<compile_context>
chip_gen: v5e
topology: v5e:2x2
jax: 0.10.0
libtpu: 0.0.40
codegen_flags: <defaults>
</compile_context>

<pallas_src>
import functools

import jax
import jax.numpy as jnp
from jax.experimental import pallas as pl
from jax.experimental.pallas import tpu as pltpu


# ----------------------------------------------------------------------------
# pltpu.roll probe (direction + lowering check); safe fallback to jnp.roll
# ----------------------------------------------------------------------------
def _roll_probe_kernel(x_ref, o_ref):
    o_ref[...] = pltpu.roll(x_ref[...], 1, axis=0)


def detect_roll_mode(nrows, nlanes=128):
    """Returns "xlu" if pltpu.roll matches jnp.roll semantics on the sublane
    axis, "xlu_flipped" if it rotates the other way, "jnp" if the probe fails
    (the kernel then uses jnp.roll == slice+concat, which always lowers)."""
    if nrows % 8 != 0:
        return "jnp"
    try:
        col = jnp.arange(nrows, dtype=jnp.float32)[:, None]
        x = col * jnp.ones((1, nlanes), jnp.float32)
        y = pl.pallas_call(
            _roll_probe_kernel,
            out_shape=jax.ShapeDtypeStruct((nrows, nlanes), jnp.float32),
        )(x)
        top = float(jax.block_until_ready(y)[0, 0])
        if top == float(nrows - 1):
            return "xlu"
        if top == 1.0:
            return "xlu_flipped"
    except Exception:
        pass
    return "jnp"


def _pick_block_batch(batch, max_bt=16):
    """Samples per grid step: amortize per-step overhead / fill MXU rows while
    keeping >= 2 grid steps so v7x's two TensorCores both get work."""
    if batch <= 1:
        return 1
    bt = max(1, min(max_bt, batch // 2))
    while batch % bt:
        bt -= 1
    return bt


# ----------------------------------------------------------------------------
# Fused kernel builder (one grid step == Bt batch elements)
# ----------------------------------------------------------------------------
def _build_kernel(*, bt, tp, t1e, n_lstm, roll_mode):
    n0 = bt * tp          # conv0/pool0 slab rows (tp = S//2 = 50 per sample)
    s1 = tp // 2          # conv1 rows emitted per sample (25)
    c1 = bt * s1
    s2 = t1e // 2         # conv2 rows emitted per sample (16)
    c2 = bt * s2

    def shift_up(y, j):
        # result[r] = y[(r + j) % n]; only rows whose r + j stays inside the
        # same sample are consumed downstream, so wrapped rows are don't-care.
        if j == 0:
            return y
        n = y.shape[0]
        if n % 8 == 0 and roll_mode == "xlu":
            return pltpu.roll(y, n - j, axis=0)        # XLU rotate (free slot)
        if n % 8 == 0 and roll_mode == "xlu_flipped":
            return pltpu.roll(y, j, axis=0)
        return jnp.roll(y, -j, axis=0)                 # slice+concat fallback

    def relu_pool_bn(acc, bst_ref):
        # conv bias + ReLU -> MaxPool1d(3, stride=1) -> eval-mode BatchNorm
        a = jnp.maximum(acc + bst_ref[0:1, :], 0.0)
        p = jnp.maximum(jnp.maximum(a, shift_up(a, 1)), shift_up(a, 2))
        return p * bst_ref[1:2, :] + bst_ref[2:3, :]

    def kernel(x_ref,                        # (bt*tp, 1536) f32 token-pair slab
               w0_ref, bst0_ref,             # (1536, 512) bf16, (3, 128) f32
               w1e_ref, w1o_ref, bst1_ref,   # (128, 256) bf16 x2, (3, 64) f32
               w2e_ref, w2o_ref, bst2_ref,   # (64, 64)/(64, 32) bf16, (3, 32) f32
               wih_ref, whh_ref, bg_ref,     # (32, 64), (16, 64), (1, 64) f32
               w1d_ref, b1d_ref, w2d_ref, b2d_ref,
               o_ref,                        # (bt, 1) f32
               h0_ref, h1_ref, xw_ref):      # VMEM scratch
        f32 = jnp.float32

        # ---- conv0: Conv1d(768,128,k=8,s=2) as ONE MXU-filling matmul over the
        #      whole batch block; 4 pair-taps combined with sublane shifts. ----
        xb = x_ref[...].astype(jnp.bfloat16)                     # cast in-kernel
        y0 = jnp.dot(xb, w0_ref[...], preferred_element_type=f32)   # [n0, 512]
        nc0 = bst0_ref.shape[1]                                  # 128
        acc0 = y0[:, 0:nc0]
        for j in range(1, w0_ref.shape[1] // nc0):               # pair taps 1..3
            acc0 = acc0 + shift_up(y0[:, j * nc0:(j + 1) * nc0], j)
        h0_ref[...] = relu_pool_bn(acc0, bst0_ref)               # [n0, 128]

        # ---- conv1: Conv1d(128,64,k=8,s=2): two stride-2 reads (even/odd rows),
        #      one wide matmul per parity, shifts combine the 4 tap groups. ----
        nc1 = bst1_ref.shape[1]                                  # 64
        te = h0_ref[pl.ds(0, c1, stride=2), :].astype(jnp.bfloat16)   # h0[2v]
        to = h0_ref[pl.ds(1, c1, stride=2), :].astype(jnp.bfloat16)   # h0[2v+1]
        ye = jnp.dot(te, w1e_ref[...], preferred_element_type=f32)    # [c1, 256]
        yo = jnp.dot(to, w1o_ref[...], preferred_element_type=f32)
        acc1 = ye[:, 0:nc1] + yo[:, 0:nc1]
        for m in range(1, w1e_ref.shape[1] // nc1):              # groups 1..3
            acc1 = (acc1 + shift_up(ye[:, m * nc1:(m + 1) * nc1], m)
                         + shift_up(yo[:, m * nc1:(m + 1) * nc1], m))
        h1v = relu_pool_bn(acc1, bst1_ref)                       # [c1, 64]

        # repack 25 rows/sample -> t1e(=32) rows/sample (even, 8-aligned) so that
        # conv2's stride-2 reads tile across samples; gap rows are zeroed.
        h1_ref[...] = jnp.zeros(h1_ref.shape, f32)
        for b in range(bt):
            h1_ref[b * t1e:b * t1e + s1, :] = h1v[b * s1:(b + 1) * s1, :]

        # ---- conv2: Conv1d(64,32,k=3,s=2) ------------------------------------
        nc2 = bst2_ref.shape[1]                                  # 32
        ue = h1_ref[pl.ds(0, c2, stride=2), :].astype(jnp.bfloat16)
        uo = h1_ref[pl.ds(1, c2, stride=2), :].astype(jnp.bfloat16)
        ze = jnp.dot(ue, w2e_ref[...], preferred_element_type=f32)    # [c2, 64]
        zo = jnp.dot(uo, w2o_ref[...], preferred_element_type=f32)    # [c2, 32]
        acc2 = ze[:, 0:nc2] + zo + shift_up(ze[:, nc2:2 * nc2], 1)
        h2v = relu_pool_bn(acc2, bst2_ref)                       # [c2, 32]

        # ---- LSTM(32 -> 16): input projection hoisted, recurrence batched ----
        xw_ref[...] = (jnp.dot(h2v, wih_ref[...], preferred_element_type=f32)
                       + bg_ref[...])                            # [c2, 64]
        hid = whh_ref.shape[0]                                   # 16
        whh = whh_ref[...]
        h = jnp.zeros((bt, hid), f32)
        c = jnp.zeros((bt, hid), f32)
        hs = []
        for t in range(n_lstm):                                  # 6 unrolled steps
            g = (xw_ref[pl.ds(t, bt, stride=s2), :]
                 + jnp.dot(h, whh, preferred_element_type=f32))  # [bt, 64]
            i_g = jax.nn.sigmoid(g[:, 0 * hid:1 * hid])
            f_g = jax.nn.sigmoid(g[:, 1 * hid:2 * hid])
            g_g = jnp.tanh(g[:, 2 * hid:3 * hid])
            o_g = jax.nn.sigmoid(g[:, 3 * hid:4 * hid])
            c = f_g * c + i_g * g_g
            h = o_g * jnp.tanh(c)
            hs.append(h)
        feats = jnp.concatenate(hs, axis=-1)                     # [bt, 96]

        # ---- dense head: Linear(96,64) -> ReLU -> Linear(64,1) -> sigmoid ----
        z = jnp.dot(feats, w1d_ref[...], preferred_element_type=f32) + b1d_ref[...]
        z = jnp.maximum(z, 0.0)
        z = jnp.dot(z, w2d_ref[...], preferred_element_type=f32) + b2d_ref[...]
        o_ref[...] = jax.nn.sigmoid(z)

    return kernel


# ----------------------------------------------------------------------------
# Wrapper (single pallas_call for the whole network)
# ----------------------------------------------------------------------------
def _full_spec(arr):
    nd = arr.ndim
    return pl.BlockSpec(arr.shape, lambda i, _nd=nd: (0,) * _nd)


def bert_base_lstm_net1_forward(x_emb, kparams, *, block_batch=None,
                                roll_mode="jnp"):
    """x_emb: [B, S, 768] stand-in for BertModel(...)[0]. Returns [B]."""
    B, S, E = x_emb.shape
    assert S % 2 == 0, "token-pair reshape needs an even sequence length"
    bt = _pick_block_batch(B) if block_batch is None else block_batch
    assert B % bt == 0
    steps = B // bt
    tp = S // 2

    # static conv/pool chain lengths (must land on Linear(96, .))
    t0 = (S - 8) // 2 + 1          # conv0 : 47
    p0 = t0 - 2                    # pool0 : 45
    t1 = (p0 - 8) // 2 + 1         # conv1 : 19
    p1 = t1 - 2                    # pool1 : 17
    t2 = (p1 - 3) // 2 + 1         # conv2 : 8
    p2 = t2 - 2                    # pool2 : 6  -> 6*16 == 96
    assert p2 * kparams["w_hh"].shape[0] == kparams["w1d"].shape[0]

    t1e = 32                       # per-sample scratch extent for conv1 output
    assert t1e % 2 == 0 and tp // 2 <= t1e and p1 <= t1e and p2 <= t1e // 2

    # free metadata reshape: [B, S, 768] -> [steps, bt*(S//2), 1536]
    x3 = x_emb.reshape(steps, bt * tp, 2 * E)

    kernel = _build_kernel(bt=bt, tp=tp, t1e=t1e, n_lstm=p2, roll_mode=roll_mode)

    weight_names = ("w0", "bst0", "w1e", "w1o", "bst1", "w2e", "w2o", "bst2",
                    "w_ih", "w_hh", "b_g", "w1d", "b1d", "w2d", "b2d")
    weights = [kparams[k] for k in weight_names]

    out = pl.pallas_call(
        kernel,
        out_shape=jax.ShapeDtypeStruct((steps, bt, 1), jnp.float32),
        grid=(steps,),
        in_specs=[pl.BlockSpec((None, bt * tp, 2 * E), lambda i: (i, 0, 0))]
                 + [_full_spec(w) for w in weights],
        out_specs=pl.BlockSpec((None, bt, 1), lambda i: (i, 0, 0)),
        scratch_shapes=[
            pltpu.VMEM((bt * tp, 128), jnp.float32),          # conv0 block (post BN)
            pltpu.VMEM((bt * t1e, 64), jnp.float32),          # conv1 block (repacked)
            pltpu.VMEM((bt * (t1e // 2), 64), jnp.float32),   # LSTM x@W_ih (+bias)
        ],
        compiler_params=pltpu.CompilerParams(
            dimension_semantics=("parallel",)),               # blocks across TCs
    )(x3, *weights)
    return out.reshape(-1)                                    # torch .view(-1)


# ----------------------------------------------------------------------------
# Pure-JAX reference (same math / dtype choices, no Pallas)
# ----------------------------------------------------------------------------
def reference_forward(x_emb, params):
    hp = jax.lax.Precision.HIGHEST
    h = x_emb
    for name in ("conv0", "conv1", "conv2"):
        p = params[name]
        w = p["w"]                                       # [K, Cin, Cout], k-major
        ksize, stride = w.shape[0], p["stride"]
        _, L, cin = h.shape
        T = (L - ksize) // stride + 1
        cols = [h[:, k: k + stride * (T - 1) + 1: stride, :] for k in range(ksize)]
        patches = jnp.concatenate(cols, axis=-1).astype(w.dtype)   # [B, T, K*Cin]
        w_flat = w.reshape(ksize * cin, -1)
        y = jax.lax.dot_general(patches, w_flat, (((2,), (0,)), ((), ())),
                                precision=hp, preferred_element_type=jnp.float32)
        bias, scale, shift = p["bst"][0], p["bst"][1], p["bst"][2]
        y = jnp.maximum(y + bias, 0.0)                              # conv -> relu
        y = jnp.maximum(jnp.maximum(y[:, 0:T - 2], y[:, 1:T - 1]), y[:, 2:T])
        h = y * scale + shift                                       # BN (eval); dropout = id
    lp, dp = params["lstm"], params["dense"]
    B, L, _ = h.shape
    H = lp["w_hh"].shape[0]
    hs = jnp.zeros((B, H), jnp.float32)
    cs = jnp.zeros((B, H), jnp.float32)
    outs = []
    for t in range(L):
        g = (jnp.dot(h[:, t, :], lp["w_ih"], precision=hp)
             + jnp.dot(hs, lp["w_hh"], precision=hp) + lp["b"])
        i_g = jax.nn.sigmoid(g[:, 0:H]); f_g = jax.nn.sigmoid(g[:, H:2 * H])
        g_g = jnp.tanh(g[:, 2 * H:3 * H]); o_g = jax.nn.sigmoid(g[:, 3 * H:4 * H])
        cs = f_g * cs + i_g * g_g
        hs = o_g * jnp.tanh(cs)
        outs.append(hs)
    feats = jnp.concatenate(outs, axis=-1)                          # [B, 96]
    z = jnp.maximum(jnp.dot(feats, dp["w1"], precision=hp) + dp["b1"], 0.0)
    z = jnp.dot(z, dp["w2"], precision=hp) + dp["b2"]
    return jax.nn.sigmoid(z).reshape(-1)


# ----------------------------------------------------------------------------
# Deterministic synthetic parameters (shapes from the module __init__)
# ----------------------------------------------------------------------------
def init_params(key):
    eps = 1e-5

    def conv_bn(subkey, cin, cout, ksize, stride):
        k1, k2, k3, k4, k5, k6 = jax.random.split(subkey, 6)
        fan = float(cin * ksize)
        # canonical k-major layout [K, Cin, Cout]
        #   ( == torch Conv1d weight [Cout, Cin, K].permute(2, 1, 0) )
        w = (jax.random.normal(k1, (ksize, cin, cout), jnp.float32)
             / jnp.sqrt(fan)).astype(jnp.bfloat16)
        b = 0.01 * jax.random.normal(k2, (cout,), jnp.float32)
        gamma = 1.0 + 0.1 * jax.random.normal(k3, (cout,), jnp.float32)
        beta = 0.1 * jax.random.normal(k4, (cout,), jnp.float32)
        running_mean = 0.1 * jax.random.normal(k5, (cout,), jnp.float32)
        running_var = 1.0 + 0.1 * jax.random.uniform(k6, (cout,), jnp.float32)
        scale = gamma / jnp.sqrt(running_var + eps)
        shift = beta - running_mean * scale
        bst = jnp.stack([b, scale, shift], axis=0)        # [3, cout] f32
        return dict(w=w, bst=bst, stride=stride)

    keys = jax.random.split(key, 8)
    params = {
        "conv0": conv_bn(keys[0], 768, 128, 8, 2),   # nn.Conv1d(768,128,8,2)+BN(128)
        "conv1": conv_bn(keys[1], 128, 64, 8, 2),    # nn.Conv1d(128,64,8,2)+BN(64)
        "conv2": conv_bn(keys[2], 64, 32, 3, 2),     # nn.Conv1d(64,32,3,2)+BN(32)
    }
    H, I = 16, 32
    s = 1.0 / jnp.sqrt(float(H))
    params["lstm"] = dict(   # nn.LSTM(32, 16, num_layers=1, batch_first=True)
        w_ih=s * jax.random.normal(keys[3], (I, 4 * H), jnp.float32),
        w_hh=s * jax.random.normal(keys[4], (H, 4 * H), jnp.float32),
        b=s * jax.random.normal(keys[5], (1, 4 * H), jnp.float32),  # b_ih + b_hh
    )
    params["dense"] = dict(  # nn.Linear(96, 64), nn.Linear(64, 1)
        w1=jax.random.normal(keys[6], (96, 64), jnp.float32) / jnp.sqrt(96.0),
        b1=jnp.zeros((1, 64), jnp.float32),
        w2=jax.random.normal(keys[7], (64, 1), jnp.float32) / 8.0,
        b2=jnp.zeros((1, 1), jnp.float32),
    )
    return params


def prepare_kernel_params(params):
    """Repack canonical (torch-like) weights into the kernel's matmul layouts."""
    c0, c1, c2 = params["conv0"], params["conv1"], params["conv2"]
    w0 = c0["w"]                                     # [8, 768, 128] bf16
    # pair-tap j = taps (2j, 2j+1) stacked along K; 4 pair-taps concatenated along N
    w0_pair = jnp.concatenate(
        [w0[2 * j:2 * j + 2].reshape(2 * w0.shape[1], w0.shape[2])
         for j in range(w0.shape[0] // 2)], axis=1)  # [1536, 512]
    w1 = c1["w"]                                     # [8, 128, 64]
    w1e = jnp.concatenate([w1[k] for k in range(0, w1.shape[0], 2)], axis=1)
    w1o = jnp.concatenate([w1[k] for k in range(1, w1.shape[0], 2)], axis=1)
    w2 = c2["w"]                                     # [3, 64, 32]
    w2e = jnp.concatenate([w2[0], w2[2]], axis=1)    # taps 0 and 2
    w2o = w2[1]                                      # tap 1
    lp, dp = params["lstm"], params["dense"]
    return dict(w0=w0_pair, bst0=c0["bst"],
                w1e=w1e, w1o=w1o, bst1=c1["bst"],
                w2e=w2e, w2o=w2o, bst2=c2["bst"],
                w_ih=lp["w_ih"], w_hh=lp["w_hh"], b_g=lp["b"],
                w1d=dp["w1"], b1d=dp["b1"], w2d=dp["w2"], b2d=dp["b2"])


# ----------------------------------------------------------------------------
if __name__ == "__main__":
    key = jax.random.PRNGKey(0)
    kx, kp = jax.random.split(key)

    # seq length 100 -> conv/pool chain gives final length 6, so 6*16 = 96
    # matches nn.Linear(in_features=96, ...) exactly.  B=8 exercises batch
    # blocking (Bt=4, two grid steps).
    B, S, E = 8, 100, 768
    x_emb = jax.random.normal(kx, (B, S, E), jnp.float32)
    params = init_params(kp)
    kparams = prepare_kernel_params(params)

    bt = _pick_block_batch(B)
    roll_mode = detect_roll_mode(bt * (S // 2))

    fwd = jax.jit(functools.partial(
        bert_base_lstm_net1_forward, kparams=kparams,
        block_batch=bt, roll_mode=roll_mode))
    out = jax.block_until_ready(fwd(x_emb))

    ref_fn = jax.jit(functools.partial(reference_forward, params=params))
    ref = jax.block_until_ready(ref_fn(x_emb))

    assert out.shape == (B,), out.shape
    assert bool(jnp.all(jnp.isfinite(out)))
    assert bool(jnp.all((out >= 0.0) & (out <= 1.0)))       # sigmoid output
    err = float(jnp.max(jnp.abs(out - ref)))
    # generous tolerance: conv matmuls use bf16 operands on both sides
    assert err < 2e-2, (err, out, ref)
    print("KERNEL_OK")
</pallas_src>

<mosaic_0001>
module attributes {stable_mosaic.version = 11 : i64} {
  func.func @_roll_probe_kernel(%arg0: memref<200x128xf32, #tpu.memory_space<vmem>>, %arg1: memref<200x128xf32, #tpu.memory_space<vmem>>) attributes {dimension_semantics = [], scalar_prefetch = 0 : i64, scratch_operands = 0 : i64, tpu.core_type = #tpu.core_type<tc>} {
    %c0 = arith.constant 0 : index
    %c0_0 = arith.constant 0 : index
    %0 = vector.load %arg0[%c0, %c0_0] : memref<200x128xf32, #tpu.memory_space<vmem>>, vector<200x128xf32>
    %c1_i32 = arith.constant 1 : i32
    %1 = tpu.dynamic_rotate %0 by %c1_i32 dim 0 : vector<200x128xf32>, i32 -> vector<200x128xf32>
    %c0_1 = arith.constant 0 : index
    %c0_2 = arith.constant 0 : index
    %2 = vector.load %arg1[%c0_1, %c0_2] : memref<200x128xf32, #tpu.memory_space<vmem>>, vector<200x128xf32>
    tpu.vector_store %arg1[%c0_1, %c0_2], %1 {strides = array<i32>} : memref<200x128xf32, #tpu.memory_space<vmem>>, vector<200x128xf32>,
    return
  }
}

module attributes {stable_mosaic.version = 11 : i64} {
  func.func @kernel(%arg0: i32, %arg1: memref<1x200x1536xf32, #tpu.memory_space<vmem>>, %arg2: memref<1536x512xbf16, #tpu.memory_space<vmem>>, %arg3: memref<3x128xf32, #tpu.memory_space<vmem>>, %arg4: memref<128x256xbf16, #tpu.memory_space<vmem>>, %arg5: memref<128x256xbf16, #tpu.memory_space<vmem>>, %arg6: memref<3x64xf32, #tpu.memory_space<vmem>>, %arg7: memref<64x64xbf16, #tpu.memory_space<vmem>>, %arg8: memref<64x32xbf16, #tpu.memory_space<vmem>>, %arg9: memref<3x32xf32, #tpu.memory_space<vmem>>, %arg10: memref<32x64xf32, #tpu.memory_space<vmem>>, %arg11: memref<16x64xf32, #tpu.memory_space<vmem>>, %arg12: memref<1x64xf32, #tpu.memory_space<vmem>>, %arg13: memref<96x64xf32, #tpu.memory_space<vmem>>, %arg14: memref<1x64xf32, #tpu.memory_space<vmem>>, %arg15: memref<64x1xf32, #tpu.memory_space<vmem>>, %arg16: memref<1x1xf32, #tpu.memory_space<vmem>>, %arg17: memref<1x4x1xf32, #tpu.memory_space<vmem>>, %arg18: memref<200x128xf32, #tpu.memory_space<vmem>>, %arg19: memref<128x64xf32, #tpu.memory_space<vmem>>, %arg20: memref<64x64xf32, #tpu.memory_space<vmem>>) attributes {dimension_semantics = [#tpu.dimension_semantics<parallel>], iteration_bounds = array<i64: 2>, scalar_prefetch = 0 : i64, scratch_operands = 3 : i64, tpu.core_type = #tpu.core_type<tc>, window_params = [{transform_indices = @transform_0, window_bounds = array<i64: 1, 200, 1536>}, {pipeline_mode = #tpu.pipeline_mode<synchronous>, transform_indices = @transform_1, window_bounds = array<i64: 1536, 512>}, {pipeline_mode = #tpu.pipeline_mode<synchronous>, transform_indices = @transform_2, window_bounds = array<i64: 3, 128>}, {pipeline_mode = #tpu.pipeline_mode<synchronous>, transform_indices = @transform_3, window_bounds = array<i64: 128, 256>}, {pipeline_mode = #tpu.pipeline_mode<synchronous>, transform_indices = @transform_4, window_bounds = array<i64: 128, 256>}, {pipeline_mode = #tpu.pipeline_mode<synchronous>, transform_indices = @transform_5, window_bounds = array<i64: 3, 64>}, {pipeline_mode = #tpu.pipeline_mode<synchronous>, transform_indices = @transform_6, window_bounds = array<i64: 64, 64>}, {pipeline_mode = #tpu.pipeline_mode<synchronous>, transform_indices = @transform_7, window_bounds = array<i64: 64, 32>}, {pipeline_mode = #tpu.pipeline_mode<synchronous>, transform_indices = @transform_8, window_bounds = array<i64: 3, 32>}, {pipeline_mode = #tpu.pipeline_mode<synchronous>, transform_indices = @transform_9, window_bounds = array<i64: 32, 64>}, {pipeline_mode = #tpu.pipeline_mode<synchronous>, transform_indices = @transform_10, window_bounds = array<i64: 16, 64>}, {pipeline_mode = #tpu.pipeline_mode<synchronous>, transform_indices = @transform_11, window_bounds = array<i64: 1, 64>}, {pipeline_mode = #tpu.pipeline_mode<synchronous>, transform_indices = @transform_12, window_bounds = array<i64: 96, 64>}, {pipeline_mode = #tpu.pipeline_mode<synchronous>, transform_indices = @transform_13, window_bounds = array<i64: 1, 64>}, {pipeline_mode = #tpu.pipeline_mode<synchronous>, transform_indices = @transform_14, window_bounds = array<i64: 64, 1>}, {pipeline_mode = #tpu.pipeline_mode<synchronous>, transform_indices = @transform_15, window_bounds = array<i64: 1, 1>}, {transform_indices = @transform_16, window_bounds = array<i64: 1, 4, 1>}]} {
    %c0 = arith.constant 0 : index
    %c0_0 = arith.constant 0 : index
    %c0_1 = arith.constant 0 : index
    %0 = vector.load %arg1[%c0, %c0_0, %c0_1] : memref<1x200x1536xf32, #tpu.memory_space<vmem>>, vector<1x200x1536xf32>
    %1 = vector.shape_cast %0 : vector<1x200x1536xf32> to vector<200x1536xf32>
    %2 = arith.truncf %1 : vector<200x1536xf32> to vector<200x1536xbf16>
    %c0_2 = arith.constant 0 : index
    %c0_3 = arith.constant 0 : index
    %3 = vector.load %arg2[%c0_2, %c0_3] : memref<1536x512xbf16, #tpu.memory_space<vmem>>, vector<1536x512xbf16>
    %cst = arith.constant dense<0.000000e+00> : vector<200x512xf32>
    %4 = tpu.matmul %2, %3, %cst {dimension_numbers = #tpu.dot_dimension_numbers<[1], [0], [0], [1], [0, 0, 1, 1], [], []>} : vector<200x1536xbf16>, vector<1536x512xbf16>, vector<200x512xf32> -> vector<200x512xf32>
    %5 = vector.extract_strided_slice %4 {offsets = [0, 0], sizes = [200, 128], strides = [1, 1]} : vector<200x512xf32> to vector<200x128xf32>
    %6 = vector.extract_strided_slice %4 {offsets = [0, 128], sizes = [200, 128], strides = [1, 1]} : vector<200x512xf32> to vector<200x128xf32>
    %7 = vector.extract_strided_slice %6 {offsets = [1, 0], sizes = [199, 128], strides = [1, 1]} : vector<200x128xf32> to vector<199x128xf32>
    %8 = vector.extract_strided_slice %6 {offsets = [0, 0], sizes = [1, 128], strides = [1, 1]} : vector<200x128xf32> to vector<1x128xf32>
    %9 = tpu.concatenate %7, %8 in 0 : vector<199x128xf32>, vector<1x128xf32> -> vector<200x128xf32>
    %10 = arith.addf %5, %9 : vector<200x128xf32>
    %11 = vector.extract_strided_slice %4 {offsets = [0, 256], sizes = [200, 128], strides = [1, 1]} : vector<200x512xf32> to vector<200x128xf32>
    %12 = vector.extract_strided_slice %11 {offsets = [2, 0], sizes = [198, 128], strides = [1, 1]} : vector<200x128xf32> to vector<198x128xf32>
    %13 = vector.extract_strided_slice %11 {offsets = [0, 0], sizes = [2, 128], strides = [1, 1]} : vector<200x128xf32> to vector<2x128xf32>
    %14 = tpu.concatenate %12, %13 in 0 : vector<198x128xf32>, vector<2x128xf32> -> vector<200x128xf32>
    %15 = arith.addf %10, %14 : vector<200x128xf32>
    %16 = vector.extract_strided_slice %4 {offsets = [0, 384], sizes = [200, 128], strides = [1, 1]} : vector<200x512xf32> to vector<200x128xf32>
    %17 = vector.extract_strided_slice %16 {offsets = [3, 0], sizes = [197, 128], strides = [1, 1]} : vector<200x128xf32> to vector<197x128xf32>
    %18 = vector.extract_strided_slice %16 {offsets = [0, 0], sizes = [3, 128], strides = [1, 1]} : vector<200x128xf32> to vector<3x128xf32>
    %19 = tpu.concatenate %17, %18 in 0 : vector<197x128xf32>, vector<3x128xf32> -> vector<200x128xf32>
    %20 = arith.addf %15, %19 : vector<200x128xf32>
    %c0_4 = arith.constant 0 : index
    %c0_5 = arith.constant 0 : index
    %21 = vector.load %arg3[%c0_4, %c0_5] : memref<3x128xf32, #tpu.memory_space<vmem>>, vector<1x128xf32>
    %22 = vector.broadcast %21 : vector<1x128xf32> to vector<200x128xf32>
    %23 = arith.addf %20, %22 : vector<200x128xf32>
    %cst_6 = arith.constant 0.000000e+00 : f32
    %24 = vector.broadcast %cst_6 : f32 to vector<200x128xf32>
    %25 = arith.maximumf %23, %24 : vector<200x128xf32>
    %26 = vector.extract_strided_slice %25 {offsets = [1, 0], sizes = [199, 128], strides = [1, 1]} : vector<200x128xf32> to vector<199x128xf32>
    %27 = vector.extract_strided_slice %25 {offsets = [0, 0], sizes = [1, 128], strides = [1, 1]} : vector<200x128xf32> to vector<1x128xf32>
    %28 = tpu.concatenate %26, %27 in 0 : vector<199x128xf32>, vector<1x128xf32> -> vector<200x128xf32>
    %29 = arith.maximumf %25, %28 : vector<200x128xf32>
    %30 = vector.extract_strided_slice %25 {offsets = [2, 0], sizes = [198, 128], strides = [1, 1]} : vector<200x128xf32> to vector<198x128xf32>
    %31 = vector.extract_strided_slice %25 {offsets = [0, 0], sizes = [2, 128], strides = [1, 1]} : vector<200x128xf32> to vector<2x128xf32>
    %32 = tpu.concatenate %30, %31 in 0 : vector<198x128xf32>, vector<2x128xf32> -> vector<200x128xf32>
    %33 = arith.maximumf %29, %32 : vector<200x128xf32>
    %c1 = arith.constant 1 : index
    %c0_7 = arith.constant 0 : index
    %34 = vector.load %arg3[%c1, %c0_7] : memref<3x128xf32, #tpu.memory_space<vmem>>, vector<1x128xf32>
    %35 = vector.broadcast %34 : vector<1x128xf32> to vector<200x128xf32>
    %36 = arith.mulf %33, %35 : vector<200x128xf32>
    %c2 = arith.constant 2 : index
    %c0_8 = arith.constant 0 : index
    %37 = vector.load %arg3[%c2, %c0_8] : memref<3x128xf32, #tpu.memory_space<vmem>>, vector<1x128xf32>
    %38 = vector.broadcast %37 : vector<1x128xf32> to vector<200x128xf32>
    %39 = arith.addf %36, %38 : vector<200x128xf32>
    %c0_9 = arith.constant 0 : index
    %c0_10 = arith.constant 0 : index
    %40 = vector.load %arg18[%c0_9, %c0_10] : memref<200x128xf32, #tpu.memory_space<vmem>>, vector<200x128xf32>
    tpu.vector_store %arg18[%c0_9, %c0_10], %39 {strides = array<i32>} : memref<200x128xf32, #tpu.memory_space<vmem>>, vector<200x128xf32>,
    %c0_11 = arith.constant 0 : index
    %c0_12 = arith.constant 0 : index
    %41 = tpu.strided_load %arg18[%c0_11, %c0_12] {strides = array<i32: 2, 1>} : memref<200x128xf32, #tpu.memory_space<vmem>>, vector<100x128xf32>
    %42 = arith.truncf %41 : vector<100x128xf32> to vector<100x128xbf16>
    %c1_13 = arith.constant 1 : index
    %c0_14 = arith.constant 0 : index
    %43 = tpu.strided_load %arg18[%c1_13, %c0_14] {strides = array<i32: 2, 1>} : memref<200x128xf32, #tpu.memory_space<vmem>>, vector<100x128xf32>
    %44 = arith.truncf %43 : vector<100x128xf32> to vector<100x128xbf16>
    %c0_15 = arith.constant 0 : index
    %c0_16 = arith.constant 0 : index
    %45 = vector.load %arg4[%c0_15, %c0_16] : memref<128x256xbf16, #tpu.memory_space<vmem>>, vector<128x256xbf16>
    %cst_17 = arith.constant dense<0.000000e+00> : vector<100x256xf32>
    %46 = tpu.matmul %42, %45, %cst_17 {dimension_numbers = #tpu.dot_dimension_numbers<[1], [0], [0], [1], [0, 0, 1, 1], [], []>} : vector<100x128xbf16>, vector<128x256xbf16>, vector<100x256xf32> -> vector<100x256xf32>
    %c0_18 = arith.constant 0 : index
    %c0_19 = arith.constant 0 : index
    %47 = vector.load %arg5[%c0_18, %c0_19] : memref<128x256xbf16, #tpu.memory_space<vmem>>, vector<128x256xbf16>
    %cst_20 = arith.constant dense<0.000000e+00> : vector<100x256xf32>
    %48 = tpu.matmul %44, %47, %cst_20 {dimension_numbers = #tpu.dot_dimension_numbers<[1], [0], [0], [1], [0, 0, 1, 1], [], []>} : vector<100x128xbf16>, vector<128x256xbf16>, vector<100x256xf32> -> vector<100x256xf32>
    %49 = vector.extract_strided_slice %46 {offsets = [0, 0], sizes = [100, 64], strides = [1, 1]} : vector<100x256xf32> to vector<100x64xf32>
    %50 = vector.extract_strided_slice %48 {offsets = [0, 0], sizes = [100, 64], strides = [1, 1]} : vector<100x256xf32> to vector<100x64xf32>
    %51 = arith.addf %49, %50 : vector<100x64xf32>
    %52 = vector.extract_strided_slice %46 {offsets = [0, 64], sizes = [100, 64], strides = [1, 1]} : vector<100x256xf32> to vector<100x64xf32>
    %53 = vector.extract_strided_slice %52 {offsets = [1, 0], sizes = [99, 64], strides = [1, 1]} : vector<100x64xf32> to vector<99x64xf32>
    %54 = vector.extract_strided_slice %52 {offsets = [0, 0], sizes = [1, 64], strides = [1, 1]} : vector<100x64xf32> to vector<1x64xf32>
    %55 = tpu.concatenate %53, %54 in 0 : vector<99x64xf32>, vector<1x64xf32> -> vector<100x64xf32>
    %56 = arith.addf %51, %55 : vector<100x64xf32>
    %57 = vector.extract_strided_slice %48 {offsets = [0, 64], sizes = [100, 64], strides = [1, 1]} : vector<100x256xf32> to vector<100x64xf32>
    %58 = vector.extract_strided_slice %57 {offsets = [1, 0], sizes = [99, 64], strides = [1, 1]} : vector<100x64xf32> to vector<99x64xf32>
    %59 = vector.extract_strided_slice %57 {offsets = [0, 0], sizes = [1, 64], strides = [1, 1]} : vector<100x64xf32> to vector<1x64xf32>
    %60 = tpu.concatenate %58, %59 in 0 : vector<99x64xf32>, vector<1x64xf32> -> vector<100x64xf32>
    %61 = arith.addf %56, %60 : vector<100x64xf32>
    %62 = vector.extract_strided_slice %46 {offsets = [0, 128], sizes = [100, 64], strides = [1, 1]} : vector<100x256xf32> to vector<100x64xf32>
    %63 = vector.extract_strided_slice %62 {offsets = [2, 0], sizes = [98, 64], strides = [1, 1]} : vector<100x64xf32> to vector<98x64xf32>
    %64 = vector.extract_strided_slice %62 {offsets = [0, 0], sizes = [2, 64], strides = [1, 1]} : vector<100x64xf32> to vector<2x64xf32>
    %65 = tpu.concatenate %63, %64 in 0 : vector<98x64xf32>, vector<2x64xf32> -> vector<100x64xf32>
    %66 = arith.addf %61, %65 : vector<100x64xf32>
    %67 = vector.extract_strided_slice %48 {offsets = [0, 128], sizes = [100, 64], strides = [1, 1]} : vector<100x256xf32> to vector<100x64xf32>
    %68 = vector.extract_strided_slice %67 {offsets = [2, 0], sizes = [98, 64], strides = [1, 1]} : vector<100x64xf32> to vector<98x64xf32>
    %69 = vector.extract_strided_slice %67 {offsets = [0, 0], sizes = [2, 64], strides = [1, 1]} : vector<100x64xf32> to vector<2x64xf32>
    %70 = tpu.concatenate %68, %69 in 0 : vector<98x64xf32>, vector<2x64xf32> -> vector<100x64xf32>
    %71 = arith.addf %66, %70 : vector<100x64xf32>
    %72 = vector.extract_strided_slice %46 {offsets = [0, 192], sizes = [100, 64], strides = [1, 1]} : vector<100x256xf32> to vector<100x64xf32>
    %73 = vector.extract_strided_slice %72 {offsets = [3, 0], sizes = [97, 64], strides = [1, 1]} : vector<100x64xf32> to vector<97x64xf32>
    %74 = vector.extract_strided_slice %72 {offsets = [0, 0], sizes = [3, 64], strides = [1, 1]} : vector<100x64xf32> to vector<3x64xf32>
    %75 = tpu.concatenate %73, %74 in 0 : vector<97x64xf32>, vector<3x64xf32> -> vector<100x64xf32>
    %76 = arith.addf %71, %75 : vector<100x64xf32>
    %77 = vector.extract_strided_slice %48 {offsets = [0, 192], sizes = [100, 64], strides = [1, 1]} : vector<100x256xf32> to vector<100x64xf32>
    %78 = vector.extract_strided_slice %77 {offsets = [3, 0], sizes = [97, 64], strides = [1, 1]} : vector<100x64xf32> to vector<97x64xf32>
    %79 = vector.extract_strided_slice %77 {offsets = [0, 0], sizes = [3, 64], strides = [1, 1]} : vector<100x64xf32> to vector<3x64xf32>
    %80 = tpu.concatenate %78, %79 in 0 : vector<97x64xf32>, vector<3x64xf32> -> vector<100x64xf32>
    %81 = arith.addf %76, %80 : vector<100x64xf32>
    %c0_21 = arith.constant 0 : index
    %c0_22 = arith.constant 0 : index
    %82 = vector.load %arg6[%c0_21, %c0_22] : memref<3x64xf32, #tpu.memory_space<vmem>>, vector<1x64xf32>
    %83 = vector.broadcast %82 : vector<1x64xf32> to vector<100x64xf32>
    %84 = arith.addf %81, %83 : vector<100x64xf32>
    %cst_23 = arith.constant 0.000000e+00 : f32
    %85 = vector.broadcast %cst_23 : f32 to vector<100x64xf32>
    %86 = arith.maximumf %84, %85 : vector<100x64xf32>
    %87 = vector.extract_strided_slice %86 {offsets = [1, 0], sizes = [99, 64], strides = [1, 1]} : vector<100x64xf32> to vector<99x64xf32>
    %88 = vector.extract_strided_slice %86 {offsets = [0, 0], sizes = [1, 64], strides = [1, 1]} : vector<100x64xf32> to vector<1x64xf32>
    %89 = tpu.concatenate %87, %88 in 0 : vector<99x64xf32>, vector<1x64xf32> -> vector<100x64xf32>
    %90 = arith.maximumf %86, %89 : vector<100x64xf32>
    %91 = vector.extract_strided_slice %86 {offsets = [2, 0], sizes = [98, 64], strides = [1, 1]} : vector<100x64xf32> to vector<98x64xf32>
    %92 = vector.extract_strided_slice %86 {offsets = [0, 0], sizes = [2, 64], strides = [1, 1]} : vector<100x64xf32> to vector<2x64xf32>
    %93 = tpu.concatenate %91, %92 in 0 : vector<98x64xf32>, vector<2x64xf32> -> vector<100x64xf32>
    %94 = arith.maximumf %90, %93 : vector<100x64xf32>
    %c1_24 = arith.constant 1 : index
    %c0_25 = arith.constant 0 : index
    %95 = vector.load %arg6[%c1_24, %c0_25] : memref<3x64xf32, #tpu.memory_space<vmem>>, vector<1x64xf32>
    %96 = vector.broadcast %95 : vector<1x64xf32> to vector<100x64xf32>
    %97 = arith.mulf %94, %96 : vector<100x64xf32>
    %c2_26 = arith.constant 2 : index
    %c0_27 = arith.constant 0 : index
    %98 = vector.load %arg6[%c2_26, %c0_27] : memref<3x64xf32, #tpu.memory_space<vmem>>, vector<1x64xf32>
    %99 = vector.broadcast %98 : vector<1x64xf32> to vector<100x64xf32>
    %100 = arith.addf %97, %99 : vector<100x64xf32>
    %cst_28 = arith.constant 0.000000e+00 : f32
    %101 = vector.broadcast %cst_28 : f32 to vector<128x64xf32>
    %c0_29 = arith.constant 0 : index
    %c0_30 = arith.constant 0 : index
    %102 = vector.load %arg19[%c0_29, %c0_30] : memref<128x64xf32, #tpu.memory_space<vmem>>, vector<128x64xf32>
    tpu.vector_store %arg19[%c0_29, %c0_30], %101 {strides = array<i32>} : memref<128x64xf32, #tpu.memory_space<vmem>>, vector<128x64xf32>,
    %103 = vector.extract_strided_slice %100 {offsets = [0, 0], sizes = [25, 64], strides = [1, 1]} : vector<100x64xf32> to vector<25x64xf32>
    %c0_31 = arith.constant 0 : index
    %c0_32 = arith.constant 0 : index
    %104 = vector.load %arg19[%c0_31, %c0_32] : memref<128x64xf32, #tpu.memory_space<vmem>>, vector<25x64xf32>
    tpu.vector_store %arg19[%c0_31, %c0_32], %103 {strides = array<i32>} : memref<128x64xf32, #tpu.memory_space<vmem>>, vector<25x64xf32>,
    %105 = vector.extract_strided_slice %100 {offsets = [25, 0], sizes = [25, 64], strides = [1, 1]} : vector<100x64xf32> to vector<25x64xf32>
    %c32 = arith.constant 32 : index
    %c0_33 = arith.constant 0 : index
    %106 = vector.load %arg19[%c32, %c0_33] : memref<128x64xf32, #tpu.memory_space<vmem>>, vector<25x64xf32>
    tpu.vector_store %arg19[%c32, %c0_33], %105 {strides = array<i32>} : memref<128x64xf32, #tpu.memory_space<vmem>>, vector<25x64xf32>,
    %107 = vector.extract_strided_slice %100 {offsets = [50, 0], sizes = [25, 64], strides = [1, 1]} : vector<100x64xf32> to vector<25x64xf32>
    %c64 = arith.constant 64 : index
    %c0_34 = arith.constant 0 : index
    %108 = vector.load %arg19[%c64, %c0_34] : memref<128x64xf32, #tpu.memory_space<vmem>>, vector<25x64xf32>
    tpu.vector_store %arg19[%c64, %c0_34], %107 {strides = array<i32>} : memref<128x64xf32, #tpu.memory_space<vmem>>, vector<25x64xf32>,
    %109 = vector.extract_strided_slice %100 {offsets = [75, 0], sizes = [25, 64], strides = [1, 1]} : vector<100x64xf32> to vector<25x64xf32>
    %c96 = arith.constant 96 : index
    %c0_35 = arith.constant 0 : index
    %110 = vector.load %arg19[%c96, %c0_35] : memref<128x64xf32, #tpu.memory_space<vmem>>, vector<25x64xf32>
    tpu.vector_store %arg19[%c96, %c0_35], %109 {strides = array<i32>} : memref<128x64xf32, #tpu.memory_space<vmem>>, vector<25x64xf32>,
    %c0_36 = arith.constant 0 : index
    %c0_37 = arith.constant 0 : index
    %111 = tpu.strided_load %arg19[%c0_36, %c0_37] {strides = array<i32: 2, 1>} : memref<128x64xf32, #tpu.memory_space<vmem>>, vector<64x64xf32>
    %112 = arith.truncf %111 : vector<64x64xf32> to vector<64x64xbf16>
    %c1_38 = arith.constant 1 : index
    %c0_39 = arith.constant 0 : index
    %113 = tpu.strided_load %arg19[%c1_38, %c0_39] {strides = array<i32: 2, 1>} : memref<128x64xf32, #tpu.memory_space<vmem>>, vector<64x64xf32>
    %114 = arith.truncf %113 : vector<64x64xf32> to vector<64x64xbf16>
    %c0_40 = arith.constant 0 : index
    %c0_41 = arith.constant 0 : index
    %115 = vector.load %arg7[%c0_40, %c0_41] : memref<64x64xbf16, #tpu.memory_space<vmem>>, vector<64x64xbf16>
    %cst_42 = arith.constant dense<0.000000e+00> : vector<64x64xf32>
    %116 = tpu.matmul %112, %115, %cst_42 {dimension_numbers = #tpu.dot_dimension_numbers<[1], [0], [0], [1], [0, 0, 1, 1], [], []>} : vector<64x64xbf16>, vector<64x64xbf16>, vector<64x64xf32> -> vector<64x64xf32>
    %c0_43 = arith.constant 0 : index
    %c0_44 = arith.constant 0 : index
    %117 = vector.load %arg8[%c0_43, %c0_44] : memref<64x32xbf16, #tpu.memory_space<vmem>>, vector<64x32xbf16>
    %cst_45 = arith.constant dense<0.000000e+00> : vector<64x32xf32>
    %118 = tpu.matmul %114, %117, %cst_45 {dimension_numbers = #tpu.dot_dimension_numbers<[1], [0], [0], [1], [0, 0, 1, 1], [], []>} : vector<64x64xbf16>, vector<64x32xbf16>, vector<64x32xf32> -> vector<64x32xf32>
    %119 = vector.extract_strided_slice %116 {offsets = [0, 0], sizes = [64, 32], strides = [1, 1]} : vector<64x64xf32> to vector<64x32xf32>
    %120 = arith.addf %119, %118 : vector<64x32xf32>
    %121 = vector.extract_strided_slice %116 {offsets = [0, 32], sizes = [64, 32], strides = [1, 1]} : vector<64x64xf32> to vector<64x32xf32>
    %122 = vector.extract_strided_slice %121 {offsets = [1, 0], sizes = [63, 32], strides = [1, 1]} : vector<64x32xf32> to vector<63x32xf32>
    %123 = vector.extract_strided_slice %121 {offsets = [0, 0], sizes = [1, 32], strides = [1, 1]} : vector<64x32xf32> to vector<1x32xf32>
    %124 = tpu.concatenate %122, %123 in 0 : vector<63x32xf32>, vector<1x32xf32> -> vector<64x32xf32>
    %125 = arith.addf %120, %124 : vector<64x32xf32>
    %c0_46 = arith.constant 0 : index
    %c0_47 = arith.constant 0 : index
    %126 = vector.load %arg9[%c0_46, %c0_47] : memref<3x32xf32, #tpu.memory_space<vmem>>, vector<1x32xf32>
    %127 = vector.broadcast %126 : vector<1x32xf32> to vector<64x32xf32>
    %128 = arith.addf %125, %127 : vector<64x32xf32>
    %cst_48 = arith.constant 0.000000e+00 : f32
    %129 = vector.broadcast %cst_48 : f32 to vector<64x32xf32>
    %130 = arith.maximumf %128, %129 : vector<64x32xf32>
    %131 = vector.extract_strided_slice %130 {offsets = [1, 0], sizes = [63, 32], strides = [1, 1]} : vector<64x32xf32> to vector<63x32xf32>
    %132 = vector.extract_strided_slice %130 {offsets = [0, 0], sizes = [1, 32], strides = [1, 1]} : vector<64x32xf32> to vector<1x32xf32>
    %133 = tpu.concatenate %131, %132 in 0 : vector<63x32xf32>, vector<1x32xf32> -> vector<64x32xf32>
    %134 = arith.maximumf %130, %133 : vector<64x32xf32>
    %135 = vector.extract_strided_slice %130 {offsets = [2, 0], sizes = [62, 32], strides = [1, 1]} : vector<64x32xf32> to vector<62x32xf32>
    %136 = vector.extract_strided_slice %130 {offsets = [0, 0], sizes = [2, 32], strides = [1, 1]} : vector<64x32xf32> to vector<2x32xf32>
    %137 = tpu.concatenate %135, %136 in 0 : vector<62x32xf32>, vector<2x32xf32> -> vector<64x32xf32>
    %138 = arith.maximumf %134, %137 : vector<64x32xf32>
    %c1_49 = arith.constant 1 : index
    %c0_50 = arith.constant 0 : index
    %139 = vector.load %arg9[%c1_49, %c0_50] : memref<3x32xf32, #tpu.memory_space<vmem>>, vector<1x32xf32>
    %140 = vector.broadcast %139 : vector<1x32xf32> to vector<64x32xf32>
    %141 = arith.mulf %138, %140 : vector<64x32xf32>
    %c2_51 = arith.constant 2 : index
    %c0_52 = arith.constant 0 : index
    %142 = vector.load %arg9[%c2_51, %c0_52] : memref<3x32xf32, #tpu.memory_space<vmem>>, vector<1x32xf32>
    %143 = vector.broadcast %142 : vector<1x32xf32> to vector<64x32xf32>
    %144 = arith.addf %141, %143 : vector<64x32xf32>
    %c0_53 = arith.constant 0 : index
    %c0_54 = arith.constant 0 : index
    %145 = vector.load %arg10[%c0_53, %c0_54] : memref<32x64xf32, #tpu.memory_space<vmem>>, vector<32x64xf32>
    %cst_55 = arith.constant dense<0.000000e+00> : vector<64x64xf32>
    %146 = tpu.matmul %144, %145, %cst_55 {dimension_numbers = #tpu.dot_dimension_numbers<[1], [0], [0], [1], [0, 0, 1, 1], [], []>} : vector<64x32xf32>, vector<32x64xf32>, vector<64x64xf32> -> vector<64x64xf32>
    %c0_56 = arith.constant 0 : index
    %c0_57 = arith.constant 0 : index
    %147 = vector.load %arg12[%c0_56, %c0_57] : memref<1x64xf32, #tpu.memory_space<vmem>>, vector<1x64xf32>
    %148 = vector.broadcast %147 : vector<1x64xf32> to vector<64x64xf32>
    %149 = arith.addf %146, %148 : vector<64x64xf32>
    %c0_58 = arith.constant 0 : index
    %c0_59 = arith.constant 0 : index
    %150 = vector.load %arg20[%c0_58, %c0_59] : memref<64x64xf32, #tpu.memory_space<vmem>>, vector<64x64xf32>
    tpu.vector_store %arg20[%c0_58, %c0_59], %149 {strides = array<i32>} : memref<64x64xf32, #tpu.memory_space<vmem>>, vector<64x64xf32>,
    %c0_60 = arith.constant 0 : index
    %c0_61 = arith.constant 0 : index
    %151 = vector.load %arg11[%c0_60, %c0_61] : memref<16x64xf32, #tpu.memory_space<vmem>>, vector<16x64xf32>
    %cst_62 = arith.constant 0.000000e+00 : f32
    %152 = vector.broadcast %cst_62 : f32 to vector<4x16xf32>
    %cst_63 = arith.constant 0.000000e+00 : f32
    %153 = vector.broadcast %cst_63 : f32 to vector<4x16xf32>
    %c0_64 = arith.constant 0 : index
    %c0_65 = arith.constant 0 : index
    %154 = tpu.strided_load %arg20[%c0_64, %c0_65] {strides = array<i32: 16, 1>} : memref<64x64xf32, #tpu.memory_space<vmem>>, vector<4x64xf32>
    %cst_66 = arith.constant dense<0.000000e+00> : vector<4x64xf32>
    %155 = tpu.matmul %152, %151, %cst_66 {dimension_numbers = #tpu.dot_dimension_numbers<[1], [0], [0], [1], [0, 0, 1, 1], [], []>} : vector<4x16xf32>, vector<16x64xf32>, vector<4x64xf32> -> vector<4x64xf32>
    %156 = arith.addf %154, %155 : vector<4x64xf32>
    %157 = vector.extract_strided_slice %156 {offsets = [0, 0], sizes = [4, 16], strides = [1, 1]} : vector<4x64xf32> to vector<4x16xf32>
    %158 = arith.negf %157 : vector<4x16xf32>
    %159 = math.exp %158 : vector<4x16xf32>
    %cst_67 = arith.constant 1.000000e+00 : f32
    %160 = vector.broadcast %cst_67 : f32 to vector<4x16xf32>
    %161 = arith.addf %160, %159 : vector<4x16xf32>
    %162 = arith.divf %160, %161 : vector<4x16xf32>
    %163 = vector.extract_strided_slice %156 {offsets = [0, 16], sizes = [4, 16], strides = [1, 1]} : vector<4x64xf32> to vector<4x16xf32>
    %164 = arith.negf %163 : vector<4x16xf32>
    %165 = math.exp %164 : vector<4x16xf32>
    %cst_68 = arith.constant 1.000000e+00 : f32
    %166 = vector.broadcast %cst_68 : f32 to vector<4x16xf32>
    %167 = arith.addf %166, %165 : vector<4x16xf32>
    %168 = arith.divf %166, %167 : vector<4x16xf32>
    %169 = vector.extract_strided_slice %156 {offsets = [0, 32], sizes = [4, 16], strides = [1, 1]} : vector<4x64xf32> to vector<4x16xf32>
    %170 = math.tanh %169 : vector<4x16xf32>
    %171 = vector.extract_strided_slice %156 {offsets = [0, 48], sizes = [4, 16], strides = [1, 1]} : vector<4x64xf32> to vector<4x16xf32>
    %172 = arith.negf %171 : vector<4x16xf32>
    %173 = math.exp %172 : vector<4x16xf32>
    %cst_69 = arith.constant 1.000000e+00 : f32
    %174 = vector.broadcast %cst_69 : f32 to vector<4x16xf32>
    %175 = arith.addf %174, %173 : vector<4x16xf32>
    %176 = arith.divf %174, %175 : vector<4x16xf32>
    %177 = arith.mulf %168, %153 : vector<4x16xf32>
    %178 = arith.mulf %162, %170 : vector<4x16xf32>
    %179 = arith.addf %177, %178 : vector<4x16xf32>
    %180 = math.tanh %179 : vector<4x16xf32>
    %181 = arith.mulf %176, %180 : vector<4x16xf32>
    %c1_70 = arith.constant 1 : index
    %c0_71 = arith.constant 0 : index
    %182 = tpu.strided_load %arg20[%c1_70, %c0_71] {strides = array<i32: 16, 1>} : memref<64x64xf32, #tpu.memory_space<vmem>>, vector<4x64xf32>
    %cst_72 = arith.constant dense<0.000000e+00> : vector<4x64xf32>
    %183 = tpu.matmul %181, %151, %cst_72 {dimension_numbers = #tpu.dot_dimension_numbers<[1], [0], [0], [1], [0, 0, 1, 1], [], []>} : vector<4x16xf32>, vector<16x64xf32>, vector<4x64xf32> -> vector<4x64xf32>
    %184 = arith.addf %182, %183 : vector<4x64xf32>
    %185 = vector.extract_strided_slice %184 {offsets = [0, 0], sizes = [4, 16], strides = [1, 1]} : vector<4x64xf32> to vector<4x16xf32>
    %186 = arith.negf %185 : vector<4x16xf32>
    %187 = math.exp %186 : vector<4x16xf32>
    %cst_73 = arith.constant 1.000000e+00 : f32
    %188 = vector.broadcast %cst_73 : f32 to vector<4x16xf32>
    %189 = arith.addf %188, %187 : vector<4x16xf32>
    %190 = arith.divf %188, %189 : vector<4x16xf32>
    %191 = vector.extract_strided_slice %184 {offsets = [0, 16], sizes = [4, 16], strides = [1, 1]} : vector<4x64xf32> to vector<4x16xf32>
    %192 = arith.negf %191 : vector<4x16xf32>
    %193 = math.exp %192 : vector<4x16xf32>
    %cst_74 = arith.constant 1.000000e+00 : f32
    %194 = vector.broadcast %cst_74 : f32 to vector<4x16xf32>
    %195 = arith.addf %194, %193 : vector<4x16xf32>
    %196 = arith.divf %194, %195 : vector<4x16xf32>
    %197 = vector.extract_strided_slice %184 {offsets = [0, 32], sizes = [4, 16], strides = [1, 1]} : vector<4x64xf32> to vector<4x16xf32>
    %198 = math.tanh %197 : vector<4x16xf32>
    %199 = vector.extract_strided_slice %184 {offsets = [0, 48], sizes = [4, 16], strides = [1, 1]} : vector<4x64xf32> to vector<4x16xf32>
    %200 = arith.negf %199 : vector<4x16xf32>
    %201 = math.exp %200 : vector<4x16xf32>
    %cst_75 = arith.constant 1.000000e+00 : f32
    %202 = vector.broadcast %cst_75 : f32 to vector<4x16xf32>
    %203 = arith.addf %202, %201 : vector<4x16xf32>
    %204 = arith.divf %202, %203 : vector<4x16xf32>
    %205 = arith.mulf %196, %179 : vector<4x16xf32>
    %206 = arith.mulf %190, %198 : vector<4x16xf32>
    %207 = arith.addf %205, %206 : vector<4x16xf32>
    %208 = math.tanh %207 : vector<4x16xf32>
    %209 = arith.mulf %204, %208 : vector<4x16xf32>
    %c2_76 = arith.constant 2 : index
    %c0_77 = arith.constant 0 : index
    %210 = tpu.strided_load %arg20[%c2_76, %c0_77] {strides = array<i32: 16, 1>} : memref<64x64xf32, #tpu.memory_space<vmem>>, vector<4x64xf32>
    %cst_78 = arith.constant dense<0.000000e+00> : vector<4x64xf32>
    %211 = tpu.matmul %209, %151, %cst_78 {dimension_numbers = #tpu.dot_dimension_numbers<[1], [0], [0], [1], [0, 0, 1, 1], [], []>} : vector<4x16xf32>, vector<16x64xf32>, vector<4x64xf32> -> vector<4x64xf32>
    %212 = arith.addf %210, %211 : vector<4x64xf32>
    %213 = vector.extract_strided_slice %212 {offsets = [0, 0], sizes = [4, 16], strides = [1, 1]} : vector<4x64xf32> to vector<4x16xf32>
    %214 = arith.negf %213 : vector<4x16xf32>
    %215 = math.exp %214 : vector<4x16xf32>
    %cst_79 = arith.constant 1.000000e+00 : f32
    %216 = vector.broadcast %cst_79 : f32 to vector<4x16xf32>
    %217 = arith.addf %216, %215 : vector<4x16xf32>
    %218 = arith.divf %216, %217 : vector<4x16xf32>
    %219 = vector.extract_strided_slice %212 {offsets = [0, 16], sizes = [4, 16], strides = [1, 1]} : vector<4x64xf32> to vector<4x16xf32>
    %220 = arith.negf %219 : vector<4x16xf32>
    %221 = math.exp %220 : vector<4x16xf32>
    %cst_80 = arith.constant 1.000000e+00 : f32
    %222 = vector.broadcast %cst_80 : f32 to vector<4x16xf32>
    %223 = arith.addf %222, %221 : vector<4x16xf32>
    %224 = arith.divf %222, %223 : vector<4x16xf32>
    %225 = vector.extract_strided_slice %212 {offsets = [0, 32], sizes = [4, 16], strides = [1, 1]} : vector<4x64xf32> to vector<4x16xf32>
    %226 = math.tanh %225 : vector<4x16xf32>
    %227 = vector.extract_strided_slice %212 {offsets = [0, 48], sizes = [4, 16], strides = [1, 1]} : vector<4x64xf32> to vector<4x16xf32>
    %228 = arith.negf %227 : vector<4x16xf32>
    %229 = math.exp %228 : vector<4x16xf32>
    %cst_81 = arith.constant 1.000000e+00 : f32
    %230 = vector.broadcast %cst_81 : f32 to vector<4x16xf32>
    %231 = arith.addf %230, %229 : vector<4x16xf32>
    %232 = arith.divf %230, %231 : vector<4x16xf32>
    %233 = arith.mulf %224, %207 : vector<4x16xf32>
    %234 = arith.mulf %218, %226 : vector<4x16xf32>
    %235 = arith.addf %233, %234 : vector<4x16xf32>
    %236 = math.tanh %235 : vector<4x16xf32>
    %237 = arith.mulf %232, %236 : vector<4x16xf32>
    %c3 = arith.constant 3 : index
    %c0_82 = arith.constant 0 : index
    %238 = tpu.strided_load %arg20[%c3, %c0_82] {strides = array<i32: 16, 1>} : memref<64x64xf32, #tpu.memory_space<vmem>>, vector<4x64xf32>
    %cst_83 = arith.constant dense<0.000000e+00> : vector<4x64xf32>
    %239 = tpu.matmul %237, %151, %cst_83 {dimension_numbers = #tpu.dot_dimension_numbers<[1], [0], [0], [1], [0, 0, 1, 1], [], []>} : vector<4x16xf32>, vector<16x64xf32>, vector<4x64xf32> -> vector<4x64xf32>
    %240 = arith.addf %238, %239 : vector<4x64xf32>
    %241 = vector.extract_strided_slice %240 {offsets = [0, 0], sizes = [4, 16], strides = [1, 1]} : vector<4x64xf32> to vector<4x16xf32>
    %242 = arith.negf %241 : vector<4x16xf32>
    %243 = math.exp %242 : vector<4x16xf32>
    %cst_84 = arith.constant 1.000000e+00 : f32
    %244 = vector.broadcast %cst_84 : f32 to vector<4x16xf32>
    %245 = arith.addf %244, %243 : vector<4x16xf32>
    %246 = arith.divf %244, %245 : vector<4x16xf32>
    %247 = vector.extract_strided_slice %240 {offsets = [0, 16], sizes = [4, 16], strides = [1, 1]} : vector<4x64xf32> to vector<4x16xf32>
    %248 = arith.negf %247 : vector<4x16xf32>
    %249 = math.exp %248 : vector<4x16xf32>
    %cst_85 = arith.constant 1.000000e+00 : f32
    %250 = vector.broadcast %cst_85 : f32 to vector<4x16xf32>
    %251 = arith.addf %250, %249 : vector<4x16xf32>
    %252 = arith.divf %250, %251 : vector<4x16xf32>
    %253 = vector.extract_strided_slice %240 {offsets = [0, 32], sizes = [4, 16], strides = [1, 1]} : vector<4x64xf32> to vector<4x16xf32>
    %254 = math.tanh %253 : vector<4x16xf32>
    %255 = vector.extract_strided_slice %240 {offsets = [0, 48], sizes = [4, 16], strides = [1, 1]} : vector<4x64xf32> to vector<4x16xf32>
    %256 = arith.negf %255 : vector<4x16xf32>
    %257 = math.exp %256 : vector<4x16xf32>
    %cst_86 = arith.constant 1.000000e+00 : f32
    %258 = vector.broadcast %cst_86 : f32 to vector<4x16xf32>
    %259 = arith.addf %258, %257 : vector<4x16xf32>
    %260 = arith.divf %258, %259 : vector<4x16xf32>
    %261 = arith.mulf %252, %235 : vector<4x16xf32>
    %262 = arith.mulf %246, %254 : vector<4x16xf32>
    %263 = arith.addf %261, %262 : vector<4x16xf32>
    %264 = math.tanh %263 : vector<4x16xf32>
    %265 = arith.mulf %260, %264 : vector<4x16xf32>
    %c4 = arith.constant 4 : index
    %c0_87 = arith.constant 0 : index
    %266 = tpu.strided_load %arg20[%c4, %c0_87] {strides = array<i32: 16, 1>} : memref<64x64xf32, #tpu.memory_space<vmem>>, vector<4x64xf32>
    %cst_88 = arith.constant dense<0.000000e+00> : vector<4x64xf32>
    %267 = tpu.matmul %265, %151, %cst_88 {dimension_numbers = #tpu.dot_dimension_numbers<[1], [0], [0], [1], [0, 0, 1, 1], [], []>} : vector<4x16xf32>, vector<16x64xf32>, vector<4x64xf32> -> vector<4x64xf32>
    %268 = arith.addf %266, %267 : vector<4x64xf32>
    %269 = vector.extract_strided_slice %268 {offsets = [0, 0], sizes = [4, 16], strides = [1, 1]} : vector<4x64xf32> to vector<4x16xf32>
    %270 = arith.negf %269 : vector<4x16xf32>
    %271 = math.exp %270 : vector<4x16xf32>
    %cst_89 = arith.constant 1.000000e+00 : f32
    %272 = vector.broadcast %cst_89 : f32 to vector<4x16xf32>
    %273 = arith.addf %272, %271 : vector<4x16xf32>
    %274 = arith.divf %272, %273 : vector<4x16xf32>
    %275 = vector.extract_strided_slice %268 {offsets = [0, 16], sizes = [4, 16], strides = [1, 1]} : vector<4x64xf32> to vector<4x16xf32>
    %276 = arith.negf %275 : vector<4x16xf32>
    %277 = math.exp %276 : vector<4x16xf32>
    %cst_90 = arith.constant 1.000000e+00 : f32
    %278 = vector.broadcast %cst_90 : f32 to vector<4x16xf32>
    %279 = arith.addf %278, %277 : vector<4x16xf32>
    %280 = arith.divf %278, %279 : vector<4x16xf32>
    %281 = vector.extract_strided_slice %268 {offsets = [0, 32], sizes = [4, 16], strides = [1, 1]} : vector<4x64xf32> to vector<4x16xf32>
    %282 = math.tanh %281 : vector<4x16xf32>
    %283 = vector.extract_strided_slice %268 {offsets = [0, 48], sizes = [4, 16], strides = [1, 1]} : vector<4x64xf32> to vector<4x16xf32>
    %284 = arith.negf %283 : vector<4x16xf32>
    %285 = math.exp %284 : vector<4x16xf32>
    %cst_91 = arith.constant 1.000000e+00 : f32
    %286 = vector.broadcast %cst_91 : f32 to vector<4x16xf32>
    %287 = arith.addf %286, %285 : vector<4x16xf32>
    %288 = arith.divf %286, %287 : vector<4x16xf32>
    %289 = arith.mulf %280, %263 : vector<4x16xf32>
    %290 = arith.mulf %274, %282 : vector<4x16xf32>
    %291 = arith.addf %289, %290 : vector<4x16xf32>
    %292 = math.tanh %291 : vector<4x16xf32>
    %293 = arith.mulf %288, %292 : vector<4x16xf32>
    %c5 = arith.constant 5 : index
    %c0_92 = arith.constant 0 : index
    %294 = tpu.strided_load %arg20[%c5, %c0_92] {strides = array<i32: 16, 1>} : memref<64x64xf32, #tpu.memory_space<vmem>>, vector<4x64xf32>
    %cst_93 = arith.constant dense<0.000000e+00> : vector<4x64xf32>
    %295 = tpu.matmul %293, %151, %cst_93 {dimension_numbers = #tpu.dot_dimension_numbers<[1], [0], [0], [1], [0, 0, 1, 1], [], []>} : vector<4x16xf32>, vector<16x64xf32>, vector<4x64xf32> -> vector<4x64xf32>
    %296 = arith.addf %294, %295 : vector<4x64xf32>
    %297 = vector.extract_strided_slice %296 {offsets = [0, 0], sizes = [4, 16], strides = [1, 1]} : vector<4x64xf32> to vector<4x16xf32>
    %298 = arith.negf %297 : vector<4x16xf32>
    %299 = math.exp %298 : vector<4x16xf32>
    %cst_94 = arith.constant 1.000000e+00 : f32
    %300 = vector.broadcast %cst_94 : f32 to vector<4x16xf32>
    %301 = arith.addf %300, %299 : vector<4x16xf32>
    %302 = arith.divf %300, %301 : vector<4x16xf32>
    %303 = vector.extract_strided_slice %296 {offsets = [0, 16], sizes = [4, 16], strides = [1, 1]} : vector<4x64xf32> to vector<4x16xf32>
    %304 = arith.negf %303 : vector<4x16xf32>
    %305 = math.exp %304 : vector<4x16xf32>
    %cst_95 = arith.constant 1.000000e+00 : f32
    %306 = vector.broadcast %cst_95 : f32 to vector<4x16xf32>
    %307 = arith.addf %306, %305 : vector<4x16xf32>
    %308 = arith.divf %306, %307 : vector<4x16xf32>
    %309 = vector.extract_strided_slice %296 {offsets = [0, 32], sizes = [4, 16], strides = [1, 1]} : vector<4x64xf32> to vector<4x16xf32>
    %310 = math.tanh %309 : vector<4x16xf32>
    %311 = vector.extract_strided_slice %296 {offsets = [0, 48], sizes = [4, 16], strides = [1, 1]} : vector<4x64xf32> to vector<4x16xf32>
    %312 = arith.negf %311 : vector<4x16xf32>
    %313 = math.exp %312 : vector<4x16xf32>
    %cst_96 = arith.constant 1.000000e+00 : f32
    %314 = vector.broadcast %cst_96 : f32 to vector<4x16xf32>
    %315 = arith.addf %314, %313 : vector<4x16xf32>
    %316 = arith.divf %314, %315 : vector<4x16xf32>
    %317 = arith.mulf %308, %291 : vector<4x16xf32>
    %318 = arith.mulf %302, %310 : vector<4x16xf32>
    %319 = arith.addf %317, %318 : vector<4x16xf32>
    %320 = math.tanh %319 : vector<4x16xf32>
    %321 = arith.mulf %316, %320 : vector<4x16xf32>
    %322 = tpu.concatenate %181, %209, %237, %265, %293, %321 in 1 : vector<4x16xf32>, vector<4x16xf32>, vector<4x16xf32>, vector<4x16xf32>, vector<4x16xf32>, vector<4x16xf32> -> vector<4x96xf32>
    %c0_97 = arith.constant 0 : index
    %c0_98 = arith.constant 0 : index
    %323 = vector.load %arg13[%c0_97, %c0_98] : memref<96x64xf32, #tpu.memory_space<vmem>>, vector<96x64xf32>
    %cst_99 = arith.constant dense<0.000000e+00> : vector<4x64xf32>
    %324 = tpu.matmul %322, %323, %cst_99 {dimension_numbers = #tpu.dot_dimension_numbers<[1], [0], [0], [1], [0, 0, 1, 1], [], []>} : vector<4x96xf32>, vector<96x64xf32>, vector<4x64xf32> -> vector<4x64xf32>
    %c0_100 = arith.constant 0 : index
    %c0_101 = arith.constant 0 : index
    %325 = vector.load %arg14[%c0_100, %c0_101] : memref<1x64xf32, #tpu.memory_space<vmem>>, vector<1x64xf32>
    %326 = vector.broadcast %325 : vector<1x64xf32> to vector<4x64xf32>
    %327 = arith.addf %324, %326 : vector<4x64xf32>
    %cst_102 = arith.constant 0.000000e+00 : f32
    %328 = vector.broadcast %cst_102 : f32 to vector<4x64xf32>
    %329 = arith.maximumf %327, %328 : vector<4x64xf32>
    %c0_103 = arith.constant 0 : index
    %c0_104 = arith.constant 0 : index
    %330 = vector.load %arg15[%c0_103, %c0_104] : memref<64x1xf32, #tpu.memory_space<vmem>>, vector<64x1xf32>
    %cst_105 = arith.constant dense<0.000000e+00> : vector<4x1xf32>
    %331 = tpu.matmul %329, %330, %cst_105 {dimension_numbers = #tpu.dot_dimension_numbers<[1], [0], [0], [1], [0, 0, 1, 1], [], []>} : vector<4x64xf32>, vector<64x1xf32>, vector<4x1xf32> -> vector<4x1xf32>
    %c0_106 = arith.constant 0 : index
    %c0_107 = arith.constant 0 : index
    %332 = vector.load %arg16[%c0_106, %c0_107] : memref<1x1xf32, #tpu.memory_space<vmem>>, vector<1x1xf32>
    %333 = vector.broadcast %332 : vector<1x1xf32> to vector<4x1xf32>
    %334 = arith.addf %331, %333 : vector<4x1xf32>
    %335 = arith.negf %334 : vector<4x1xf32>
    %336 = math.exp %335 : vector<4x1xf32>
    %cst_108 = arith.constant 1.000000e+00 : f32
    %337 = vector.broadcast %cst_108 : f32 to vector<4x1xf32>
    %338 = arith.addf %337, %336 : vector<4x1xf32>
    %339 = arith.divf %337, %338 : vector<4x1xf32>
    %c0_109 = arith.constant 0 : index
    %c0_110 = arith.constant 0 : index
    %c0_111 = arith.constant 0 : index
    %340 = vector.load %arg17[%c0_109, %c0_110, %c0_111] : memref<1x4x1xf32, #tpu.memory_space<vmem>>, vector<1x4x1xf32>
    %341 = vector.shape_cast %340 : vector<1x4x1xf32> to vector<4x1xf32>
    %342 = vector.shape_cast %339 : vector<4x1xf32> to vector<1x4x1xf32>
    tpu.vector_store %arg17[%c0_109, %c0_110, %c0_111], %342 {strides = array<i32>} : memref<1x4x1xf32, #tpu.memory_space<vmem>>, vector<1x4x1xf32>,
    return
  }
  func.func @transform_0(%arg0: i32) -> (i32, i32, i32) {
    %c0_i32 = arith.constant 0 : i32
    %c0_i32_0 = arith.constant 0 : i32
    %c0_i32_1 = arith.constant 0 : i32
    return %arg0, %c0_i32, %c0_i32_0 : i32, i32, i32
  }
  func.func @transform_1(%arg0: i32) -> (i32, i32) {
    %c0_i32 = arith.constant 0 : i32
    %c0_i32_0 = arith.constant 0 : i32
    %c0_i32_1 = arith.constant 0 : i32
    return %c0_i32, %c0_i32_0 : i32, i32
  }
  func.func @transform_2(%arg0: i32) -> (i32, i32) {
    %c0_i32 = arith.constant 0 : i32
    %c0_i32_0 = arith.constant 0 : i32
    %c0_i32_1 = arith.constant 0 : i32
    return %c0_i32, %c0_i32_0 : i32, i32
  }
  func.func @transform_3(%arg0: i32) -> (i32, i32) {
    %c0_i32 = arith.constant 0 : i32
    %c0_i32_0 = arith.constant 0 : i32
    %c0_i32_1 = arith.constant 0 : i32
    return %c0_i32, %c0_i32_0 : i32, i32
  }
  func.func @transform_4(%arg0: i32) -> (i32, i32) {
    %c0_i32 = arith.constant 0 : i32
    %c0_i32_0 = arith.constant 0 : i32
    %c0_i32_1 = arith.constant 0 : i32
    return %c0_i32, %c0_i32_0 : i32, i32
  }
  func.func @transform_5(%arg0: i32) -> (i32, i32) {
    %c0_i32 = arith.constant 0 : i32
    %c0_i32_0 = arith.constant 0 : i32
    %c0_i32_1 = arith.constant 0 : i32
    return %c0_i32, %c0_i32_0 : i32, i32
  }
  func.func @transform_6(%arg0: i32) -> (i32, i32) {
    %c0_i32 = arith.constant 0 : i32
    %c0_i32_0 = arith.constant 0 : i32
    %c0_i32_1 = arith.constant 0 : i32
    return %c0_i32, %c0_i32_0 : i32, i32
  }
  func.func @transform_7(%arg0: i32) -> (i32, i32) {
    %c0_i32 = arith.constant 0 : i32
    %c0_i32_0 = arith.constant 0 : i32
    %c0_i32_1 = arith.constant 0 : i32
    return %c0_i32, %c0_i32_0 : i32, i32
  }
  func.func @transform_8(%arg0: i32) -> (i32, i32) {
    %c0_i32 = arith.constant 0 : i32
    %c0_i32_0 = arith.constant 0 : i32
    %c0_i32_1 = arith.constant 0 : i32
    return %c0_i32, %c0_i32_0 : i32, i32
  }
  func.func @transform_9(%arg0: i32) -> (i32, i32) {
    %c0_i32 = arith.constant 0 : i32
    %c0_i32_0 = arith.constant 0 : i32
    %c0_i32_1 = arith.constant 0 : i32
    return %c0_i32, %c0_i32_0 : i32, i32
  }
  func.func @transform_10(%arg0: i32) -> (i32, i32) {
    %c0_i32 = arith.constant 0 : i32
    %c0_i32_0 = arith.constant 0 : i32
    %c0_i32_1 = arith.constant 0 : i32
    return %c0_i32, %c0_i32_0 : i32, i32
  }
  func.func @transform_11(%arg0: i32) -> (i32, i32) {
    %c0_i32 = arith.constant 0 : i32
    %c0_i32_0 = arith.constant 0 : i32
    %c0_i32_1 = arith.constant 0 : i32
    return %c0_i32, %c0_i32_0 : i32, i32
  }
  func.func @transform_12(%arg0: i32) -> (i32, i32) {
    %c0_i32 = arith.constant 0 : i32
    %c0_i32_0 = arith.constant 0 : i32
    %c0_i32_1 = arith.constant 0 : i32
    return %c0_i32, %c0_i32_0 : i32, i32
  }
  func.func @transform_13(%arg0: i32) -> (i32, i32) {
    %c0_i32 = arith.constant 0 : i32
    %c0_i32_0 = arith.constant 0 : i32
    %c0_i32_1 = arith.constant 0 : i32
    return %c0_i32, %c0_i32_0 : i32, i32
  }
  func.func @transform_14(%arg0: i32) -> (i32, i32) {
    %c0_i32 = arith.constant 0 : i32
    %c0_i32_0 = arith.constant 0 : i32
    %c0_i32_1 = arith.constant 0 : i32
    return %c0_i32, %c0_i32_0 : i32, i32
  }
  func.func @transform_15(%arg0: i32) -> (i32, i32) {
    %c0_i32 = arith.constant 0 : i32
    %c0_i32_0 = arith.constant 0 : i32
    %c0_i32_1 = arith.constant 0 : i32
    return %c0_i32, %c0_i32_0 : i32, i32
  }
  func.func @transform_16(%arg0: i32) -> (i32, i32, i32) {
    %c0_i32 = arith.constant 0 : i32
    %c0_i32_0 = arith.constant 0 : i32
    %c0_i32_1 = arith.constant 0 : i32
    return %arg0, %c0_i32, %c0_i32_0 : i32, i32, i32
  }
}

</mosaic_0001>

<llo_original>
// kernel: tpu_custom_call.1
$region0: #{tpu_custom_call.1}
  #allocation0 [shape = 'u32[]', space=smem, size = 0x4, offset = 0x4, fixed_abs, tag = 'smem constant byte address 0x4 - core index']
  #allocation1 [shape = 'u32[72,128]{1,0:T(1,128)}', space=vmem, size = 0x9000, scoped, tag = 'internal scratch']
  %s0 = inlined_call_operand.hbm [shape: f32[200,128], index: 0, kind: input, shape index: {}]
  %s1 = inlined_call_operand.hbm [shape: f32[200,128], index: 1, kind: output, shape index: {}]
  %s2 = sld [smem:[#allocation0]]
  $region18: #{tpu_custom_call.1} parent=0
    _
  %s4 = ssub.s32 1, %s2
  %s5 = scalar_select 0, %s4, %s2
  $region1: #{tpu_custom_call.1} parent=0
    #allocation2 [shape = 'u8[102400]{0}', space=vmem, size = 0x19000, scoped, tag = 'input window, operand 0, single buffered']
    #allocation3 [shape = 's32[1]{0}', space=sflag, size = 0x4, scoped, tag = 'scoped memory for tpu_custom_call.1']
    #allocation4 [shape = 's32[1]{0}', space=sflag, size = 0x4, scoped, tag = 'scoped memory for tpu_custom_call.1']
    #allocation5 [shape = 'u8[102400]{0}', space=vmem, size = 0x19000, scoped, tag = 'output window, operand 0, single buffered']
    %6 = vsyncpa [#allocation3], 0
    %7 = vsyncpa [#allocation4], 0
    // Predicated region
    $region2: #{tpu_custom_call.1} parent=1 // pred_check
      _
    $region3: #{tpu_custom_call.1} parent=1 // pred_check_branch
      %9 = sbr.rel (0) target = $region5
    $region4: #{tpu_custom_call.1} parent=1 // pred_region
      %11 = vsyncadd [#allocation3], 0
      %s12 = sshll.u32 %s0, 4
      %s13 = int_to_ptr.hbm [resolvable:$true] %s12
      %s14 = sshll.u32 [#allocation2], 4
      %s15 = int_to_ptr.vmem [resolvable:$true] %s14
      %20 = dma.hbm_to_vmem [thread:$0]  %s13, 3200, %s15, [#allocation3], 128, 128, 8
    $region5: #{tpu_custom_call.1} parent=1 // pred_fallthru
      _
    // Predicated region
    $region6: #{tpu_custom_call.1} parent=1 // pred_check
      _
    $region7: #{tpu_custom_call.1} parent=1 // pred_check_branch
      %22 = sbr.rel (0) target = $region9
    $region8: #{tpu_custom_call.1} parent=1 // pred_region
      %24 = dma.done [#allocation3], 3200
    $region9: #{tpu_custom_call.1} parent=1 // pred_fallthru
      _
    %v25 = vld [vmem:[#allocation2] sm:$0xff]
    %v26 = vld [vmem:[#allocation2 + $0x8] sm:$0xff]
    %v27 = vld [vmem:[#allocation2 + $0x10] sm:$0xff]
    %v28 = vld [vmem:[#allocation2 + $0x18] sm:$0xff]
    %v29 = vld [vmem:[#allocation2 + $0x20] sm:$0xff]
    %v30 = vld [vmem:[#allocation2 + $0x28] sm:$0xff]
    %v31 = vld [vmem:[#allocation2 + $0x30] sm:$0xff]
    %v32 = vld [vmem:[#allocation2 + $0x38] sm:$0xff]
    %v33 = vld [vmem:[#allocation2 + $0x40] sm:$0xff]
    %v34 = vld [vmem:[#allocation2 + $0x48] sm:$0xff]
    %v35 = vld [vmem:[#allocation2 + $0x50] sm:$0xff]
    %v36 = vld [vmem:[#allocation2 + $0x58] sm:$0xff]
    %v37 = vld [vmem:[#allocation2 + $0x60] sm:$0xff]
    %v38 = vld [vmem:[#allocation2 + $0x68] sm:$0xff]
    %v39 = vld [vmem:[#allocation2 + $0x70] sm:$0xff]
    %v40 = vld [vmem:[#allocation2 + $0x78] sm:$0xff]
    %v41 = vld [vmem:[#allocation2 + $0x80] sm:$0xff]
    %v42 = vld [vmem:[#allocation2 + $0x88] sm:$0xff]
    %v43 = vld [vmem:[#allocation2 + $0x90] sm:$0xff]
    %v44 = vld [vmem:[#allocation2 + $0x98] sm:$0xff]
    %v45 = vld [vmem:[#allocation2 + $0xa0] sm:$0xff]
    %v46 = vld [vmem:[#allocation2 + $0xa8] sm:$0xff]
    %v47 = vld [vmem:[#allocation2 + $0xb0] sm:$0xff]
    %v48 = vld [vmem:[#allocation2 + $0xb8] sm:$0xff]
    %v49 = vld [vmem:[#allocation2 + $0xc0] sm:$0xff]
    %v50 = vrot.slane %v25, 7
    %v51 = vrot.slane %v26, 7
    %v52 = vrot.slane %v27, 7
    %v53 = vrot.slane %v28, 7
    %v54 = vrot.slane %v29, 7
    %v55 = vrot.slane %v30, 7
    %v56 = vrot.slane %v31, 7
    %v57 = vrot.slane %v32, 7
    %v58 = vrot.slane %v33, 7
    %v59 = vrot.slane %v34, 7
    %v60 = vrot.slane %v35, 7
    %v61 = vrot.slane %v36, 7
    %v62 = vrot.slane %v37, 7
    %v63 = vrot.slane %v38, 7
    %v64 = vrot.slane %v39, 7
    %v65 = vrot.slane %v40, 7
    %v66 = vrot.slane %v41, 7
    %v67 = vrot.slane %v42, 7
    %v68 = vrot.slane %v43, 7
    %v69 = vrot.slane %v44, 7
    %v70 = vrot.slane %v45, 7
    %v71 = vrot.slane %v46, 7
    %v72 = vrot.slane %v47, 7
    %v73 = vrot.slane %v48, 7
    %v74 = vrot.slane %v49, 7
    %v75 = vlaneseq
    %v76 = vshrl.u32 %v75, 7
    %vm77 = vcmp.lt.s32.totalorder %v76, 1
    %v78 = vsel %vm77, %v73, %v74
    %v79 = vsel %vm77, %v72, %v73
    %v80 = vsel %vm77, %v71, %v72
    %v81 = vsel %vm77, %v70, %v71
    %v82 = vsel %vm77, %v69, %v70
    %v83 = vsel %vm77, %v68, %v69
    %v84 = vsel %vm77, %v67, %v68
    %v85 = vsel %vm77, %v66, %v67
    %v86 = vsel %vm77, %v65, %v66
    %v87 = vsel %vm77, %v64, %v65
    %v88 = vsel %vm77, %v63, %v64
    %v89 = vsel %vm77, %v62, %v63
    %v90 = vsel %vm77, %v61, %v62
    %v91 = vsel %vm77, %v60, %v61
    %v92 = vsel %vm77, %v59, %v60
    %v93 = vsel %vm77, %v58, %v59
    %v94 = vsel %vm77, %v57, %v58
    %v95 = vsel %vm77, %v56, %v57
    %v96 = vsel %vm77, %v55, %v56
    %v97 = vsel %vm77, %v54, %v55
    %v98 = vsel %vm77, %v53, %v54
    %v99 = vsel %vm77, %v52, %v53
    %v100 = vsel %vm77, %v51, %v52
    %v101 = vsel %vm77, %v50, %v51
    %v102 = vsel %vm77, %v74, %v50
    %103 = vst [vmem:[#allocation5] sm:$0xff] %v102
    %104 = vst [vmem:[#allocation5 + $0x8] sm:$0xff] %v101
    %105 = vst [vmem:[#allocation5 + $0x10] sm:$0xff] %v100
    %106 = vst [vmem:[#allocation5 + $0x18] sm:$0xff] %v99
    %107 = vst [vmem:[#allocation5 + $0x20] sm:$0xff] %v98
    %108 = vst [vmem:[#allocation5 + $0x28] sm:$0xff] %v97
    %109 = vst [vmem:[#allocation5 + $0x30] sm:$0xff] %v96
    %110 = vst [vmem:[#allocation5 + $0x38] sm:$0xff] %v95
    %111 = vst [vmem:[#allocation5 + $0x40] sm:$0xff] %v94
    %112 = vst [vmem:[#allocation5 + $0x48] sm:$0xff] %v93
    %113 = vst [vmem:[#allocation5 + $0x50] sm:$0xff] %v92
    %114 = vst [vmem:[#allocation5 + $0x58] sm:$0xff] %v91
    %115 = vst [vmem:[#allocation5 + $0x60] sm:$0xff] %v90
    %116 = vst [vmem:[#allocation5 + $0x68] sm:$0xff] %v89
    %117 = vst [vmem:[#allocation5 + $0x70] sm:$0xff] %v88
    %118 = vst [vmem:[#allocation5 + $0x78] sm:$0xff] %v87
    %119 = vst [vmem:[#allocation5 + $0x80] sm:$0xff] %v86
    %120 = vst [vmem:[#allocation5 + $0x88] sm:$0xff] %v85
    %121 = vst [vmem:[#allocation5 + $0x90] sm:$0xff] %v84
    %122 = vst [vmem:[#allocation5 + $0x98] sm:$0xff] %v83
    %123 = vst [vmem:[#allocation5 + $0xa0] sm:$0xff] %v82
    %124 = vst [vmem:[#allocation5 + $0xa8] sm:$0xff] %v81
    %125 = vst [vmem:[#allocation5 + $0xb0] sm:$0xff] %v80
    %126 = vst [vmem:[#allocation5 + $0xb8] sm:$0xff] %v79
    %127 = vst [vmem:[#allocation5 + $0xc0] sm:$0xff] %v78
    // Predicated region
    $region10: #{tpu_custom_call.1} parent=1 // pred_check
      _
    $region11: #{tpu_custom_call.1} parent=1 // pred_check_branch
      %129 = sbr.rel (0) target = $region13
    $region12: #{tpu_custom_call.1} parent=1 // pred_region
      %131 = vsyncadd [#allocation4], 0
      %s132 = sshll.u32 [#allocation5], 4
      %s133 = int_to_ptr.vmem [resolvable:$true] %s132
      %s134 = sshll.u32 %s1, 4
      %s135 = int_to_ptr.hbm [resolvable:$true] %s134
      %140 = dma.vmem_to_hbm [thread:$0]  %s133, 3200, %s135, [#allocation4], 128, 128, 8
    $region13: #{tpu_custom_call.1} parent=1 // pred_fallthru
      _
    // Predicated region
    $region14: #{tpu_custom_call.1} parent=1 // pred_check
      _
    $region15: #{tpu_custom_call.1} parent=1 // pred_check_branch
      %142 = sbr.rel (0) target = $region17
    $region16: #{tpu_custom_call.1} parent=1 // pred_region
      %144 = dma.done [#allocation4], 3200
    $region17: #{tpu_custom_call.1} parent=1 // pred_fallthru
      _
    %145 = vsyncpa [#allocation3], 1
    %146 = vsyncpa [#allocation4], 1

// kernel: bert_base_lstm_net1_forward.1
$region0: #{bert_base_lstm_net1_forward.1}
  #allocation0 [shape = 'u32[]', space=smem, size = 0x4, offset = 0x4, fixed_abs, tag = 'smem constant byte address 0x4 - core index']
  #allocation1 [shape = 'u32[72,128]{1,0:T(1,128)}', space=vmem, size = 0x9000, scoped, tag = 'internal scratch']
  #allocation2 [shape = 'f32[200,128]{1,0:T(8,128)}', space=vmem, size = 0x19000, scoped, tag = 'scratch operand']
  #allocation3 [shape = 'f32[128,64]{1,0:T(8,128)}', space=vmem, size = 0x10000, scoped, tag = 'scratch operand']
  #allocation4 [shape = 'f32[64,64]{1,0:T(8,128)}', space=vmem, size = 0x8000, scoped, tag = 'scratch operand']
  #allocation5 [shape = 'f32[1,1]{1,0:T(1,128)S(1)}', space=vmem, size = 0x200, scoped, tag = 'scoped memory for bert_base_lstm_net1_forward.1']
  %s0 = inlined_call_operand.vmem [shape: f32[2,200,1536], index: 0, kind: input, shape index: {}]
  %s1 = inlined_call_operand.vmem [shape: bf16[1536,512], index: 1, kind: input, shape index: {}]
  %s2 = inlined_call_operand.vmem [shape: f32[3,128], index: 2, kind: input, shape index: {}]
  %s3 = inlined_call_operand.vmem [shape: bf16[128,256], index: 3, kind: input, shape index: {}]
  %s4 = inlined_call_operand.vmem [shape: bf16[128,256], index: 4, kind: input, shape index: {}]
  %s5 = inlined_call_operand.vmem [shape: f32[3,64], index: 5, kind: input, shape index: {}]
  %s6 = inlined_call_operand.vmem [shape: bf16[64,64], index: 6, kind: input, shape index: {}]
  %s7 = inlined_call_operand.vmem [shape: bf16[64,32], index: 7, kind: input, shape index: {}]
  %s8 = inlined_call_operand.vmem [shape: f32[3,32], index: 8, kind: input, shape index: {}]
  %s9 = inlined_call_operand.vmem [shape: f32[32,64], index: 9, kind: input, shape index: {}]
  %s10 = inlined_call_operand.vmem [shape: f32[16,64], index: 10, kind: input, shape index: {}]
  %s11 = inlined_call_operand.vmem [shape: f32[1,64], index: 11, kind: input, shape index: {}]
  %s12 = inlined_call_operand.vmem [shape: f32[96,64], index: 12, kind: input, shape index: {}]
  %s13 = inlined_call_operand.vmem [shape: f32[1,64], index: 13, kind: input, shape index: {}]
  %s14 = inlined_call_operand.vmem [shape: f32[64,1], index: 14, kind: input, shape index: {}]
  %s15 = inlined_call_operand.<no memory space> [shape: f32[1,1], index: 15, kind: input, shape index: {}]
  %s16 = inlined_call_operand.vmem [shape: f32[2,4,1], index: 16, kind: output, shape index: {}]
  %s17 = sld [smem:[#allocation0]]
  $region97: #{bert_base_lstm_net1_forward.1} parent=0
    _
  %s19 = ssub.s32 1, %s17
  %s20 = scalar_select 0, %s19, %s17
  %v21 = vstv %s15
  %22 = vst [vmem:[#allocation5] sm:$0x1] %v21
  loop: start=0, step=1, limit=4
  $region2: #{bert_base_lstm_net1_forward.1} parent=0 // loop_pre_header
    _
  $region3: #{bert_base_lstm_net1_forward.1} parent=0 // loop_header
    %s24 = sphi 0, %s28
    %p25 = scmp.ge.s32.totalorder %s24, 4
    %s34 = sphi 0, %s36
    %s37 = sphi 0, %s34
    %s38 = sphi 0, %s37
    %s54 = sphi 0, %s38
    %s58 = sphi 0, %s58
    %s60 = sphi 0, %s58
    %s61 = sphi 0, %s60
    %s75 = sphi 0, %s61
    %s79 = sphi 0, %s79
    %s81 = sphi 0, %s79
    %s82 = sphi 0, %s81
    %s96 = sphi 0, %s82
    %s100 = sphi 0, %s100
    %s102 = sphi 0, %s100
    %s103 = sphi 0, %s102
    %s117 = sphi 0, %s103
    %s121 = sphi 0, %s121
    %s123 = sphi 0, %s121
    %s124 = sphi 0, %s123
    %s138 = sphi 0, %s124
    %s142 = sphi 0, %s142
    %s144 = sphi 0, %s142
    %s145 = sphi 0, %s144
    %s159 = sphi 0, %s145
    %s163 = sphi 0, %s163
    %s165 = sphi 0, %s163
    %s166 = sphi 0, %s165
    %s180 = sphi 0, %s166
    %s184 = sphi 0, %s184
    %s186 = sphi 0, %s184
    %s187 = sphi 0, %s186
    %s201 = sphi 0, %s187
    %s205 = sphi 0, %s205
    %s207 = sphi 0, %s205
    %s208 = sphi 0, %s207
    %s222 = sphi 0, %s208
    %s226 = sphi 0, %s226
    %s228 = sphi 0, %s226
    %s229 = sphi 0, %s228
    %s243 = sphi 0, %s229
    %s247 = sphi 0, %s247
    %s249 = sphi 0, %s247
    %s250 = sphi 0, %s249
    %s264 = sphi 0, %s250
    %s268 = sphi 0, %s268
    %s270 = sphi 0, %s268
    %s271 = sphi 0, %s270
    %s285 = sphi 0, %s271
    %s289 = sphi 0, %s289
    %s291 = sphi 0, %s289
    %s292 = sphi 0, %s291
    %s306 = sphi 0, %s292
    %s310 = sphi 0, %s310
    %s312 = sphi 0, %s310
    %s313 = sphi 0, %s312
    %s327 = sphi 0, %s313
    %s331 = sphi 0, %s331
    %s333 = sphi 0, %s331
    %s334 = sphi 0, %s333
    %s348 = sphi 0, %s334
    %s352 = sphi 0, %s352
    %s354 = sphi 0, %s352
    %s355 = sphi 0, %s354
    %s369 = sphi 0, %s355
    %s375 = sphi 0, %s377
    %s378 = sphi 0, %s375
    %s379 = sphi 0, %s378
    %s395 = sphi 0, %s379
  $region4: #{bert_base_lstm_net1_forward.1} parent=0 // loop_header_branch
    %27 = sbr.rel (%p25) target = $region8
  $region5: #{bert_base_lstm_net1_forward.1} parent=0 // loop_body
    %s29 = ssub.s32 %s24, 1
    %s30 = ssub.s32 %s24, 2
    %s31 = sadd.s32 %s24, 1
    %s32 = ssub.s32 %s24, %s31
    %p33 = scmp.eq.s32.totalorder %s32, 0
    %s35 = sadd.s32 %s34, 1
    %s36 = scalar_select %p33, %s34, %s35
    %p39 = pneg %p33
    %p40 = scmp.eq.s32.totalorder %s24, 1
    %p41 = por %p39, %p40
    %p42 = scmp.ne.s32.totalorder %s34, %s37
    %p43 = scmp.eq.s32.totalorder %s24, 0
    %p44 = por %p42, %p43
    %p45 = scmp.ne.s32.totalorder %s34, %s37
    %p46 = scmp.eq.s32.totalorder %s29, 1
    %p47 = por %p45, %p46
    %p48 = scmp.ne.s32.totalorder %s37, %s38
    %p49 = scmp.eq.s32.totalorder %s29, 0
    %p50 = por %p48, %p49
    %p51 = scmp.ne.s32.totalorder %s37, %s38
    %p52 = scmp.eq.s32.totalorder %s30, 1
    %p53 = por %p51, %p52
    %p55 = scmp.ne.s32.totalorder %s38, %s54
    %p56 = scmp.eq.s32.totalorder %s30, 0
    %p57 = por %p55, %p56
    %s59 = sadd.s32 %s58, 1
    %p62 = scmp.eq.s32.totalorder %s24, 1
    %p63 = scmp.ne.s32.totalorder %s58, %s60
    %p64 = scmp.eq.s32.totalorder %s24, 0
    %p65 = por %p63, %p64
    %p66 = scmp.ne.s32.totalorder %s58, %s60
    %p67 = scmp.eq.s32.totalorder %s29, 1
    %p68 = por %p66, %p67
    %p69 = scmp.ne.s32.totalorder %s60, %s61
    %p70 = scmp.eq.s32.totalorder %s29, 0
    %p71 = por %p69, %p70
    %p72 = scmp.ne.s32.totalorder %s60, %s61
    %p73 = scmp.eq.s32.totalorder %s30, 1
    %p74 = por %p72, %p73
    %p76 = scmp.ne.s32.totalorder %s61, %s75
    %p77 = scmp.eq.s32.totalorder %s30, 0
    %p78 = por %p76, %p77
    %s80 = sadd.s32 %s79, 1
    %p83 = scmp.eq.s32.totalorder %s24, 1
    %p84 = scmp.ne.s32.totalorder %s79, %s81
    %p85 = scmp.eq.s32.totalorder %s24, 0
    %p86 = por %p84, %p85
    %p87 = scmp.ne.s32.totalorder %s79, %s81
    %p88 = scmp.eq.s32.totalorder %s29, 1
    %p89 = por %p87, %p88
    %p90 = scmp.ne.s32.totalorder %s81, %s82
    %p91 = scmp.eq.s32.totalorder %s29, 0
    %p92 = por %p90, %p91
    %p93 = scmp.ne.s32.totalorder %s81, %s82
    %p94 = scmp.eq.s32.totalorder %s30, 1
    %p95 = por %p93, %p94
    %p97 = scmp.ne.s32.totalorder %s82, %s96
    %p98 = scmp.eq.s32.totalorder %s30, 0
    %p99 = por %p97, %p98
    %s101 = sadd.s32 %s100, 1
    %p104 = scmp.eq.s32.totalorder %s24, 1
    %p105 = scmp.ne.s32.totalorder %s100, %s102
    %p106 = scmp.eq.s32.totalorder %s24, 0
    %p107 = por %p105, %p106
    %p108 = scmp.ne.s32.totalorder %s100, %s102
    %p109 = scmp.eq.s32.totalorder %s29, 1
    %p110 = por %p108, %p109
    %p111 = scmp.ne.s32.totalorder %s102, %s103
    %p112 = scmp.eq.s32.totalorder %s29, 0
    %p113 = por %p111, %p112
    %p114 = scmp.ne.s32.totalorder %s102, %s103
    %p115 = scmp.eq.s32.totalorder %s30, 1
    %p116 = por %p114, %p115
    %p118 = scmp.ne.s32.totalorder %s103, %s117
    %p119 = scmp.eq.s32.totalorder %s30, 0
    %p120 = por %p118, %p119
    %s122 = sadd.s32 %s121, 1
    %p125 = scmp.eq.s32.totalorder %s24, 1
    %p126 = scmp.ne.s32.totalorder %s121, %s123
    %p127 = scmp.eq.s32.totalorder %s24, 0
    %p128 = por %p126, %p127
    %p129 = scmp.ne.s32.totalorder %s121, %s123
    %p130 = scmp.eq.s32.totalorder %s29, 1
    %p131 = por %p129, %p130
    %p132 = scmp.ne.s32.totalorder %s123, %s124
    %p133 = scmp.eq.s32.totalorder %s29, 0
    %p134 = por %p132, %p133
    %p135 = scmp.ne.s32.totalorder %s123, %s124
    %p136 = scmp.eq.s32.totalorder %s30, 1
    %p137 = por %p135, %p136
    %p139 = scmp.ne.s32.totalorder %s124, %s138
    %p140 = scmp.eq.s32.totalorder %s30, 0
    %p141 = por %p139, %p140
    %s143 = sadd.s32 %s142, 1
    %p146 = scmp.eq.s32.totalorder %s24, 1
    %p147 = scmp.ne.s32.totalorder %s142, %s144
    %p148 = scmp.eq.s32.totalorder %s24, 0
    %p149 = por %p147, %p148
    %p150 = scmp.ne.s32.totalorder %s142, %s144
    %p151 = scmp.eq.s32.totalorder %s29, 1
    %p152 = por %p150, %p151
    %p153 = scmp.ne.s32.totalorder %s144, %s145
    %p154 = scmp.eq.s32.totalorder %s29, 0
    %p155 = por %p153, %p154
    %p156 = scmp.ne.s32.totalorder %s144, %s145
    %p157 = scmp.eq.s32.totalorder %s30, 1
    %p158 = por %p156, %p157
    %p160 = scmp.ne.s32.totalorder %s145, %s159
    %p161 = scmp.eq.s32.totalorder %s30, 0
    %p162 = por %p160, %p161
    %s164 = sadd.s32 %s163, 1
    %p167 = scmp.eq.s32.totalorder %s24, 1
    %p168 = scmp.ne.s32.totalorder %s163, %s165
    %p169 = scmp.eq.s32.totalorder %s24, 0
    %p170 = por %p168, %p169
    %p171 = scmp.ne.s32.totalorder %s163, %s165
    %p172 = scmp.eq.s32.totalorder %s29, 1
    %p173 = por %p171, %p172
    %p174 = scmp.ne.s32.totalorder %s165, %s166
    %p175 = scmp.eq.s32.totalorder %s29, 0
    %p176 = por %p174, %p175
    %p177 = scmp.ne.s32.totalorder %s165, %s166
    %p178 = scmp.eq.s32.totalorder %s30, 1
    %p179 = por %p177, %p178
    %p181 = scmp.ne.s32.totalorder %s166, %s180
    %p182 = scmp.eq.s32.totalorder %s30, 0
    %p183 = por %p181, %p182
    %s185 = sadd.s32 %s184, 1
    %p188 = scmp.eq.s32.totalorder %s24, 1
    %p189 = scmp.ne.s32.totalorder %s184, %s186
    %p190 = scmp.eq.s32.totalorder %s24, 0
    %p191 = por %p189, %p190
    %p192 = scmp.ne.s32.totalorder %s184, %s186
    %p193 = scmp.eq.s32.totalorder %s29, 1
    %p194 = por %p192, %p193
    %p195 = scmp.ne.s32.totalorder %s186, %s187
    %p196 = scmp.eq.s32.totalorder %s29, 0
    %p197 = por %p195, %p196
    %p198 = scmp.ne.s32.totalorder %s186, %s187
    %p199 = scmp.eq.s32.totalorder %s30, 1
    %p200 = por %p198, %p199
    %p202 = scmp.ne.s32.totalorder %s187, %s201
    %p203 = scmp.eq.s32.totalorder %s30, 0
    %p204 = por %p202, %p203
    %s206 = sadd.s32 %s205, 1
    %p209 = scmp.eq.s32.totalorder %s24, 1
    %p210 = scmp.ne.s32.totalorder %s205, %s207
    %p211 = scmp.eq.s32.totalorder %s24, 0
    %p212 = por %p210, %p211
    %p213 = scmp.ne.s32.totalorder %s205, %s207
    %p214 = scmp.eq.s32.totalorder %s29, 1
    %p215 = por %p213, %p214
    %p216 = scmp.ne.s32.totalorder %s207, %s208
    %p217 = scmp.eq.s32.totalorder %s29, 0
    %p218 = por %p216, %p217
    %p219 = scmp.ne.s32.totalorder %s207, %s208
    %p220 = scmp.eq.s32.totalorder %s30, 1
    %p221 = por %p219, %p220
    %p223 = scmp.ne.s32.totalorder %s208, %s222
    %p224 = scmp.eq.s32.totalorder %s30, 0
    %p225 = por %p223, %p224
    %s227 = sadd.s32 %s226, 1
    %p230 = scmp.eq.s32.totalorder %s24, 1
    %p231 = scmp.ne.s32.totalorder %s226, %s228
    %p232 = scmp.eq.s32.totalorder %s24, 0
    %p233 = por %p231, %p232
    %p234 = scmp.ne.s32.totalorder %s226, %s228
    %p235 = scmp.eq.s32.totalorder %s29, 1
    %p236 = por %p234, %p235
    %p237 = scmp.ne.s32.totalorder %s228, %s229
    %p238 = scmp.eq.s32.totalorder %s29, 0
    %p239 = por %p237, %p238
    %p240 = scmp.ne.s32.totalorder %s228, %s229
    %p241 = scmp.eq.s32.totalorder %s30, 1
    %p242 = por %p240, %p241
    %p244 = scmp.ne.s32.totalorder %s229, %s243
    %p245 = scmp.eq.s32.totalorder %s30, 0
    %p246 = por %p244, %p245
    %s248 = sadd.s32 %s247, 1
    %p251 = scmp.eq.s32.totalorder %s24, 1
    %p252 = scmp.ne.s32.totalorder %s247, %s249
    %p253 = scmp.eq.s32.totalorder %s24, 0
    %p254 = por %p252, %p253
    %p255 = scmp.ne.s32.totalorder %s247, %s249
    %p256 = scmp.eq.s32.totalorder %s29, 1
    %p257 = por %p255, %p256
    %p258 = scmp.ne.s32.totalorder %s249, %s250
    %p259 = scmp.eq.s32.totalorder %s29, 0
    %p260 = por %p258, %p259
    %p261 = scmp.ne.s32.totalorder %s249, %s250
    %p262 = scmp.eq.s32.totalorder %s30, 1
    %p263 = por %p261, %p262
    %p265 = scmp.ne.s32.totalorder %s250, %s264
    %p266 = scmp.eq.s32.totalorder %s30, 0
    %p267 = por %p265, %p266
    %s269 = sadd.s32 %s268, 1
    %p272 = scmp.eq.s32.totalorder %s24, 1
    %p273 = scmp.ne.s32.totalorder %s268, %s270
    %p274 = scmp.eq.s32.totalorder %s24, 0
    %p275 = por %p273, %p274
    %p276 = scmp.ne.s32.totalorder %s268, %s270
    %p277 = scmp.eq.s32.totalorder %s29, 1
    %p278 = por %p276, %p277
    %p279 = scmp.ne.s32.totalorder %s270, %s271
    %p280 = scmp.eq.s32.totalorder %s29, 0
    %p281 = por %p279, %p280
    %p282 = scmp.ne.s32.totalorder %s270, %s271
    %p283 = scmp.eq.s32.totalorder %s30, 1
    %p284 = por %p282, %p283
    %p286 = scmp.ne.s32.totalorder %s271, %s285
    %p287 = scmp.eq.s32.totalorder %s30, 0
    %p288 = por %p286, %p287
    %s290 = sadd.s32 %s289, 1
    %p293 = scmp.eq.s32.totalorder %s24, 1
    %p294 = scmp.ne.s32.totalorder %s289, %s291
    %p295 = scmp.eq.s32.totalorder %s24, 0
    %p296 = por %p294, %p295
    %p297 = scmp.ne.s32.totalorder %s289, %s291
    %p298 = scmp.eq.s32.totalorder %s29, 1
    %p299 = por %p297, %p298
    %p300 = scmp.ne.s32.totalorder %s291, %s292
    %p301 = scmp.eq.s32.totalorder %s29, 0
    %p302 = por %p300, %p301
    %p303 = scmp.ne.s32.totalorder %s291, %s292
    %p304 = scmp.eq.s32.totalorder %s30, 1
    %p305 = por %p303, %p304
    %p307 = scmp.ne.s32.totalorder %s292, %s306
    %p308 = scmp.eq.s32.totalorder %s30, 0
    %p309 = por %p307, %p308
    %s311 = sadd.s32 %s310, 1
    %p314 = scmp.eq.s32.totalorder %s24, 1
    %p315 = scmp.ne.s32.totalorder %s310, %s312
    %p316 = scmp.eq.s32.totalorder %s24, 0
    %p317 = por %p315, %p316
    %p318 = scmp.ne.s32.totalorder %s310, %s312
    %p319 = scmp.eq.s32.totalorder %s29, 1
    %p320 = por %p318, %p319
    %p321 = scmp.ne.s32.totalorder %s312, %s313
    %p322 = scmp.eq.s32.totalorder %s29, 0
    %p323 = por %p321, %p322
    %p324 = scmp.ne.s32.totalorder %s312, %s313
    %p325 = scmp.eq.s32.totalorder %s30, 1
    %p326 = por %p324, %p325
    %p328 = scmp.ne.s32.totalorder %s313, %s327
    %p329 = scmp.eq.s32.totalorder %s30, 0
    %p330 = por %p328, %p329
    %s332 = sadd.s32 %s331, 1
    %p335 = scmp.eq.s32.totalorder %s24, 1
    %p336 = scmp.ne.s32.totalorder %s331, %s333
    %p337 = scmp.eq.s32.totalorder %s24, 0
    %p338 = por %p336, %p337
    %p339 = scmp.ne.s32.totalorder %s331, %s333
    %p340 = scmp.eq.s32.totalorder %s29, 1
    %p341 = por %p339, %p340
    %p342 = scmp.ne.s32.totalorder %s333, %s334
    %p343 = scmp.eq.s32.totalorder %s29, 0
    %p344 = por %p342, %p343
    %p345 = scmp.ne.s32.totalorder %s333, %s334
    %p346 = scmp.eq.s32.totalorder %s30, 1
    %p347 = por %p345, %p346
    %p349 = scmp.ne.s32.totalorder %s334, %s348
    %p350 = scmp.eq.s32.totalorder %s30, 0
    %p351 = por %p349, %p350
    %s353 = sadd.s32 %s352, 1
    %p356 = scmp.eq.s32.totalorder %s24, 1
    %p357 = scmp.ne.s32.totalorder %s352, %s354
    %p358 = scmp.eq.s32.totalorder %s24, 0
    %p359 = por %p357, %p358
    %p360 = scmp.ne.s32.totalorder %s352, %s354
    %p361 = scmp.eq.s32.totalorder %s29, 1
    %p362 = por %p360, %p361
    %p363 = scmp.ne.s32.totalorder %s354, %s355
    %p364 = scmp.eq.s32.totalorder %s29, 0
    %p365 = por %p363, %p364
    %p366 = scmp.ne.s32.totalorder %s354, %s355
    %p367 = scmp.eq.s32.totalorder %s30, 1
    %p368 = por %p366, %p367
    %p370 = scmp.ne.s32.totalorder %s355, %s369
    %p371 = scmp.eq.s32.totalorder %s30, 0
    %p372 = por %p370, %p371
    %s373 = ssub.s32 %s24, %s31
    %p374 = scmp.eq.s32.totalorder %s373, 0
    %s376 = sadd.s32 %s375, 1
    %s377 = scalar_select %p374, %s375, %s376
    %p380 = pneg %p374
    %p381 = scmp.eq.s32.totalorder %s24, 1
    %p382 = por %p380, %p381
    %p383 = scmp.ne.s32.totalorder %s375, %s378
    %p384 = scmp.eq.s32.totalorder %s24, 0
    %p385 = por %p383, %p384
    %p386 = scmp.ne.s32.totalorder %s375, %s378
    %p387 = scmp.eq.s32.totalorder %s29, 1
    %p388 = por %p386, %p387
    %p389 = scmp.ne.s32.totalorder %s378, %s379
    %p390 = scmp.eq.s32.totalorder %s29, 0
    %p391 = por %p389, %p390
    %p392 = scmp.ne.s32.totalorder %s378, %s379
    %p393 = scmp.eq.s32.totalorder %s30, 1
    %p394 = por %p392, %p393
    %p396 = scmp.ne.s32.totalorder %s379, %s395
    %p397 = scmp.eq.s32.totalorder %s30, 0
    %p398 = por %p396, %p397
    %p399 = scmp.le.s32.totalorder 1, %s24
    %p400 = scmp.lt.s32.totalorder %s24, 3
    %p401 = pnand %p399, %p400
    %p402 = pneg %p401
    // Predicated region
    $region9: #{bert_base_lstm_net1_forward.1} parent=5 // pred_check
      _
    $region10: #{bert_base_lstm_net1_forward.1} parent=5 // pred_check_branch
      %404 = sbr.rel (%p401) target = $region12
    $region11: #{bert_base_lstm_net1_forward.1} parent=5 // pred_region
      %s405 = ssub.s32 %s24, 1
      // Predicated region
      $region13: #{bert_base_lstm_net1_forward.1} parent=11 // pred_check
        %p406 = pneg %p71
      $region14: #{bert_base_lstm_net1_forward.1} parent=11 // pred_check_branch
        %408 = sbr.rel (%p406) target = $region16
      $region15: #{bert_base_lstm_net1_forward.1} parent=11 // pred_region
        _
      $region16: #{bert_base_lstm_net1_forward.1} parent=11 // pred_fallthru
        _
      // Predicated region
      $region17: #{bert_base_lstm_net1_forward.1} parent=11 // pred_check
        %p409 = pneg %p92
      $region18: #{bert_base_lstm_net1_forward.1} parent=11 // pred_check_branch
        %411 = sbr.rel (%p409) target = $region20
      $region19: #{bert_base_lstm_net1_forward.1} parent=11 // pred_region
        _
      $region20: #{bert_base_lstm_net1_forward.1} parent=11 // pred_fallthru
        _
      // Predicated region
      $region21: #{bert_base_lstm_net1_forward.1} parent=11 // pred_check
        %p412 = pneg %p113
      $region22: #{bert_base_lstm_net1_forward.1} parent=11 // pred_check_branch
        %414 = sbr.rel (%p412) target = $region24
      $region23: #{bert_base_lstm_net1_forward.1} parent=11 // pred_region
        _
      $region24: #{bert_base_lstm_net1_forward.1} parent=11 // pred_fallthru
        _
      // Predicated region
      $region25: #{bert_base_lstm_net1_forward.1} parent=11 // pred_check
        %p415 = pneg %p134
      $region26: #{bert_base_lstm_net1_forward.1} parent=11 // pred_check_branch
        %417 = sbr.rel (%p415) target = $region28
      $region27: #{bert_base_lstm_net1_forward.1} parent=11 // pred_region
        _
      $region28: #{bert_base_lstm_net1_forward.1} parent=11 // pred_fallthru
        _
      // Predicated region
      $region29: #{bert_base_lstm_net1_forward.1} parent=11 // pred_check
        %p418 = pneg %p155
      $region30: #{bert_base_lstm_net1_forward.1} parent=11 // pred_check_branch
        %420 = sbr.rel (%p418) target = $region32
      $region31: #{bert_base_lstm_net1_forward.1} parent=11 // pred_region
        _
      $region32: #{bert_base_lstm_net1_forward.1} parent=11 // pred_fallthru
        _
      // Predicated region
      $region33: #{bert_base_lstm_net1_forward.1} parent=11 // pred_check
        %p421 = pneg %p176
      $region34: #{bert_base_lstm_net1_forward.1} parent=11 // pred_check_branch
        %423 = sbr.rel (%p421) target = $region36
      $region35: #{bert_base_lstm_net1_forward.1} parent=11 // pred_region
        _
      $region36: #{bert_base_lstm_net1_forward.1} parent=11 // pred_fallthru
        _
      // Predicated region
      $region37: #{bert_base_lstm_net1_forward.1} parent=11 // pred_check
        %p424 = pneg %p197
      $region38: #{bert_base_lstm_net1_forward.1} parent=11 // pred_check_branch
        %426 = sbr.rel (%p424) target = $region40
      $region39: #{bert_base_lstm_net1_forward.1} parent=11 // pred_region
        _
      $region40: #{bert_base_lstm_net1_forward.1} parent=11 // pred_fallthru
        _
      // Predicated region
      $region41: #{bert_base_lstm_net1_forward.1} parent=11 // pred_check
        %p427 = pneg %p218
      $region42: #{bert_base_lstm_net1_forward.1} parent=11 // pred_check_branch
        %429 = sbr.rel (%p427) target = $region44
      $region43: #{bert_base_lstm_net1_forward.1} parent=11 // pred_region
        _
      $region44: #{bert_base_lstm_net1_forward.1} parent=11 // pred_fallthru
        _
      // Predicated region
      $region45: #{bert_base_lstm_net1_forward.1} parent=11 // pred_check
        %p430 = pneg %p239
      $region46: #{bert_base_lstm_net1_forward.1} parent=11 // pred_check_branch
        %432 = sbr.rel (%p430) target = $region48
      $region47: #{bert_base_lstm_net1_forward.1} parent=11 // pred_region
        _
      $region48: #{bert_base_lstm_net1_forward.1} parent=11 // pred_fallthru
        _
      // Predicated region
      $region49: #{bert_base_lstm_net1_forward.1} parent=11 // pred_check
        %p433 = pneg %p260
      $region50: #{bert_base_lstm_net1_forward.1} parent=11 // pred_check_branch
        %435 = sbr.rel (%p433) target = $region52
      $region51: #{bert_base_lstm_net1_forward.1} parent=11 // pred_region
        _
      $region52: #{bert_base_lstm_net1_forward.1} parent=11 // pred_fallthru
        _
      // Predicated region
      $region53: #{bert_base_lstm_net1_forward.1} parent=11 // pred_check
        %p436 = pneg %p281
      $region54: #{bert_base_lstm_net1_forward.1} parent=11 // pred_check_branch
        %438 = sbr.rel (%p436) target = $region56
      $region55: #{bert_base_lstm_net1_forward.1} parent=11 // pred_region
        _
      $region56: #{bert_base_lstm_net1_forward.1} parent=11 // pred_fallthru
        _
      // Predicated region
      $region57: #{bert_base_lstm_net1_forward.1} parent=11 // pred_check
        %p439 = pneg %p302
      $region58: #{bert_base_lstm_net1_forward.1} parent=11 // pred_check_branch
        %441 = sbr.rel (%p439) target = $region60
      $region59: #{bert_base_lstm_net1_forward.1} parent=11 // pred_region
        _
      $region60: #{bert_base_lstm_net1_forward.1} parent=11 // pred_fallthru
        _
      // Predicated region
      $region61: #{bert_base_lstm_net1_forward.1} parent=11 // pred_check
        %p442 = pneg %p323
      $region62: #{bert_base_lstm_net1_forward.1} parent=11 // pred_check_branch
        %444 = sbr.rel (%p442) target = $region64
      $region63: #{bert_base_lstm_net1_forward.1} parent=11 // pred_region
        _
      $region64: #{bert_base_lstm_net1_forward.1} parent=11 // pred_fallthru
        _
      // Predicated region
      $region65: #{bert_base_lstm_net1_forward.1} parent=11 // pred_check
        %p445 = pneg %p344
      $region66: #{bert_base_lstm_net1_forward.1} parent=11 // pred_check_branch
        %447 = sbr.rel (%p445) target = $region68
      $region67: #{bert_base_lstm_net1_forward.1} parent=11 // pred_region
        _
      $region68: #{bert_base_lstm_net1_forward.1} parent=11 // pred_fallthru
        _
      // Predicated region
      $region69: #{bert_base_lstm_net1_forward.1} parent=11 // pred_check
        %p448 = pneg %p365
      $region70: #{bert_base_lstm_net1_forward.1} parent=11 // pred_check_branch
        %450 = sbr.rel (%p448) target = $region72
      $region71: #{bert_base_lstm_net1_forward.1} parent=11 // pred_region
        _
      $region72: #{bert_base_lstm_net1_forward.1} parent=11 // pred_fallthru
        _
    $region12: #{bert_base_lstm_net1_forward.1} parent=5 // pred_fallthru
      _
    %p451 = scmp.lt.s32.totalorder %s24, 2
    // Predicated region
    $region73: #{bert_base_lstm_net1_forward.1} parent=5 // pred_check
      %p452 = pneg %p451
    $region74: #{bert_base_lstm_net1_forward.1} parent=5 // pred_check_branch
      %454 = sbr.rel (%p452) target = $region76
    $region75: #{bert_base_lstm_net1_forward.1} parent=5 // pred_region
      // Predicated region
      $region77: #{bert_base_lstm_net1_forward.1} parent=75 // pred_check
        %p455 = pneg %p44
      $region78: #{bert_base_lstm_net1_forward.1} parent=75 // pred_check_branch
        %457 = sbr.rel (%p455) target = $region80
      $region79: #{bert_base_lstm_net1_forward.1} parent=75 // pred_region
        %p458 = scmp.lt.s32.totalorder %s24, 1
        %s459 = scalar_select %p458, %s24, 1
        %s460 = smul.addr %s459, 300
        %s461 = smul.addr %s460, 8
        %s462 = scalar_lea.vmem %s0, %s461
      $region80: #{bert_base_lstm_net1_forward.1} parent=75 // pred_fallthru
        _
    $region76: #{bert_base_lstm_net1_forward.1} parent=5 // pred_fallthru
      _
    %p463 = scmp.le.s32.totalorder 1, %s24
    %p464 = scmp.lt.s32.totalorder %s24, 3
    %p465 = pnand %p463, %p464
    %p466 = pneg %p465
    // Predicated region
    $region81: #{bert_base_lstm_net1_forward.1} parent=5 // pred_check
      _
    $region82: #{bert_base_lstm_net1_forward.1} parent=5 // pred_check_branch
      %468 = sbr.rel (%p465) target = $region84
    $region83: #{bert_base_lstm_net1_forward.1} parent=5 // pred_region
      %s469 = ssub.s32 %s24, 1
      %p470 = scmp.lt.s32.totalorder %s29, 1
      %s471 = scalar_select %p470, %s29, 1
      %s472 = smul.addr %s471, 300
      %s473 = smul.addr %s472, 8
      %s474 = scalar_lea.vmem %s0, %s473
      %p475 = pneg %p50
      %p476 = pneg %p47
      %p477 = pneg %p71
      %p478 = pneg %p68
      %p479 = pneg %p92
      %p480 = pneg %p89
      %p481 = pneg %p113
      %p482 = pneg %p110
      %p483 = pneg %p134
      %p484 = pneg %p131
      %p485 = pneg %p155
      %p486 = pneg %p152
      %p487 = pneg %p176
      %p488 = pneg %p173
      %p489 = pneg %p197
      %p490 = pneg %p194
      %p491 = pneg %p218
      %p492 = pneg %p215
      %p493 = pneg %p239
      %p494 = pneg %p236
      %p495 = pneg %p260
      %p496 = pneg %p257
      %p497 = pneg %p281
      %p498 = pneg %p278
      %p499 = pneg %p302
      %p500 = pneg %p299
      %p501 = pneg %p323
      %p502 = pneg %p320
      %p503 = pneg %p344
      %p504 = pneg %p341
      %p505 = pneg %p365
      %p506 = pneg %p362
      %p507 = pneg %p391
      %p508 = pneg %p388
      %p509 = scmp.lt.s32.totalorder %s29, 1
      %s510 = scalar_select %p509, %s29, 1
      %s511 = smul.addr %s510, 4
      %s512 = scalar_lea.vmem %s16, %s511
      %p513 = scmp.lt.s32.totalorder %s29, 1
      %s514 = scalar_select %p513, %s29, 1
      %s515 = smul.addr %s514, 300
      %s516 = smul.addr %s515, 8
      %s517 = scalar_lea.vmem %s0, %s516
      %p518 = scmp.lt.s32.totalorder %s29, 1
      %s519 = scalar_select %p518, %s29, 1
      %s520 = smul.addr %s519, 4
      %s521 = scalar_lea.vmem %s16, %s520
      %v523 = vld [vmem:[%s517] sm:$0xff]
      %v524 = vld [vmem:[%s517 + $0x8] sm:$0xff]
      %v525 = vld [vmem:[%s517 + $0x10] sm:$0xff]
      %v526 = vld [vmem:[%s517 + $0x18] sm:$0xff]
      %v527 = vld [vmem:[%s517 + $0x20] sm:$0xff]
      %v528 = vld [vmem:[%s517 + $0x28] sm:$0xff]
      %v529 = vld [vmem:[%s517 + $0x30] sm:$0xff]
      %v530 = vld [vmem:[%s517 + $0x38] sm:$0xff]
      %v531 = vld [vmem:[%s517 + $0x40] sm:$0xff]
      %v532 = vld [vmem:[%s517 + $0x48] sm:$0xff]
      %v533 = vld [vmem:[%s517 + $0x50] sm:$0xff]
      %v534 = vld [vmem:[%s517 + $0x58] sm:$0xff]
      %v535 = vld [vmem:[%s517 + $0x60] sm:$0xff]
      %v536 = vld [vmem:[%s517 + $0x68] sm:$0xff]
      %v537 = vld [vmem:[%s517 + $0x70] sm:$0xff]
      %v538 = vld [vmem:[%s517 + $0x78] sm:$0xff]
      %v539 = vld [vmem:[%s517 + $0x80] sm:$0xff]
      %v540 = vld [vmem:[%s517 + $0x88] sm:$0xff]
      %v541 = vld [vmem:[%s517 + $0x90] sm:$0xff]
      %v542 = vld [vmem:[%s517 + $0x98] sm:$0xff]
      %v543 = vld [vmem:[%s517 + $0xa0] sm:$0xff]
      %v544 = vld [vmem:[%s517 + $0xa8] sm:$0xff]
      %v545 = vld [vmem:[%s517 + $0xb0] sm:$0xff]
      %v546 = vld [vmem:[%s517 + $0xb8] sm:$0xff]
      %v547 = vld [vmem:[%s517 + $0xc0] sm:$0xff]
      %v548 = vld [vmem:[%s517 + $0xc8] sm:$0xff]
      %v549 = vld [vmem:[%s517 + $0xd0] sm:$0xff]
      %v550 = vld [vmem:[%s517 + $0xd8] sm:$0xff]
      %v551 = vld [vmem:[%s517 + $0xe0] sm:$0xff]
      %v552 = vld [vmem:[%s517 + $0xe8] sm:$0xff]
      %v553 = vld [vmem:[%s517 + $0xf0] sm:$0xff]
      %v554 = vld [vmem:[%s517 + $0xf8] sm:$0xff]
      %v555 = vld [vmem:[%s517 + $0x100] sm:$0xff]
      %v556 = vld [vmem:[%s517 + $0x108] sm:$0xff]
      %v557 = vld [vmem:[%s517 + $0x110] sm:$0xff]
      %v558 = vld [vmem:[%s517 + $0x118] sm:$0xff]
      %v559 = vld [vmem:[%s517 + $0x120] sm:$0xff]
      %v560 = vld [vmem:[%s517 + $0x128] sm:$0xff]
      %v561 = vld [vmem:[%s517 + $0x130] sm:$0xff]
      %v562 = vld [vmem:[%s517 + $0x138] sm:$0xff]
      %v563 = vld [vmem:[%s517 + $0x140] sm:$0xff]
      %v564 = vld [vmem:[%s517 + $0x148] sm:$0xff]
      %v565 = vld [vmem:[%s517 + $0x150] sm:$0xff]
      %v566 = vld [vmem:[%s517 + $0x158] sm:$0xff]
      %v567 = vld [vmem:[%s517 + $0x160] sm:$0xff]
      %v568 = vld [vmem:[%s517 + $0x168] sm:$0xff]
      %v569 = vld [vmem:[%s517 + $0x170] sm:$0xff]
      %v570 = vld [vmem:[%s517 + $0x178] sm:$0xff]
      %v571 = vld [vmem:[%s517 + $0x180] sm:$0xff]
      %v572 = vld [vmem:[%s517 + $0x188] sm:$0xff]
      %v573 = vld [vmem:[%s517 + $0x190] sm:$0xff]
      %v574 = vld [vmem:[%s517 + $0x198] sm:$0xff]
      %v575 = vld [vmem:[%s517 + $0x1a0] sm:$0xff]
      %v576 = vld [vmem:[%s517 + $0x1a8] sm:$0xff]
      %v577 = vld [vmem:[%s517 + $0x1b0] sm:$0xff]
      %v578 = vld [vmem:[%s517 + $0x1b8] sm:$0xff]
      %v579 = vld [vmem:[%s517 + $0x1c0] sm:$0xff]
      %v580 = vld [vmem:[%s517 + $0x1c8] sm:$0xff]
      %v581 = vld [vmem:[%s517 + $0x1d0] sm:$0xff]
      %v582 = vld [vmem:[%s517 + $0x1d8] sm:$0xff]
      %v583 = vld [vmem:[%s517 + $0x1e0] sm:$0xff]
      %v584 = vld [vmem:[%s517 + $0x1e8] sm:$0xff]
      %v585 = vld [vmem:[%s517 + $0x1f0] sm:$0xff]
      %v586 = vld [vmem:[%s517 + $0x1f8] sm:$0xff]
      %v587 = vld [vmem:[%s517 + $0x200] sm:$0xff]
      %v588 = vld [vmem:[%s517 + $0x208] sm:$0xff]
      %v589 = vld [vmem:[%s517 + $0x210] sm:$0xff]
      %v590 = vld [vmem:[%s517 + $0x218] sm:$0xff]
      %v591 = vld [vmem:[%s517 + $0x220] sm:$0xff]
      %v592 = vld [vmem:[%s517 + $0x228] sm:$0xff]
      %v593 = vld [vmem:[%s517 + $0x230] sm:$0xff]
      %v594 = vld [vmem:[%s517 + $0x238] sm:$0xff]
      %v595 = vld [vmem:[%s517 + $0x240] sm:$0xff]
      %v596 = vld [vmem:[%s517 + $0x248] sm:$0xff]
      %v597 = vld [vmem:[%s517 + $0x250] sm:$0xff]
      %v598 = vld [vmem:[%s517 + $0x258] sm:$0xff]
      %v599 = vld [vmem:[%s517 + $0x260] sm:$0xff]
      %v600 = vld [vmem:[%s517 + $0x268] sm:$0xff]
      %v601 = vld [vmem:[%s517 + $0x270] sm:$0xff]
      %v602 = vld [vmem:[%s517 + $0x278] sm:$0xff]
      %v603 = vld [vmem:[%s517 + $0x280] sm:$0xff]
      %v604 = vld [vmem:[%s517 + $0x288] sm:$0xff]
      %v605 = vld [vmem:[%s517 + $0x290] sm:$0xff]
      %v606 = vld [vmem:[%s517 + $0x298] sm:$0xff]
      %v607 = vld [vmem:[%s517 + $0x2a0] sm:$0xff]
      %v608 = vld [vmem:[%s517 + $0x2a8] sm:$0xff]
      %v609 = vld [vmem:[%s517 + $0x2b0] sm:$0xff]
      %v610 = vld [vmem:[%s517 + $0x2b8] sm:$0xff]
      %v611 = vld [vmem:[%s517 + $0x2c0] sm:$0xff]
      %v612 = vld [vmem:[%s517 + $0x2c8] sm:$0xff]
      %v613 = vld [vmem:[%s517 + $0x2d0] sm:$0xff]
      %v614 = vld [vmem:[%s517 + $0x2d8] sm:$0xff]
      %v615 = vld [vmem:[%s517 + $0x2e0] sm:$0xff]
      %v616 = vld [vmem:[%s517 + $0x2e8] sm:$0xff]
      %v617 = vld [vmem:[%s517 + $0x2f0] sm:$0xff]
      %v618 = vld [vmem:[%s517 + $0x2f8] sm:$0xff]
      %v619 = vld [vmem:[%s517 + $0x300] sm:$0xff]
      %v620 = vld [vmem:[%s517 + $0x308] sm:$0xff]
      %v621 = vld [vmem:[%s517 + $0x310] sm:$0xff]
      %v622 = vld [vmem:[%s517 + $0x318] sm:$0xff]
      %v623 = vld [vmem:[%s517 + $0x320] sm:$0xff]
      %v624 = vld [vmem:[%s517 + $0x328] sm:$0xff]
      %v625 = vld [vmem:[%s517 + $0x330] sm:$0xff]
      %v626 = vld [vmem:[%s517 + $0x338] sm:$0xff]
      %v627 = vld [vmem:[%s517 + $0x340] sm:$0xff]
      %v628 = vld [vmem:[%s517 + $0x348] sm:$0xff]
      %v629 = vld [vmem:[%s517 + $0x350] sm:$0xff]
      %v630 = vld [vmem:[%s517 + $0x358] sm:$0xff]
      %v631 = vld [vmem:[%s517 + $0x360] sm:$0xff]
      %v632 = vld [vmem:[%s517 + $0x368] sm:$0xff]
      %v633 = vld [vmem:[%s517 + $0x370] sm:$0xff]
      %v634 = vld [vmem:[%s517 + $0x378] sm:$0xff]
      %v635 = vld [vmem:[%s517 + $0x380] sm:$0xff]
      %v636 = vld [vmem:[%s517 + $0x388] sm:$0xff]
      %v637 = vld [vmem:[%s517 + $0x390] sm:$0xff]
      %v638 = vld [vmem:[%s517 + $0x398] sm:$0xff]
      %v639 = vld [vmem:[%s517 + $0x3a0] sm:$0xff]
      %v640 = vld [vmem:[%s517 + $0x3a8] sm:$0xff]
      %v641 = vld [vmem:[%s517 + $0x3b0] sm:$0xff]
      %v642 = vld [vmem:[%s517 + $0x3b8] sm:$0xff]
      %v643 = vld [vmem:[%s517 + $0x3c0] sm:$0xff]
      %v644 = vld [vmem:[%s517 + $0x3c8] sm:$0xff]
      %v645 = vld [vmem:[%s517 + $0x3d0] sm:$0xff]
      %v646 = vld [vmem:[%s517 + $0x3d8] sm:$0xff]
      %v647 = vld [vmem:[%s517 + $0x3e0] sm:$0xff]
      %v648 = vld [vmem:[%s517 + $0x3e8] sm:$0xff]
      %v649 = vld [vmem:[%s517 + $0x3f0] sm:$0xff]
      %v650 = vld [vmem:[%s517 + $0x3f8] sm:$0xff]
      %v651 = vld [vmem:[%s517 + $0x400] sm:$0xff]
      %v652 = vld [vmem:[%s517 + $0x408] sm:$0xff]
      %v653 = vld [vmem:[%s517 + $0x410] sm:$0xff]
      %v654 = vld [vmem:[%s517 + $0x418] sm:$0xff]
      %v655 = vld [vmem:[%s517 + $0x420] sm:$0xff]
      %v656 = vld [vmem:[%s517 + $0x428] sm:$0xff]
      %v657 = vld [vmem:[%s517 + $0x430] sm:$0xff]
      %v658 = vld [vmem:[%s517 + $0x438] sm:$0xff]
      %v659 = vld [vmem:[%s517 + $0x440] sm:$0xff]
      %v660 = vld [vmem:[%s517 + $0x448] sm:$0xff]
      %v661 = vld [vmem:[%s517 + $0x450] sm:$0xff]
      %v662 = vld [vmem:[%s517 + $0x458] sm:$0xff]
      %v663 = vld [vmem:[%s517 + $0x460] sm:$0xff]
      %v664 = vld [vmem:[%s517 + $0x468] sm:$0xff]
      %v665 = vld [vmem:[%s517 + $0x470] sm:$0xff]
      %v666 = vld [vmem:[%s517 + $0x478] sm:$0xff]
      %v667 = vld [vmem:[%s517 + $0x480] sm:$0xff]
      %v668 = vld [vmem:[%s517 + $0x488] sm:$0xff]
      %v669 = vld [vmem:[%s517 + $0x490] sm:$0xff]
      %v670 = vld [vmem:[%s517 + $0x498] sm:$0xff]
      %v671 = vld [vmem:[%s517 + $0x4a0] sm:$0xff]
      %v672 = vld [vmem:[%s517 + $0x4a8] sm:$0xff]
      %v673 = vld [vmem:[%s517 + $0x4b0] sm:$0xff]
      %v674 = vld [vmem:[%s517 + $0x4b8] sm:$0xff]
      %v675 = vld [vmem:[%s517 + $0x4c0] sm:$0xff]
      %v676 = vld [vmem:[%s517 + $0x4c8] sm:$0xff]
      %v677 = vld [vmem:[%s517 + $0x4d0] sm:$0xff]
      %v678 = vld [vmem:[%s517 + $0x4d8] sm:$0xff]
      %v679 = vld [vmem:[%s517 + $0x4e0] sm:$0xff]
      %v680 = vld [vmem:[%s517 + $0x4e8] sm:$0xff]
      %v681 = vld [vmem:[%s517 + $0x4f0] sm:$0xff]
      %v682 = vld [vmem:[%s517 + $0x4f8] sm:$0xff]
      %v683 = vld [vmem:[%s517 + $0x500] sm:$0xff]
      %v684 = vld [vmem:[%s517 + $0x508] sm:$0xff]
      %v685 = vld [vmem:[%s517 + $0x510] sm:$0xff]
      %v686 = vld [vmem:[%s517 + $0x518] sm:$0xff]
      %v687 = vld [vmem:[%s517 + $0x520] sm:$0xff]
      %v688 = vld [vmem:[%s517 + $0x528] sm:$0xff]
      %v689 = vld [vmem:[%s517 + $0x530] sm:$0xff]
      %v690 = vld [vmem:[%s517 + $0x538] sm:$0xff]
      %v691 = vld [vmem:[%s517 + $0x540] sm:$0xff]
      %v692 = vld [vmem:[%s517 + $0x548] sm:$0xff]
      %v693 = vld [vmem:[%s517 + $0x550] sm:$0xff]
      %v694 = vld [vmem:[%s517 + $0x558] sm:$0xff]
      %v695 = vld [vmem:[%s517 + $0x560] sm:$0xff]
      %v696 = vld [vmem:[%s517 + $0x568] sm:$0xff]
      %v697 = vld [vmem:[%s517 + $0x570] sm:$0xff]
      %v698 = vld [vmem:[%s517 + $0x578] sm:$0xff]
      %v699 = vld [vmem:[%s517 + $0x580] sm:$0xff]
      %v700 = vld [vmem:[%s517 + $0x588] sm:$0xff]
      %v701 = vld [vmem:[%s517 + $0x590] sm:$0xff]
      %v702 = vld [vmem:[%s517 + $0x598] sm:$0xff]
      %v703 = vld [vmem:[%s517 + $0x5a0] sm:$0xff]
      %v704 = vld [vmem:[%s517 + $0x5a8] sm:$0xff]
      %v705 = vld [vmem:[%s517 + $0x5b0] sm:$0xff]
      %v706 = vld [vmem:[%s517 + $0x5b8] sm:$0xff]
      %v707 = vld [vmem:[%s517 + $0x5c0] sm:$0xff]
      %v708 = vld [vmem:[%s517 + $0x5c8] sm:$0xff]
      %v709 = vld [vmem:[%s517 + $0x5d0] sm:$0xff]
      %v710 = vld [vmem:[%s517 + $0x5d8] sm:$0xff]
      %v711 = vld [vmem:[%s517 + $0x5e0] sm:$0xff]
      %v712 = vld [vmem:[%s517 + $0x5e8] sm:$0xff]
      %v713 = vld [vmem:[%s517 + $0x5f0] sm:$0xff]
      %v714 = vld [vmem:[%s517 + $0x5f8] sm:$0xff]
      %v715 = vld [vmem:[%s517 + $0x600] sm:$0xff]
      %v716 = vld [vmem:[%s517 + $0x608] sm:$0xff]
      %v717 = vld [vmem:[%s517 + $0x610] sm:$0xff]
      %v718 = vld [vmem:[%s517 + $0x618] sm:$0xff]
      %v719 = vld [vmem:[%s517 + $0x620] sm:$0xff]
      %v720 = vld [vmem:[%s517 + $0x628] sm:$0xff]
      %v721 = vld [vmem:[%s517 + $0x630] sm:$0xff]
      %v722 = vld [vmem:[%s517 + $0x638] sm:$0xff]
      %v723 = vld [vmem:[%s517 + $0x640] sm:$0xff]
      %v724 = vld [vmem:[%s517 + $0x648] sm:$0xff]
      %v725 = vld [vmem:[%s517 + $0x650] sm:$0xff]
      %v726 = vld [vmem:[%s517 + $0x658] sm:$0xff]
      %v727 = vld [vmem:[%s517 + $0x660] sm:$0xff]
      %v728 = vld [vmem:[%s517 + $0x668] sm:$0xff]
      %v729 = vld [vmem:[%s517 + $0x670] sm:$0xff]
      %v730 = vld [vmem:[%s517 + $0x678] sm:$0xff]
      %v731 = vld [vmem:[%s517 + $0x680] sm:$0xff]
      %v732 = vld [vmem:[%s517 + $0x688] sm:$0xff]
      %v733 = vld [vmem:[%s517 + $0x690] sm:$0xff]
      %v734 = vld [vmem:[%s517 + $0x698] sm:$0xff]
      %v735 = vld [vmem:[%s517 + $0x6a0] sm:$0xff]
      %v736 = vld [vmem:[%s517 + $0x6a8] sm:$0xff]
      %v737 = vld [vmem:[%s517 + $0x6b0] sm:$0xff]
      %v738 = vld [vmem:[%s517 + $0x6b8] sm:$0xff]
      %v739 = vld [vmem:[%s517 + $0x6c0] sm:$0xff]
      %v740 = vld [vmem:[%s517 + $0x6c8] sm:$0xff]
      %v741 = vld [vmem:[%s517 + $0x6d0] sm:$0xff]
      %v742 = vld [vmem:[%s517 + $0x6d8] sm:$0xff]
      %v743 = vld [vmem:[%s517 + $0x6e0] sm:$0xff]
      %v744 = vld [vmem:[%s517 + $0x6e8] sm:$0xff]
      %v745 = vld [vmem:[%s517 + $0x6f0] sm:$0xff]
      %v746 = vld [vmem:[%s517 + $0x6f8] sm:$0xff]
      %v747 = vld [vmem:[%s517 + $0x700] sm:$0xff]
      %v748 = vld [vmem:[%s517 + $0x708] sm:$0xff]
      %v749 = vld [vmem:[%s517 + $0x710] sm:$0xff]
      %v750 = vld [vmem:[%s517 + $0x718] sm:$0xff]
      %v751 = vld [vmem:[%s517 + $0x720] sm:$0xff]
      %v752 = vld [vmem:[%s517 + $0x728] sm:$0xff]
      %v753 = vld [vmem:[%s517 + $0x730] sm:$0xff]
      %v754 = vld [vmem:[%s517 + $0x738] sm:$0xff]
      %v755 = vld [vmem:[%s517 + $0x740] sm:$0xff]
      %v756 = vld [vmem:[%s517 + $0x748] sm:$0xff]
      %v757 = vld [vmem:[%s517 + $0x750] sm:$0xff]
      %v758 = vld [vmem:[%s517 + $0x758] sm:$0xff]
      %v759 = vld [vmem:[%s517 + $0x760] sm:$0xff]
      %v760 = vld [vmem:[%s517 + $0x768] sm:$0xff]
      %v761 = vld [vmem:[%s517 + $0x770] sm:$0xff]
      %v762 = vld [vmem:[%s517 + $0x778] sm:$0xff]
      %v763 = vld [vmem:[%s517 + $0x780] sm:$0xff]
      %v764 = vld [vmem:[%s517 + $0x788] sm:$0xff]
      %v765 = vld [vmem:[%s517 + $0x790] sm:$0xff]
      %v766 = vld [vmem:[%s517 + $0x798] sm:$0xff]
      %v767 = vld [vmem:[%s517 + $0x7a0] sm:$0xff]
      %v768 = vld [vmem:[%s517 + $0x7a8] sm:$0xff]
      %v769 = vld [vmem:[%s517 + $0x7b0] sm:$0xff]
      %v770 = vld [vmem:[%s517 + $0x7b8] sm:$0xff]
      %v771 = vld [vmem:[%s517 + $0x7c0] sm:$0xff]
      %v772 = vld [vmem:[%s517 + $0x7c8] sm:$0xff]
      %v773 = vld [vmem:[%s517 + $0x7d0] sm:$0xff]
      %v774 = vld [vmem:[%s517 + $0x7d8] sm:$0xff]
      %v775 = vld [vmem:[%s517 + $0x7e0] sm:$0xff]
      %v776 = vld [vmem:[%s517 + $0x7e8] sm:$0xff]
      %v777 = vld [vmem:[%s517 + $0x7f0] sm:$0xff]
      %v778 = vld [vmem:[%s517 + $0x7f8] sm:$0xff]
      %v779 = vld [vmem:[%s517 + $0x800] sm:$0xff]
      %v780 = vld [vmem:[%s517 + $0x808] sm:$0xff]
      %v781 = vld [vmem:[%s517 + $0x810] sm:$0xff]
      %v782 = vld [vmem:[%s517 + $0x818] sm:$0xff]
      %v783 = vld [vmem:[%s517 + $0x820] sm:$0xff]
      %v784 = vld [vmem:[%s517 + $0x828] sm:$0xff]
      %v785 = vld [vmem:[%s517 + $0x830] sm:$0xff]
      %v786 = vld [vmem:[%s517 + $0x838] sm:$0xff]
      %v787 = vld [vmem:[%s517 + $0x840] sm:$0xff]
      %v788 = vld [vmem:[%s517 + $0x848] sm:$0xff]
      %v789 = vld [vmem:[%s517 + $0x850] sm:$0xff]
      %v790 = vld [vmem:[%s517 + $0x858] sm:$0xff]
      %v791 = vld [vmem:[%s517 + $0x860] sm:$0xff]
      %v792 = vld [vmem:[%s517 + $0x868] sm:$0xff]
      %v793 = vld [vmem:[%s517 + $0x870] sm:$0xff]
      %v794 = vld [vmem:[%s517 + $0x878] sm:$0xff]
      %v795 = vld [vmem:[%s517 + $0x880] sm:$0xff]
      %v796 = vld [vmem:[%s517 + $0x888] sm:$0xff]
      %v797 = vld [vmem:[%s517 + $0x890] sm:$0xff]
      %v798 = vld [vmem:[%s517 + $0x898] sm:$0xff]
      %v799 = vld [vmem:[%s517 + $0x8a0] sm:$0xff]
      %v800 = vld [vmem:[%s517 + $0x8a8] sm:$0xff]
      %v801 = vld [vmem:[%s517 + $0x8b0] sm:$0xff]
      %v802 = vld [vmem:[%s517 + $0x8b8] sm:$0xff]
      %v803 = vld [vmem:[%s517 + $0x8c0] sm:$0xff]
      %v804 = vld [vmem:[%s517 + $0x8c8] sm:$0xff]
      %v805 = vld [vmem:[%s517 + $0x8d0] sm:$0xff]
      %v806 = vld [vmem:[%s517 + $0x8d8] sm:$0xff]
      %v807 = vld [vmem:[%s517 + $0x8e0] sm:$0xff]
      %v808 = vld [vmem:[%s517 + $0x8e8] sm:$0xff]
      %v809 = vld [vmem:[%s517 + $0x8f0] sm:$0xff]
      %v810 = vld [vmem:[%s517 + $0x8f8] sm:$0xff]
      %v811 = vld [vmem:[%s517 + $0x900] sm:$0xff]
      %v812 = vld [vmem:[%s517 + $0x908] sm:$0xff]
      %v813 = vld [vmem:[%s517 + $0x910] sm:$0xff]
      %v814 = vld [vmem:[%s517 + $0x918] sm:$0xff]
      %v815 = vld [vmem:[%s517 + $0x920] sm:$0xff]
      %v816 = vld [vmem:[%s517 + $0x928] sm:$0xff]
      %v817 = vld [vmem:[%s517 + $0x930] sm:$0xff]
      %v818 = vld [vmem:[%s517 + $0x938] sm:$0xff]
      %v819 = vld [vmem:[%s517 + $0x940] sm:$0xff]
      %v820 = vld [vmem:[%s517 + $0x948] sm:$0xff]
      %v821 = vld [vmem:[%s517 + $0x950] sm:$0xff]
      %v822 = vld [vmem:[%s517 + $0x958] sm:$0xff]
      %v823 = vpack.c.bf16 %v535, %v523
      %v824 = vpack.c.bf16 %v536, %v524
      %v825 = vpack.c.bf16 %v537, %v525
      %v826 = vpack.c.bf16 %v538, %v526
      %v827 = vpack.c.bf16 %v539, %v527
      %v828 = vpack.c.bf16 %v540, %v528
      %v829 = vpack.c.bf16 %v541, %v529
      %v830 = vpack.c.bf16 %v542, %v530
      %v831 = vpack.c.bf16 %v543, %v531
      %v832 = vpack.c.bf16 %v544, %v532
      %v833 = vpack.c.bf16 %v545, %v533
      %v834 = vpack.c.bf16 %v546, %v534
      %v835 = vpack.c.bf16 %v559, %v547
      %v836 = vpack.c.bf16 %v560, %v548
      %v837 = vpack.c.bf16 %v561, %v549
      %v838 = vpack.c.bf16 %v562, %v550
      %v839 = vpack.c.bf16 %v563, %v551
      %v840 = vpack.c.bf16 %v564, %v552
      %v841 = vpack.c.bf16 %v565, %v553
      %v842 = vpack.c.bf16 %v566, %v554
      %v843 = vpack.c.bf16 %v567, %v555
      %v844 = vpack.c.bf16 %v568, %v556
      %v845 = vpack.c.bf16 %v569, %v557
      %v846 = vpack.c.bf16 %v570, %v558
      %v847 = vpack.c.bf16 %v583, %v571
      %v848 = vpack.c.bf16 %v584, %v572
      %v849 = vpack.c.bf16 %v585, %v573
      %v850 = vpack.c.bf16 %v586, %v574
      %v851 = vpack.c.bf16 %v587, %v575
      %v852 = vpack.c.bf16 %v588, %v576
      %v853 = vpack.c.bf16 %v589, %v577
      %v854 = vpack.c.bf16 %v590, %v578
      %v855 = vpack.c.bf16 %v591, %v579
      %v856 = vpack.c.bf16 %v592, %v580
      %v857 = vpack.c.bf16 %v593, %v581
      %v858 = vpack.c.bf16 %v594, %v582
      %v859 = vpack.c.bf16 %v607, %v595
      %v860 = vpack.c.bf16 %v608, %v596
      %v861 = vpack.c.bf16 %v609, %v597
      %v862 = vpack.c.bf16 %v610, %v598
      %v863 = vpack.c.bf16 %v611, %v599
      %v864 = vpack.c.bf16 %v612, %v600
      %v865 = vpack.c.bf16 %v613, %v601
      %v866 = vpack.c.bf16 %v614, %v602
      %v867 = vpack.c.bf16 %v615, %v603
      %v868 = vpack.c.bf16 %v616, %v604
      %v869 = vpack.c.bf16 %v617, %v605
      %v870 = vpack.c.bf16 %v618, %v606
      %v871 = vpack.c.bf16 %v631, %v619
      %v872 = vpack.c.bf16 %v632, %v620
      %v873 = vpack.c.bf16 %v633, %v621
      %v874 = vpack.c.bf16 %v634, %v622
      %v875 = vpack.c.bf16 %v635, %v623
      %v876 = vpack.c.bf16 %v636, %v624
      %v877 = vpack.c.bf16 %v637, %v625
      %v878 = vpack.c.bf16 %v638, %v626
      %v879 = vpack.c.bf16 %v639, %v627
      %v880 = vpack.c.bf16 %v640, %v628
      %v881 = vpack.c.bf16 %v641, %v629
      %v882 = vpack.c.bf16 %v642, %v630
      %v883 = vpack.c.bf16 %v655, %v643
      %v884 = vpack.c.bf16 %v656, %v644
      %v885 = vpack.c.bf16 %v657, %v645
      %v886 = vpack.c.bf16 %v658, %v646
      %v887 = vpack.c.bf16 %v659, %v647
      %v888 = vpack.c.bf16 %v660, %v648
      %v889 = vpack.c.bf16 %v661, %v649
      %v890 = vpack.c.bf16 %v662, %v650
      %v891 = vpack.c.bf16 %v663, %v651
      %v892 = vpack.c.bf16 %v664, %v652
      %v893 = vpack.c.bf16 %v665, %v653
      %v894 = vpack.c.bf16 %v666, %v654
      %v895 = vpack.c.bf16 %v679, %v667
      %v896 = vpack.c.bf16 %v680, %v668
      %v897 = vpack.c.bf16 %v681, %v669
      %v898 = vpack.c.bf16 %v682, %v670
      %v899 = vpack.c.bf16 %v683, %v671
      %v900 = vpack.c.bf16 %v684, %v672
      %v901 = vpack.c.bf16 %v685, %v673
      %v902 = vpack.c.bf16 %v686, %v674
      %v903 = vpack.c.bf16 %v687, %v675
      %v904 = vpack.c.bf16 %v688, %v676
      %v905 = vpack.c.bf16 %v689, %v677
      %v906 = vpack.c.bf16 %v690, %v678
      %v907 = vpack.c.bf16 %v703, %v691
      %v908 = vpack.c.bf16 %v704, %v692
      %v909 = vpack.c.bf16 %v705, %v693
      %v910 = vpack.c.bf16 %v706, %v694
      %v911 = vpack.c.bf16 %v707, %v695
      %v912 = vpack.c.bf16 %v708, %v696
      %v913 = vpack.c.bf16 %v709, %v697
      %v914 = vpack.c.bf16 %v710, %v698
      %v915 = vpack.c.bf16 %v711, %v699
      %v916 = vpack.c.bf16 %v712, %v700
      %v917 = vpack.c.bf16 %v713, %v701
      %v918 = vpack.c.bf16 %v714, %v702
      %v919 = vpack.c.bf16 %v727, %v715
      %v920 = vpack.c.bf16 %v728, %v716
      %v921 = vpack.c.bf16 %v729, %v717
      %v922 = vpack.c.bf16 %v730, %v718
      %v923 = vpack.c.bf16 %v731, %v719
      %v924 = vpack.c.bf16 %v732, %v720
      %v925 = vpack.c.bf16 %v733, %v721
      %v926 = vpack.c.bf16 %v734, %v722
      %v927 = vpack.c.bf16 %v735, %v723
      %v928 = vpack.c.bf16 %v736, %v724
      %v929 = vpack.c.bf16 %v737, %v725
      %v930 = vpack.c.bf16 %v738, %v726
      %v931 = vpack.c.bf16 %v751, %v739
      %v932 = vpack.c.bf16 %v752, %v740
      %v933 = vpack.c.bf16 %v753, %v741
      %v934 = vpack.c.bf16 %v754, %v742
      %v935 = vpack.c.bf16 %v755, %v743
      %v936 = vpack.c.bf16 %v756, %v744
      %v937 = vpack.c.bf16 %v757, %v745
      %v938 = vpack.c.bf16 %v758, %v746
      %v939 = vpack.c.bf16 %v759, %v747
      %v940 = vpack.c.bf16 %v760, %v748
      %v941 = vpack.c.bf16 %v761, %v749
      %v942 = vpack.c.bf16 %v762, %v750
      %v943 = vpack.c.bf16 %v775, %v763
      %v944 = vpack.c.bf16 %v776, %v764
      %v945 = vpack.c.bf16 %v777, %v765
      %v946 = vpack.c.bf16 %v778, %v766
      %v947 = vpack.c.bf16 %v779, %v767
      %v948 = vpack.c.bf16 %v780, %v768
      %v949 = vpack.c.bf16 %v781, %v769
      %v950 = vpack.c.bf16 %v782, %v770
      %v951 = vpack.c.bf16 %v783, %v771
      %v952 = vpack.c.bf16 %v784, %v772
      %v953 = vpack.c.bf16 %v785, %v773
      %v954 = vpack.c.bf16 %v786, %v774
      %v955 = vpack.c.bf16 %v799, %v787
      %v956 = vpack.c.bf16 %v800, %v788
      %v957 = vpack.c.bf16 %v801, %v789
      %v958 = vpack.c.bf16 %v802, %v790
      %v959 = vpack.c.bf16 %v803, %v791
      %v960 = vpack.c.bf16 %v804, %v792
      %v961 = vpack.c.bf16 %v805, %v793
      %v962 = vpack.c.bf16 %v806, %v794
      %v963 = vpack.c.bf16 %v807, %v795
      %v964 = vpack.c.bf16 %v808, %v796
      %v965 = vpack.c.bf16 %v809, %v797
      %v966 = vpack.c.bf16 %v810, %v798
      %v967 = vpack.c.bf16 %v811, %v811
      %v968 = vpack.c.bf16 %v812, %v812
      %v969 = vpack.c.bf16 %v813, %v813
      %v970 = vpack.c.bf16 %v814, %v814
      %v971 = vpack.c.bf16 %v815, %v815
      %v972 = vpack.c.bf16 %v816, %v816
      %v973 = vpack.c.bf16 %v817, %v817
      %v974 = vpack.c.bf16 %v818, %v818
      %v975 = vpack.c.bf16 %v819, %v819
      %v976 = vpack.c.bf16 %v820, %v820
      %v977 = vpack.c.bf16 %v821, %v821
      %v978 = vpack.c.bf16 %v822, %v822
      %v979 = vld [vmem:[%s1] sm:$0xff]
      %v980 = vld [vmem:[%s1 + $0x8] sm:$0xff]
      %v981 = vld [vmem:[%s1 + $0x10] sm:$0xff]
      %v982 = vld [vmem:[%s1 + $0x18] sm:$0xff]
      %v983 = vld [vmem:[%s1 + $0x20] sm:$0xff]
      %v984 = vld [vmem:[%s1 + $0x28] sm:$0xff]
      %v985 = vld [vmem:[%s1 + $0x30] sm:$0xff]
      %v986 = vld [vmem:[%s1 + $0x38] sm:$0xff]
      %v987 = vld [vmem:[%s1 + $0x40] sm:$0xff]
      %v988 = vld [vmem:[%s1 + $0x48] sm:$0xff]
      %v989 = vld [vmem:[%s1 + $0x50] sm:$0xff]
      %v990 = vld [vmem:[%s1 + $0x58] sm:$0xff]
      %v991 = vld [vmem:[%s1 + $0x60] sm:$0xff]
      %v992 = vld [vmem:[%s1 + $0x68] sm:$0xff]
      %v993 = vld [vmem:[%s1 + $0x70] sm:$0xff]
      %v994 = vld [vmem:[%s1 + $0x78] sm:$0xff]
      %v995 = vld [vmem:[%s1 + $0x80] sm:$0xff]
      %v996 = vld [vmem:[%s1 + $0x88] sm:$0xff]
      %v997 = vld [vmem:[%s1 + $0x90] sm:$0xff]
      %v998 = vld [vmem:[%s1 + $0x98] sm:$0xff]
      %v999 = vld [vmem:[%s1 + $0xa0] sm:$0xff]
      %v1000 = vld [vmem:[%s1 + $0xa8] sm:$0xff]
      %v1001 = vld [vmem:[%s1 + $0xb0] sm:$0xff]
      %v1002 = vld [vmem:[%s1 + $0xb8] sm:$0xff]
      %v1003 = vld [vmem:[%s1 + $0xc0] sm:$0xff]
      %v1004 = vld [vmem:[%s1 + $0xc8] sm:$0xff]
      %v1005 = vld [vmem:[%s1 + $0xd0] sm:$0xff]
      %v1006 = vld [vmem:[%s1 + $0xd8] sm:$0xff]
      %v1007 = vld [vmem:[%s1 + $0xe0] sm:$0xff]
      %v1008 = vld [vmem:[%s1 + $0xe8] sm:$0xff]
      %v1009 = vld [vmem:[%s1 + $0xf0] sm:$0xff]
      %v1010 = vld [vmem:[%s1 + $0xf8] sm:$0xff]
      %v1011 = vld [vmem:[%s1 + $0x100] sm:$0xff]
      %v1012 = vld [vmem:[%s1 + $0x108] sm:$0xff]
      %v1013 = vld [vmem:[%s1 + $0x110] sm:$0xff]
      %v1014 = vld [vmem:[%s1 + $0x118] sm:$0xff]
      %v1015 = vld [vmem:[%s1 + $0x120] sm:$0xff]
      %v1016 = vld [vmem:[%s1 + $0x128] sm:$0xff]
      %v1017 = vld [vmem:[%s1 + $0x130] sm:$0xff]
      %v1018 = vld [vmem:[%s1 + $0x138] sm:$0xff]
      %v1019 = vld [vmem:[%s1 + $0x140] sm:$0xff]
      %v1020 = vld [vmem:[%s1 + $0x148] sm:$0xff]
      %v1021 = vld [vmem:[%s1 + $0x150] sm:$0xff]
      %v1022 = vld [vmem:[%s1 + $0x158] sm:$0xff]
      %v1023 = vld [vmem:[%s1 + $0x160] sm:$0xff]
      %v1024 = vld [vmem:[%s1 + $0x168] sm:$0xff]
      %v1025 = vld [vmem:[%s1 + $0x170] sm:$0xff]
      %v1026 = vld [vmem:[%s1 + $0x178] sm:$0xff]
      %v1027 = vld [vmem:[%s1 + $0x180] sm:$0xff]
      %v1028 = vld [vmem:[%s1 + $0x188] sm:$0xff]
      %v1029 = vld [vmem:[%s1 + $0x190] sm:$0xff]
      %v1030 = vld [vmem:[%s1 + $0x198] sm:$0xff]
      %v1031 = vld [vmem:[%s1 + $0x1a0] sm:$0xff]
      %v1032 = vld [vmem:[%s1 + $0x1a8] sm:$0xff]
      %v1033 = vld [vmem:[%s1 + $0x1b0] sm:$0xff]
      %v1034 = vld [vmem:[%s1 + $0x1b8] sm:$0xff]
      %v1035 = vld [vmem:[%s1 + $0x1c0] sm:$0xff]
      %v1036 = vld [vmem:[%s1 + $0x1c8] sm:$0xff]
      %v1037 = vld [vmem:[%s1 + $0x1d0] sm:$0xff]
      %v1038 = vld [vmem:[%s1 + $0x1d8] sm:$0xff]
      %v1039 = vld [vmem:[%s1 + $0x1e0] sm:$0xff]
      %v1040 = vld [vmem:[%s1 + $0x1e8] sm:$0xff]
      %v1041 = vld [vmem:[%s1 + $0x1f0] sm:$0xff]
      %v1042 = vld [vmem:[%s1 + $0x1f8] sm:$0xff]
      %v1043 = vld [vmem:[%s1 + $0x200] sm:$0xff]
      %v1044 = vld [vmem:[%s1 + $0x208] sm:$0xff]
      %v1045 = vld [vmem:[%s1 + $0x210] sm:$0xff]
      %v1046 = vld [vmem:[%s1 + $0x218] sm:$0xff]
      %v1047 = vld [vmem:[%s1 + $0x220] sm:$0xff]
      %v1048 = vld [vmem:[%s1 + $0x228] sm:$0xff]
      %v1049 = vld [vmem:[%s1 + $0x230] sm:$0xff]
      %v1050 = vld [vmem:[%s1 + $0x238] sm:$0xff]
      %v1051 = vld [vmem:[%s1 + $0x240] sm:$0xff]
      %v1052 = vld [vmem:[%s1 + $0x248] sm:$0xff]
      %v1053 = vld [vmem:[%s1 + $0x250] sm:$0xff]
      %v1054 = vld [vmem:[%s1 + $0x258] sm:$0xff]
      %v1055 = vld [vmem:[%s1 + $0x260] sm:$0xff]
      %v1056 = vld [vmem:[%s1 + $0x268] sm:$0xff]
      %v1057 = vld [vmem:[%s1 + $0x270] sm:$0xff]
      %v1058 = vld [vmem:[%s1 + $0x278] sm:$0xff]
      %v1059 = vld [vmem:[%s1 + $0x280] sm:$0xff]
      %v1060 = vld [vmem:[%s1 + $0x288] sm:$0xff]
      %v1061 = vld [vmem:[%s1 + $0x290] sm:$0xff]
      %v1062 = vld [vmem:[%s1 + $0x298] sm:$0xff]
      %v1063 = vld [vmem:[%s1 + $0x2a0] sm:$0xff]
      %v1064 = vld [vmem:[%s1 + $0x2a8] sm:$0xff]
      %v1065 = vld [vmem:[%s1 + $0x2b0] sm:$0xff]
      %v1066 = vld [vmem:[%s1 + $0x2b8] sm:$0xff]
      %v1067 = vld [vmem:[%s1 + $0x2c0] sm:$0xff]
      %v1068 = vld [vmem:[%s1 + $0x2c8] sm:$0xff]
      %v1069 = vld [vmem:[%s1 + $0x2d0] sm:$0xff]
      %v1070 = vld [vmem:[%s1 + $0x2d8] sm:$0xff]
      %v1071 = vld [vmem:[%s1 + $0x2e0] sm:$0xff]
      %v1072 = vld [vmem:[%s1 + $0x2e8] sm:$0xff]
      %v1073 = vld [vmem:[%s1 + $0x2f0] sm:$0xff]
      %v1074 = vld [vmem:[%s1 + $0x2f8] sm:$0xff]
      %v1075 = vld [vmem:[%s1 + $0x300] sm:$0xff]
      %v1076 = vld [vmem:[%s1 + $0x308] sm:$0xff]
      %v1077 = vld [vmem:[%s1 + $0x310] sm:$0xff]
      %v1078 = vld [vmem:[%s1 + $0x318] sm:$0xff]
      %v1079 = vld [vmem:[%s1 + $0x320] sm:$0xff]
      %v1080 = vld [vmem:[%s1 + $0x328] sm:$0xff]
      %v1081 = vld [vmem:[%s1 + $0x330] sm:$0xff]
      %v1082 = vld [vmem:[%s1 + $0x338] sm:$0xff]
      %v1083 = vld [vmem:[%s1 + $0x340] sm:$0xff]
      %v1084 = vld [vmem:[%s1 + $0x348] sm:$0xff]
      %v1085 = vld [vmem:[%s1 + $0x350] sm:$0xff]
      %v1086 = vld [vmem:[%s1 + $0x358] sm:$0xff]
      %v1087 = vld [vmem:[%s1 + $0x360] sm:$0xff]
      %v1088 = vld [vmem:[%s1 + $0x368] sm:$0xff]
      %v1089 = vld [vmem:[%s1 + $0x370] sm:$0xff]
      %v1090 = vld [vmem:[%s1 + $0x378] sm:$0xff]
      %v1091 = vld [vmem:[%s1 + $0x380] sm:$0xff]
      %v1092 = vld [vmem:[%s1 + $0x388] sm:$0xff]
      %v1093 = vld [vmem:[%s1 + $0x390] sm:$0xff]
      %v1094 = vld [vmem:[%s1 + $0x398] sm:$0xff]
      %v1095 = vld [vmem:[%s1 + $0x3a0] sm:$0xff]
      %v1096 = vld [vmem:[%s1 + $0x3a8] sm:$0xff]
      %v1097 = vld [vmem:[%s1 + $0x3b0] sm:$0xff]
      %v1098 = vld [vmem:[%s1 + $0x3b8] sm:$0xff]
      %v1099 = vld [vmem:[%s1 + $0x3c0] sm:$0xff]
      %v1100 = vld [vmem:[%s1 + $0x3c8] sm:$0xff]
      %v1101 = vld [vmem:[%s1 + $0x3d0] sm:$0xff]
      %v1102 = vld [vmem:[%s1 + $0x3d8] sm:$0xff]
      %v1103 = vld [vmem:[%s1 + $0x3e0] sm:$0xff]
      %v1104 = vld [vmem:[%s1 + $0x3e8] sm:$0xff]
      %v1105 = vld [vmem:[%s1 + $0x3f0] sm:$0xff]
      %v1106 = vld [vmem:[%s1 + $0x3f8] sm:$0xff]
      %v1107 = vld [vmem:[%s1 + $0x400] sm:$0xff]
      %v1108 = vld [vmem:[%s1 + $0x408] sm:$0xff]
      %v1109 = vld [vmem:[%s1 + $0x410] sm:$0xff]
      %v1110 = vld [vmem:[%s1 + $0x418] sm:$0xff]
      %v1111 = vld [vmem:[%s1 + $0x420] sm:$0xff]
      %v1112 = vld [vmem:[%s1 + $0x428] sm:$0xff]
      %v1113 = vld [vmem:[%s1 + $0x430] sm:$0xff]
      %v1114 = vld [vmem:[%s1 + $0x438] sm:$0xff]
      %v1115 = vld [vmem:[%s1 + $0x440] sm:$0xff]
      %v1116 = vld [vmem:[%s1 + $0x448] sm:$0xff]
      %v1117 = vld [vmem:[%s1 + $0x450] sm:$0xff]
      %v1118 = vld [vmem:[%s1 + $0x458] sm:$0xff]
      %v1119 = vld [vmem:[%s1 + $0x460] sm:$0xff]
      %v1120 = vld [vmem:[%s1 + $0x468] sm:$0xff]
      %v1121 = vld [vmem:[%s1 + $0x470] sm:$0xff]
      %v1122 = vld [vmem:[%s1 + $0x478] sm:$0xff]
      %v1123 = vld [vmem:[%s1 + $0x480] sm:$0xff]
      %v1124 = vld [vmem:[%s1 + $0x488] sm:$0xff]
      %v1125 = vld [vmem:[%s1 + $0x490] sm:$0xff]
      %v1126 = vld [vmem:[%s1 + $0x498] sm:$0xff]
      %v1127 = vld [vmem:[%s1 + $0x4a0] sm:$0xff]
      %v1128 = vld [vmem:[%s1 + $0x4a8] sm:$0xff]
      %v1129 = vld [vmem:[%s1 + $0x4b0] sm:$0xff]
      %v1130 = vld [vmem:[%s1 + $0x4b8] sm:$0xff]
      %v1131 = vld [vmem:[%s1 + $0x4c0] sm:$0xff]
      %v1132 = vld [vmem:[%s1 + $0x4c8] sm:$0xff]
      %v1133 = vld [vmem:[%s1 + $0x4d0] sm:$0xff]
      %v1134 = vld [vmem:[%s1 + $0x4d8] sm:$0xff]
      %v1135 = vld [vmem:[%s1 + $0x4e0] sm:$0xff]
      %v1136 = vld [vmem:[%s1 + $0x4e8] sm:$0xff]
      %v1137 = vld [vmem:[%s1 + $0x4f0] sm:$0xff]
      %v1138 = vld [vmem:[%s1 + $0x4f8] sm:$0xff]
      %v1139 = vld [vmem:[%s1 + $0x500] sm:$0xff]
      %v1140 = vld [vmem:[%s1 + $0x508] sm:$0xff]
      %v1141 = vld [vmem:[%s1 + $0x510] sm:$0xff]
      %v1142 = vld [vmem:[%s1 + $0x518] sm:$0xff]
      %v1143 = vld [vmem:[%s1 + $0x520] sm:$0xff]
      %v1144 = vld [vmem:[%s1 + $0x528] sm:$0xff]
      %v1145 = vld [vmem:[%s1 + $0x530] sm:$0xff]
      %v1146 = vld [vmem:[%s1 + $0x538] sm:$0xff]
      %v1147 = vld [vmem:[%s1 + $0x540] sm:$0xff]
      %v1148 = vld [vmem:[%s1 + $0x548] sm:$0xff]
      %v1149 = vld [vmem:[%s1 + $0x550] sm:$0xff]
      %v1150 = vld [vmem:[%s1 + $0x558] sm:$0xff]
      %v1151 = vld [vmem:[%s1 + $0x560] sm:$0xff]
      %v1152 = vld [vmem:[%s1 + $0x568] sm:$0xff]
      %v1153 = vld [vmem:[%s1 + $0x570] sm:$0xff]
      %v1154 = vld [vmem:[%s1 + $0x578] sm:$0xff]
      %v1155 = vld [vmem:[%s1 + $0x580] sm:$0xff]
      %v1156 = vld [vmem:[%s1 + $0x588] sm:$0xff]
      %v1157 = vld [vmem:[%s1 + $0x590] sm:$0xff]
      %v1158 = vld [vmem:[%s1 + $0x598] sm:$0xff]
      %v1159 = vld [vmem:[%s1 + $0x5a0] sm:$0xff]
      %v1160 = vld [vmem:[%s1 + $0x5a8] sm:$0xff]
      %v1161 = vld [vmem:[%s1 + $0x5b0] sm:$0xff]
      %v1162 = vld [vmem:[%s1 + $0x5b8] sm:$0xff]
      %v1163 = vld [vmem:[%s1 + $0x5c0] sm:$0xff]
      %v1164 = vld [vmem:[%s1 + $0x5c8] sm:$0xff]
      %v1165 = vld [vmem:[%s1 + $0x5d0] sm:$0xff]
      %v1166 = vld [vmem:[%s1 + $0x5d8] sm:$0xff]
      %v1167 = vld [vmem:[%s1 + $0x5e0] sm:$0xff]
      %v1168 = vld [vmem:[%s1 + $0x5e8] sm:$0xff]
      %v1169 = vld [vmem:[%s1 + $0x5f0] sm:$0xff]
      %v1170 = vld [vmem:[%s1 + $0x5f8] sm:$0xff]
      %v1171 = vld [vmem:[%s1 + $0x600] sm:$0xff]
      %v1172 = vld [vmem:[%s1 + $0x608] sm:$0xff]
      %v1173 = vld [vmem:[%s1 + $0x610] sm:$0xff]
      %v1174 = vld [vmem:[%s1 + $0x618] sm:$0xff]
      %v1175 = vld [vmem:[%s1 + $0x620] sm:$0xff]
      %v1176 = vld [vmem:[%s1 + $0x628] sm:$0xff]
      %v1177 = vld [vmem:[%s1 + $0x630] sm:$0xff]
      %v1178 = vld [vmem:[%s1 + $0x638] sm:$0xff]
      %v1179 = vld [vmem:[%s1 + $0x640] sm:$0xff]
      %v1180 = vld [vmem:[%s1 + $0x648] sm:$0xff]
      %v1181 = vld [vmem:[%s1 + $0x650] sm:$0xff]
      %v1182 = vld [vmem:[%s1 + $0x658] sm:$0xff]
      %v1183 = vld [vmem:[%s1 + $0x660] sm:$0xff]
      %v1184 = vld [vmem:[%s1 + $0x668] sm:$0xff]
      %v1185 = vld [vmem:[%s1 + $0x670] sm:$0xff]
      %v1186 = vld [vmem:[%s1 + $0x678] sm:$0xff]
      %v1187 = vld [vmem:[%s1 + $0x680] sm:$0xff]
      %v1188 = vld [vmem:[%s1 + $0x688] sm:$0xff]
      %v1189 = vld [vmem:[%s1 + $0x690] sm:$0xff]
      %v1190 = vld [vmem:[%s1 + $0x698] sm:$0xff]
      %v1191 = vld [vmem:[%s1 + $0x6a0] sm:$0xff]
      %v1192 = vld [vmem:[%s1 + $0x6a8] sm:$0xff]
      %v1193 = vld [vmem:[%s1 + $0x6b0] sm:$0xff]
      %v1194 = vld [vmem:[%s1 + $0x6b8] sm:$0xff]
      %v1195 = vld [vmem:[%s1 + $0x6c0] sm:$0xff]
      %v1196 = vld [vmem:[%s1 + $0x6c8] sm:$0xff]
      %v1197 = vld [vmem:[%s1 + $0x6d0] sm:$0xff]
      %v1198 = vld [vmem:[%s1 + $0x6d8] sm:$0xff]
      %v1199 = vld [vmem:[%s1 + $0x6e0] sm:$0xff]
      %v1200 = vld [vmem:[%s1 + $0x6e8] sm:$0xff]
      %v1201 = vld [vmem:[%s1 + $0x6f0] sm:$0xff]
      %v1202 = vld [vmem:[%s1 + $0x6f8] sm:$0xff]
      %v1203 = vld [vmem:[%s1 + $0x700] sm:$0xff]
      %v1204 = vld [vmem:[%s1 + $0x708] sm:$0xff]
      %v1205 = vld [vmem:[%s1 + $0x710] sm:$0xff]
      %v1206 = vld [vmem:[%s1 + $0x718] sm:$0xff]
      %v1207 = vld [vmem:[%s1 + $0x720] sm:$0xff]
      %v1208 = vld [vmem:[%s1 + $0x728] sm:$0xff]
      %v1209 = vld [vmem:[%s1 + $0x730] sm:$0xff]
      %v1210 = vld [vmem:[%s1 + $0x738] sm:$0xff]
      %v1211 = vld [vmem:[%s1 + $0x740] sm:$0xff]
      %v1212 = vld [vmem:[%s1 + $0x748] sm:$0xff]
      %v1213 = vld [vmem:[%s1 + $0x750] sm:$0xff]
      %v1214 = vld [vmem:[%s1 + $0x758] sm:$0xff]
      %v1215 = vld [vmem:[%s1 + $0x760] sm:$0xff]
      %v1216 = vld [vmem:[%s1 + $0x768] sm:$0xff]
      %v1217 = vld [vmem:[%s1 + $0x770] sm:$0xff]
      %v1218 = vld [vmem:[%s1 + $0x778] sm:$0xff]
      %v1219 = vld [vmem:[%s1 + $0x780] sm:$0xff]
      %v1220 = vld [vmem:[%s1 + $0x788] sm:$0xff]
      %v1221 = vld [vmem:[%s1 + $0x790] sm:$0xff]
      %v1222 = vld [vmem:[%s1 + $0x798] sm:$0xff]
      %v1223 = vld [vmem:[%s1 + $0x7a0] sm:$0xff]
      %v1224 = vld [vmem:[%s1 + $0x7a8] sm:$0xff]
      %v1225 = vld [vmem:[%s1 + $0x7b0] sm:$0xff]
      %v1226 = vld [vmem:[%s1 + $0x7b8] sm:$0xff]
      %v1227 = vld [vmem:[%s1 + $0x7c0] sm:$0xff]
      %v1228 = vld [vmem:[%s1 + $0x7c8] sm:$0xff]
      %v1229 = vld [vmem:[%s1 + $0x7d0] sm:$0xff]
      %v1230 = vld [vmem:[%s1 + $0x7d8] sm:$0xff]
      %v1231 = vld [vmem:[%s1 + $0x7e0] sm:$0xff]
      %v1232 = vld [vmem:[%s1 + $0x7e8] sm:$0xff]
      %v1233 = vld [vmem:[%s1 + $0x7f0] sm:$0xff]
      %v1234 = vld [vmem:[%s1 + $0x7f8] sm:$0xff]
      %v1235 = vld [vmem:[%s1 + $0x800] sm:$0xff]
      %v1236 = vld [vmem:[%s1 + $0x808] sm:$0xff]
      %v1237 = vld [vmem:[%s1 + $0x810] sm:$0xff]
      %v1238 = vld [vmem:[%s1 + $0x818] sm:$0xff]
      %v1239 = vld [vmem:[%s1 + $0x820] sm:$0xff]
      %v1240 = vld [vmem:[%s1 + $0x828] sm:$0xff]
      %v1241 = vld [vmem:[%s1 + $0x830] sm:$0xff]
      %v1242 = vld [vmem:[%s1 + $0x838] sm:$0xff]
      %v1243 = vld [vmem:[%s1 + $0x840] sm:$0xff]
      %v1244 = vld [vmem:[%s1 + $0x848] sm:$0xff]
      %v1245 = vld [vmem:[%s1 + $0x850] sm:$0xff]
      %v1246 = vld [vmem:[%s1 + $0x858] sm:$0xff]
      %v1247 = vld [vmem:[%s1 + $0x860] sm:$0xff]
      %v1248 = vld [vmem:[%s1 + $0x868] sm:$0xff]
      %v1249 = vld [vmem:[%s1 + $0x870] sm:$0xff]
      %v1250 = vld [vmem:[%s1 + $0x878] sm:$0xff]
      %v1251 = vld [vmem:[%s1 + $0x880] sm:$0xff]
      %v1252 = vld [vmem:[%s1 + $0x888] sm:$0xff]
      %v1253 = vld [vmem:[%s1 + $0x890] sm:$0xff]
      %v1254 = vld [vmem:[%s1 + $0x898] sm:$0xff]
      %v1255 = vld [vmem:[%s1 + $0x8a0] sm:$0xff]
      %v1256 = vld [vmem:[%s1 + $0x8a8] sm:$0xff]
      %v1257 = vld [vmem:[%s1 + $0x8b0] sm:$0xff]
      %v1258 = vld [vmem:[%s1 + $0x8b8] sm:$0xff]
      %v1259 = vld [vmem:[%s1 + $0x8c0] sm:$0xff]
      %v1260 = vld [vmem:[%s1 + $0x8c8] sm:$0xff]
      %v1261 = vld [vmem:[%s1 + $0x8d0] sm:$0xff]
      %v1262 = vld [vmem:[%s1 + $0x8d8] sm:$0xff]
      %v1263 = vld [vmem:[%s1 + $0x8e0] sm:$0xff]
      %v1264 = vld [vmem:[%s1 + $0x8e8] sm:$0xff]
      %v1265 = vld [vmem:[%s1 + $0x8f0] sm:$0xff]
      %v1266 = vld [vmem:[%s1 + $0x8f8] sm:$0xff]
      %v1267 = vld [vmem:[%s1 + $0x900] sm:$0xff]
      %v1268 = vld [vmem:[%s1 + $0x908] sm:$0xff]
      %v1269 = vld [vmem:[%s1 + $0x910] sm:$0xff]
      %v1270 = vld [vmem:[%s1 + $0x918] sm:$0xff]
      %v1271 = vld [vmem:[%s1 + $0x920] sm:$0xff]
      %v1272 = vld [vmem:[%s1 + $0x928] sm:$0xff]
      %v1273 = vld [vmem:[%s1 + $0x930] sm:$0xff]
      %v1274 = vld [vmem:[%s1 + $0x938] sm:$0xff]
      %v1275 = vld [vmem:[%s1 + $0x940] sm:$0xff]
      %v1276 = vld [vmem:[%s1 + $0x948] sm:$0xff]
      %v1277 = vld [vmem:[%s1 + $0x950] sm:$0xff]
      %v1278 = vld [vmem:[%s1 + $0x958] sm:$0xff]
      %v1279 = vld [vmem:[%s1 + $0x960] sm:$0xff]
      %v1280 = vld [vmem:[%s1 + $0x968] sm:$0xff]
      %v1281 = vld [vmem:[%s1 + $0x970] sm:$0xff]
      %v1282 = vld [vmem:[%s1 + $0x978] sm:$0xff]
      %v1283 = vld [vmem:[%s1 + $0x980] sm:$0xff]
      %v1284 = vld [vmem:[%s1 + $0x988] sm:$0xff]
      %v1285 = vld [vmem:[%s1 + $0x990] sm:$0xff]
      %v1286 = vld [vmem:[%s1 + $0x998] sm:$0xff]
      %v1287 = vld [vmem:[%s1 + $0x9a0] sm:$0xff]
      %v1288 = vld [vmem:[%s1 + $0x9a8] sm:$0xff]
      %v1289 = vld [vmem:[%s1 + $0x9b0] sm:$0xff]
      %v1290 = vld [vmem:[%s1 + $0x9b8] sm:$0xff]
      %v1291 = vld [vmem:[%s1 + $0x9c0] sm:$0xff]
      %v1292 = vld [vmem:[%s1 + $0x9c8] sm:$0xff]
      %v1293 = vld [vmem:[%s1 + $0x9d0] sm:$0xff]
      %v1294 = vld [vmem:[%s1 + $0x9d8] sm:$0xff]
      %v1295 = vld [vmem:[%s1 + $0x9e0] sm:$0xff]
      %v1296 = vld [vmem:[%s1 + $0x9e8] sm:$0xff]
      %v1297 = vld [vmem:[%s1 + $0x9f0] sm:$0xff]
      %v1298 = vld [vmem:[%s1 + $0x9f8] sm:$0xff]
      %v1299 = vld [vmem:[%s1 + $0xa00] sm:$0xff]
      %v1300 = vld [vmem:[%s1 + $0xa08] sm:$0xff]
      %v1301 = vld [vmem:[%s1 + $0xa10] sm:$0xff]
      %v1302 = vld [vmem:[%s1 + $0xa18] sm:$0xff]
      %v1303 = vld [vmem:[%s1 + $0xa20] sm:$0xff]
      %v1304 = vld [vmem:[%s1 + $0xa28] sm:$0xff]
      %v1305 = vld [vmem:[%s1 + $0xa30] sm:$0xff]
      %v1306 = vld [vmem:[%s1 + $0xa38] sm:$0xff]
      %v1307 = vld [vmem:[%s1 + $0xa40] sm:$0xff]
      %v1308 = vld [vmem:[%s1 + $0xa48] sm:$0xff]
      %v1309 = vld [vmem:[%s1 + $0xa50] sm:$0xff]
      %v1310 = vld [vmem:[%s1 + $0xa58] sm:$0xff]
      %v1311 = vld [vmem:[%s1 + $0xa60] sm:$0xff]
      %v1312 = vld [vmem:[%s1 + $0xa68] sm:$0xff]
      %v1313 = vld [vmem:[%s1 + $0xa70] sm:$0xff]
      %v1314 = vld [vmem:[%s1 + $0xa78] sm:$0xff]
      %v1315 = vld [vmem:[%s1 + $0xa80] sm:$0xff]
      %v1316 = vld [vmem:[%s1 + $0xa88] sm:$0xff]
      %v1317 = vld [vmem:[%s1 + $0xa90] sm:$0xff]
      %v1318 = vld [vmem:[%s1 + $0xa98] sm:$0xff]
      %v1319 = vld [vmem:[%s1 + $0xaa0] sm:$0xff]
      %v1320 = vld [vmem:[%s1 + $0xaa8] sm:$0xff]
      %v1321 = vld [vmem:[%s1 + $0xab0] sm:$0xff]
      %v1322 = vld [vmem:[%s1 + $0xab8] sm:$0xff]
      %v1323 = vld [vmem:[%s1 + $0xac0] sm:$0xff]
      %v1324 = vld [vmem:[%s1 + $0xac8] sm:$0xff]
      %v1325 = vld [vmem:[%s1 + $0xad0] sm:$0xff]
      %v1326 = vld [vmem:[%s1 + $0xad8] sm:$0xff]
      %v1327 = vld [vmem:[%s1 + $0xae0] sm:$0xff]
      %v1328 = vld [vmem:[%s1 + $0xae8] sm:$0xff]
      %v1329 = vld [vmem:[%s1 + $0xaf0] sm:$0xff]
      %v1330 = vld [vmem:[%s1 + $0xaf8] sm:$0xff]
      %v1331 = vld [vmem:[%s1 + $0xb00] sm:$0xff]
      %v1332 = vld [vmem:[%s1 + $0xb08] sm:$0xff]
      %v1333 = vld [vmem:[%s1 + $0xb10] sm:$0xff]
      %v1334 = vld [vmem:[%s1 + $0xb18] sm:$0xff]
      %v1335 = vld [vmem:[%s1 + $0xb20] sm:$0xff]
      %v1336 = vld [vmem:[%s1 + $0xb28] sm:$0xff]
      %v1337 = vld [vmem:[%s1 + $0xb30] sm:$0xff]
      %v1338 = vld [vmem:[%s1 + $0xb38] sm:$0xff]
      %v1339 = vld [vmem:[%s1 + $0xb40] sm:$0xff]
      %v1340 = vld [vmem:[%s1 + $0xb48] sm:$0xff]
      %v1341 = vld [vmem:[%s1 + $0xb50] sm:$0xff]
      %v1342 = vld [vmem:[%s1 + $0xb58] sm:$0xff]
      %v1343 = vld [vmem:[%s1 + $0xb60] sm:$0xff]
      %v1344 = vld [vmem:[%s1 + $0xb68] sm:$0xff]
      %v1345 = vld [vmem:[%s1 + $0xb70] sm:$0xff]
      %v1346 = vld [vmem:[%s1 + $0xb78] sm:$0xff]
      %v1347 = vld [vmem:[%s1 + $0xb80] sm:$0xff]
      %v1348 = vld [vmem:[%s1 + $0xb88] sm:$0xff]
      %v1349 = vld [vmem:[%s1 + $0xb90] sm:$0xff]
      %v1350 = vld [vmem:[%s1 + $0xb98] sm:$0xff]
      %v1351 = vld [vmem:[%s1 + $0xba0] sm:$0xff]
      %v1352 = vld [vmem:[%s1 + $0xba8] sm:$0xff]
      %v1353 = vld [vmem:[%s1 + $0xbb0] sm:$0xff]
      %v1354 = vld [vmem:[%s1 + $0xbb8] sm:$0xff]
      %v1355 = vld [vmem:[%s1 + $0xbc0] sm:$0xff]
      %v1356 = vld [vmem:[%s1 + $0xbc8] sm:$0xff]
      %v1357 = vld [vmem:[%s1 + $0xbd0] sm:$0xff]
      %v1358 = vld [vmem:[%s1 + $0xbd8] sm:$0xff]
      %v1359 = vld [vmem:[%s1 + $0xbe0] sm:$0xff]
      %v1360 = vld [vmem:[%s1 + $0xbe8] sm:$0xff]
      %v1361 = vld [vmem:[%s1 + $0xbf0] sm:$0xff]
      %v1362 = vld [vmem:[%s1 + $0xbf8] sm:$0xff]
      %v1747 = vunpack.c.l.b16 %v979
      %v1748 = vunpack.c.h.b16 %v979
      %v1749 = vunpack.c.l.b16 %v980
      %v1750 = vunpack.c.h.b16 %v980
      %v1751 = vunpack.c.l.b16 %v981
      %v1752 = vunpack.c.h.b16 %v981
      %v1753 = vunpack.c.l.b16 %v982
      %v1754 = vunpack.c.h.b16 %v982
      %v1755 = vunpack.c.l.b16 %v983
      %v1756 = vunpack.c.h.b16 %v983
      %v1757 = vunpack.c.l.b16 %v984
      %v1758 = vunpack.c.h.b16 %v984
      %v1759 = vunpack.c.l.b16 %v985
      %v1760 = vunpack.c.h.b16 %v985
      %v1761 = vunpack.c.l.b16 %v986
      %v1762 = vunpack.c.h.b16 %v986
      %v1763 = vunpack.c.l.b16 %v987
      %v1764 = vunpack.c.h.b16 %v987
      %v1765 = vunpack.c.l.b16 %v988
      %v1766 = vunpack.c.h.b16 %v988
      %v1767 = vunpack.c.l.b16 %v989
      %v1768 = vunpack.c.h.b16 %v989
      %v1769 = vunpack.c.l.b16 %v990
      %v1770 = vunpack.c.h.b16 %v990
      %v1771 = vunpack.c.l.b16 %v991
      %v1772 = vunpack.c.h.b16 %v991
      %v1773 = vunpack.c.l.b16 %v992
      %v1774 = vunpack.c.h.b16 %v992
      %v1775 = vunpack.c.l.b16 %v993
      %v1776 = vunpack.c.h.b16 %v993
      %v1777 = vunpack.c.l.b16 %v994
      %v1778 = vunpack.c.h.b16 %v994
      %v1779 = vunpack.c.l.b16 %v995
      %v1780 = vunpack.c.h.b16 %v995
      %v1781 = vunpack.c.l.b16 %v996
      %v1782 = vunpack.c.h.b16 %v996
      %v1783 = vunpack.c.l.b16 %v997
      %v1784 = vunpack.c.h.b16 %v997
      %v1785 = vunpack.c.l.b16 %v998
      %v1786 = vunpack.c.h.b16 %v998
      %v1787 = vunpack.c.l.b16 %v999
      %v1788 = vunpack.c.h.b16 %v999
      %v1789 = vunpack.c.l.b16 %v1000
      %v1790 = vunpack.c.h.b16 %v1000
      %v1791 = vunpack.c.l.b16 %v1001
      %v1792 = vunpack.c.h.b16 %v1001
      %v1793 = vunpack.c.l.b16 %v1002
      %v1794 = vunpack.c.h.b16 %v1002
      %v1795 = vunpack.c.l.b16 %v1003
      %v1796 = vunpack.c.h.b16 %v1003
      %v1797 = vunpack.c.l.b16 %v1004
      %v1798 = vunpack.c.h.b16 %v1004
      %v1799 = vunpack.c.l.b16 %v1005
      %v1800 = vunpack.c.h.b16 %v1005
      %v1801 = vunpack.c.l.b16 %v1006
      %v1802 = vunpack.c.h.b16 %v1006
      %v1803 = vunpack.c.l.b16 %v1007
      %v1804 = vunpack.c.h.b16 %v1007
      %v1805 = vunpack.c.l.b16 %v1008
      %v1806 = vunpack.c.h.b16 %v1008
      %v1807 = vunpack.c.l.b16 %v1009
      %v1808 = vunpack.c.h.b16 %v1009
      %v1809 = vunpack.c.l.b16 %v1010
      %v1810 = vunpack.c.h.b16 %v1010
      %v1811 = vunpack.c.l.b16 %v1011
      %v1812 = vunpack.c.h.b16 %v1011
      %v1813 = vunpack.c.l.b16 %v1012
      %v1814 = vunpack.c.h.b16 %v1012
      %v1815 = vunpack.c.l.b16 %v1013
      %v1816 = vunpack.c.h.b16 %v1013
      %v1817 = vunpack.c.l.b16 %v1014
      %v1818 = vunpack.c.h.b16 %v1014
      %v1819 = vunpack.c.l.b16 %v1015
      %v1820 = vunpack.c.h.b16 %v1015
      %v1821 = vunpack.c.l.b16 %v1016
      %v1822 = vunpack.c.h.b16 %v1016
      %v1823 = vunpack.c.l.b16 %v1017
      %v1824 = vunpack.c.h.b16 %v1017
      %v1825 = vunpack.c.l.b16 %v1018
      %v1826 = vunpack.c.h.b16 %v1018
      %v1827 = vunpack.c.l.b16 %v1019
      %v1828 = vunpack.c.h.b16 %v1019
      %v1829 = vunpack.c.l.b16 %v1020
      %v1830 = vunpack.c.h.b16 %v1020
      %v1831 = vunpack.c.l.b16 %v1021
      %v1832 = vunpack.c.h.b16 %v1021
      %v1833 = vunpack.c.l.b16 %v1022
      %v1834 = vunpack.c.h.b16 %v1022
      %v1835 = vunpack.c.l.b16 %v1023
      %v1836 = vunpack.c.h.b16 %v1023
      %v1837 = vunpack.c.l.b16 %v1024
      %v1838 = vunpack.c.h.b16 %v1024
      %v1839 = vunpack.c.l.b16 %v1025
      %v1840 = vunpack.c.h.b16 %v1025
      %v1841 = vunpack.c.l.b16 %v1026
      %v1842 = vunpack.c.h.b16 %v1026
      %v1843 = vunpack.c.l.b16 %v1027
      %v1844 = vunpack.c.h.b16 %v1027
      %v1845 = vunpack.c.l.b16 %v1028
      %v1846 = vunpack.c.h.b16 %v1028
      %v1847 = vunpack.c.l.b16 %v1029
      %v1848 = vunpack.c.h.b16 %v1029
      %v1849 = vunpack.c.l.b16 %v1030
      %v1850 = vunpack.c.h.b16 %v1030
      %v1851 = vunpack.c.l.b16 %v1031
      %v1852 = vunpack.c.h.b16 %v1031
      %v1853 = vunpack.c.l.b16 %v1032
      %v1854 = vunpack.c.h.b16 %v1032
      %v1855 = vunpack.c.l.b16 %v1033
      %v1856 = vunpack.c.h.b16 %v1033
      %v1857 = vunpack.c.l.b16 %v1034
      %v1858 = vunpack.c.h.b16 %v1034
      %v1859 = vunpack.c.l.b16 %v1035
      %v1860 = vunpack.c.h.b16 %v1035
      %v1861 = vunpack.c.l.b16 %v1036
      %v1862 = vunpack.c.h.b16 %v1036
      %v1863 = vunpack.c.l.b16 %v1037
      %v1864 = vunpack.c.h.b16 %v1037
      %v1865 = vunpack.c.l.b16 %v1038
      %v1866 = vunpack.c.h.b16 %v1038
      %v1867 = vunpack.c.l.b16 %v1039
      %v1868 = vunpack.c.h.b16 %v1039
      %v1869 = vunpack.c.l.b16 %v1040
      %v1870 = vunpack.c.h.b16 %v1040
      %v1871 = vunpack.c.l.b16 %v1041
      %v1872 = vunpack.c.h.b16 %v1041
      %v1873 = vunpack.c.l.b16 %v1042
      %v1874 = vunpack.c.h.b16 %v1042
      %v1875 = vunpack.c.l.b16 %v1043
      %v1876 = vunpack.c.h.b16 %v1043
      %v1877 = vunpack.c.l.b16 %v1044
      %v1878 = vunpack.c.h.b16 %v1044
      %v1879 = vunpack.c.l.b16 %v1045
      %v1880 = vunpack.c.h.b16 %v1045
      %v1881 = vunpack.c.l.b16 %v1046
      %v1882 = vunpack.c.h.b16 %v1046
      %v1883 = vunpack.c.l.b16 %v1047
      %v1884 = vunpack.c.h.b16 %v1047
      %v1885 = vunpack.c.l.b16 %v1048
      %v1886 = vunpack.c.h.b16 %v1048
      %v1887 = vunpack.c.l.b16 %v1049
      %v1888 = vunpack.c.h.b16 %v1049
      %v1889 = vunpack.c.l.b16 %v1050
      %v1890 = vunpack.c.h.b16 %v1050
      %v1891 = vunpack.c.l.b16 %v1051
      %v1892 = vunpack.c.h.b16 %v1051
      %v1893 = vunpack.c.l.b16 %v1052
      %v1894 = vunpack.c.h.b16 %v1052
      %v1895 = vunpack.c.l.b16 %v1053
      %v1896 = vunpack.c.h.b16 %v1053
      %v1897 = vunpack.c.l.b16 %v1054
      %v1898 = vunpack.c.h.b16 %v1054
      %v1899 = vunpack.c.l.b16 %v1055
      %v1900 = vunpack.c.h.b16 %v1055
      %v1901 = vunpack.c.l.b16 %v1056
      %v1902 = vunpack.c.h.b16 %v1056
      %v1903 = vunpack.c.l.b16 %v1057
      %v1904 = vunpack.c.h.b16 %v1057
      %v1905 = vunpack.c.l.b16 %v1058
      %v1906 = vunpack.c.h.b16 %v1058
      %v1907 = vunpack.c.l.b16 %v1059
      %v1908 = vunpack.c.h.b16 %v1059
      %v1909 = vunpack.c.l.b16 %v1060
      %v1910 = vunpack.c.h.b16 %v1060
      %v1911 = vunpack.c.l.b16 %v1061
      %v1912 = vunpack.c.h.b16 %v1061
      %v1913 = vunpack.c.l.b16 %v1062
      %v1914 = vunpack.c.h.b16 %v1062
      %v1915 = vunpack.c.l.b16 %v1063
      %v1916 = vunpack.c.h.b16 %v1063
      %v1917 = vunpack.c.l.b16 %v1064
      %v1918 = vunpack.c.h.b16 %v1064
      %v1919 = vunpack.c.l.b16 %v1065
      %v1920 = vunpack.c.h.b16 %v1065
      %v1921 = vunpack.c.l.b16 %v1066
      %v1922 = vunpack.c.h.b16 %v1066
      %v1923 = vunpack.c.l.b16 %v1067
      %v1924 = vunpack.c.h.b16 %v1067
      %v1925 = vunpack.c.l.b16 %v1068
      %v1926 = vunpack.c.h.b16 %v1068
      %v1927 = vunpack.c.l.b16 %v1069
      %v1928 = vunpack.c.h.b16 %v1069
      %v1929 = vunpack.c.l.b16 %v1070
      %v1930 = vunpack.c.h.b16 %v1070
      %v1931 = vunpack.c.l.b16 %v1071
      %v1932 = vunpack.c.h.b16 %v1071
      %v1933 = vunpack.c.l.b16 %v1072
      %v1934 = vunpack.c.h.b16 %v1072
      %v1935 = vunpack.c.l.b16 %v1073
      %v1936 = vunpack.c.h.b16 %v1073
      %v1937 = vunpack.c.l.b16 %v1074
      %v1938 = vunpack.c.h.b16 %v1074
      %v1939 = vunpack.c.l.b16 %v1075
      %v1940 = vunpack.c.h.b16 %v1075
      %v1941 = vunpack.c.l.b16 %v1076
      %v1942 = vunpack.c.h.b16 %v1076
      %v1943 = vunpack.c.l.b16 %v1077
      %v1944 = vunpack.c.h.b16 %v1077
      %v1945 = vunpack.c.l.b16 %v1078
      %v1946 = vunpack.c.h.b16 %v1078
      %v1947 = vunpack.c.l.b16 %v1079
      %v1948 = vunpack.c.h.b16 %v1079
      %v1949 = vunpack.c.l.b16 %v1080
      %v1950 = vunpack.c.h.b16 %v1080
      %v1951 = vunpack.c.l.b16 %v1081
      %v1952 = vunpack.c.h.b16 %v1081
      %v1953 = vunpack.c.l.b16 %v1082
      %v1954 = vunpack.c.h.b16 %v1082
      %v1955 = vunpack.c.l.b16 %v1083
      %v1956 = vunpack.c.h.b16 %v1083
      %v1957 = vunpack.c.l.b16 %v1084
      %v1958 = vunpack.c.h.b16 %v1084
      %v1959 = vunpack.c.l.b16 %v1085
      %v1960 = vunpack.c.h.b16 %v1085
      %v1961 = vunpack.c.l.b16 %v1086
      %v1962 = vunpack.c.h.b16 %v1086
      %v1963 = vunpack.c.l.b16 %v1087
      %v1964 = vunpack.c.h.b16 %v1087
      %v1965 = vunpack.c.l.b16 %v1088
      %v1966 = vunpack.c.h.b16 %v1088
      %v1967 = vunpack.c.l.b16 %v1089
      %v1968 = vunpack.c.h.b16 %v1089
      %v1969 = vunpack.c.l.b16 %v1090
      %v1970 = vunpack.c.h.b16 %v1090
      %v1971 = vunpack.c.l.b16 %v1091
      %v1972 = vunpack.c.h.b16 %v1091
      %v1973 = vunpack.c.l.b16 %v1092
      %v1974 = vunpack.c.h.b16 %v1092
      %v1975 = vunpack.c.l.b16 %v1093
      %v1976 = vunpack.c.h.b16 %v1093
      %v1977 = vunpack.c.l.b16 %v1094
      %v1978 = vunpack.c.h.b16 %v1094
      %v1979 = vunpack.c.l.b16 %v1095
      %v1980 = vunpack.c.h.b16 %v1095
      %v1981 = vunpack.c.l.b16 %v1096
      %v1982 = vunpack.c.h.b16 %v1096
      %v1983 = vunpack.c.l.b16 %v1097
      %v1984 = vunpack.c.h.b16 %v1097
      %v1985 = vunpack.c.l.b16 %v1098
      %v1986 = vunpack.c.h.b16 %v1098
      %v1987 = vunpack.c.l.b16 %v1099
      %v1988 = vunpack.c.h.b16 %v1099
      %v1989 = vunpack.c.l.b16 %v1100
      %v1990 = vunpack.c.h.b16 %v1100
      %v1991 = vunpack.c.l.b16 %v1101
      %v1992 = vunpack.c.h.b16 %v1101
      %v1993 = vunpack.c.l.b16 %v1102
      %v1994 = vunpack.c.h.b16 %v1102
      %v1995 = vunpack.c.l.b16 %v1103
      %v1996 = vunpack.c.h.b16 %v1103
      %v1997 = vunpack.c.l.b16 %v1104
      %v1998 = vunpack.c.h.b16 %v1104
      %v1999 = vunpack.c.l.b16 %v1105
      %v2000 = vunpack.c.h.b16 %v1105
      %v2001 = vunpack.c.l.b16 %v1106
      %v2002 = vunpack.c.h.b16 %v1106
      %v2003 = vunpack.c.l.b16 %v1107
      %v2004 = vunpack.c.h.b16 %v1107
      %v2005 = vunpack.c.l.b16 %v1108
      %v2006 = vunpack.c.h.b16 %v1108
      %v2007 = vunpack.c.l.b16 %v1109
      %v2008 = vunpack.c.h.b16 %v1109
      %v2009 = vunpack.c.l.b16 %v1110
      %v2010 = vunpack.c.h.b16 %v1110
      %v2011 = vunpack.c.l.b16 %v1111
      %v2012 = vunpack.c.h.b16 %v1111
      %v2013 = vunpack.c.l.b16 %v1112
      %v2014 = vunpack.c.h.b16 %v1112
      %v2015 = vunpack.c.l.b16 %v1113
      %v2016 = vunpack.c.h.b16 %v1113
      %v2017 = vunpack.c.l.b16 %v1114
      %v2018 = vunpack.c.h.b16 %v1114
      %v2019 = vunpack.c.l.b16 %v1115
      %v2020 = vunpack.c.h.b16 %v1115
      %v2021 = vunpack.c.l.b16 %v1116
      %v2022 = vunpack.c.h.b16 %v1116
      %v2023 = vunpack.c.l.b16 %v1117
      %v2024 = vunpack.c.h.b16 %v1117
      %v2025 = vunpack.c.l.b16 %v1118
      %v2026 = vunpack.c.h.b16 %v1118
      %v2027 = vunpack.c.l.b16 %v1119
      %v2028 = vunpack.c.h.b16 %v1119
      %v2029 = vunpack.c.l.b16 %v1120
      %v2030 = vunpack.c.h.b16 %v1120
      %v2031 = vunpack.c.l.b16 %v1121
      %v2032 = vunpack.c.h.b16 %v1121
      %v2033 = vunpack.c.l.b16 %v1122
      %v2034 = vunpack.c.h.b16 %v1122
      %v2035 = vunpack.c.l.b16 %v1123
      %v2036 = vunpack.c.h.b16 %v1123
      %v2037 = vunpack.c.l.b16 %v1124
      %v2038 = vunpack.c.h.b16 %v1124
      %v2039 = vunpack.c.l.b16 %v1125
      %v2040 = vunpack.c.h.b16 %v1125
      %v2041 = vunpack.c.l.b16 %v1126
      %v2042 = vunpack.c.h.b16 %v1126
      %v2043 = vunpack.c.l.b16 %v1127
      %v2044 = vunpack.c.h.b16 %v1127
      %v2045 = vunpack.c.l.b16 %v1128
      %v2046 = vunpack.c.h.b16 %v1128
      %v2047 = vunpack.c.l.b16 %v1129
      %v2048 = vunpack.c.h.b16 %v1129
      %v2049 = vunpack.c.l.b16 %v1130
      %v2050 = vunpack.c.h.b16 %v1130
      %v2051 = vunpack.c.l.b16 %v1131
      %v2052 = vunpack.c.h.b16 %v1131
      %v2053 = vunpack.c.l.b16 %v1132
      %v2054 = vunpack.c.h.b16 %v1132
      %v2055 = vunpack.c.l.b16 %v1133
      %v2056 = vunpack.c.h.b16 %v1133
      %v2057 = vunpack.c.l.b16 %v1134
      %v2058 = vunpack.c.h.b16 %v1134
      %v2059 = vunpack.c.l.b16 %v1135
      %v2060 = vunpack.c.h.b16 %v1135
      %v2061 = vunpack.c.l.b16 %v1136
      %v2062 = vunpack.c.h.b16 %v1136
      %v2063 = vunpack.c.l.b16 %v1137
      %v2064 = vunpack.c.h.b16 %v1137
      %v2065 = vunpack.c.l.b16 %v1138
      %v2066 = vunpack.c.h.b16 %v1138
      %v2067 = vunpack.c.l.b16 %v1139
      %v2068 = vunpack.c.h.b16 %v1139
      %v2069 = vunpack.c.l.b16 %v1140
      %v2070 = vunpack.c.h.b16 %v1140
      %v2071 = vunpack.c.l.b16 %v1141
      %v2072 = vunpack.c.h.b16 %v1141
      %v2073 = vunpack.c.l.b16 %v1142
      %v2074 = vunpack.c.h.b16 %v1142
      %v2075 = vunpack.c.l.b16 %v1143
      %v2076 = vunpack.c.h.b16 %v1143
      %v2077 = vunpack.c.l.b16 %v1144
      %v2078 = vunpack.c.h.b16 %v1144
      %v2079 = vunpack.c.l.b16 %v1145
      %v2080 = vunpack.c.h.b16 %v1145
      %v2081 = vunpack.c.l.b16 %v1146
      %v2082 = vunpack.c.h.b16 %v1146
      %v2083 = vunpack.c.l.b16 %v1147
      %v2084 = vunpack.c.h.b16 %v1147
      %v2085 = vunpack.c.l.b16 %v1148
      %v2086 = vunpack.c.h.b16 %v1148
      %v2087 = vunpack.c.l.b16 %v1149
      %v2088 = vunpack.c.h.b16 %v1149
      %v2089 = vunpack.c.l.b16 %v1150
      %v2090 = vunpack.c.h.b16 %v1150
      %v2091 = vunpack.c.l.b16 %v1151
      %v2092 = vunpack.c.h.b16 %v1151
      %v2093 = vunpack.c.l.b16 %v1152
      %v2094 = vunpack.c.h.b16 %v1152
      %v2095 = vunpack.c.l.b16 %v1153
      %v2096 = vunpack.c.h.b16 %v1153
      %v2097 = vunpack.c.l.b16 %v1154
      %v2098 = vunpack.c.h.b16 %v1154
      %v2099 = vunpack.c.l.b16 %v1155
      %v2100 = vunpack.c.h.b16 %v1155
      %v2101 = vunpack.c.l.b16 %v1156
      %v2102 = vunpack.c.h.b16 %v1156
      %v2103 = vunpack.c.l.b16 %v1157
      %v2104 = vunpack.c.h.b16 %v1157
      %v2105 = vunpack.c.l.b16 %v1158
      %v2106 = vunpack.c.h.b16 %v1158
      %v2107 = vunpack.c.l.b16 %v1159
      %v2108 = vunpack.c.h.b16 %v1159
      %v2109 = vunpack.c.l.b16 %v1160
      %v2110 = vunpack.c.h.b16 %v1160
      %v2111 = vunpack.c.l.b16 %v1161
      %v2112 = vunpack.c.h.b16 %v1161
      %v2113 = vunpack.c.l.b16 %v1162
      %v2114 = vunpack.c.h.b16 %v1162
      %v2115 = vunpack.c.l.b16 %v1163
      %v2116 = vunpack.c.h.b16 %v1163
      %v2117 = vunpack.c.l.b16 %v1164
      %v2118 = vunpack.c.h.b16 %v1164
      %v2119 = vunpack.c.l.b16 %v1165
      %v2120 = vunpack.c.h.b16 %v1165
      %v2121 = vunpack.c.l.b16 %v1166
      %v2122 = vunpack.c.h.b16 %v1166
      %v2123 = vunpack.c.l.b16 %v1167
      %v2124 = vunpack.c.h.b16 %v1167
      %v2125 = vunpack.c.l.b16 %v1168
      %v2126 = vunpack.c.h.b16 %v1168
      %v2127 = vunpack.c.l.b16 %v1169
      %v2128 = vunpack.c.h.b16 %v1169
      %v2129 = vunpack.c.l.b16 %v1170
      %v2130 = vunpack.c.h.b16 %v1170
      %v2131 = vunpack.c.l.b16 %v1171
      %v2132 = vunpack.c.h.b16 %v1171
      %v2133 = vunpack.c.l.b16 %v1172
      %v2134 = vunpack.c.h.b16 %v1172
      %v2135 = vunpack.c.l.b16 %v1173
      %v2136 = vunpack.c.h.b16 %v1173
      %v2137 = vunpack.c.l.b16 %v1174
      %v2138 = vunpack.c.h.b16 %v1174
      %v2139 = vunpack.c.l.b16 %v1175
      %v2140 = vunpack.c.h.b16 %v1175
      %v2141 = vunpack.c.l.b16 %v1176
      %v2142 = vunpack.c.h.b16 %v1176
      %v2143 = vunpack.c.l.b16 %v1177
      %v2144 = vunpack.c.h.b16 %v1177
      %v2145 = vunpack.c.l.b16 %v1178
      %v2146 = vunpack.c.h.b16 %v1178
      %v2147 = vunpack.c.l.b16 %v1179
      %v2148 = vunpack.c.h.b16 %v1179
      %v2149 = vunpack.c.l.b16 %v1180
      %v2150 = vunpack.c.h.b16 %v1180
      %v2151 = vunpack.c.l.b16 %v1181
      %v2152 = vunpack.c.h.b16 %v1181
      %v2153 = vunpack.c.l.b16 %v1182
      %v2154 = vunpack.c.h.b16 %v1182
      %v2155 = vunpack.c.l.b16 %v1183
      %v2156 = vunpack.c.h.b16 %v1183
      %v2157 = vunpack.c.l.b16 %v1184
      %v2158 = vunpack.c.h.b16 %v1184
      %v2159 = vunpack.c.l.b16 %v1185
      %v2160 = vunpack.c.h.b16 %v1185
      %v2161 = vunpack.c.l.b16 %v1186
      %v2162 = vunpack.c.h.b16 %v1186
      %v2163 = vunpack.c.l.b16 %v1187
      %v2164 = vunpack.c.h.b16 %v1187
      %v2165 = vunpack.c.l.b16 %v1188
      %v2166 = vunpack.c.h.b16 %v1188
      %v2167 = vunpack.c.l.b16 %v1189
      %v2168 = vunpack.c.h.b16 %v1189
      %v2169 = vunpack.c.l.b16 %v1190
      %v2170 = vunpack.c.h.b16 %v1190
      %v2171 = vunpack.c.l.b16 %v1191
      %v2172 = vunpack.c.h.b16 %v1191
      %v2173 = vunpack.c.l.b16 %v1192
      %v2174 = vunpack.c.h.b16 %v1192
      %v2175 = vunpack.c.l.b16 %v1193
      %v2176 = vunpack.c.h.b16 %v1193
      %v2177 = vunpack.c.l.b16 %v1194
      %v2178 = vunpack.c.h.b16 %v1194
      %v2179 = vunpack.c.l.b16 %v1195
      %v2180 = vunpack.c.h.b16 %v1195
      %v2181 = vunpack.c.l.b16 %v1196
      %v2182 = vunpack.c.h.b16 %v1196
      %v2183 = vunpack.c.l.b16 %v1197
      %v2184 = vunpack.c.h.b16 %v1197
      %v2185 = vunpack.c.l.b16 %v1198
      %v2186 = vunpack.c.h.b16 %v1198
      %v2187 = vunpack.c.l.b16 %v1199
      %v2188 = vunpack.c.h.b16 %v1199
      %v2189 = vunpack.c.l.b16 %v1200
      %v2190 = vunpack.c.h.b16 %v1200
      %v2191 = vunpack.c.l.b16 %v1201
      %v2192 = vunpack.c.h.b16 %v1201
      %v2193 = vunpack.c.l.b16 %v1202
      %v2194 = vunpack.c.h.b16 %v1202
      %v2195 = vunpack.c.l.b16 %v1203
      %v2196 = vunpack.c.h.b16 %v1203
      %v2197 = vunpack.c.l.b16 %v1204
      %v2198 = vunpack.c.h.b16 %v1204
      %v2199 = vunpack.c.l.b16 %v1205
      %v2200 = vunpack.c.h.b16 %v1205
      %v2201 = vunpack.c.l.b16 %v1206
      %v2202 = vunpack.c.h.b16 %v1206
      %v2203 = vunpack.c.l.b16 %v1207
      %v2204 = vunpack.c.h.b16 %v1207
      %v2205 = vunpack.c.l.b16 %v1208
      %v2206 = vunpack.c.h.b16 %v1208
      %v2207 = vunpack.c.l.b16 %v1209
      %v2208 = vunpack.c.h.b16 %v1209
      %v2209 = vunpack.c.l.b16 %v1210
      %v2210 = vunpack.c.h.b16 %v1210
      %v2211 = vunpack.c.l.b16 %v1211
      %v2212 = vunpack.c.h.b16 %v1211
      %v2213 = vunpack.c.l.b16 %v1212
      %v2214 = vunpack.c.h.b16 %v1212
      %v2215 = vunpack.c.l.b16 %v1213
      %v2216 = vunpack.c.h.b16 %v1213
      %v2217 = vunpack.c.l.b16 %v1214
      %v2218 = vunpack.c.h.b16 %v1214
      %v2219 = vunpack.c.l.b16 %v1215
      %v2220 = vunpack.c.h.b16 %v1215
      %v2221 = vunpack.c.l.b16 %v1216
      %v2222 = vunpack.c.h.b16 %v1216
      %v2223 = vunpack.c.l.b16 %v1217
      %v2224 = vunpack.c.h.b16 %v1217
      %v2225 = vunpack.c.l.b16 %v1218
      %v2226 = vunpack.c.h.b16 %v1218
      %v2227 = vunpack.c.l.b16 %v1219
      %v2228 = vunpack.c.h.b16 %v1219
      %v2229 = vunpack.c.l.b16 %v1220
      %v2230 = vunpack.c.h.b16 %v1220
      %v2231 = vunpack.c.l.b16 %v1221
      %v2232 = vunpack.c.h.b16 %v1221
      %v2233 = vunpack.c.l.b16 %v1222
      %v2234 = vunpack.c.h.b16 %v1222
      %v2235 = vunpack.c.l.b16 %v1223
      %v2236 = vunpack.c.h.b16 %v1223
      %v2237 = vunpack.c.l.b16 %v1224
      %v2238 = vunpack.c.h.b16 %v1224
      %v2239 = vunpack.c.l.b16 %v1225
      %v2240 = vunpack.c.h.b16 %v1225
      %v2241 = vunpack.c.l.b16 %v1226
      %v2242 = vunpack.c.h.b16 %v1226
      %v2243 = vunpack.c.l.b16 %v1227
      %v2244 = vunpack.c.h.b16 %v1227
      %v2245 = vunpack.c.l.b16 %v1228
      %v2246 = vunpack.c.h.b16 %v1228
      %v2247 = vunpack.c.l.b16 %v1229
      %v2248 = vunpack.c.h.b16 %v1229
      %v2249 = vunpack.c.l.b16 %v1230
      %v2250 = vunpack.c.h.b16 %v1230
      %v2251 = vunpack.c.l.b16 %v1231
      %v2252 = vunpack.c.h.b16 %v1231
      %v2253 = vunpack.c.l.b16 %v1232
      %v2254 = vunpack.c.h.b16 %v1232
      %v2255 = vunpack.c.l.b16 %v1233
      %v2256 = vunpack.c.h.b16 %v1233
      %v2257 = vunpack.c.l.b16 %v1234
      %v2258 = vunpack.c.h.b16 %v1234
      %v2259 = vunpack.c.l.b16 %v1235
      %v2260 = vunpack.c.h.b16 %v1235
      %v2261 = vunpack.c.l.b16 %v1236
      %v2262 = vunpack.c.h.b16 %v1236
      %v2263 = vunpack.c.l.b16 %v1237
      %v2264 = vunpack.c.h.b16 %v1237
      %v2265 = vunpack.c.l.b16 %v1238
      %v2266 = vunpack.c.h.b16 %v1238
      %v2267 = vunpack.c.l.b16 %v1239
      %v2268 = vunpack.c.h.b16 %v1239
      %v2269 = vunpack.c.l.b16 %v1240
      %v2270 = vunpack.c.h.b16 %v1240
      %v2271 = vunpack.c.l.b16 %v1241
      %v2272 = vunpack.c.h.b16 %v1241
      %v2273 = vunpack.c.l.b16 %v1242
      %v2274 = vunpack.c.h.b16 %v1242
      %v2275 = vunpack.c.l.b16 %v1243
      %v2276 = vunpack.c.h.b16 %v1243
      %v2277 = vunpack.c.l.b16 %v1244
      %v2278 = vunpack.c.h.b16 %v1244
      %v2279 = vunpack.c.l.b16 %v1245
      %v2280 = vunpack.c.h.b16 %v1245
      %v2281 = vunpack.c.l.b16 %v1246
      %v2282 = vunpack.c.h.b16 %v1246
      %v2283 = vunpack.c.l.b16 %v1247
      %v2284 = vunpack.c.h.b16 %v1247
      %v2285 = vunpack.c.l.b16 %v1248
      %v2286 = vunpack.c.h.b16 %v1248
      %v2287 = vunpack.c.l.b16 %v1249
      %v2288 = vunpack.c.h.b16 %v1249
      %v2289 = vunpack.c.l.b16 %v1250
      %v2290 = vunpack.c.h.b16 %v1250
      %v2291 = vunpack.c.l.b16 %v1251
      %v2292 = vunpack.c.h.b16 %v1251
      %v2293 = vunpack.c.l.b16 %v1252
      %v2294 = vunpack.c.h.b16 %v1252
      %v2295 = vunpack.c.l.b16 %v1253
      %v2296 = vunpack.c.h.b16 %v1253
      %v2297 = vunpack.c.l.b16 %v1254
      %v2298 = vunpack.c.h.b16 %v1254
      %v2299 = vunpack.c.l.b16 %v1255
      %v2300 = vunpack.c.h.b16 %v1255
      %v2301 = vunpack.c.l.b16 %v1256
      %v2302 = vunpack.c.h.b16 %v1256
      %v2303 = vunpack.c.l.b16 %v1257
      %v2304 = vunpack.c.h.b16 %v1257
      %v2305 = vunpack.c.l.b16 %v1258
      %v2306 = vunpack.c.h.b16 %v1258
      %v2307 = vunpack.c.l.b16 %v1259
      %v2308 = vunpack.c.h.b16 %v1259
      %v2309 = vunpack.c.l.b16 %v1260
      %v2310 = vunpack.c.h.b16 %v1260
      %v2311 = vunpack.c.l.b16 %v1261
      %v2312 = vunpack.c.h.b16 %v1261
      %v2313 = vunpack.c.l.b16 %v1262
      %v2314 = vunpack.c.h.b16 %v1262
      %v2315 = vunpack.c.l.b16 %v1263
      %v2316 = vunpack.c.h.b16 %v1263
      %v2317 = vunpack.c.l.b16 %v1264
      %v2318 = vunpack.c.h.b16 %v1264
      %v2319 = vunpack.c.l.b16 %v1265
      %v2320 = vunpack.c.h.b16 %v1265
      %v2321 = vunpack.c.l.b16 %v1266
      %v2322 = vunpack.c.h.b16 %v1266
      %v2323 = vunpack.c.l.b16 %v1267
      %v2324 = vunpack.c.h.b16 %v1267
      %v2325 = vunpack.c.l.b16 %v1268
      %v2326 = vunpack.c.h.b16 %v1268
      %v2327 = vunpack.c.l.b16 %v1269
      %v2328 = vunpack.c.h.b16 %v1269
      %v2329 = vunpack.c.l.b16 %v1270
      %v2330 = vunpack.c.h.b16 %v1270
      %v2331 = vunpack.c.l.b16 %v1271
      %v2332 = vunpack.c.h.b16 %v1271
      %v2333 = vunpack.c.l.b16 %v1272
      %v2334 = vunpack.c.h.b16 %v1272
      %v2335 = vunpack.c.l.b16 %v1273
      %v2336 = vunpack.c.h.b16 %v1273
      %v2337 = vunpack.c.l.b16 %v1274
      %v2338 = vunpack.c.h.b16 %v1274
      %v2339 = vunpack.c.l.b16 %v1275
      %v2340 = vunpack.c.h.b16 %v1275
      %v2341 = vunpack.c.l.b16 %v1276
      %v2342 = vunpack.c.h.b16 %v1276
      %v2343 = vunpack.c.l.b16 %v1277
      %v2344 = vunpack.c.h.b16 %v1277
      %v2345 = vunpack.c.l.b16 %v1278
      %v2346 = vunpack.c.h.b16 %v1278
      %v2347 = vunpack.c.l.b16 %v1279
      %v2348 = vunpack.c.h.b16 %v1279
      %v2349 = vunpack.c.l.b16 %v1280
      %v2350 = vunpack.c.h.b16 %v1280
      %v2351 = vunpack.c.l.b16 %v1281
      %v2352 = vunpack.c.h.b16 %v1281
      %v2353 = vunpack.c.l.b16 %v1282
      %v2354 = vunpack.c.h.b16 %v1282
      %v2355 = vunpack.c.l.b16 %v1283
      %v2356 = vunpack.c.h.b16 %v1283
      %v2357 = vunpack.c.l.b16 %v1284
      %v2358 = vunpack.c.h.b16 %v1284
      %v2359 = vunpack.c.l.b16 %v1285
      %v2360 = vunpack.c.h.b16 %v1285
      %v2361 = vunpack.c.l.b16 %v1286
      %v2362 = vunpack.c.h.b16 %v1286
      %v2363 = vunpack.c.l.b16 %v1287
      %v2364 = vunpack.c.h.b16 %v1287
      %v2365 = vunpack.c.l.b16 %v1288
      %v2366 = vunpack.c.h.b16 %v1288
      %v2367 = vunpack.c.l.b16 %v1289
      %v2368 = vunpack.c.h.b16 %v1289
      %v2369 = vunpack.c.l.b16 %v1290
      %v2370 = vunpack.c.h.b16 %v1290
      %v2371 = vunpack.c.l.b16 %v1291
      %v2372 = vunpack.c.h.b16 %v1291
      %v2373 = vunpack.c.l.b16 %v1292
      %v2374 = vunpack.c.h.b16 %v1292
      %v2375 = vunpack.c.l.b16 %v1293
      %v2376 = vunpack.c.h.b16 %v1293
      %v2377 = vunpack.c.l.b16 %v1294
      %v2378 = vunpack.c.h.b16 %v1294
      %v2379 = vunpack.c.l.b16 %v1295
      %v2380 = vunpack.c.h.b16 %v1295
      %v2381 = vunpack.c.l.b16 %v1296
      %v2382 = vunpack.c.h.b16 %v1296
      %v2383 = vunpack.c.l.b16 %v1297
      %v2384 = vunpack.c.h.b16 %v1297
      %v2385 = vunpack.c.l.b16 %v1298
      %v2386 = vunpack.c.h.b16 %v1298
      %v2387 = vunpack.c.l.b16 %v1299
      %v2388 = vunpack.c.h.b16 %v1299
      %v2389 = vunpack.c.l.b16 %v1300
      %v2390 = vunpack.c.h.b16 %v1300
      %v2391 = vunpack.c.l.b16 %v1301
      %v2392 = vunpack.c.h.b16 %v1301
      %v2393 = vunpack.c.l.b16 %v1302
      %v2394 = vunpack.c.h.b16 %v1302
      %v2395 = vunpack.c.l.b16 %v1303
      %v2396 = vunpack.c.h.b16 %v1303
      %v2397 = vunpack.c.l.b16 %v1304
      %v2398 = vunpack.c.h.b16 %v1304
      %v2399 = vunpack.c.l.b16 %v1305
      %v2400 = vunpack.c.h.b16 %v1305
      %v2401 = vunpack.c.l.b16 %v1306
      %v2402 = vunpack.c.h.b16 %v1306
      %v2403 = vunpack.c.l.b16 %v1307
      %v2404 = vunpack.c.h.b16 %v1307
      %v2405 = vunpack.c.l.b16 %v1308
      %v2406 = vunpack.c.h.b16 %v1308
      %v2407 = vunpack.c.l.b16 %v1309
      %v2408 = vunpack.c.h.b16 %v1309
      %v2409 = vunpack.c.l.b16 %v1310
      %v2410 = vunpack.c.h.b16 %v1310
      %v2411 = vunpack.c.l.b16 %v1311
      %v2412 = vunpack.c.h.b16 %v1311
      %v2413 = vunpack.c.l.b16 %v1312
      %v2414 = vunpack.c.h.b16 %v1312
      %v2415 = vunpack.c.l.b16 %v1313
      %v2416 = vunpack.c.h.b16 %v1313
      %v2417 = vunpack.c.l.b16 %v1314
      %v2418 = vunpack.c.h.b16 %v1314
      %v2419 = vunpack.c.l.b16 %v1315
      %v2420 = vunpack.c.h.b16 %v1315
      %v2421 = vunpack.c.l.b16 %v1316
      %v2422 = vunpack.c.h.b16 %v1316
      %v2423 = vunpack.c.l.b16 %v1317
      %v2424 = vunpack.c.h.b16 %v1317
      %v2425 = vunpack.c.l.b16 %v1318
      %v2426 = vunpack.c.h.b16 %v1318
      %v2427 = vunpack.c.l.b16 %v1319
      %v2428 = vunpack.c.h.b16 %v1319
      %v2429 = vunpack.c.l.b16 %v1320
      %v2430 = vunpack.c.h.b16 %v1320
      %v2431 = vunpack.c.l.b16 %v1321
      %v2432 = vunpack.c.h.b16 %v1321
      %v2433 = vunpack.c.l.b16 %v1322
      %v2434 = vunpack.c.h.b16 %v1322
      %v2435 = vunpack.c.l.b16 %v1323
      %v2436 = vunpack.c.h.b16 %v1323
      %v2437 = vunpack.c.l.b16 %v1324
      %v2438 = vunpack.c.h.b16 %v1324
      %v2439 = vunpack.c.l.b16 %v1325
      %v2440 = vunpack.c.h.b16 %v1325
      %v2441 = vunpack.c.l.b16 %v1326
      %v2442 = vunpack.c.h.b16 %v1326
      %v2443 = vunpack.c.l.b16 %v1327
      %v2444 = vunpack.c.h.b16 %v1327
      %v2445 = vunpack.c.l.b16 %v1328
      %v2446 = vunpack.c.h.b16 %v1328
      %v2447 = vunpack.c.l.b16 %v1329
      %v2448 = vunpack.c.h.b16 %v1329
      %v2449 = vunpack.c.l.b16 %v1330
      %v2450 = vunpack.c.h.b16 %v1330
      %v2451 = vunpack.c.l.b16 %v1331
      %v2452 = vunpack.c.h.b16 %v1331
      %v2453 = vunpack.c.l.b16 %v1332
      %v2454 = vunpack.c.h.b16 %v1332
      %v2455 = vunpack.c.l.b16 %v1333
      %v2456 = vunpack.c.h.b16 %v1333
      %v2457 = vunpack.c.l.b16 %v1334
      %v2458 = vunpack.c.h.b16 %v1334
      %v2459 = vunpack.c.l.b16 %v1335
      %v2460 = vunpack.c.h.b16 %v1335
      %v2461 = vunpack.c.l.b16 %v1336
      %v2462 = vunpack.c.h.b16 %v1336
      %v2463 = vunpack.c.l.b16 %v1337
      %v2464 = vunpack.c.h.b16 %v1337
      %v2465 = vunpack.c.l.b16 %v1338
      %v2466 = vunpack.c.h.b16 %v1338
      %v2467 = vunpack.c.l.b16 %v1339
      %v2468 = vunpack.c.h.b16 %v1339
      %v2469 = vunpack.c.l.b16 %v1340
      %v2470 = vunpack.c.h.b16 %v1340
      %v2471 = vunpack.c.l.b16 %v1341
      %v2472 = vunpack.c.h.b16 %v1341
      %v2473 = vunpack.c.l.b16 %v1342
      %v2474 = vunpack.c.h.b16 %v1342
      %v2475 = vunpack.c.l.b16 %v1343
      %v2476 = vunpack.c.h.b16 %v1343
      %v2477 = vunpack.c.l.b16 %v1344
      %v2478 = vunpack.c.h.b16 %v1344
      %v2479 = vunpack.c.l.b16 %v1345
      %v2480 = vunpack.c.h.b16 %v1345
      %v2481 = vunpack.c.l.b16 %v1346
      %v2482 = vunpack.c.h.b16 %v1346
      %v2483 = vunpack.c.l.b16 %v1347
      %v2484 = vunpack.c.h.b16 %v1347
      %v2485 = vunpack.c.l.b16 %v1348
      %v2486 = vunpack.c.h.b16 %v1348
      %v2487 = vunpack.c.l.b16 %v1349
      %v2488 = vunpack.c.h.b16 %v1349
      %v2489 = vunpack.c.l.b16 %v1350
      %v2490 = vunpack.c.h.b16 %v1350
      %v2491 = vunpack.c.l.b16 %v1351
      %v2492 = vunpack.c.h.b16 %v1351
      %v2493 = vunpack.c.l.b16 %v1352
      %v2494 = vunpack.c.h.b16 %v1352
      %v2495 = vunpack.c.l.b16 %v1353
      %v2496 = vunpack.c.h.b16 %v1353
      %v2497 = vunpack.c.l.b16 %v1354
      %v2498 = vunpack.c.h.b16 %v1354
      %v2499 = vunpack.c.l.b16 %v1355
      %v2500 = vunpack.c.h.b16 %v1355
      %v2501 = vunpack.c.l.b16 %v1356
      %v2502 = vunpack.c.h.b16 %v1356
      %v2503 = vunpack.c.l.b16 %v1357
      %v2504 = vunpack.c.h.b16 %v1357
      %v2505 = vunpack.c.l.b16 %v1358
      %v2506 = vunpack.c.h.b16 %v1358
      %v2507 = vunpack.c.l.b16 %v1359
      %v2508 = vunpack.c.h.b16 %v1359
      %v2509 = vunpack.c.l.b16 %v1360
      %v2510 = vunpack.c.h.b16 %v1360
      %v2511 = vunpack.c.l.b16 %v1361
      %v2512 = vunpack.c.h.b16 %v1361
      %v2513 = vunpack.c.l.b16 %v1362
      %v2514 = vunpack.c.h.b16 %v1362
      %v2515 = vpack.c.b16 %v1751, %v1747
      %v2516 = vpack.c.b16 %v1752, %v1748
      %v2517 = vpack.c.b16 %v1753, %v1749
      %v2518 = vpack.c.b16 %v1754, %v1750
      %v2519 = vpack.c.b16 %v1759, %v1755
      %v2520 = vpack.c.b16 %v1760, %v1756
      %v2521 = vpack.c.b16 %v1761, %v1757
      %v2522 = vpack.c.b16 %v1762, %v1758
      %v2523 = vpack.c.b16 %v1767, %v1763
      %v2524 = vpack.c.b16 %v1768, %v1764
      %v2525 = vpack.c.b16 %v1769, %v1765
      %v2526 = vpack.c.b16 %v1770, %v1766
      %v2527 = vpack.c.b16 %v1775, %v1771
      %v2528 = vpack.c.b16 %v1776, %v1772
      %v2529 = vpack.c.b16 %v1777, %v1773
      %v2530 = vpack.c.b16 %v1778, %v1774
      %v2531 = vpack.c.b16 %v1783, %v1779
      %v2532 = vpack.c.b16 %v1784, %v1780
      %v2533 = vpack.c.b16 %v1785, %v1781
      %v2534 = vpack.c.b16 %v1786, %v1782
      %v2535 = vpack.c.b16 %v1791, %v1787
      %v2536 = vpack.c.b16 %v1792, %v1788
      %v2537 = vpack.c.b16 %v1793, %v1789
      %v2538 = vpack.c.b16 %v1794, %v1790
      %v2539 = vpack.c.b16 %v1799, %v1795
      %v2540 = vpack.c.b16 %v1800, %v1796
      %v2541 = vpack.c.b16 %v1801, %v1797
      %v2542 = vpack.c.b16 %v1802, %v1798
      %v2543 = vpack.c.b16 %v1807, %v1803
      %v2544 = vpack.c.b16 %v1808, %v1804
      %v2545 = vpack.c.b16 %v1809, %v1805
      %v2546 = vpack.c.b16 %v1810, %v1806
      %v2547 = vpack.c.b16 %v1815, %v1811
      %v2548 = vpack.c.b16 %v1816, %v1812
      %v2549 = vpack.c.b16 %v1817, %v1813
      %v2550 = vpack.c.b16 %v1818, %v1814
      %v2551 = vpack.c.b16 %v1823, %v1819
      %v2552 = vpack.c.b16 %v1824, %v1820
      %v2553 = vpack.c.b16 %v1825, %v1821
      %v2554 = vpack.c.b16 %v1826, %v1822
      %v2555 = vpack.c.b16 %v1831, %v1827
      %v2556 = vpack.c.b16 %v1832, %v1828
      %v2557 = vpack.c.b16 %v1833, %v1829
      %v2558 = vpack.c.b16 %v1834, %v1830
      %v2559 = vpack.c.b16 %v1839, %v1835
      %v2560 = vpack.c.b16 %v1840, %v1836
      %v2561 = vpack.c.b16 %v1841, %v1837
      %v2562 = vpack.c.b16 %v1842, %v1838
      %v2563 = vpack.c.b16 %v1847, %v1843
      %v2564 = vpack.c.b16 %v1848, %v1844
      %v2565 = vpack.c.b16 %v1849, %v1845
      %v2566 = vpack.c.b16 %v1850, %v1846
      %v2567 = vpack.c.b16 %v1855, %v1851
      %v2568 = vpack.c.b16 %v1856, %v1852
      %v2569 = vpack.c.b16 %v1857, %v1853
      %v2570 = vpack.c.b16 %v1858, %v1854
      %v2571 = vpack.c.b16 %v1863, %v1859
      %v2572 = vpack.c.b16 %v1864, %v1860
      %v2573 = vpack.c.b16 %v1865, %v1861
      %v2574 = vpack.c.b16 %v1866, %v1862
      %v2575 = vpack.c.b16 %v1871, %v1867
      %v2576 = vpack.c.b16 %v1872, %v1868
      %v2577 = vpack.c.b16 %v1873, %v1869
      %v2578 = vpack.c.b16 %v1874, %v1870
      %v2579 = vpack.c.b16 %v1879, %v1875
      %v2580 = vpack.c.b16 %v1880, %v1876
      %v2581 = vpack.c.b16 %v1881, %v1877
      %v2582 = vpack.c.b16 %v1882, %v1878
      %v2583 = vpack.c.b16 %v1887, %v1883
      %v2584 = vpack.c.b16 %v1888, %v1884
      %v2585 = vpack.c.b16 %v1889, %v1885
      %v2586 = vpack.c.b16 %v1890, %v1886
      %v2587 = vpack.c.b16 %v1895, %v1891
      %v2588 = vpack.c.b16 %v1896, %v1892
      %v2589 = vpack.c.b16 %v1897, %v1893
      %v2590 = vpack.c.b16 %v1898, %v1894
      %v2591 = vpack.c.b16 %v1903, %v1899
      %v2592 = vpack.c.b16 %v1904, %v1900
      %v2593 = vpack.c.b16 %v1905, %v1901
      %v2594 = vpack.c.b16 %v1906, %v1902
      %v2595 = vpack.c.b16 %v1911, %v1907
      %v2596 = vpack.c.b16 %v1912, %v1908
      %v2597 = vpack.c.b16 %v1913, %v1909
      %v2598 = vpack.c.b16 %v1914, %v1910
      %v2599 = vpack.c.b16 %v1919, %v1915
      %v2600 = vpack.c.b16 %v1920, %v1916
      %v2601 = vpack.c.b16 %v1921, %v1917
      %v2602 = vpack.c.b16 %v1922, %v1918
      %v2603 = vpack.c.b16 %v1927, %v1923
      %v2604 = vpack.c.b16 %v1928, %v1924
      %v2605 = vpack.c.b16 %v1929, %v1925
      %v2606 = vpack.c.b16 %v1930, %v1926
      %v2607 = vpack.c.b16 %v1935, %v1931
      %v2608 = vpack.c.b16 %v1936, %v1932
      %v2609 = vpack.c.b16 %v1937, %v1933
      %v2610 = vpack.c.b16 %v1938, %v1934
      %v2611 = vpack.c.b16 %v1943, %v1939
      %v2612 = vpack.c.b16 %v1944, %v1940
      %v2613 = vpack.c.b16 %v1945, %v1941
      %v2614 = vpack.c.b16 %v1946, %v1942
      %v2615 = vpack.c.b16 %v1951, %v1947
      %v2616 = vpack.c.b16 %v1952, %v1948
      %v2617 = vpack.c.b16 %v1953, %v1949
      %v2618 = vpack.c.b16 %v1954, %v1950
      %v2619 = vpack.c.b16 %v1959, %v1955
      %v2620 = vpack.c.b16 %v1960, %v1956
      %v2621 = vpack.c.b16 %v1961, %v1957
      %v2622 = vpack.c.b16 %v1962, %v1958
      %v2623 = vpack.c.b16 %v1967, %v1963
      %v2624 = vpack.c.b16 %v1968, %v1964
      %v2625 = vpack.c.b16 %v1969, %v1965
      %v2626 = vpack.c.b16 %v1970, %v1966
      %v2627 = vpack.c.b16 %v1975, %v1971
      %v2628 = vpack.c.b16 %v1976, %v1972
      %v2629 = vpack.c.b16 %v1977, %v1973
      %v2630 = vpack.c.b16 %v1978, %v1974
      %v2631 = vpack.c.b16 %v1983, %v1979
      %v2632 = vpack.c.b16 %v1984, %v1980
      %v2633 = vpack.c.b16 %v1985, %v1981
      %v2634 = vpack.c.b16 %v1986, %v1982
      %v2635 = vpack.c.b16 %v1991, %v1987
      %v2636 = vpack.c.b16 %v1992, %v1988
      %v2637 = vpack.c.b16 %v1993, %v1989
      %v2638 = vpack.c.b16 %v1994, %v1990
      %v2639 = vpack.c.b16 %v1999, %v1995
      %v2640 = vpack.c.b16 %v2000, %v1996
      %v2641 = vpack.c.b16 %v2001, %v1997
      %v2642 = vpack.c.b16 %v2002, %v1998
      %v2643 = vpack.c.b16 %v2007, %v2003
      %v2644 = vpack.c.b16 %v2008, %v2004
      %v2645 = vpack.c.b16 %v2009, %v2005
      %v2646 = vpack.c.b16 %v2010, %v2006
      %v2647 = vpack.c.b16 %v2015, %v2011
      %v2648 = vpack.c.b16 %v2016, %v2012
      %v2649 = vpack.c.b16 %v2017, %v2013
      %v2650 = vpack.c.b16 %v2018, %v2014
      %v2651 = vpack.c.b16 %v2023, %v2019
      %v2652 = vpack.c.b16 %v2024, %v2020
      %v2653 = vpack.c.b16 %v2025, %v2021
      %v2654 = vpack.c.b16 %v2026, %v2022
      %v2655 = vpack.c.b16 %v2031, %v2027
      %v2656 = vpack.c.b16 %v2032, %v2028
      %v2657 = vpack.c.b16 %v2033, %v2029
      %v2658 = vpack.c.b16 %v2034, %v2030
      %v2659 = vpack.c.b16 %v2039, %v2035
      %v2660 = vpack.c.b16 %v2040, %v2036
      %v2661 = vpack.c.b16 %v2041, %v2037
      %v2662 = vpack.c.b16 %v2042, %v2038
      %v2663 = vpack.c.b16 %v2047, %v2043
      %v2664 = vpack.c.b16 %v2048, %v2044
      %v2665 = vpack.c.b16 %v2049, %v2045
      %v2666 = vpack.c.b16 %v2050, %v2046
      %v2667 = vpack.c.b16 %v2055, %v2051
      %v2668 = vpack.c.b16 %v2056, %v2052
      %v2669 = vpack.c.b16 %v2057, %v2053
      %v2670 = vpack.c.b16 %v2058, %v2054
      %v2671 = vpack.c.b16 %v2063, %v2059
      %v2672 = vpack.c.b16 %v2064, %v2060
      %v2673 = vpack.c.b16 %v2065, %v2061
      %v2674 = vpack.c.b16 %v2066, %v2062
      %v2675 = vpack.c.b16 %v2071, %v2067
      %v2676 = vpack.c.b16 %v2072, %v2068
      %v2677 = vpack.c.b16 %v2073, %v2069
      %v2678 = vpack.c.b16 %v2074, %v2070
      %v2679 = vpack.c.b16 %v2079, %v2075
      %v2680 = vpack.c.b16 %v2080, %v2076
      %v2681 = vpack.c.b16 %v2081, %v2077
      %v2682 = vpack.c.b16 %v2082, %v2078
      %v2683 = vpack.c.b16 %v2087, %v2083
      %v2684 = vpack.c.b16 %v2088, %v2084
      %v2685 = vpack.c.b16 %v2089, %v2085
      %v2686 = vpack.c.b16 %v2090, %v2086
      %v2687 = vpack.c.b16 %v2095, %v2091
      %v2688 = vpack.c.b16 %v2096, %v2092
      %v2689 = vpack.c.b16 %v2097, %v2093
      %v2690 = vpack.c.b16 %v2098, %v2094
      %v2691 = vpack.c.b16 %v2103, %v2099
      %v2692 = vpack.c.b16 %v2104, %v2100
      %v2693 = vpack.c.b16 %v2105, %v2101
      %v2694 = vpack.c.b16 %v2106, %v2102
      %v2695 = vpack.c.b16 %v2111, %v2107
      %v2696 = vpack.c.b16 %v2112, %v2108
      %v2697 = vpack.c.b16 %v2113, %v2109
      %v2698 = vpack.c.b16 %v2114, %v2110
      %v2699 = vpack.c.b16 %v2119, %v2115
      %v2700 = vpack.c.b16 %v2120, %v2116
      %v2701 = vpack.c.b16 %v2121, %v2117
      %v2702 = vpack.c.b16 %v2122, %v2118
      %v2703 = vpack.c.b16 %v2127, %v2123
      %v2704 = vpack.c.b16 %v2128, %v2124
      %v2705 = vpack.c.b16 %v2129, %v2125
      %v2706 = vpack.c.b16 %v2130, %v2126
      %v2707 = vpack.c.b16 %v2135, %v2131
      %v2708 = vpack.c.b16 %v2136, %v2132
      %v2709 = vpack.c.b16 %v2137, %v2133
      %v2710 = vpack.c.b16 %v2138, %v2134
      %v2711 = vpack.c.b16 %v2143, %v2139
      %v2712 = vpack.c.b16 %v2144, %v2140
      %v2713 = vpack.c.b16 %v2145, %v2141
      %v2714 = vpack.c.b16 %v2146, %v2142
      %v2715 = vpack.c.b16 %v2151, %v2147
      %v2716 = vpack.c.b16 %v2152, %v2148
      %v2717 = vpack.c.b16 %v2153, %v2149
      %v2718 = vpack.c.b16 %v2154, %v2150
      %v2719 = vpack.c.b16 %v2159, %v2155
      %v2720 = vpack.c.b16 %v2160, %v2156
      %v2721 = vpack.c.b16 %v2161, %v2157
      %v2722 = vpack.c.b16 %v2162, %v2158
      %v2723 = vpack.c.b16 %v2167, %v2163
      %v2724 = vpack.c.b16 %v2168, %v2164
      %v2725 = vpack.c.b16 %v2169, %v2165
      %v2726 = vpack.c.b16 %v2170, %v2166
      %v2727 = vpack.c.b16 %v2175, %v2171
      %v2728 = vpack.c.b16 %v2176, %v2172
      %v2729 = vpack.c.b16 %v2177, %v2173
      %v2730 = vpack.c.b16 %v2178, %v2174
      %v2731 = vpack.c.b16 %v2183, %v2179
      %v2732 = vpack.c.b16 %v2184, %v2180
      %v2733 = vpack.c.b16 %v2185, %v2181
      %v2734 = vpack.c.b16 %v2186, %v2182
      %v2735 = vpack.c.b16 %v2191, %v2187
      %v2736 = vpack.c.b16 %v2192, %v2188
      %v2737 = vpack.c.b16 %v2193, %v2189
      %v2738 = vpack.c.b16 %v2194, %v2190
      %v2739 = vpack.c.b16 %v2199, %v2195
      %v2740 = vpack.c.b16 %v2200, %v2196
      %v2741 = vpack.c.b16 %v2201, %v2197
      %v2742 = vpack.c.b16 %v2202, %v2198
      %v2743 = vpack.c.b16 %v2207, %v2203
      %v2744 = vpack.c.b16 %v2208, %v2204
      %v2745 = vpack.c.b16 %v2209, %v2205
      %v2746 = vpack.c.b16 %v2210, %v2206
      %v2747 = vpack.c.b16 %v2215, %v2211
      %v2748 = vpack.c.b16 %v2216, %v2212
      %v2749 = vpack.c.b16 %v2217, %v2213
      %v2750 = vpack.c.b16 %v2218, %v2214
      %v2751 = vpack.c.b16 %v2223, %v2219
      %v2752 = vpack.c.b16 %v2224, %v2220
      %v2753 = vpack.c.b16 %v2225, %v2221
      %v2754 = vpack.c.b16 %v2226, %v2222
      %v2755 = vpack.c.b16 %v2231, %v2227
      %v2756 = vpack.c.b16 %v2232, %v2228
      %v2757 = vpack.c.b16 %v2233, %v2229
      %v2758 = vpack.c.b16 %v2234, %v2230
      %v2759 = vpack.c.b16 %v2239, %v2235
      %v2760 = vpack.c.b16 %v2240, %v2236
      %v2761 = vpack.c.b16 %v2241, %v2237
      %v2762 = vpack.c.b16 %v2242, %v2238
      %v2763 = vpack.c.b16 %v2247, %v2243
      %v2764 = vpack.c.b16 %v2248, %v2244
      %v2765 = vpack.c.b16 %v2249, %v2245
      %v2766 = vpack.c.b16 %v2250, %v2246
      %v2767 = vpack.c.b16 %v2255, %v2251
      %v2768 = vpack.c.b16 %v2256, %v2252
      %v2769 = vpack.c.b16 %v2257, %v2253
      %v2770 = vpack.c.b16 %v2258, %v2254
      %v2771 = vpack.c.b16 %v2263, %v2259
      %v2772 = vpack.c.b16 %v2264, %v2260
      %v2773 = vpack.c.b16 %v2265, %v2261
      %v2774 = vpack.c.b16 %v2266, %v2262
      %v2775 = vpack.c.b16 %v2271, %v2267
      %v2776 = vpack.c.b16 %v2272, %v2268
      %v2777 = vpack.c.b16 %v2273, %v2269
      %v2778 = vpack.c.b16 %v2274, %v2270
      %v2779 = vpack.c.b16 %v2279, %v2275
      %v2780 = vpack.c.b16 %v2280, %v2276
      %v2781 = vpack.c.b16 %v2281, %v2277
      %v2782 = vpack.c.b16 %v2282, %v2278
      %v2783 = vpack.c.b16 %v2287, %v2283
      %v2784 = vpack.c.b16 %v2288, %v2284
      %v2785 = vpack.c.b16 %v2289, %v2285
      %v2786 = vpack.c.b16 %v2290, %v2286
      %v2787 = vpack.c.b16 %v2295, %v2291
      %v2788 = vpack.c.b16 %v2296, %v2292
      %v2789 = vpack.c.b16 %v2297, %v2293
      %v2790 = vpack.c.b16 %v2298, %v2294
      %v2791 = vpack.c.b16 %v2303, %v2299
      %v2792 = vpack.c.b16 %v2304, %v2300
      %v2793 = vpack.c.b16 %v2305, %v2301
      %v2794 = vpack.c.b16 %v2306, %v2302
      %v2795 = vpack.c.b16 %v2311, %v2307
      %v2796 = vpack.c.b16 %v2312, %v2308
      %v2797 = vpack.c.b16 %v2313, %v2309
      %v2798 = vpack.c.b16 %v2314, %v2310
      %v2799 = vpack.c.b16 %v2319, %v2315
      %v2800 = vpack.c.b16 %v2320, %v2316
      %v2801 = vpack.c.b16 %v2321, %v2317
      %v2802 = vpack.c.b16 %v2322, %v2318
      %v2803 = vpack.c.b16 %v2327, %v2323
      %v2804 = vpack.c.b16 %v2328, %v2324
      %v2805 = vpack.c.b16 %v2329, %v2325
      %v2806 = vpack.c.b16 %v2330, %v2326
      %v2807 = vpack.c.b16 %v2335, %v2331
      %v2808 = vpack.c.b16 %v2336, %v2332
      %v2809 = vpack.c.b16 %v2337, %v2333
      %v2810 = vpack.c.b16 %v2338, %v2334
      %v2811 = vpack.c.b16 %v2343, %v2339
      %v2812 = vpack.c.b16 %v2344, %v2340
      %v2813 = vpack.c.b16 %v2345, %v2341
      %v2814 = vpack.c.b16 %v2346, %v2342
      %v2815 = vpack.c.b16 %v2351, %v2347
      %v2816 = vpack.c.b16 %v2352, %v2348
      %v2817 = vpack.c.b16 %v2353, %v2349
      %v2818 = vpack.c.b16 %v2354, %v2350
      %v2819 = vpack.c.b16 %v2359, %v2355
      %v2820 = vpack.c.b16 %v2360, %v2356
      %v2821 = vpack.c.b16 %v2361, %v2357
      %v2822 = vpack.c.b16 %v2362, %v2358
      %v2823 = vpack.c.b16 %v2367, %v2363
      %v2824 = vpack.c.b16 %v2368, %v2364
      %v2825 = vpack.c.b16 %v2369, %v2365
      %v2826 = vpack.c.b16 %v2370, %v2366
      %v2827 = vpack.c.b16 %v2375, %v2371
      %v2828 = vpack.c.b16 %v2376, %v2372
      %v2829 = vpack.c.b16 %v2377, %v2373
      %v2830 = vpack.c.b16 %v2378, %v2374
      %v2831 = vpack.c.b16 %v2383, %v2379
      %v2832 = vpack.c.b16 %v2384, %v2380
      %v2833 = vpack.c.b16 %v2385, %v2381
      %v2834 = vpack.c.b16 %v2386, %v2382
      %v2835 = vpack.c.b16 %v2391, %v2387
      %v2836 = vpack.c.b16 %v2392, %v2388
      %v2837 = vpack.c.b16 %v2393, %v2389
      %v2838 = vpack.c.b16 %v2394, %v2390
      %v2839 = vpack.c.b16 %v2399, %v2395
      %v2840 = vpack.c.b16 %v2400, %v2396
      %v2841 = vpack.c.b16 %v2401, %v2397
      %v2842 = vpack.c.b16 %v2402, %v2398
      %v2843 = vpack.c.b16 %v2407, %v2403
      %v2844 = vpack.c.b16 %v2408, %v2404
      %v2845 = vpack.c.b16 %v2409, %v2405
      %v2846 = vpack.c.b16 %v2410, %v2406
      %v2847 = vpack.c.b16 %v2415, %v2411
      %v2848 = vpack.c.b16 %v2416, %v2412
      %v2849 = vpack.c.b16 %v2417, %v2413
      %v2850 = vpack.c.b16 %v2418, %v2414
      %v2851 = vpack.c.b16 %v2423, %v2419
      %v2852 = vpack.c.b16 %v2424, %v2420
      %v2853 = vpack.c.b16 %v2425, %v2421
      %v2854 = vpack.c.b16 %v2426, %v2422
      %v2855 = vpack.c.b16 %v2431, %v2427
      %v2856 = vpack.c.b16 %v2432, %v2428
      %v2857 = vpack.c.b16 %v2433, %v2429
      %v2858 = vpack.c.b16 %v2434, %v2430
      %v2859 = vpack.c.b16 %v2439, %v2435
      %v2860 = vpack.c.b16 %v2440, %v2436
      %v2861 = vpack.c.b16 %v2441, %v2437
      %v2862 = vpack.c.b16 %v2442, %v2438
      %v2863 = vpack.c.b16 %v2447, %v2443
      %v2864 = vpack.c.b16 %v2448, %v2444
      %v2865 = vpack.c.b16 %v2449, %v2445
      %v2866 = vpack.c.b16 %v2450, %v2446
      %v2867 = vpack.c.b16 %v2455, %v2451
      %v2868 = vpack.c.b16 %v2456, %v2452
      %v2869 = vpack.c.b16 %v2457, %v2453
      %v2870 = vpack.c.b16 %v2458, %v2454
      %v2871 = vpack.c.b16 %v2463, %v2459
      %v2872 = vpack.c.b16 %v2464, %v2460
      %v2873 = vpack.c.b16 %v2465, %v2461
      %v2874 = vpack.c.b16 %v2466, %v2462
      %v2875 = vpack.c.b16 %v2471, %v2467
      %v2876 = vpack.c.b16 %v2472, %v2468
      %v2877 = vpack.c.b16 %v2473, %v2469
      %v2878 = vpack.c.b16 %v2474, %v2470
      %v2879 = vpack.c.b16 %v2479, %v2475
      %v2880 = vpack.c.b16 %v2480, %v2476
      %v2881 = vpack.c.b16 %v2481, %v2477
      %v2882 = vpack.c.b16 %v2482, %v2478
      %v2883 = vpack.c.b16 %v2487, %v2483
      %v2884 = vpack.c.b16 %v2488, %v2484
      %v2885 = vpack.c.b16 %v2489, %v2485
      %v2886 = vpack.c.b16 %v2490, %v2486
      %v2887 = vpack.c.b16 %v2495, %v2491
      %v2888 = vpack.c.b16 %v2496, %v2492
      %v2889 = vpack.c.b16 %v2497, %v2493
      %v2890 = vpack.c.b16 %v2498, %v2494
      %v2891 = vpack.c.b16 %v2503, %v2499
      %v2892 = vpack.c.b16 %v2504, %v2500
      %v2893 = vpack.c.b16 %v2505, %v2501
      %v2894 = vpack.c.b16 %v2506, %v2502
      %v2895 = vpack.c.b16 %v2511, %v2507
      %v2896 = vpack.c.b16 %v2512, %v2508
      %v2897 = vpack.c.b16 %v2513, %v2509
      %v2898 = vpack.c.b16 %v2514, %v2510
      %3283 = vmatpush.bf16.msra.mxu0 %v2543
      %3284 = vmatpush.bf16.msra.mxu0 %v2539
      %3285 = vmatpush.bf16.msra.mxu0 %v2535
      %3286 = vmatpush.bf16.msra.mxu0 %v2531
      %3287 = vmatpush.bf16.msra.mxu0 %v2527
      %3288 = vmatpush.bf16.msra.mxu0 %v2523
      %3289 = vmatpush.bf16.msra.mxu0 %v2519
      %3290 = vmatpush.bf16.msra.mxu0 %v2515
      %3291 = vmatmul.bf16.gmra.mxu0 %v823
      %v3292 = vpop.f32.mrf.mxu0
      %v3293 = vadd.f32 0.0, %v3292
      %v3294 = vpop.f32.mrf.mxu0
      %v3295 = vadd.f32 0.0, %v3294
      %3296 = vmatmul.bf16.gmra.mxu0 %v835
      %v3297 = vpop.f32.mrf.mxu0
      %v3298 = vadd.f32 0.0, %v3297
      %v3299 = vpop.f32.mrf.mxu0
      %v3300 = vadd.f32 0.0, %v3299
      %3301 = vmatmul.bf16.gmra.mxu0 %v847
      %v3302 = vpop.f32.mrf.mxu0
      %v3303 = vadd.f32 0.0, %v3302
      %v3304 = vpop.f32.mrf.mxu0
      %v3305 = vadd.f32 0.0, %v3304
      %3306 = vmatmul.bf16.gmra.mxu0 %v859
      %v3307 = vpop.f32.mrf.mxu0
      %v3308 = vadd.f32 0.0, %v3307
      %v3309 = vpop.f32.mrf.mxu0
      %v3310 = vadd.f32 0.0, %v3309
      %3311 = vmatmul.bf16.gmra.mxu0 %v871
      %v3312 = vpop.f32.mrf.mxu0
      %v3313 = vadd.f32 0.0, %v3312
      %v3314 = vpop.f32.mrf.mxu0
      %v3315 = vadd.f32 0.0, %v3314
      %3316 = vmatmul.bf16.gmra.mxu0 %v883
      %v3317 = vpop.f32.mrf.mxu0
      %v3318 = vadd.f32 0.0, %v3317
      %v3319 = vpop.f32.mrf.mxu0
      %v3320 = vadd.f32 0.0, %v3319
      %3321 = vmatmul.bf16.gmra.mxu0 %v895
      %v3322 = vpop.f32.mrf.mxu0
      %v3323 = vadd.f32 0.0, %v3322
      %v3324 = vpop.f32.mrf.mxu0
      %v3325 = vadd.f32 0.0, %v3324
      %3326 = vmatmul.bf16.gmra.mxu0 %v907
      %v3327 = vpop.f32.mrf.mxu0
      %v3328 = vadd.f32 0.0, %v3327
      %v3329 = vpop.f32.mrf.mxu0
      %v3330 = vadd.f32 0.0, %v3329
      %3331 = vmatmul.bf16.gmra.mxu0 %v919
      %v3332 = vpop.f32.mrf.mxu0
      %v3333 = vadd.f32 0.0, %v3332
      %v3334 = vpop.f32.mrf.mxu0
      %v3335 = vadd.f32 0.0, %v3334
      %3336 = vmatmul.bf16.gmra.mxu0 %v931
      %v3337 = vpop.f32.mrf.mxu0
      %v3338 = vadd.f32 0.0, %v3337
      %v3339 = vpop.f32.mrf.mxu0
      %v3340 = vadd.f32 0.0, %v3339
      %3341 = vmatmul.bf16.gmra.mxu0 %v943
      %v3342 = vpop.f32.mrf.mxu0
      %v3343 = vadd.f32 0.0, %v3342
      %v3344 = vpop.f32.mrf.mxu0
      %v3345 = vadd.f32 0.0, %v3344
      %3346 = vmatmul.bf16.gmra.mxu0 %v955
      %v3347 = vpop.f32.mrf.mxu0
      %v3348 = vadd.f32 0.0, %v3347
      %v3349 = vpop.f32.mrf.mxu0
      %v3350 = vadd.f32 0.0, %v3349
      %3351 = vmatmul.bf16.gmra.mxu0 %v967
      %v3352 = vpop.f32.mrf.mxu0
      %v3353 = vadd.f32 0.0, %v3352
      %v3354 = vpop.f32.mrf.mxu0
      %3355 = vdwg.mxu0
      %3356 = vmatpush.bf16.msra.mxu0 %v2575
      %3357 = vmatpush.bf16.msra.mxu0 %v2571
      %3358 = vmatpush.bf16.msra.mxu0 %v2567
      %3359 = vmatpush.bf16.msra.mxu0 %v2563
      %3360 = vmatpush.bf16.msra.mxu0 %v2559
      %3361 = vmatpush.bf16.msra.mxu0 %v2555
      %3362 = vmatpush.bf16.msra.mxu0 %v2551
      %3363 = vmatpush.bf16.msra.mxu0 %v2547
      %3364 = vmatmul.bf16.gmra.mxu0 %v824
      %v3365 = vpop.f32.mrf.mxu0
      %v3366 = vadd.f32 %v3293, %v3365
      %v3367 = vpop.f32.mrf.mxu0
      %v3368 = vadd.f32 %v3295, %v3367
      %3369 = vmatmul.bf16.gmra.mxu0 %v836
      %v3370 = vpop.f32.mrf.mxu0
      %v3371 = vadd.f32 %v3298, %v3370
      %v3372 = vpop.f32.mrf.mxu0
      %v3373 = vadd.f32 %v3300, %v3372
      %3374 = vmatmul.bf16.gmra.mxu0 %v848
      %v3375 = vpop.f32.mrf.mxu0
      %v3376 = vadd.f32 %v3303, %v3375
      %v3377 = vpop.f32.mrf.mxu0
      %v3378 = vadd.f32 %v3305, %v3377
      %3379 = vmatmul.bf16.gmra.mxu0 %v860
      %v3380 = vpop.f32.mrf.mxu0
      %v3381 = vadd.f32 %v3308, %v3380
      %v3382 = vpop.f32.mrf.mxu0
      %v3383 = vadd.f32 %v3310, %v3382
      %3384 = vmatmul.bf16.gmra.mxu0 %v872
      %v3385 = vpop.f32.mrf.mxu0
      %v3386 = vadd.f32 %v3313, %v3385
      %v3387 = vpop.f32.mrf.mxu0
      %v3388 = vadd.f32 %v3315, %v3387
      %3389 = vmatmul.bf16.gmra.mxu0 %v884
      %v3390 = vpop.f32.mrf.mxu0
      %v3391 = vadd.f32 %v3318, %v3390
      %v3392 = vpop.f32.mrf.mxu0
      %v3393 = vadd.f32 %v3320, %v3392
      %3394 = vmatmul.bf16.gmra.mxu0 %v896
      %v3395 = vpop.f32.mrf.mxu0
      %v3396 = vadd.f32 %v3323, %v3395
      %v3397 = vpop.f32.mrf.mxu0
      %v3398 = vadd.f32 %v3325, %v3397
      %3399 = vmatmul.bf16.gmra.mxu0 %v908
      %v3400 = vpop.f32.mrf.mxu0
      %v3401 = vadd.f32 %v3328, %v3400
      %v3402 = vpop.f32.mrf.mxu0
      %v3403 = vadd.f32 %v3330, %v3402
      %3404 = vmatmul.bf16.gmra.mxu0 %v920
      %v3405 = vpop.f32.mrf.mxu0
      %v3406 = vadd.f32 %v3333, %v3405
      %v3407 = vpop.f32.mrf.mxu0
      %v3408 = vadd.f32 %v3335, %v3407
      %3409 = vmatmul.bf16.gmra.mxu0 %v932
      %v3410 = vpop.f32.mrf.mxu0
      %v3411 = vadd.f32 %v3338, %v3410
      %v3412 = vpop.f32.mrf.mxu0
      %v3413 = vadd.f32 %v3340, %v3412
      %3414 = vmatmul.bf16.gmra.mxu0 %v944
      %v3415 = vpop.f32.mrf.mxu0
      %v3416 = vadd.f32 %v3343, %v3415
      %v3417 = vpop.f32.mrf.mxu0
      %v3418 = vadd.f32 %v3345, %v3417
      %3419 = vmatmul.bf16.gmra.mxu0 %v956
      %v3420 = vpop.f32.mrf.mxu0
      %v3421 = vadd.f32 %v3348, %v3420
      %v3422 = vpop.f32.mrf.mxu0
      %v3423 = vadd.f32 %v3350, %v3422
      %3424 = vmatmul.bf16.gmra.mxu0 %v968
      %v3425 = vpop.f32.mrf.mxu0
      %v3426 = vadd.f32 %v3353, %v3425
      %v3427 = vpop.f32.mrf.mxu0
      %3428 = vdwg.mxu0
      %3429 = vmatpush.bf16.msra.mxu0 %v2607
      %3430 = vmatpush.bf16.msra.mxu0 %v2603
      %3431 = vmatpush.bf16.msra.mxu0 %v2599
      %3432 = vmatpush.bf16.msra.mxu0 %v2595
      %3433 = vmatpush.bf16.msra.mxu0 %v2591
      %3434 = vmatpush.bf16.msra.mxu0 %v2587
      %3435 = vmatpush.bf16.msra.mxu0 %v2583
      %3436 = vmatpush.bf16.msra.mxu0 %v2579
      %3437 = vmatmul.bf16.gmra.mxu0 %v825
      %v3438 = vpop.f32.mrf.mxu0
      %v3439 = vadd.f32 %v3366, %v3438
      %v3440 = vpop.f32.mrf.mxu0
      %v3441 = vadd.f32 %v3368, %v3440
      %3442 = vmatmul.bf16.gmra.mxu0 %v837
      %v3443 = vpop.f32.mrf.mxu0
      %v3444 = vadd.f32 %v3371, %v3443
      %v3445 = vpop.f32.mrf.mxu0
      %v3446 = vadd.f32 %v3373, %v3445
      %3447 = vmatmul.bf16.gmra.mxu0 %v849
      %v3448 = vpop.f32.mrf.mxu0
      %v3449 = vadd.f32 %v3376, %v3448
      %v3450 = vpop.f32.mrf.mxu0
      %v3451 = vadd.f32 %v3378, %v3450
      %3452 = vmatmul.bf16.gmra.mxu0 %v861
      %v3453 = vpop.f32.mrf.mxu0
      %v3454 = vadd.f32 %v3381, %v3453
      %v3455 = vpop.f32.mrf.mxu0
      %v3456 = vadd.f32 %v3383, %v3455
      %3457 = vmatmul.bf16.gmra.mxu0 %v873
      %v3458 = vpop.f32.mrf.mxu0
      %v3459 = vadd.f32 %v3386, %v3458
      %v3460 = vpop.f32.mrf.mxu0
      %v3461 = vadd.f32 %v3388, %v3460
      %3462 = vmatmul.bf16.gmra.mxu0 %v885
      %v3463 = vpop.f32.mrf.mxu0
      %v3464 = vadd.f32 %v3391, %v3463
      %v3465 = vpop.f32.mrf.mxu0
      %v3466 = vadd.f32 %v3393, %v3465
      %3467 = vmatmul.bf16.gmra.mxu0 %v897
      %v3468 = vpop.f32.mrf.mxu0
      %v3469 = vadd.f32 %v3396, %v3468
      %v3470 = vpop.f32.mrf.mxu0
      %v3471 = vadd.f32 %v3398, %v3470
      %3472 = vmatmul.bf16.gmra.mxu0 %v909
      %v3473 = vpop.f32.mrf.mxu0
      %v3474 = vadd.f32 %v3401, %v3473
      %v3475 = vpop.f32.mrf.mxu0
      %v3476 = vadd.f32 %v3403, %v3475
      %3477 = vmatmul.bf16.gmra.mxu0 %v921
      %v3478 = vpop.f32.mrf.mxu0
      %v3479 = vadd.f32 %v3406, %v3478
      %v3480 = vpop.f32.mrf.mxu0
      %v3481 = vadd.f32 %v3408, %v3480
      %3482 = vmatmul.bf16.gmra.mxu0 %v933
      %v3483 = vpop.f32.mrf.mxu0
      %v3484 = vadd.f32 %v3411, %v3483
      %v3485 = vpop.f32.mrf.mxu0
      %v3486 = vadd.f32 %v3413, %v3485
      %3487 = vmatmul.bf16.gmra.mxu0 %v945
      %v3488 = vpop.f32.mrf.mxu0
      %v3489 = vadd.f32 %v3416, %v3488
      %v3490 = vpop.f32.mrf.mxu0
      %v3491 = vadd.f32 %v3418, %v3490
      %3492 = vmatmul.bf16.gmra.mxu0 %v957
      %v3493 = vpop.f32.mrf.mxu0
      %v3494 = vadd.f32 %v3421, %v3493
      %v3495 = vpop.f32.mrf.mxu0
      %v3496 = vadd.f32 %v3423, %v3495
      %3497 = vmatmul.bf16.gmra.mxu0 %v969
      %v3498 = vpop.f32.mrf.mxu0
      %v3499 = vadd.f32 %v3426, %v3498
      %v3500 = vpop.f32.mrf.mxu0
      %3501 = vdwg.mxu0
      %3502 = vmatpush.bf16.msra.mxu0 %v2639
      %3503 = vmatpush.bf16.msra.mxu0 %v2635
      %3504 = vmatpush.bf16.msra.mxu0 %v2631
      %3505 = vmatpush.bf16.msra.mxu0 %v2627
      %3506 = vmatpush.bf16.msra.mxu0 %v2623
      %3507 = vmatpush.bf16.msra.mxu0 %v2619
      %3508 = vmatpush.bf16.msra.mxu0 %v2615
      %3509 = vmatpush.bf16.msra.mxu0 %v2611
      %3510 = vmatmul.bf16.gmra.mxu0 %v826
      %v3511 = vpop.f32.mrf.mxu0
      %v3512 = vadd.f32 %v3439, %v3511
      %v3513 = vpop.f32.mrf.mxu0
      %v3514 = vadd.f32 %v3441, %v3513
      %3515 = vmatmul.bf16.gmra.mxu0 %v838
      %v3516 = vpop.f32.mrf.mxu0
      %v3517 = vadd.f32 %v3444, %v3516
      %v3518 = vpop.f32.mrf.mxu0
      %v3519 = vadd.f32 %v3446, %v3518
      %3520 = vmatmul.bf16.gmra.mxu0 %v850
      %v3521 = vpop.f32.mrf.mxu0
      %v3522 = vadd.f32 %v3449, %v3521
      %v3523 = vpop.f32.mrf.mxu0
      %v3524 = vadd.f32 %v3451, %v3523
      %3525 = vmatmul.bf16.gmra.mxu0 %v862
      %v3526 = vpop.f32.mrf.mxu0
      %v3527 = vadd.f32 %v3454, %v3526
      %v3528 = vpop.f32.mrf.mxu0
      %v3529 = vadd.f32 %v3456, %v3528
      %3530 = vmatmul.bf16.gmra.mxu0 %v874
      %v3531 = vpop.f32.mrf.mxu0
      %v3532 = vadd.f32 %v3459, %v3531
      %v3533 = vpop.f32.mrf.mxu0
      %v3534 = vadd.f32 %v3461, %v3533
      %3535 = vmatmul.bf16.gmra.mxu0 %v886
      %v3536 = vpop.f32.mrf.mxu0
      %v3537 = vadd.f32 %v3464, %v3536
      %v3538 = vpop.f32.mrf.mxu0
      %v3539 = vadd.f32 %v3466, %v3538
      %3540 = vmatmul.bf16.gmra.mxu0 %v898
      %v3541 = vpop.f32.mrf.mxu0
      %v3542 = vadd.f32 %v3469, %v3541
      %v3543 = vpop.f32.mrf.mxu0
      %v3544 = vadd.f32 %v3471, %v3543
      %3545 = vmatmul.bf16.gmra.mxu0 %v910
      %v3546 = vpop.f32.mrf.mxu0
      %v3547 = vadd.f32 %v3474, %v3546
      %v3548 = vpop.f32.mrf.mxu0
      %v3549 = vadd.f32 %v3476, %v3548
      %3550 = vmatmul.bf16.gmra.mxu0 %v922
      %v3551 = vpop.f32.mrf.mxu0
      %v3552 = vadd.f32 %v3479, %v3551
      %v3553 = vpop.f32.mrf.mxu0
      %v3554 = vadd.f32 %v3481, %v3553
      %3555 = vmatmul.bf16.gmra.mxu0 %v934
      %v3556 = vpop.f32.mrf.mxu0
      %v3557 = vadd.f32 %v3484, %v3556
      %v3558 = vpop.f32.mrf.mxu0
      %v3559 = vadd.f32 %v3486, %v3558
      %3560 = vmatmul.bf16.gmra.mxu0 %v946
      %v3561 = vpop.f32.mrf.mxu0
      %v3562 = vadd.f32 %v3489, %v3561
      %v3563 = vpop.f32.mrf.mxu0
      %v3564 = vadd.f32 %v3491, %v3563
      %3565 = vmatmul.bf16.gmra.mxu0 %v958
      %v3566 = vpop.f32.mrf.mxu0
      %v3567 = vadd.f32 %v3494, %v3566
      %v3568 = vpop.f32.mrf.mxu0
      %v3569 = vadd.f32 %v3496, %v3568
      %3570 = vmatmul.bf16.gmra.mxu0 %v970
      %v3571 = vpop.f32.mrf.mxu0
      %v3572 = vadd.f32 %v3499, %v3571
      %v3573 = vpop.f32.mrf.mxu0
      %3574 = vdwg.mxu0
      %3575 = vmatpush.bf16.msra.mxu0 %v2671
      %3576 = vmatpush.bf16.msra.mxu0 %v2667
      %3577 = vmatpush.bf16.msra.mxu0 %v2663
      %3578 = vmatpush.bf16.msra.mxu0 %v2659
      %3579 = vmatpush.bf16.msra.mxu0 %v2655
      %3580 = vmatpush.bf16.msra.mxu0 %v2651
      %3581 = vmatpush.bf16.msra.mxu0 %v2647
      %3582 = vmatpush.bf16.msra.mxu0 %v2643
      %3583 = vmatmul.bf16.gmra.mxu0 %v827
      %v3584 = vpop.f32.mrf.mxu0
      %v3585 = vadd.f32 %v3512, %v3584
      %v3586 = vpop.f32.mrf.mxu0
      %v3587 = vadd.f32 %v3514, %v3586
      %3588 = vmatmul.bf16.gmra.mxu0 %v839
      %v3589 = vpop.f32.mrf.mxu0
      %v3590 = vadd.f32 %v3517, %v3589
      %v3591 = vpop.f32.mrf.mxu0
      %v3592 = vadd.f32 %v3519, %v3591
      %3593 = vmatmul.bf16.gmra.mxu0 %v851
      %v3594 = vpop.f32.mrf.mxu0
      %v3595 = vadd.f32 %v3522, %v3594
      %v3596 = vpop.f32.mrf.mxu0
      %v3597 = vadd.f32 %v3524, %v3596
      %3598 = vmatmul.bf16.gmra.mxu0 %v863
      %v3599 = vpop.f32.mrf.mxu0
      %v3600 = vadd.f32 %v3527, %v3599
      %v3601 = vpop.f32.mrf.mxu0
      %v3602 = vadd.f32 %v3529, %v3601
      %3603 = vmatmul.bf16.gmra.mxu0 %v875
      %v3604 = vpop.f32.mrf.mxu0
      %v3605 = vadd.f32 %v3532, %v3604
      %v3606 = vpop.f32.mrf.mxu0
      %v3607 = vadd.f32 %v3534, %v3606
      %3608 = vmatmul.bf16.gmra.mxu0 %v887
      %v3609 = vpop.f32.mrf.mxu0
      %v3610 = vadd.f32 %v3537, %v3609
      %v3611 = vpop.f32.mrf.mxu0
      %v3612 = vadd.f32 %v3539, %v3611
      %3613 = vmatmul.bf16.gmra.mxu0 %v899
      %v3614 = vpop.f32.mrf.mxu0
      %v3615 = vadd.f32 %v3542, %v3614
      %v3616 = vpop.f32.mrf.mxu0
      %v3617 = vadd.f32 %v3544, %v3616
      %3618 = vmatmul.bf16.gmra.mxu0 %v911
      %v3619 = vpop.f32.mrf.mxu0
      %v3620 = vadd.f32 %v3547, %v3619
      %v3621 = vpop.f32.mrf.mxu0
      %v3622 = vadd.f32 %v3549, %v3621
      %3623 = vmatmul.bf16.gmra.mxu0 %v923
      %v3624 = vpop.f32.mrf.mxu0
      %v3625 = vadd.f32 %v3552, %v3624
      %v3626 = vpop.f32.mrf.mxu0
      %v3627 = vadd.f32 %v3554, %v3626
      %3628 = vmatmul.bf16.gmra.mxu0 %v935
      %v3629 = vpop.f32.mrf.mxu0
      %v3630 = vadd.f32 %v3557, %v3629
      %v3631 = vpop.f32.mrf.mxu0
      %v3632 = vadd.f32 %v3559, %v3631
      %3633 = vmatmul.bf16.gmra.mxu0 %v947
      %v3634 = vpop.f32.mrf.mxu0
      %v3635 = vadd.f32 %v3562, %v3634
      %v3636 = vpop.f32.mrf.mxu0
      %v3637 = vadd.f32 %v3564, %v3636
      %3638 = vmatmul.bf16.gmra.mxu0 %v959
      %v3639 = vpop.f32.mrf.mxu0
      %v3640 = vadd.f32 %v3567, %v3639
      %v3641 = vpop.f32.mrf.mxu0
      %v3642 = vadd.f32 %v3569, %v3641
      %3643 = vmatmul.bf16.gmra.mxu0 %v971
      %v3644 = vpop.f32.mrf.mxu0
      %v3645 = vadd.f32 %v3572, %v3644
      %v3646 = vpop.f32.mrf.mxu0
      %3647 = vdwg.mxu0
      %3648 = vmatpush.bf16.msra.mxu0 %v2703
      %3649 = vmatpush.bf16.msra.mxu0 %v2699
      %3650 = vmatpush.bf16.msra.mxu0 %v2695
      %3651 = vmatpush.bf16.msra.mxu0 %v2691
      %3652 = vmatpush.bf16.msra.mxu0 %v2687
      %3653 = vmatpush.bf16.msra.mxu0 %v2683
      %3654 = vmatpush.bf16.msra.mxu0 %v2679
      %3655 = vmatpush.bf16.msra.mxu0 %v2675
      %3656 = vmatmul.bf16.gmra.mxu0 %v828
      %v3657 = vpop.f32.mrf.mxu0
      %v3658 = vadd.f32 %v3585, %v3657
      %v3659 = vpop.f32.mrf.mxu0
      %v3660 = vadd.f32 %v3587, %v3659
      %3661 = vmatmul.bf16.gmra.mxu0 %v840
      %v3662 = vpop.f32.mrf.mxu0
      %v3663 = vadd.f32 %v3590, %v3662
      %v3664 = vpop.f32.mrf.mxu0
      %v3665 = vadd.f32 %v3592, %v3664
      %3666 = vmatmul.bf16.gmra.mxu0 %v852
      %v3667 = vpop.f32.mrf.mxu0
      %v3668 = vadd.f32 %v3595, %v3667
      %v3669 = vpop.f32.mrf.mxu0
      %v3670 = vadd.f32 %v3597, %v3669
      %3671 = vmatmul.bf16.gmra.mxu0 %v864
      %v3672 = vpop.f32.mrf.mxu0
      %v3673 = vadd.f32 %v3600, %v3672
      %v3674 = vpop.f32.mrf.mxu0
      %v3675 = vadd.f32 %v3602, %v3674
      %3676 = vmatmul.bf16.gmra.mxu0 %v876
      %v3677 = vpop.f32.mrf.mxu0
      %v3678 = vadd.f32 %v3605, %v3677
      %v3679 = vpop.f32.mrf.mxu0
      %v3680 = vadd.f32 %v3607, %v3679
      %3681 = vmatmul.bf16.gmra.mxu0 %v888
      %v3682 = vpop.f32.mrf.mxu0
      %v3683 = vadd.f32 %v3610, %v3682
      %v3684 = vpop.f32.mrf.mxu0
      %v3685 = vadd.f32 %v3612, %v3684
      %3686 = vmatmul.bf16.gmra.mxu0 %v900
      %v3687 = vpop.f32.mrf.mxu0
      %v3688 = vadd.f32 %v3615, %v3687
      %v3689 = vpop.f32.mrf.mxu0
      %v3690 = vadd.f32 %v3617, %v3689
      %3691 = vmatmul.bf16.gmra.mxu0 %v912
      %v3692 = vpop.f32.mrf.mxu0
      %v3693 = vadd.f32 %v3620, %v3692
      %v3694 = vpop.f32.mrf.mxu0
      %v3695 = vadd.f32 %v3622, %v3694
      %3696 = vmatmul.bf16.gmra.mxu0 %v924
      %v3697 = vpop.f32.mrf.mxu0
      %v3698 = vadd.f32 %v3625, %v3697
      %v3699 = vpop.f32.mrf.mxu0
      %v3700 = vadd.f32 %v3627, %v3699
      %3701 = vmatmul.bf16.gmra.mxu0 %v936
      %v3702 = vpop.f32.mrf.mxu0
      %v3703 = vadd.f32 %v3630, %v3702
      %v3704 = vpop.f32.mrf.mxu0
      %v3705 = vadd.f32 %v3632, %v3704
      %3706 = vmatmul.bf16.gmra.mxu0 %v948
      %v3707 = vpop.f32.mrf.mxu0
      %v3708 = vadd.f32 %v3635, %v3707
      %v3709 = vpop.f32.mrf.mxu0
      %v3710 = vadd.f32 %v3637, %v3709
      %3711 = vmatmul.bf16.gmra.mxu0 %v960
      %v3712 = vpop.f32.mrf.mxu0
      %v3713 = vadd.f32 %v3640, %v3712
      %v3714 = vpop.f32.mrf.mxu0
      %v3715 = vadd.f32 %v3642, %v3714
      %3716 = vmatmul.bf16.gmra.mxu0 %v972
      %v3717 = vpop.f32.mrf.mxu0
      %v3718 = vadd.f32 %v3645, %v3717
      %v3719 = vpop.f32.mrf.mxu0
      %3720 = vdwg.mxu0
      %3721 = vmatpush.bf16.msra.mxu0 %v2735
      %3722 = vmatpush.bf16.msra.mxu0 %v2731
      %3723 = vmatpush.bf16.msra.mxu0 %v2727
      %3724 = vmatpush.bf16.msra.mxu0 %v2723
      %3725 = vmatpush.bf16.msra.mxu0 %v2719
      %3726 = vmatpush.bf16.msra.mxu0 %v2715
      %3727 = vmatpush.bf16.msra.mxu0 %v2711
      %3728 = vmatpush.bf16.msra.mxu0 %v2707
      %3729 = vmatmul.bf16.gmra.mxu0 %v829
      %v3730 = vpop.f32.mrf.mxu0
      %v3731 = vadd.f32 %v3658, %v3730
      %v3732 = vpop.f32.mrf.mxu0
      %v3733 = vadd.f32 %v3660, %v3732
      %3734 = vmatmul.bf16.gmra.mxu0 %v841
      %v3735 = vpop.f32.mrf.mxu0
      %v3736 = vadd.f32 %v3663, %v3735
      %v3737 = vpop.f32.mrf.mxu0
      %v3738 = vadd.f32 %v3665, %v3737
      %3739 = vmatmul.bf16.gmra.mxu0 %v853
      %v3740 = vpop.f32.mrf.mxu0
      %v3741 = vadd.f32 %v3668, %v3740
      %v3742 = vpop.f32.mrf.mxu0
      %v3743 = vadd.f32 %v3670, %v3742
      %3744 = vmatmul.bf16.gmra.mxu0 %v865
      %v3745 = vpop.f32.mrf.mxu0
      %v3746 = vadd.f32 %v3673, %v3745
      %v3747 = vpop.f32.mrf.mxu0
      %v3748 = vadd.f32 %v3675, %v3747
      %3749 = vmatmul.bf16.gmra.mxu0 %v877
      %v3750 = vpop.f32.mrf.mxu0
      %v3751 = vadd.f32 %v3678, %v3750
      %v3752 = vpop.f32.mrf.mxu0
      %v3753 = vadd.f32 %v3680, %v3752
      %3754 = vmatmul.bf16.gmra.mxu0 %v889
      %v3755 = vpop.f32.mrf.mxu0
      %v3756 = vadd.f32 %v3683, %v3755
      %v3757 = vpop.f32.mrf.mxu0
      %v3758 = vadd.f32 %v3685, %v3757
      %3759 = vmatmul.bf16.gmra.mxu0 %v901
      %v3760 = vpop.f32.mrf.mxu0
      %v3761 = vadd.f32 %v3688, %v3760
      %v3762 = vpop.f32.mrf.mxu0
      %v3763 = vadd.f32 %v3690, %v3762
      %3764 = vmatmul.bf16.gmra.mxu0 %v913
      %v3765 = vpop.f32.mrf.mxu0
      %v3766 = vadd.f32 %v3693, %v3765
      %v3767 = vpop.f32.mrf.mxu0
      %v3768 = vadd.f32 %v3695, %v3767
      %3769 = vmatmul.bf16.gmra.mxu0 %v925
      %v3770 = vpop.f32.mrf.mxu0
      %v3771 = vadd.f32 %v3698, %v3770
      %v3772 = vpop.f32.mrf.mxu0
      %v3773 = vadd.f32 %v3700, %v3772
      %3774 = vmatmul.bf16.gmra.mxu0 %v937
      %v3775 = vpop.f32.mrf.mxu0
      %v3776 = vadd.f32 %v3703, %v3775
      %v3777 = vpop.f32.mrf.mxu0
      %v3778 = vadd.f32 %v3705, %v3777
      %3779 = vmatmul.bf16.gmra.mxu0 %v949
      %v3780 = vpop.f32.mrf.mxu0
      %v3781 = vadd.f32 %v3708, %v3780
      %v3782 = vpop.f32.mrf.mxu0
      %v3783 = vadd.f32 %v3710, %v3782
      %3784 = vmatmul.bf16.gmra.mxu0 %v961
      %v3785 = vpop.f32.mrf.mxu0
      %v3786 = vadd.f32 %v3713, %v3785
      %v3787 = vpop.f32.mrf.mxu0
      %v3788 = vadd.f32 %v3715, %v3787
      %3789 = vmatmul.bf16.gmra.mxu0 %v973
      %v3790 = vpop.f32.mrf.mxu0
      %v3791 = vadd.f32 %v3718, %v3790
      %v3792 = vpop.f32.mrf.mxu0
      %3793 = vdwg.mxu0
      %3794 = vmatpush.bf16.msra.mxu0 %v2767
      %3795 = vmatpush.bf16.msra.mxu0 %v2763
      %3796 = vmatpush.bf16.msra.mxu0 %v2759
      %3797 = vmatpush.bf16.msra.mxu0 %v2755
      %3798 = vmatpush.bf16.msra.mxu0 %v2751
      %3799 = vmatpush.bf16.msra.mxu0 %v2747
      %3800 = vmatpush.bf16.msra.mxu0 %v2743
      %3801 = vmatpush.bf16.msra.mxu0 %v2739
      %3802 = vmatmul.bf16.gmra.mxu0 %v830
      %v3803 = vpop.f32.mrf.mxu0
      %v3804 = vadd.f32 %v3731, %v3803
      %v3805 = vpop.f32.mrf.mxu0
      %v3806 = vadd.f32 %v3733, %v3805
      %3807 = vmatmul.bf16.gmra.mxu0 %v842
      %v3808 = vpop.f32.mrf.mxu0
      %v3809 = vadd.f32 %v3736, %v3808
      %v3810 = vpop.f32.mrf.mxu0
      %v3811 = vadd.f32 %v3738, %v3810
      %3812 = vmatmul.bf16.gmra.mxu0 %v854
      %v3813 = vpop.f32.mrf.mxu0
      %v3814 = vadd.f32 %v3741, %v3813
      %v3815 = vpop.f32.mrf.mxu0
      %v3816 = vadd.f32 %v3743, %v3815
      %3817 = vmatmul.bf16.gmra.mxu0 %v866
      %v3818 = vpop.f32.mrf.mxu0
      %v3819 = vadd.f32 %v3746, %v3818
      %v3820 = vpop.f32.mrf.mxu0
      %v3821 = vadd.f32 %v3748, %v3820
      %3822 = vmatmul.bf16.gmra.mxu0 %v878
      %v3823 = vpop.f32.mrf.mxu0
      %v3824 = vadd.f32 %v3751, %v3823
      %v3825 = vpop.f32.mrf.mxu0
      %v3826 = vadd.f32 %v3753, %v3825
      %3827 = vmatmul.bf16.gmra.mxu0 %v890
      %v3828 = vpop.f32.mrf.mxu0
      %v3829 = vadd.f32 %v3756, %v3828
      %v3830 = vpop.f32.mrf.mxu0
      %v3831 = vadd.f32 %v3758, %v3830
      %3832 = vmatmul.bf16.gmra.mxu0 %v902
      %v3833 = vpop.f32.mrf.mxu0
      %v3834 = vadd.f32 %v3761, %v3833
      %v3835 = vpop.f32.mrf.mxu0
      %v3836 = vadd.f32 %v3763, %v3835
      %3837 = vmatmul.bf16.gmra.mxu0 %v914
      %v3838 = vpop.f32.mrf.mxu0
      %v3839 = vadd.f32 %v3766, %v3838
      %v3840 = vpop.f32.mrf.mxu0
      %v3841 = vadd.f32 %v3768, %v3840
      %3842 = vmatmul.bf16.gmra.mxu0 %v926
      %v3843 = vpop.f32.mrf.mxu0
      %v3844 = vadd.f32 %v3771, %v3843
      %v3845 = vpop.f32.mrf.mxu0
      %v3846 = vadd.f32 %v3773, %v3845
      %3847 = vmatmul.bf16.gmra.mxu0 %v938
      %v3848 = vpop.f32.mrf.mxu0
      %v3849 = vadd.f32 %v3776, %v3848
      %v3850 = vpop.f32.mrf.mxu0
      %v3851 = vadd.f32 %v3778, %v3850
      %3852 = vmatmul.bf16.gmra.mxu0 %v950
      %v3853 = vpop.f32.mrf.mxu0
      %v3854 = vadd.f32 %v3781, %v3853
      %v3855 = vpop.f32.mrf.mxu0
      %v3856 = vadd.f32 %v3783, %v3855
      %3857 = vmatmul.bf16.gmra.mxu0 %v962
      %v3858 = vpop.f32.mrf.mxu0
      %v3859 = vadd.f32 %v3786, %v3858
      %v3860 = vpop.f32.mrf.mxu0
      %v3861 = vadd.f32 %v3788, %v3860
      %3862 = vmatmul.bf16.gmra.mxu0 %v974
      %v3863 = vpop.f32.mrf.mxu0
      %v3864 = vadd.f32 %v3791, %v3863
      %v3865 = vpop.f32.mrf.mxu0
      %3866 = vdwg.mxu0
      %3867 = vmatpush.bf16.msra.mxu0 %v2799
      %3868 = vmatpush.bf16.msra.mxu0 %v2795
      %3869 = vmatpush.bf16.msra.mxu0 %v2791
      %3870 = vmatpush.bf16.msra.mxu0 %v2787
      %3871 = vmatpush.bf16.msra.mxu0 %v2783
      %3872 = vmatpush.bf16.msra.mxu0 %v2779
      %3873 = vmatpush.bf16.msra.mxu0 %v2775
      %3874 = vmatpush.bf16.msra.mxu0 %v2771
      %3875 = vmatmul.bf16.gmra.mxu0 %v831
      %v3876 = vpop.f32.mrf.mxu0
      %v3877 = vadd.f32 %v3804, %v3876
      %v3878 = vpop.f32.mrf.mxu0
      %v3879 = vadd.f32 %v3806, %v3878
      %3880 = vmatmul.bf16.gmra.mxu0 %v843
      %v3881 = vpop.f32.mrf.mxu0
      %v3882 = vadd.f32 %v3809, %v3881
      %v3883 = vpop.f32.mrf.mxu0
      %v3884 = vadd.f32 %v3811, %v3883
      %3885 = vmatmul.bf16.gmra.mxu0 %v855
      %v3886 = vpop.f32.mrf.mxu0
      %v3887 = vadd.f32 %v3814, %v3886
      %v3888 = vpop.f32.mrf.mxu0
      %v3889 = vadd.f32 %v3816, %v3888
      %3890 = vmatmul.bf16.gmra.mxu0 %v867
      %v3891 = vpop.f32.mrf.mxu0
      %v3892 = vadd.f32 %v3819, %v3891
      %v3893 = vpop.f32.mrf.mxu0
      %v3894 = vadd.f32 %v3821, %v3893
      %3895 = vmatmul.bf16.gmra.mxu0 %v879
      %v3896 = vpop.f32.mrf.mxu0
      %v3897 = vadd.f32 %v3824, %v3896
      %v3898 = vpop.f32.mrf.mxu0
      %v3899 = vadd.f32 %v3826, %v3898
      %3900 = vmatmul.bf16.gmra.mxu0 %v891
      %v3901 = vpop.f32.mrf.mxu0
      %v3902 = vadd.f32 %v3829, %v3901
      %v3903 = vpop.f32.mrf.mxu0
      %v3904 = vadd.f32 %v3831, %v3903
      %3905 = vmatmul.bf16.gmra.mxu0 %v903
      %v3906 = vpop.f32.mrf.mxu0
      %v3907 = vadd.f32 %v3834, %v3906
      %v3908 = vpop.f32.mrf.mxu0
      %v3909 = vadd.f32 %v3836, %v3908
      %3910 = vmatmul.bf16.gmra.mxu0 %v915
      %v3911 = vpop.f32.mrf.mxu0
      %v3912 = vadd.f32 %v3839, %v3911
      %v3913 = vpop.f32.mrf.mxu0
      %v3914 = vadd.f32 %v3841, %v3913
      %3915 = vmatmul.bf16.gmra.mxu0 %v927
      %v3916 = vpop.f32.mrf.mxu0
      %v3917 = vadd.f32 %v3844, %v3916
      %v3918 = vpop.f32.mrf.mxu0
      %v3919 = vadd.f32 %v3846, %v3918
      %3920 = vmatmul.bf16.gmra.mxu0 %v939
      %v3921 = vpop.f32.mrf.mxu0
      %v3922 = vadd.f32 %v3849, %v3921
      %v3923 = vpop.f32.mrf.mxu0
      %v3924 = vadd.f32 %v3851, %v3923
      %3925 = vmatmul.bf16.gmra.mxu0 %v951
      %v3926 = vpop.f32.mrf.mxu0
      %v3927 = vadd.f32 %v3854, %v3926
      %v3928 = vpop.f32.mrf.mxu0
      %v3929 = vadd.f32 %v3856, %v3928
      %3930 = vmatmul.bf16.gmra.mxu0 %v963
      %v3931 = vpop.f32.mrf.mxu0
      %v3932 = vadd.f32 %v3859, %v3931
      %v3933 = vpop.f32.mrf.mxu0
      %v3934 = vadd.f32 %v3861, %v3933
      %3935 = vmatmul.bf16.gmra.mxu0 %v975
      %v3936 = vpop.f32.mrf.mxu0
      %v3937 = vadd.f32 %v3864, %v3936
      %v3938 = vpop.f32.mrf.mxu0
      %3939 = vdwg.mxu0
      %3940 = vmatpush.bf16.msra.mxu0 %v2831
      %3941 = vmatpush.bf16.msra.mxu0 %v2827
      %3942 = vmatpush.bf16.msra.mxu0 %v2823
      %3943 = vmatpush.bf16.msra.mxu0 %v2819
      %3944 = vmatpush.bf16.msra.mxu0 %v2815
      %3945 = vmatpush.bf16.msra.mxu0 %v2811
      %3946 = vmatpush.bf16.msra.mxu0 %v2807
      %3947 = vmatpush.bf16.msra.mxu0 %v2803
      %3948 = vmatmul.bf16.gmra.mxu0 %v832
      %v3949 = vpop.f32.mrf.mxu0
      %v3950 = vadd.f32 %v3877, %v3949
      %v3951 = vpop.f32.mrf.mxu0
      %v3952 = vadd.f32 %v3879, %v3951
      %3953 = vmatmul.bf16.gmra.mxu0 %v844
      %v3954 = vpop.f32.mrf.mxu0
      %v3955 = vadd.f32 %v3882, %v3954
      %v3956 = vpop.f32.mrf.mxu0
      %v3957 = vadd.f32 %v3884, %v3956
      %3958 = vmatmul.bf16.gmra.mxu0 %v856
      %v3959 = vpop.f32.mrf.mxu0
      %v3960 = vadd.f32 %v3887, %v3959
      %v3961 = vpop.f32.mrf.mxu0
      %v3962 = vadd.f32 %v3889, %v3961
      %3963 = vmatmul.bf16.gmra.mxu0 %v868
      %v3964 = vpop.f32.mrf.mxu0
      %v3965 = vadd.f32 %v3892, %v3964
      %v3966 = vpop.f32.mrf.mxu0
      %v3967 = vadd.f32 %v3894, %v3966
      %3968 = vmatmul.bf16.gmra.mxu0 %v880
      %v3969 = vpop.f32.mrf.mxu0
      %v3970 = vadd.f32 %v3897, %v3969
      %v3971 = vpop.f32.mrf.mxu0
      %v3972 = vadd.f32 %v3899, %v3971
      %3973 = vmatmul.bf16.gmra.mxu0 %v892
      %v3974 = vpop.f32.mrf.mxu0
      %v3975 = vadd.f32 %v3902, %v3974
      %v3976 = vpop.f32.mrf.mxu0
      %v3977 = vadd.f32 %v3904, %v3976
      %3978 = vmatmul.bf16.gmra.mxu0 %v904
      %v3979 = vpop.f32.mrf.mxu0
      %v3980 = vadd.f32 %v3907, %v3979
      %v3981 = vpop.f32.mrf.mxu0
      %v3982 = vadd.f32 %v3909, %v3981
      %3983 = vmatmul.bf16.gmra.mxu0 %v916
      %v3984 = vpop.f32.mrf.mxu0
      %v3985 = vadd.f32 %v3912, %v3984
      %v3986 = vpop.f32.mrf.mxu0
      %v3987 = vadd.f32 %v3914, %v3986
      %3988 = vmatmul.bf16.gmra.mxu0 %v928
      %v3989 = vpop.f32.mrf.mxu0
      %v3990 = vadd.f32 %v3917, %v3989
      %v3991 = vpop.f32.mrf.mxu0
      %v3992 = vadd.f32 %v3919, %v3991
      %3993 = vmatmul.bf16.gmra.mxu0 %v940
      %v3994 = vpop.f32.mrf.mxu0
      %v3995 = vadd.f32 %v3922, %v3994
      %v3996 = vpop.f32.mrf.mxu0
      %v3997 = vadd.f32 %v3924, %v3996
      %3998 = vmatmul.bf16.gmra.mxu0 %v952
      %v3999 = vpop.f32.mrf.mxu0
      %v4000 = vadd.f32 %v3927, %v3999
      %v4001 = vpop.f32.mrf.mxu0
      %v4002 = vadd.f32 %v3929, %v4001
      %4003 = vmatmul.bf16.gmra.mxu0 %v964
      %v4004 = vpop.f32.mrf.mxu0
      %v4005 = vadd.f32 %v3932, %v4004
      %v4006 = vpop.f32.mrf.mxu0
      %v4007 = vadd.f32 %v3934, %v4006
      %4008 = vmatmul.bf16.gmra.mxu0 %v976
      %v4009 = vpop.f32.mrf.mxu0
      %v4010 = vadd.f32 %v3937, %v4009
      %v4011 = vpop.f32.mrf.mxu0
      %4012 = vdwg.mxu0
      %4013 = vmatpush.bf16.msra.mxu0 %v2863
      %4014 = vmatpush.bf16.msra.mxu0 %v2859
      %4015 = vmatpush.bf16.msra.mxu0 %v2855
      %4016 = vmatpush.bf16.msra.mxu0 %v2851
      %4017 = vmatpush.bf16.msra.mxu0 %v2847
      %4018 = vmatpush.bf16.msra.mxu0 %v2843
      %4019 = vmatpush.bf16.msra.mxu0 %v2839
      %4020 = vmatpush.bf16.msra.mxu0 %v2835
      %4021 = vmatmul.bf16.gmra.mxu0 %v833
      %v4022 = vpop.f32.mrf.mxu0
      %v4023 = vadd.f32 %v3950, %v4022
      %v4024 = vpop.f32.mrf.mxu0
      %v4025 = vadd.f32 %v3952, %v4024
      %4026 = vmatmul.bf16.gmra.mxu0 %v845
      %v4027 = vpop.f32.mrf.mxu0
      %v4028 = vadd.f32 %v3955, %v4027
      %v4029 = vpop.f32.mrf.mxu0
      %v4030 = vadd.f32 %v3957, %v4029
      %4031 = vmatmul.bf16.gmra.mxu0 %v857
      %v4032 = vpop.f32.mrf.mxu0
      %v4033 = vadd.f32 %v3960, %v4032
      %v4034 = vpop.f32.mrf.mxu0
      %v4035 = vadd.f32 %v3962, %v4034
      %4036 = vmatmul.bf16.gmra.mxu0 %v869
      %v4037 = vpop.f32.mrf.mxu0
      %v4038 = vadd.f32 %v3965, %v4037
      %v4039 = vpop.f32.mrf.mxu0
      %v4040 = vadd.f32 %v3967, %v4039
      %4041 = vmatmul.bf16.gmra.mxu0 %v881
      %v4042 = vpop.f32.mrf.mxu0
      %v4043 = vadd.f32 %v3970, %v4042
      %v4044 = vpop.f32.mrf.mxu0
      %v4045 = vadd.f32 %v3972, %v4044
      %4046 = vmatmul.bf16.gmra.mxu0 %v893
      %v4047 = vpop.f32.mrf.mxu0
      %v4048 = vadd.f32 %v3975, %v4047
      %v4049 = vpop.f32.mrf.mxu0
      %v4050 = vadd.f32 %v3977, %v4049
      %4051 = vmatmul.bf16.gmra.mxu0 %v905
      %v4052 = vpop.f32.mrf.mxu0
      %v4053 = vadd.f32 %v3980, %v4052
      %v4054 = vpop.f32.mrf.mxu0
      %v4055 = vadd.f32 %v3982, %v4054
      %4056 = vmatmul.bf16.gmra.mxu0 %v917
      %v4057 = vpop.f32.mrf.mxu0
      %v4058 = vadd.f32 %v3985, %v4057
      %v4059 = vpop.f32.mrf.mxu0
      %v4060 = vadd.f32 %v3987, %v4059
      %4061 = vmatmul.bf16.gmra.mxu0 %v929
      %v4062 = vpop.f32.mrf.mxu0
      %v4063 = vadd.f32 %v3990, %v4062
      %v4064 = vpop.f32.mrf.mxu0
      %v4065 = vadd.f32 %v3992, %v4064
      %4066 = vmatmul.bf16.gmra.mxu0 %v941
      %v4067 = vpop.f32.mrf.mxu0
      %v4068 = vadd.f32 %v3995, %v4067
      %v4069 = vpop.f32.mrf.mxu0
      %v4070 = vadd.f32 %v3997, %v4069
      %4071 = vmatmul.bf16.gmra.mxu0 %v953
      %v4072 = vpop.f32.mrf.mxu0
      %v4073 = vadd.f32 %v4000, %v4072
      %v4074 = vpop.f32.mrf.mxu0
      %v4075 = vadd.f32 %v4002, %v4074
      %4076 = vmatmul.bf16.gmra.mxu0 %v965
      %v4077 = vpop.f32.mrf.mxu0
      %v4078 = vadd.f32 %v4005, %v4077
      %v4079 = vpop.f32.mrf.mxu0
      %v4080 = vadd.f32 %v4007, %v4079
      %4081 = vmatmul.bf16.gmra.mxu0 %v977
      %v4082 = vpop.f32.mrf.mxu0
      %v4083 = vadd.f32 %v4010, %v4082
      %v4084 = vpop.f32.mrf.mxu0
      %4085 = vdwg.mxu0
      %4086 = vmatpush.bf16.msra.mxu0 %v2895
      %4087 = vmatpush.bf16.msra.mxu0 %v2891
      %4088 = vmatpush.bf16.msra.mxu0 %v2887
      %4089 = vmatpush.bf16.msra.mxu0 %v2883
      %4090 = vmatpush.bf16.msra.mxu0 %v2879
      %4091 = vmatpush.bf16.msra.mxu0 %v2875
      %4092 = vmatpush.bf16.msra.mxu0 %v2871
      %4093 = vmatpush.bf16.msra.mxu0 %v2867
      %4094 = vmatmul.bf16.gmra.mxu0 %v834
      %v4095 = vpop.f32.mrf.mxu0
      %v4096 = vadd.f32 %v4023, %v4095
      %v4097 = vpop.f32.mrf.mxu0
      %v4098 = vadd.f32 %v4025, %v4097
      %4099 = vmatmul.bf16.gmra.mxu0 %v846
      %v4100 = vpop.f32.mrf.mxu0
      %v4101 = vadd.f32 %v4028, %v4100
      %v4102 = vpop.f32.mrf.mxu0
      %v4103 = vadd.f32 %v4030, %v4102
      %4104 = vmatmul.bf16.gmra.mxu0 %v858
      %v4105 = vpop.f32.mrf.mxu0
      %v4106 = vadd.f32 %v4033, %v4105
      %v4107 = vpop.f32.mrf.mxu0
      %v4108 = vadd.f32 %v4035, %v4107
      %4109 = vmatmul.bf16.gmra.mxu0 %v870
      %v4110 = vpop.f32.mrf.mxu0
      %v4111 = vadd.f32 %v4038, %v4110
      %v4112 = vpop.f32.mrf.mxu0
      %v4113 = vadd.f32 %v4040, %v4112
      %4114 = vmatmul.bf16.gmra.mxu0 %v882
      %v4115 = vpop.f32.mrf.mxu0
      %v4116 = vadd.f32 %v4043, %v4115
      %v4117 = vpop.f32.mrf.mxu0
      %v4118 = vadd.f32 %v4045, %v4117
      %4119 = vmatmul.bf16.gmra.mxu0 %v894
      %v4120 = vpop.f32.mrf.mxu0
      %v4121 = vadd.f32 %v4048, %v4120
      %v4122 = vpop.f32.mrf.mxu0
      %v4123 = vadd.f32 %v4050, %v4122
      %4124 = vmatmul.bf16.gmra.mxu0 %v906
      %v4125 = vpop.f32.mrf.mxu0
      %v4126 = vadd.f32 %v4053, %v4125
      %v4127 = vpop.f32.mrf.mxu0
      %v4128 = vadd.f32 %v4055, %v4127
      %4129 = vmatmul.bf16.gmra.mxu0 %v918
      %v4130 = vpop.f32.mrf.mxu0
      %v4131 = vadd.f32 %v4058, %v4130
      %v4132 = vpop.f32.mrf.mxu0
      %v4133 = vadd.f32 %v4060, %v4132
      %4134 = vmatmul.bf16.gmra.mxu0 %v930
      %v4135 = vpop.f32.mrf.mxu0
      %v4136 = vadd.f32 %v4063, %v4135
      %v4137 = vpop.f32.mrf.mxu0
      %v4138 = vadd.f32 %v4065, %v4137
      %4139 = vmatmul.bf16.gmra.mxu0 %v942
      %v4140 = vpop.f32.mrf.mxu0
      %v4141 = vadd.f32 %v4068, %v4140
      %v4142 = vpop.f32.mrf.mxu0
      %v4143 = vadd.f32 %v4070, %v4142
      %4144 = vmatmul.bf16.gmra.mxu0 %v954
      %v4145 = vpop.f32.mrf.mxu0
      %v4146 = vadd.f32 %v4073, %v4145
      %v4147 = vpop.f32.mrf.mxu0
      %v4148 = vadd.f32 %v4075, %v4147
      %4149 = vmatmul.bf16.gmra.mxu0 %v966
      %v4150 = vpop.f32.mrf.mxu0
      %v4151 = vadd.f32 %v4078, %v4150
      %v4152 = vpop.f32.mrf.mxu0
      %v4153 = vadd.f32 %v4080, %v4152
      %4154 = vmatmul.bf16.gmra.mxu0 %v978
      %v4155 = vpop.f32.mrf.mxu0
      %v4156 = vadd.f32 %v4083, %v4155
      %v4157 = vpop.f32.mrf.mxu0
      %4158 = vdwg.mxu0
      %4159 = vmatpush.bf16.msra.mxu0 %v2544
      %4160 = vmatpush.bf16.msra.mxu0 %v2540
      %4161 = vmatpush.bf16.msra.mxu0 %v2536
      %4162 = vmatpush.bf16.msra.mxu0 %v2532
      %4163 = vmatpush.bf16.msra.mxu0 %v2528
      %4164 = vmatpush.bf16.msra.mxu0 %v2524
      %4165 = vmatpush.bf16.msra.mxu0 %v2520
      %4166 = vmatpush.bf16.msra.mxu0 %v2516
      %4167 = vmatmul.bf16.gmra.mxu0 %v823
      %v4168 = vpop.f32.mrf.mxu0
      %v4169 = vadd.f32 0.0, %v4168
      %v4170 = vpop.f32.mrf.mxu0
      %v4171 = vadd.f32 0.0, %v4170
      %4172 = vmatmul.bf16.gmra.mxu0 %v835
      %v4173 = vpop.f32.mrf.mxu0
      %v4174 = vadd.f32 0.0, %v4173
      %v4175 = vpop.f32.mrf.mxu0
      %v4176 = vadd.f32 0.0, %v4175
      %4177 = vmatmul.bf16.gmra.mxu0 %v847
      %v4178 = vpop.f32.mrf.mxu0
      %v4179 = vadd.f32 0.0, %v4178
      %v4180 = vpop.f32.mrf.mxu0
      %v4181 = vadd.f32 0.0, %v4180
      %4182 = vmatmul.bf16.gmra.mxu0 %v859
      %v4183 = vpop.f32.mrf.mxu0
      %v4184 = vadd.f32 0.0, %v4183
      %v4185 = vpop.f32.mrf.mxu0
      %v4186 = vadd.f32 0.0, %v4185
      %4187 = vmatmul.bf16.gmra.mxu0 %v871
      %v4188 = vpop.f32.mrf.mxu0
      %v4189 = vadd.f32 0.0, %v4188
      %v4190 = vpop.f32.mrf.mxu0
      %v4191 = vadd.f32 0.0, %v4190
      %4192 = vmatmul.bf16.gmra.mxu0 %v883
      %v4193 = vpop.f32.mrf.mxu0
      %v4194 = vadd.f32 0.0, %v4193
      %v4195 = vpop.f32.mrf.mxu0
      %v4196 = vadd.f32 0.0, %v4195
      %4197 = vmatmul.bf16.gmra.mxu0 %v895
      %v4198 = vpop.f32.mrf.mxu0
      %v4199 = vadd.f32 0.0, %v4198
      %v4200 = vpop.f32.mrf.mxu0
      %v4201 = vadd.f32 0.0, %v4200
      %4202 = vmatmul.bf16.gmra.mxu0 %v907
      %v4203 = vpop.f32.mrf.mxu0
      %v4204 = vadd.f32 0.0, %v4203
      %v4205 = vpop.f32.mrf.mxu0
      %v4206 = vadd.f32 0.0, %v4205
      %4207 = vmatmul.bf16.gmra.mxu0 %v919
      %v4208 = vpop.f32.mrf.mxu0
      %v4209 = vadd.f32 0.0, %v4208
      %v4210 = vpop.f32.mrf.mxu0
      %v4211 = vadd.f32 0.0, %v4210
      %4212 = vmatmul.bf16.gmra.mxu0 %v931
      %v4213 = vpop.f32.mrf.mxu0
      %v4214 = vadd.f32 0.0, %v4213
      %v4215 = vpop.f32.mrf.mxu0
      %v4216 = vadd.f32 0.0, %v4215
      %4217 = vmatmul.bf16.gmra.mxu0 %v943
      %v4218 = vpop.f32.mrf.mxu0
      %v4219 = vadd.f32 0.0, %v4218
      %v4220 = vpop.f32.mrf.mxu0
      %v4221 = vadd.f32 0.0, %v4220
      %4222 = vmatmul.bf16.gmra.mxu0 %v955
      %v4223 = vpop.f32.mrf.mxu0
      %v4224 = vadd.f32 0.0, %v4223
      %v4225 = vpop.f32.mrf.mxu0
      %v4226 = vadd.f32 0.0, %v4225
      %4227 = vmatmul.bf16.gmra.mxu0 %v967
      %v4228 = vpop.f32.mrf.mxu0
      %v4229 = vadd.f32 0.0, %v4228
      %v4230 = vpop.f32.mrf.mxu0
      %4231 = vdwg.mxu0
      %4232 = vmatpush.bf16.msra.mxu0 %v2576
      %4233 = vmatpush.bf16.msra.mxu0 %v2572
      %4234 = vmatpush.bf16.msra.mxu0 %v2568
      %4235 = vmatpush.bf16.msra.mxu0 %v2564
      %4236 = vmatpush.bf16.msra.mxu0 %v2560
      %4237 = vmatpush.bf16.msra.mxu0 %v2556
      %4238 = vmatpush.bf16.msra.mxu0 %v2552
      %4239 = vmatpush.bf16.msra.mxu0 %v2548
      %4240 = vmatmul.bf16.gmra.mxu0 %v824
      %v4241 = vpop.f32.mrf.mxu0
      %v4242 = vadd.f32 %v4169, %v4241
      %v4243 = vpop.f32.mrf.mxu0
      %v4244 = vadd.f32 %v4171, %v4243
      %4245 = vmatmul.bf16.gmra.mxu0 %v836
      %v4246 = vpop.f32.mrf.mxu0
      %v4247 = vadd.f32 %v4174, %v4246
      %v4248 = vpop.f32.mrf.mxu0
      %v4249 = vadd.f32 %v4176, %v4248
      %4250 = vmatmul.bf16.gmra.mxu0 %v848
      %v4251 = vpop.f32.mrf.mxu0
      %v4252 = vadd.f32 %v4179, %v4251
      %v4253 = vpop.f32.mrf.mxu0
      %v4254 = vadd.f32 %v4181, %v4253
      %4255 = vmatmul.bf16.gmra.mxu0 %v860
      %v4256 = vpop.f32.mrf.mxu0
      %v4257 = vadd.f32 %v4184, %v4256
      %v4258 = vpop.f32.mrf.mxu0
      %v4259 = vadd.f32 %v4186, %v4258
      %4260 = vmatmul.bf16.gmra.mxu0 %v872
      %v4261 = vpop.f32.mrf.mxu0
      %v4262 = vadd.f32 %v4189, %v4261
      %v4263 = vpop.f32.mrf.mxu0
      %v4264 = vadd.f32 %v4191, %v4263
      %4265 = vmatmul.bf16.gmra.mxu0 %v884
      %v4266 = vpop.f32.mrf.mxu0
      %v4267 = vadd.f32 %v4194, %v4266
      %v4268 = vpop.f32.mrf.mxu0
      %v4269 = vadd.f32 %v4196, %v4268
      %4270 = vmatmul.bf16.gmra.mxu0 %v896
      %v4271 = vpop.f32.mrf.mxu0
      %v4272 = vadd.f32 %v4199, %v4271
      %v4273 = vpop.f32.mrf.mxu0
      %v4274 = vadd.f32 %v4201, %v4273
      %4275 = vmatmul.bf16.gmra.mxu0 %v908
      %v4276 = vpop.f32.mrf.mxu0
      %v4277 = vadd.f32 %v4204, %v4276
      %v4278 = vpop.f32.mrf.mxu0
      %v4279 = vadd.f32 %v4206, %v4278
      %4280 = vmatmul.bf16.gmra.mxu0 %v920
      %v4281 = vpop.f32.mrf.mxu0
      %v4282 = vadd.f32 %v4209, %v4281
      %v4283 = vpop.f32.mrf.mxu0
      %v4284 = vadd.f32 %v4211, %v4283
      %4285 = vmatmul.bf16.gmra.mxu0 %v932
      %v4286 = vpop.f32.mrf.mxu0
      %v4287 = vadd.f32 %v4214, %v4286
      %v4288 = vpop.f32.mrf.mxu0
      %v4289 = vadd.f32 %v4216, %v4288
      %4290 = vmatmul.bf16.gmra.mxu0 %v944
      %v4291 = vpop.f32.mrf.mxu0
      %v4292 = vadd.f32 %v4219, %v4291
      %v4293 = vpop.f32.mrf.mxu0
      %v4294 = vadd.f32 %v4221, %v4293
      %4295 = vmatmul.bf16.gmra.mxu0 %v956
      %v4296 = vpop.f32.mrf.mxu0
      %v4297 = vadd.f32 %v4224, %v4296
      %v4298 = vpop.f32.mrf.mxu0
      %v4299 = vadd.f32 %v4226, %v4298
      %4300 = vmatmul.bf16.gmra.mxu0 %v968
      %v4301 = vpop.f32.mrf.mxu0
      %v4302 = vadd.f32 %v4229, %v4301
      %v4303 = vpop.f32.mrf.mxu0
      %4304 = vdwg.mxu0
      %4305 = vmatpush.bf16.msra.mxu0 %v2608
      %4306 = vmatpush.bf16.msra.mxu0 %v2604
      %4307 = vmatpush.bf16.msra.mxu0 %v2600
      %4308 = vmatpush.bf16.msra.mxu0 %v2596
      %4309 = vmatpush.bf16.msra.mxu0 %v2592
      %4310 = vmatpush.bf16.msra.mxu0 %v2588
      %4311 = vmatpush.bf16.msra.mxu0 %v2584
      %4312 = vmatpush.bf16.msra.mxu0 %v2580
      %4313 = vmatmul.bf16.gmra.mxu0 %v825
      %v4314 = vpop.f32.mrf.mxu0
      %v4315 = vadd.f32 %v4242, %v4314
      %v4316 = vpop.f32.mrf.mxu0
      %v4317 = vadd.f32 %v4244, %v4316
      %4318 = vmatmul.bf16.gmra.mxu0 %v837
      %v4319 = vpop.f32.mrf.mxu0
      %v4320 = vadd.f32 %v4247, %v4319
      %v4321 = vpop.f32.mrf.mxu0
      %v4322 = vadd.f32 %v4249, %v4321
      %4323 = vmatmul.bf16.gmra.mxu0 %v849
      %v4324 = vpop.f32.mrf.mxu0
      %v4325 = vadd.f32 %v4252, %v4324
      %v4326 = vpop.f32.mrf.mxu0
      %v4327 = vadd.f32 %v4254, %v4326
      %4328 = vmatmul.bf16.gmra.mxu0 %v861
      %v4329 = vpop.f32.mrf.mxu0
      %v4330 = vadd.f32 %v4257, %v4329
      %v4331 = vpop.f32.mrf.mxu0
      %v4332 = vadd.f32 %v4259, %v4331
      %4333 = vmatmul.bf16.gmra.mxu0 %v873
      %v4334 = vpop.f32.mrf.mxu0
      %v4335 = vadd.f32 %v4262, %v4334
      %v4336 = vpop.f32.mrf.mxu0
      %v4337 = vadd.f32 %v4264, %v4336
      %4338 = vmatmul.bf16.gmra.mxu0 %v885
      %v4339 = vpop.f32.mrf.mxu0
      %v4340 = vadd.f32 %v4267, %v4339
      %v4341 = vpop.f32.mrf.mxu0
      %v4342 = vadd.f32 %v4269, %v4341
      %4343 = vmatmul.bf16.gmra.mxu0 %v897
      %v4344 = vpop.f32.mrf.mxu0
      %v4345 = vadd.f32 %v4272, %v4344
      %v4346 = vpop.f32.mrf.mxu0
      %v4347 = vadd.f32 %v4274, %v4346
      %4348 = vmatmul.bf16.gmra.mxu0 %v909
      %v4349 = vpop.f32.mrf.mxu0
      %v4350 = vadd.f32 %v4277, %v4349
      %v4351 = vpop.f32.mrf.mxu0
      %v4352 = vadd.f32 %v4279, %v4351
      %4353 = vmatmul.bf16.gmra.mxu0 %v921
      %v4354 = vpop.f32.mrf.mxu0
      %v4355 = vadd.f32 %v4282, %v4354
      %v4356 = vpop.f32.mrf.mxu0
      %v4357 = vadd.f32 %v4284, %v4356
      %4358 = vmatmul.bf16.gmra.mxu0 %v933
      %v4359 = vpop.f32.mrf.mxu0
      %v4360 = vadd.f32 %v4287, %v4359
      %v4361 = vpop.f32.mrf.mxu0
      %v4362 = vadd.f32 %v4289, %v4361
      %4363 = vmatmul.bf16.gmra.mxu0 %v945
      %v4364 = vpop.f32.mrf.mxu0
      %v4365 = vadd.f32 %v4292, %v4364
      %v4366 = vpop.f32.mrf.mxu0
      %v4367 = vadd.f32 %v4294, %v4366
      %4368 = vmatmul.bf16.gmra.mxu0 %v957
      %v4369 = vpop.f32.mrf.mxu0
      %v4370 = vadd.f32 %v4297, %v4369
      %v4371 = vpop.f32.mrf.mxu0
      %v4372 = vadd.f32 %v4299, %v4371
      %4373 = vmatmul.bf16.gmra.mxu0 %v969
      %v4374 = vpop.f32.mrf.mxu0
      %v4375 = vadd.f32 %v4302, %v4374
      %v4376 = vpop.f32.mrf.mxu0
      %4377 = vdwg.mxu0
      %4378 = vmatpush.bf16.msra.mxu0 %v2640
      %4379 = vmatpush.bf16.msra.mxu0 %v2636
      %4380 = vmatpush.bf16.msra.mxu0 %v2632
      %4381 = vmatpush.bf16.msra.mxu0 %v2628
      %4382 = vmatpush.bf16.msra.mxu0 %v2624
      %4383 = vmatpush.bf16.msra.mxu0 %v2620
      %4384 = vmatpush.bf16.msra.mxu0 %v2616
      %4385 = vmatpush.bf16.msra.mxu0 %v2612
      %4386 = vmatmul.bf16.gmra.mxu0 %v826
      %v4387 = vpop.f32.mrf.mxu0
      %v4388 = vadd.f32 %v4315, %v4387
      %v4389 = vpop.f32.mrf.mxu0
      %v4390 = vadd.f32 %v4317, %v4389
      %4391 = vmatmul.bf16.gmra.mxu0 %v838
      %v4392 = vpop.f32.mrf.mxu0
      %v4393 = vadd.f32 %v4320, %v4392
      %v4394 = vpop.f32.mrf.mxu0
      %v4395 = vadd.f32 %v4322, %v4394
      %4396 = vmatmul.bf16.gmra.mxu0 %v850
      %v4397 = vpop.f32.mrf.mxu0
      %v4398 = vadd.f32 %v4325, %v4397
      %v4399 = vpop.f32.mrf.mxu0
      %v4400 = vadd.f32 %v4327, %v4399
      %4401 = vmatmul.bf16.gmra.mxu0 %v862
      %v4402 = vpop.f32.mrf.mxu0
      %v4403 = vadd.f32 %v4330, %v4402
      %v4404 = vpop.f32.mrf.mxu0
      %v4405 = vadd.f32 %v4332, %v4404
      %4406 = vmatmul.bf16.gmra.mxu0 %v874
      %v4407 = vpop.f32.mrf.mxu0
      %v4408 = vadd.f32 %v4335, %v4407
      %v4409 = vpop.f32.mrf.mxu0
      %v4410 = vadd.f32 %v4337, %v4409
      %4411 = vmatmul.bf16.gmra.mxu0 %v886
      %v4412 = vpop.f32.mrf.mxu0
      %v4413 = vadd.f32 %v4340, %v4412
      %v4414 = vpop.f32.mrf.mxu0
      %v4415 = vadd.f32 %v4342, %v4414
      %4416 = vmatmul.bf16.gmra.mxu0 %v898
      %v4417 = vpop.f32.mrf.mxu0
      %v4418 = vadd.f32 %v4345, %v4417
      %v4419 = vpop.f32.mrf.mxu0
      %v4420 = vadd.f32 %v4347, %v4419
      %4421 = vmatmul.bf16.gmra.mxu0 %v910
      %v4422 = vpop.f32.mrf.mxu0
      %v4423 = vadd.f32 %v4350, %v4422
      %v4424 = vpop.f32.mrf.mxu0
      %v4425 = vadd.f32 %v4352, %v4424
      %4426 = vmatmul.bf16.gmra.mxu0 %v922
      %v4427 = vpop.f32.mrf.mxu0
      %v4428 = vadd.f32 %v4355, %v4427
      %v4429 = vpop.f32.mrf.mxu0
      %v4430 = vadd.f32 %v4357, %v4429
      %4431 = vmatmul.bf16.gmra.mxu0 %v934
      %v4432 = vpop.f32.mrf.mxu0
      %v4433 = vadd.f32 %v4360, %v4432
      %v4434 = vpop.f32.mrf.mxu0
      %v4435 = vadd.f32 %v4362, %v4434
      %4436 = vmatmul.bf16.gmra.mxu0 %v946
      %v4437 = vpop.f32.mrf.mxu0
      %v4438 = vadd.f32 %v4365, %v4437
      %v4439 = vpop.f32.mrf.mxu0
      %v4440 = vadd.f32 %v4367, %v4439
      %4441 = vmatmul.bf16.gmra.mxu0 %v958
      %v4442 = vpop.f32.mrf.mxu0
      %v4443 = vadd.f32 %v4370, %v4442
      %v4444 = vpop.f32.mrf.mxu0
      %v4445 = vadd.f32 %v4372, %v4444
      %4446 = vmatmul.bf16.gmra.mxu0 %v970
      %v4447 = vpop.f32.mrf.mxu0
      %v4448 = vadd.f32 %v4375, %v4447
      %v4449 = vpop.f32.mrf.mxu0
      %4450 = vdwg.mxu0
      %4451 = vmatpush.bf16.msra.mxu0 %v2672
      %4452 = vmatpush.bf16.msra.mxu0 %v2668
      %4453 = vmatpush.bf16.msra.mxu0 %v2664
      %4454 = vmatpush.bf16.msra.mxu0 %v2660
      %4455 = vmatpush.bf16.msra.mxu0 %v2656
      %4456 = vmatpush.bf16.msra.mxu0 %v2652
      %4457 = vmatpush.bf16.msra.mxu0 %v2648
      %4458 = vmatpush.bf16.msra.mxu0 %v2644
      %4459 = vmatmul.bf16.gmra.mxu0 %v827
      %v4460 = vpop.f32.mrf.mxu0
      %v4461 = vadd.f32 %v4388, %v4460
      %v4462 = vpop.f32.mrf.mxu0
      %v4463 = vadd.f32 %v4390, %v4462
      %4464 = vmatmul.bf16.gmra.mxu0 %v839
      %v4465 = vpop.f32.mrf.mxu0
      %v4466 = vadd.f32 %v4393, %v4465
      %v4467 = vpop.f32.mrf.mxu0
      %v4468 = vadd.f32 %v4395, %v4467
      %4469 = vmatmul.bf16.gmra.mxu0 %v851
      %v4470 = vpop.f32.mrf.mxu0
      %v4471 = vadd.f32 %v4398, %v4470
      %v4472 = vpop.f32.mrf.mxu0
      %v4473 = vadd.f32 %v4400, %v4472
      %4474 = vmatmul.bf16.gmra.mxu0 %v863
      %v4475 = vpop.f32.mrf.mxu0
      %v4476 = vadd.f32 %v4403, %v4475
      %v4477 = vpop.f32.mrf.mxu0
      %v4478 = vadd.f32 %v4405, %v4477
      %4479 = vmatmul.bf16.gmra.mxu0 %v875
      %v4480 = vpop.f32.mrf.mxu0
      %v4481 = vadd.f32 %v4408, %v4480
      %v4482 = vpop.f32.mrf.mxu0
      %v4483 = vadd.f32 %v4410, %v4482
      %4484 = vmatmul.bf16.gmra.mxu0 %v887
      %v4485 = vpop.f32.mrf.mxu0
      %v4486 = vadd.f32 %v4413, %v4485
      %v4487 = vpop.f32.mrf.mxu0
      %v4488 = vadd.f32 %v4415, %v4487
      %4489 = vmatmul.bf16.gmra.mxu0 %v899
      %v4490 = vpop.f32.mrf.mxu0
      %v4491 = vadd.f32 %v4418, %v4490
      %v4492 = vpop.f32.mrf.mxu0
      %v4493 = vadd.f32 %v4420, %v4492
      %4494 = vmatmul.bf16.gmra.mxu0 %v911
      %v4495 = vpop.f32.mrf.mxu0
      %v4496 = vadd.f32 %v4423, %v4495
      %v4497 = vpop.f32.mrf.mxu0
      %v4498 = vadd.f32 %v4425, %v4497
      %4499 = vmatmul.bf16.gmra.mxu0 %v923
      %v4500 = vpop.f32.mrf.mxu0
      %v4501 = vadd.f32 %v4428, %v4500
      %v4502 = vpop.f32.mrf.mxu0
      %v4503 = vadd.f32 %v4430, %v4502
      %4504 = vmatmul.bf16.gmra.mxu0 %v935
      %v4505 = vpop.f32.mrf.mxu0
      %v4506 = vadd.f32 %v4433, %v4505
      %v4507 = vpop.f32.mrf.mxu0
      %v4508 = vadd.f32 %v4435, %v4507
      %4509 = vmatmul.bf16.gmra.mxu0 %v947
      %v4510 = vpop.f32.mrf.mxu0
      %v4511 = vadd.f32 %v4438, %v4510
      %v4512 = vpop.f32.mrf.mxu0
      %v4513 = vadd.f32 %v4440, %v4512
      %4514 = vmatmul.bf16.gmra.mxu0 %v959
      %v4515 = vpop.f32.mrf.mxu0
      %v4516 = vadd.f32 %v4443, %v4515
      %v4517 = vpop.f32.mrf.mxu0
      %v4518 = vadd.f32 %v4445, %v4517
      %4519 = vmatmul.bf16.gmra.mxu0 %v971
      %v4520 = vpop.f32.mrf.mxu0
      %v4521 = vadd.f32 %v4448, %v4520
      %v4522 = vpop.f32.mrf.mxu0
      %4523 = vdwg.mxu0
      %4524 = vmatpush.bf16.msra.mxu0 %v2704
      %4525 = vmatpush.bf16.msra.mxu0 %v2700
      %4526 = vmatpush.bf16.msra.mxu0 %v2696
      %4527 = vmatpush.bf16.msra.mxu0 %v2692
      %4528 = vmatpush.bf16.msra.mxu0 %v2688
      %4529 = vmatpush.bf16.msra.mxu0 %v2684
      %4530 = vmatpush.bf16.msra.mxu0 %v2680
      %4531 = vmatpush.bf16.msra.mxu0 %v2676
      %4532 = vmatmul.bf16.gmra.mxu0 %v828
      %v4533 = vpop.f32.mrf.mxu0
      %v4534 = vadd.f32 %v4461, %v4533
      %v4535 = vpop.f32.mrf.mxu0
      %v4536 = vadd.f32 %v4463, %v4535
      %4537 = vmatmul.bf16.gmra.mxu0 %v840
      %v4538 = vpop.f32.mrf.mxu0
      %v4539 = vadd.f32 %v4466, %v4538
      %v4540 = vpop.f32.mrf.mxu0
      %v4541 = vadd.f32 %v4468, %v4540
      %4542 = vmatmul.bf16.gmra.mxu0 %v852
      %v4543 = vpop.f32.mrf.mxu0
      %v4544 = vadd.f32 %v4471, %v4543
      %v4545 = vpop.f32.mrf.mxu0
      %v4546 = vadd.f32 %v4473, %v4545
      %4547 = vmatmul.bf16.gmra.mxu0 %v864
      %v4548 = vpop.f32.mrf.mxu0
      %v4549 = vadd.f32 %v4476, %v4548
      %v4550 = vpop.f32.mrf.mxu0
      %v4551 = vadd.f32 %v4478, %v4550
      %4552 = vmatmul.bf16.gmra.mxu0 %v876
      %v4553 = vpop.f32.mrf.mxu0
      %v4554 = vadd.f32 %v4481, %v4553
      %v4555 = vpop.f32.mrf.mxu0
      %v4556 = vadd.f32 %v4483, %v4555
      %4557 = vmatmul.bf16.gmra.mxu0 %v888
      %v4558 = vpop.f32.mrf.mxu0
      %v4559 = vadd.f32 %v4486, %v4558
      %v4560 = vpop.f32.mrf.mxu0
      %v4561 = vadd.f32 %v4488, %v4560
      %4562 = vmatmul.bf16.gmra.mxu0 %v900
      %v4563 = vpop.f32.mrf.mxu0
      %v4564 = vadd.f32 %v4491, %v4563
      %v4565 = vpop.f32.mrf.mxu0
      %v4566 = vadd.f32 %v4493, %v4565
      %4567 = vmatmul.bf16.gmra.mxu0 %v912
      %v4568 = vpop.f32.mrf.mxu0
      %v4569 = vadd.f32 %v4496, %v4568
      %v4570 = vpop.f32.mrf.mxu0
      %v4571 = vadd.f32 %v4498, %v4570
      %4572 = vmatmul.bf16.gmra.mxu0 %v924
      %v4573 = vpop.f32.mrf.mxu0
      %v4574 = vadd.f32 %v4501, %v4573
      %v4575 = vpop.f32.mrf.mxu0
      %v4576 = vadd.f32 %v4503, %v4575
      %4577 = vmatmul.bf16.gmra.mxu0 %v936
      %v4578 = vpop.f32.mrf.mxu0
      %v4579 = vadd.f32 %v4506, %v4578
      %v4580 = vpop.f32.mrf.mxu0
      %v4581 = vadd.f32 %v4508, %v4580
      %4582 = vmatmul.bf16.gmra.mxu0 %v948
      %v4583 = vpop.f32.mrf.mxu0
      %v4584 = vadd.f32 %v4511, %v4583
      %v4585 = vpop.f32.mrf.mxu0
      %v4586 = vadd.f32 %v4513, %v4585
      %4587 = vmatmul.bf16.gmra.mxu0 %v960
      %v4588 = vpop.f32.mrf.mxu0
      %v4589 = vadd.f32 %v4516, %v4588
      %v4590 = vpop.f32.mrf.mxu0
      %v4591 = vadd.f32 %v4518, %v4590
      %4592 = vmatmul.bf16.gmra.mxu0 %v972
      %v4593 = vpop.f32.mrf.mxu0
      %v4594 = vadd.f32 %v4521, %v4593
      %v4595 = vpop.f32.mrf.mxu0
      %4596 = vdwg.mxu0
      %4597 = vmatpush.bf16.msra.mxu0 %v2736
      %4598 = vmatpush.bf16.msra.mxu0 %v2732
      %4599 = vmatpush.bf16.msra.mxu0 %v2728
      %4600 = vmatpush.bf16.msra.mxu0 %v2724
      %4601 = vmatpush.bf16.msra.mxu0 %v2720
      %4602 = vmatpush.bf16.msra.mxu0 %v2716
      %4603 = vmatpush.bf16.msra.mxu0 %v2712
      %4604 = vmatpush.bf16.msra.mxu0 %v2708
      %4605 = vmatmul.bf16.gmra.mxu0 %v829
      %v4606 = vpop.f32.mrf.mxu0
      %v4607 = vadd.f32 %v4534, %v4606
      %v4608 = vpop.f32.mrf.mxu0
      %v4609 = vadd.f32 %v4536, %v4608
      %4610 = vmatmul.bf16.gmra.mxu0 %v841
      %v4611 = vpop.f32.mrf.mxu0
      %v4612 = vadd.f32 %v4539, %v4611
      %v4613 = vpop.f32.mrf.mxu0
      %v4614 = vadd.f32 %v4541, %v4613
      %4615 = vmatmul.bf16.gmra.mxu0 %v853
      %v4616 = vpop.f32.mrf.mxu0
      %v4617 = vadd.f32 %v4544, %v4616
      %v4618 = vpop.f32.mrf.mxu0
      %v4619 = vadd.f32 %v4546, %v4618
      %4620 = vmatmul.bf16.gmra.mxu0 %v865
      %v4621 = vpop.f32.mrf.mxu0
      %v4622 = vadd.f32 %v4549, %v4621
      %v4623 = vpop.f32.mrf.mxu0
      %v4624 = vadd.f32 %v4551, %v4623
      %4625 = vmatmul.bf16.gmra.mxu0 %v877
      %v4626 = vpop.f32.mrf.mxu0
      %v4627 = vadd.f32 %v4554, %v4626
      %v4628 = vpop.f32.mrf.mxu0
      %v4629 = vadd.f32 %v4556, %v4628
      %4630 = vmatmul.bf16.gmra.mxu0 %v889
      %v4631 = vpop.f32.mrf.mxu0
      %v4632 = vadd.f32 %v4559, %v4631
      %v4633 = vpop.f32.mrf.mxu0
      %v4634 = vadd.f32 %v4561, %v4633
      %4635 = vmatmul.bf16.gmra.mxu0 %v901
      %v4636 = vpop.f32.mrf.mxu0
      %v4637 = vadd.f32 %v4564, %v4636
      %v4638 = vpop.f32.mrf.mxu0
      %v4639 = vadd.f32 %v4566, %v4638
      %4640 = vmatmul.bf16.gmra.mxu0 %v913
      %v4641 = vpop.f32.mrf.mxu0
      %v4642 = vadd.f32 %v4569, %v4641
      %v4643 = vpop.f32.mrf.mxu0
      %v4644 = vadd.f32 %v4571, %v4643
      %4645 = vmatmul.bf16.gmra.mxu0 %v925
      %v4646 = vpop.f32.mrf.mxu0
      %v4647 = vadd.f32 %v4574, %v4646
      %v4648 = vpop.f32.mrf.mxu0
      %v4649 = vadd.f32 %v4576, %v4648
      %4650 = vmatmul.bf16.gmra.mxu0 %v937
      %v4651 = vpop.f32.mrf.mxu0
      %v4652 = vadd.f32 %v4579, %v4651
      %v4653 = vpop.f32.mrf.mxu0
      %v4654 = vadd.f32 %v4581, %v4653
      %4655 = vmatmul.bf16.gmra.mxu0 %v949
      %v4656 = vpop.f32.mrf.mxu0
      %v4657 = vadd.f32 %v4584, %v4656
      %v4658 = vpop.f32.mrf.mxu0
      %v4659 = vadd.f32 %v4586, %v4658
      %4660 = vmatmul.bf16.gmra.mxu0 %v961
      %v4661 = vpop.f32.mrf.mxu0
      %v4662 = vadd.f32 %v4589, %v4661
      %v4663 = vpop.f32.mrf.mxu0
      %v4664 = vadd.f32 %v4591, %v4663
      %4665 = vmatmul.bf16.gmra.mxu0 %v973
      %v4666 = vpop.f32.mrf.mxu0
      %v4667 = vadd.f32 %v4594, %v4666
      %v4668 = vpop.f32.mrf.mxu0
      %4669 = vdwg.mxu0
      %4670 = vmatpush.bf16.msra.mxu0 %v2768
      %4671 = vmatpush.bf16.msra.mxu0 %v2764
      %4672 = vmatpush.bf16.msra.mxu0 %v2760
      %4673 = vmatpush.bf16.msra.mxu0 %v2756
      %4674 = vmatpush.bf16.msra.mxu0 %v2752
      %4675 = vmatpush.bf16.msra.mxu0 %v2748
      %4676 = vmatpush.bf16.msra.mxu0 %v2744
      %4677 = vmatpush.bf16.msra.mxu0 %v2740
      %4678 = vmatmul.bf16.gmra.mxu0 %v830
      %v4679 = vpop.f32.mrf.mxu0
      %v4680 = vadd.f32 %v4607, %v4679
      %v4681 = vpop.f32.mrf.mxu0
      %v4682 = vadd.f32 %v4609, %v4681
      %4683 = vmatmul.bf16.gmra.mxu0 %v842
      %v4684 = vpop.f32.mrf.mxu0
      %v4685 = vadd.f32 %v4612, %v4684
      %v4686 = vpop.f32.mrf.mxu0
      %v4687 = vadd.f32 %v4614, %v4686
      %4688 = vmatmul.bf16.gmra.mxu0 %v854
      %v4689 = vpop.f32.mrf.mxu0
      %v4690 = vadd.f32 %v4617, %v4689
      %v4691 = vpop.f32.mrf.mxu0
      %v4692 = vadd.f32 %v4619, %v4691
      %4693 = vmatmul.bf16.gmra.mxu0 %v866
      %v4694 = vpop.f32.mrf.mxu0
      %v4695 = vadd.f32 %v4622, %v4694
      %v4696 = vpop.f32.mrf.mxu0
      %v4697 = vadd.f32 %v4624, %v4696
      %4698 = vmatmul.bf16.gmra.mxu0 %v878
      %v4699 = vpop.f32.mrf.mxu0
      %v4700 = vadd.f32 %v4627, %v4699
      %v4701 = vpop.f32.mrf.mxu0
      %v4702 = vadd.f32 %v4629, %v4701
      %4703 = vmatmul.bf16.gmra.mxu0 %v890
      %v4704 = vpop.f32.mrf.mxu0
      %v4705 = vadd.f32 %v4632, %v4704
      %v4706 = vpop.f32.mrf.mxu0
      %v4707 = vadd.f32 %v4634, %v4706
      %4708 = vmatmul.bf16.gmra.mxu0 %v902
      %v4709 = vpop.f32.mrf.mxu0
      %v4710 = vadd.f32 %v4637, %v4709
      %v4711 = vpop.f32.mrf.mxu0
      %v4712 = vadd.f32 %v4639, %v4711
      %4713 = vmatmul.bf16.gmra.mxu0 %v914
      %v4714 = vpop.f32.mrf.mxu0
      %v4715 = vadd.f32 %v4642, %v4714
      %v4716 = vpop.f32.mrf.mxu0
      %v4717 = vadd.f32 %v4644, %v4716
      %4718 = vmatmul.bf16.gmra.mxu0 %v926
      %v4719 = vpop.f32.mrf.mxu0
      %v4720 = vadd.f32 %v4647, %v4719
      %v4721 = vpop.f32.mrf.mxu0
      %v4722 = vadd.f32 %v4649, %v4721
      %4723 = vmatmul.bf16.gmra.mxu0 %v938
      %v4724 = vpop.f32.mrf.mxu0
      %v4725 = vadd.f32 %v4652, %v4724
      %v4726 = vpop.f32.mrf.mxu0
      %v4727 = vadd.f32 %v4654, %v4726
      %4728 = vmatmul.bf16.gmra.mxu0 %v950
      %v4729 = vpop.f32.mrf.mxu0
      %v4730 = vadd.f32 %v4657, %v4729
      %v4731 = vpop.f32.mrf.mxu0
      %v4732 = vadd.f32 %v4659, %v4731
      %4733 = vmatmul.bf16.gmra.mxu0 %v962
      %v4734 = vpop.f32.mrf.mxu0
      %v4735 = vadd.f32 %v4662, %v4734
      %v4736 = vpop.f32.mrf.mxu0
      %v4737 = vadd.f32 %v4664, %v4736
      %4738 = vmatmul.bf16.gmra.mxu0 %v974
      %v4739 = vpop.f32.mrf.mxu0
      %v4740 = vadd.f32 %v4667, %v4739
      %v4741 = vpop.f32.mrf.mxu0
      %4742 = vdwg.mxu0
      %4743 = vmatpush.bf16.msra.mxu0 %v2800
      %4744 = vmatpush.bf16.msra.mxu0 %v2796
      %4745 = vmatpush.bf16.msra.mxu0 %v2792
      %4746 = vmatpush.bf16.msra.mxu0 %v2788
      %4747 = vmatpush.bf16.msra.mxu0 %v2784
      %4748 = vmatpush.bf16.msra.mxu0 %v2780
      %4749 = vmatpush.bf16.msra.mxu0 %v2776
      %4750 = vmatpush.bf16.msra.mxu0 %v2772
      %4751 = vmatmul.bf16.gmra.mxu0 %v831
      %v4752 = vpop.f32.mrf.mxu0
      %v4753 = vadd.f32 %v4680, %v4752
      %v4754 = vpop.f32.mrf.mxu0
      %v4755 = vadd.f32 %v4682, %v4754
      %4756 = vmatmul.bf16.gmra.mxu0 %v843
      %v4757 = vpop.f32.mrf.mxu0
      %v4758 = vadd.f32 %v4685, %v4757
      %v4759 = vpop.f32.mrf.mxu0
      %v4760 = vadd.f32 %v4687, %v4759
      %4761 = vmatmul.bf16.gmra.mxu0 %v855
      %v4762 = vpop.f32.mrf.mxu0
      %v4763 = vadd.f32 %v4690, %v4762
      %v4764 = vpop.f32.mrf.mxu0
      %v4765 = vadd.f32 %v4692, %v4764
      %4766 = vmatmul.bf16.gmra.mxu0 %v867
      %v4767 = vpop.f32.mrf.mxu0
      %v4768 = vadd.f32 %v4695, %v4767
      %v4769 = vpop.f32.mrf.mxu0
      %v4770 = vadd.f32 %v4697, %v4769
      %4771 = vmatmul.bf16.gmra.mxu0 %v879
      %v4772 = vpop.f32.mrf.mxu0
      %v4773 = vadd.f32 %v4700, %v4772
      %v4774 = vpop.f32.mrf.mxu0
      %v4775 = vadd.f32 %v4702, %v4774
      %4776 = vmatmul.bf16.gmra.mxu0 %v891
      %v4777 = vpop.f32.mrf.mxu0
      %v4778 = vadd.f32 %v4705, %v4777
      %v4779 = vpop.f32.mrf.mxu0
      %v4780 = vadd.f32 %v4707, %v4779
      %4781 = vmatmul.bf16.gmra.mxu0 %v903
      %v4782 = vpop.f32.mrf.mxu0
      %v4783 = vadd.f32 %v4710, %v4782
      %v4784 = vpop.f32.mrf.mxu0
      %v4785 = vadd.f32 %v4712, %v4784
      %4786 = vmatmul.bf16.gmra.mxu0 %v915
      %v4787 = vpop.f32.mrf.mxu0
      %v4788 = vadd.f32 %v4715, %v4787
      %v4789 = vpop.f32.mrf.mxu0
      %v4790 = vadd.f32 %v4717, %v4789
      %4791 = vmatmul.bf16.gmra.mxu0 %v927
      %v4792 = vpop.f32.mrf.mxu0
      %v4793 = vadd.f32 %v4720, %v4792
      %v4794 = vpop.f32.mrf.mxu0
      %v4795 = vadd.f32 %v4722, %v4794
      %4796 = vmatmul.bf16.gmra.mxu0 %v939
      %v4797 = vpop.f32.mrf.mxu0
      %v4798 = vadd.f32 %v4725, %v4797
      %v4799 = vpop.f32.mrf.mxu0
      %v4800 = vadd.f32 %v4727, %v4799
      %4801 = vmatmul.bf16.gmra.mxu0 %v951
      %v4802 = vpop.f32.mrf.mxu0
      %v4803 = vadd.f32 %v4730, %v4802
      %v4804 = vpop.f32.mrf.mxu0
      %v4805 = vadd.f32 %v4732, %v4804
      %4806 = vmatmul.bf16.gmra.mxu0 %v963
      %v4807 = vpop.f32.mrf.mxu0
      %v4808 = vadd.f32 %v4735, %v4807
      %v4809 = vpop.f32.mrf.mxu0
      %v4810 = vadd.f32 %v4737, %v4809
      %4811 = vmatmul.bf16.gmra.mxu0 %v975
      %v4812 = vpop.f32.mrf.mxu0
      %v4813 = vadd.f32 %v4740, %v4812
      %v4814 = vpop.f32.mrf.mxu0
      %4815 = vdwg.mxu0
      %4816 = vmatpush.bf16.msra.mxu0 %v2832
      %4817 = vmatpush.bf16.msra.mxu0 %v2828
      %4818 = vmatpush.bf16.msra.mxu0 %v2824
      %4819 = vmatpush.bf16.msra.mxu0 %v2820
      %4820 = vmatpush.bf16.msra.mxu0 %v2816
      %4821 = vmatpush.bf16.msra.mxu0 %v2812
      %4822 = vmatpush.bf16.msra.mxu0 %v2808
      %4823 = vmatpush.bf16.msra.mxu0 %v2804
      %4824 = vmatmul.bf16.gmra.mxu0 %v832
      %v4825 = vpop.f32.mrf.mxu0
      %v4826 = vadd.f32 %v4753, %v4825
      %v4827 = vpop.f32.mrf.mxu0
      %v4828 = vadd.f32 %v4755, %v4827
      %4829 = vmatmul.bf16.gmra.mxu0 %v844
      %v4830 = vpop.f32.mrf.mxu0
      %v4831 = vadd.f32 %v4758, %v4830
      %v4832 = vpop.f32.mrf.mxu0
      %v4833 = vadd.f32 %v4760, %v4832
      %4834 = vmatmul.bf16.gmra.mxu0 %v856
      %v4835 = vpop.f32.mrf.mxu0
      %v4836 = vadd.f32 %v4763, %v4835
      %v4837 = vpop.f32.mrf.mxu0
      %v4838 = vadd.f32 %v4765, %v4837
      %4839 = vmatmul.bf16.gmra.mxu0 %v868
      %v4840 = vpop.f32.mrf.mxu0
      %v4841 = vadd.f32 %v4768, %v4840
      %v4842 = vpop.f32.mrf.mxu0
      %v4843 = vadd.f32 %v4770, %v4842
      %4844 = vmatmul.bf16.gmra.mxu0 %v880
      %v4845 = vpop.f32.mrf.mxu0
      %v4846 = vadd.f32 %v4773, %v4845
      %v4847 = vpop.f32.mrf.mxu0
      %v4848 = vadd.f32 %v4775, %v4847
      %4849 = vmatmul.bf16.gmra.mxu0 %v892
      %v4850 = vpop.f32.mrf.mxu0
      %v4851 = vadd.f32 %v4778, %v4850
      %v4852 = vpop.f32.mrf.mxu0
      %v4853 = vadd.f32 %v4780, %v4852
      %4854 = vmatmul.bf16.gmra.mxu0 %v904
      %v4855 = vpop.f32.mrf.mxu0
      %v4856 = vadd.f32 %v4783, %v4855
      %v4857 = vpop.f32.mrf.mxu0
      %v4858 = vadd.f32 %v4785, %v4857
      %4859 = vmatmul.bf16.gmra.mxu0 %v916
      %v4860 = vpop.f32.mrf.mxu0
      %v4861 = vadd.f32 %v4788, %v4860
      %v4862 = vpop.f32.mrf.mxu0
      %v4863 = vadd.f32 %v4790, %v4862
      %4864 = vmatmul.bf16.gmra.mxu0 %v928
      %v4865 = vpop.f32.mrf.mxu0
      %v4866 = vadd.f32 %v4793, %v4865
      %v4867 = vpop.f32.mrf.mxu0
      %v4868 = vadd.f32 %v4795, %v4867
      %4869 = vmatmul.bf16.gmra.mxu0 %v940
      %v4870 = vpop.f32.mrf.mxu0
      %v4871 = vadd.f32 %v4798, %v4870
      %v4872 = vpop.f32.mrf.mxu0
      %v4873 = vadd.f32 %v4800, %v4872
      %4874 = vmatmul.bf16.gmra.mxu0 %v952
      %v4875 = vpop.f32.mrf.mxu0
      %v4876 = vadd.f32 %v4803, %v4875
      %v4877 = vpop.f32.mrf.mxu0
      %v4878 = vadd.f32 %v4805, %v4877
      %4879 = vmatmul.bf16.gmra.mxu0 %v964
      %v4880 = vpop.f32.mrf.mxu0
      %v4881 = vadd.f32 %v4808, %v4880
      %v4882 = vpop.f32.mrf.mxu0
      %v4883 = vadd.f32 %v4810, %v4882
      %4884 = vmatmul.bf16.gmra.mxu0 %v976
      %v4885 = vpop.f32.mrf.mxu0
      %v4886 = vadd.f32 %v4813, %v4885
      %v4887 = vpop.f32.mrf.mxu0
      %4888 = vdwg.mxu0
      %4889 = vmatpush.bf16.msra.mxu0 %v2864
      %4890 = vmatpush.bf16.msra.mxu0 %v2860
      %4891 = vmatpush.bf16.msra.mxu0 %v2856
      %4892 = vmatpush.bf16.msra.mxu0 %v2852
      %4893 = vmatpush.bf16.msra.mxu0 %v2848
      %4894 = vmatpush.bf16.msra.mxu0 %v2844
      %4895 = vmatpush.bf16.msra.mxu0 %v2840
      %4896 = vmatpush.bf16.msra.mxu0 %v2836
      %4897 = vmatmul.bf16.gmra.mxu0 %v833
      %v4898 = vpop.f32.mrf.mxu0
      %v4899 = vadd.f32 %v4826, %v4898
      %v4900 = vpop.f32.mrf.mxu0
      %v4901 = vadd.f32 %v4828, %v4900
      %4902 = vmatmul.bf16.gmra.mxu0 %v845
      %v4903 = vpop.f32.mrf.mxu0
      %v4904 = vadd.f32 %v4831, %v4903
      %v4905 = vpop.f32.mrf.mxu0
      %v4906 = vadd.f32 %v4833, %v4905
      %4907 = vmatmul.bf16.gmra.mxu0 %v857
      %v4908 = vpop.f32.mrf.mxu0
      %v4909 = vadd.f32 %v4836, %v4908
      %v4910 = vpop.f32.mrf.mxu0
      %v4911 = vadd.f32 %v4838, %v4910
      %4912 = vmatmul.bf16.gmra.mxu0 %v869
      %v4913 = vpop.f32.mrf.mxu0
      %v4914 = vadd.f32 %v4841, %v4913
      %v4915 = vpop.f32.mrf.mxu0
      %v4916 = vadd.f32 %v4843, %v4915
      %4917 = vmatmul.bf16.gmra.mxu0 %v881
      %v4918 = vpop.f32.mrf.mxu0
      %v4919 = vadd.f32 %v4846, %v4918
      %v4920 = vpop.f32.mrf.mxu0
      %v4921 = vadd.f32 %v4848, %v4920
      %4922 = vmatmul.bf16.gmra.mxu0 %v893
      %v4923 = vpop.f32.mrf.mxu0
      %v4924 = vadd.f32 %v4851, %v4923
      %v4925 = vpop.f32.mrf.mxu0
      %v4926 = vadd.f32 %v4853, %v4925
      %4927 = vmatmul.bf16.gmra.mxu0 %v905
      %v4928 = vpop.f32.mrf.mxu0
      %v4929 = vadd.f32 %v4856, %v4928
      %v4930 = vpop.f32.mrf.mxu0
      %v4931 = vadd.f32 %v4858, %v4930
      %4932 = vmatmul.bf16.gmra.mxu0 %v917
      %v4933 = vpop.f32.mrf.mxu0
      %v4934 = vadd.f32 %v4861, %v4933
      %v4935 = vpop.f32.mrf.mxu0
      %v4936 = vadd.f32 %v4863, %v4935
      %4937 = vmatmul.bf16.gmra.mxu0 %v929
      %v4938 = vpop.f32.mrf.mxu0
      %v4939 = vadd.f32 %v4866, %v4938
      %v4940 = vpop.f32.mrf.mxu0
      %v4941 = vadd.f32 %v4868, %v4940
      %4942 = vmatmul.bf16.gmra.mxu0 %v941
      %v4943 = vpop.f32.mrf.mxu0
      %v4944 = vadd.f32 %v4871, %v4943
      %v4945 = vpop.f32.mrf.mxu0
      %v4946 = vadd.f32 %v4873, %v4945
      %4947 = vmatmul.bf16.gmra.mxu0 %v953
      %v4948 = vpop.f32.mrf.mxu0
      %v4949 = vadd.f32 %v4876, %v4948
      %v4950 = vpop.f32.mrf.mxu0
      %v4951 = vadd.f32 %v4878, %v4950
      %4952 = vmatmul.bf16.gmra.mxu0 %v965
      %v4953 = vpop.f32.mrf.mxu0
      %v4954 = vadd.f32 %v4881, %v4953
      %v4955 = vpop.f32.mrf.mxu0
      %v4956 = vadd.f32 %v4883, %v4955
      %4957 = vmatmul.bf16.gmra.mxu0 %v977
      %v4958 = vpop.f32.mrf.mxu0
      %v4959 = vadd.f32 %v4886, %v4958
      %v4960 = vpop.f32.mrf.mxu0
      %4961 = vdwg.mxu0
      %4962 = vmatpush.bf16.msra.mxu0 %v2896
      %4963 = vmatpush.bf16.msra.mxu0 %v2892
      %4964 = vmatpush.bf16.msra.mxu0 %v2888
      %4965 = vmatpush.bf16.msra.mxu0 %v2884
      %4966 = vmatpush.bf16.msra.mxu0 %v2880
      %4967 = vmatpush.bf16.msra.mxu0 %v2876
      %4968 = vmatpush.bf16.msra.mxu0 %v2872
      %4969 = vmatpush.bf16.msra.mxu0 %v2868
      %4970 = vmatmul.bf16.gmra.mxu0 %v834
      %v4971 = vpop.f32.mrf.mxu0
      %v4972 = vadd.f32 %v4899, %v4971
      %v4973 = vpop.f32.mrf.mxu0
      %v4974 = vadd.f32 %v4901, %v4973
      %4975 = vmatmul.bf16.gmra.mxu0 %v846
      %v4976 = vpop.f32.mrf.mxu0
      %v4977 = vadd.f32 %v4904, %v4976
      %v4978 = vpop.f32.mrf.mxu0
      %v4979 = vadd.f32 %v4906, %v4978
      %4980 = vmatmul.bf16.gmra.mxu0 %v858
      %v4981 = vpop.f32.mrf.mxu0
      %v4982 = vadd.f32 %v4909, %v4981
      %v4983 = vpop.f32.mrf.mxu0
      %v4984 = vadd.f32 %v4911, %v4983
      %4985 = vmatmul.bf16.gmra.mxu0 %v870
      %v4986 = vpop.f32.mrf.mxu0
      %v4987 = vadd.f32 %v4914, %v4986
      %v4988 = vpop.f32.mrf.mxu0
      %v4989 = vadd.f32 %v4916, %v4988
      %4990 = vmatmul.bf16.gmra.mxu0 %v882
      %v4991 = vpop.f32.mrf.mxu0
      %v4992 = vadd.f32 %v4919, %v4991
      %v4993 = vpop.f32.mrf.mxu0
      %v4994 = vadd.f32 %v4921, %v4993
      %4995 = vmatmul.bf16.gmra.mxu0 %v894
      %v4996 = vpop.f32.mrf.mxu0
      %v4997 = vadd.f32 %v4924, %v4996
      %v4998 = vpop.f32.mrf.mxu0
      %v4999 = vadd.f32 %v4926, %v4998
      %5000 = vmatmul.bf16.gmra.mxu0 %v906
      %v5001 = vpop.f32.mrf.mxu0
      %v5002 = vadd.f32 %v4929, %v5001
      %v5003 = vpop.f32.mrf.mxu0
      %v5004 = vadd.f32 %v4931, %v5003
      %5005 = vmatmul.bf16.gmra.mxu0 %v918
      %v5006 = vpop.f32.mrf.mxu0
      %v5007 = vadd.f32 %v4934, %v5006
      %v5008 = vpop.f32.mrf.mxu0
      %v5009 = vadd.f32 %v4936, %v5008
      %5010 = vmatmul.bf16.gmra.mxu0 %v930
      %v5011 = vpop.f32.mrf.mxu0
      %v5012 = vadd.f32 %v4939, %v5011
      %v5013 = vpop.f32.mrf.mxu0
      %v5014 = vadd.f32 %v4941, %v5013
      %5015 = vmatmul.bf16.gmra.mxu0 %v942
      %v5016 = vpop.f32.mrf.mxu0
      %v5017 = vadd.f32 %v4944, %v5016
      %v5018 = vpop.f32.mrf.mxu0
      %v5019 = vadd.f32 %v4946, %v5018
      %5020 = vmatmul.bf16.gmra.mxu0 %v954
      %v5021 = vpop.f32.mrf.mxu0
      %v5022 = vadd.f32 %v4949, %v5021
      %v5023 = vpop.f32.mrf.mxu0
      %v5024 = vadd.f32 %v4951, %v5023
      %5025 = vmatmul.bf16.gmra.mxu0 %v966
      %v5026 = vpop.f32.mrf.mxu0
      %v5027 = vadd.f32 %v4954, %v5026
      %v5028 = vpop.f32.mrf.mxu0
      %v5029 = vadd.f32 %v4956, %v5028
      %5030 = vmatmul.bf16.gmra.mxu0 %v978
      %v5031 = vpop.f32.mrf.mxu0
      %v5032 = vadd.f32 %v4959, %v5031
      %v5033 = vpop.f32.mrf.mxu0
      %5034 = vdwg.mxu0
      %5035 = vmatpush.bf16.msra.mxu0 %v2545
      %5036 = vmatpush.bf16.msra.mxu0 %v2541
      %5037 = vmatpush.bf16.msra.mxu0 %v2537
      %5038 = vmatpush.bf16.msra.mxu0 %v2533
      %5039 = vmatpush.bf16.msra.mxu0 %v2529
      %5040 = vmatpush.bf16.msra.mxu0 %v2525
      %5041 = vmatpush.bf16.msra.mxu0 %v2521
      %5042 = vmatpush.bf16.msra.mxu0 %v2517
      %5043 = vmatmul.bf16.gmra.mxu0 %v823
      %v5044 = vpop.f32.mrf.mxu0
      %v5045 = vadd.f32 0.0, %v5044
      %v5046 = vpop.f32.mrf.mxu0
      %v5047 = vadd.f32 0.0, %v5046
      %5048 = vmatmul.bf16.gmra.mxu0 %v835
      %v5049 = vpop.f32.mrf.mxu0
      %v5050 = vadd.f32 0.0, %v5049
      %v5051 = vpop.f32.mrf.mxu0
      %v5052 = vadd.f32 0.0, %v5051
      %5053 = vmatmul.bf16.gmra.mxu0 %v847
      %v5054 = vpop.f32.mrf.mxu0
      %v5055 = vadd.f32 0.0, %v5054
      %v5056 = vpop.f32.mrf.mxu0
      %v5057 = vadd.f32 0.0, %v5056
      %5058 = vmatmul.bf16.gmra.mxu0 %v859
      %v5059 = vpop.f32.mrf.mxu0
      %v5060 = vadd.f32 0.0, %v5059
      %v5061 = vpop.f32.mrf.mxu0
      %v5062 = vadd.f32 0.0, %v5061
      %5063 = vmatmul.bf16.gmra.mxu0 %v871
      %v5064 = vpop.f32.mrf.mxu0
      %v5065 = vadd.f32 0.0, %v5064
      %v5066 = vpop.f32.mrf.mxu0
      %v5067 = vadd.f32 0.0, %v5066
      %5068 = vmatmul.bf16.gmra.mxu0 %v883
      %v5069 = vpop.f32.mrf.mxu0
      %v5070 = vadd.f32 0.0, %v5069
      %v5071 = vpop.f32.mrf.mxu0
      %v5072 = vadd.f32 0.0, %v5071
      %5073 = vmatmul.bf16.gmra.mxu0 %v895
      %v5074 = vpop.f32.mrf.mxu0
      %v5075 = vadd.f32 0.0, %v5074
      %v5076 = vpop.f32.mrf.mxu0
      %v5077 = vadd.f32 0.0, %v5076
      %5078 = vmatmul.bf16.gmra.mxu0 %v907
      %v5079 = vpop.f32.mrf.mxu0
      %v5080 = vadd.f32 0.0, %v5079
      %v5081 = vpop.f32.mrf.mxu0
      %v5082 = vadd.f32 0.0, %v5081
      %5083 = vmatmul.bf16.gmra.mxu0 %v919
      %v5084 = vpop.f32.mrf.mxu0
      %v5085 = vadd.f32 0.0, %v5084
      %v5086 = vpop.f32.mrf.mxu0
      %v5087 = vadd.f32 0.0, %v5086
      %5088 = vmatmul.bf16.gmra.mxu0 %v931
      %v5089 = vpop.f32.mrf.mxu0
      %v5090 = vadd.f32 0.0, %v5089
      %v5091 = vpop.f32.mrf.mxu0
      %v5092 = vadd.f32 0.0, %v5091
      %5093 = vmatmul.bf16.gmra.mxu0 %v943
      %v5094 = vpop.f32.mrf.mxu0
      %v5095 = vadd.f32 0.0, %v5094
      %v5096 = vpop.f32.mrf.mxu0
      %v5097 = vadd.f32 0.0, %v5096
      %5098 = vmatmul.bf16.gmra.mxu0 %v955
      %v5099 = vpop.f32.mrf.mxu0
      %v5100 = vadd.f32 0.0, %v5099
      %v5101 = vpop.f32.mrf.mxu0
      %v5102 = vadd.f32 0.0, %v5101
      %5103 = vmatmul.bf16.gmra.mxu0 %v967
      %v5104 = vpop.f32.mrf.mxu0
      %v5105 = vadd.f32 0.0, %v5104
      %v5106 = vpop.f32.mrf.mxu0
      %5107 = vdwg.mxu0
      %5108 = vmatpush.bf16.msra.mxu0 %v2577
      %5109 = vmatpush.bf16.msra.mxu0 %v2573
      %5110 = vmatpush.bf16.msra.mxu0 %v2569
      %5111 = vmatpush.bf16.msra.mxu0 %v2565
      %5112 = vmatpush.bf16.msra.mxu0 %v2561
      %5113 = vmatpush.bf16.msra.mxu0 %v2557
      %5114 = vmatpush.bf16.msra.mxu0 %v2553
      %5115 = vmatpush.bf16.msra.mxu0 %v2549
      %5116 = vmatmul.bf16.gmra.mxu0 %v824
      %v5117 = vpop.f32.mrf.mxu0
      %v5118 = vadd.f32 %v5045, %v5117
      %v5119 = vpop.f32.mrf.mxu0
      %v5120 = vadd.f32 %v5047, %v5119
      %5121 = vmatmul.bf16.gmra.mxu0 %v836
      %v5122 = vpop.f32.mrf.mxu0
      %v5123 = vadd.f32 %v5050, %v5122
      %v5124 = vpop.f32.mrf.mxu0
      %v5125 = vadd.f32 %v5052, %v5124
      %5126 = vmatmul.bf16.gmra.mxu0 %v848
      %v5127 = vpop.f32.mrf.mxu0
      %v5128 = vadd.f32 %v5055, %v5127
      %v5129 = vpop.f32.mrf.mxu0
      %v5130 = vadd.f32 %v5057, %v5129
      %5131 = vmatmul.bf16.gmra.mxu0 %v860
      %v5132 = vpop.f32.mrf.mxu0
      %v5133 = vadd.f32 %v5060, %v5132
      %v5134 = vpop.f32.mrf.mxu0
      %v5135 = vadd.f32 %v5062, %v5134
      %5136 = vmatmul.bf16.gmra.mxu0 %v872
      %v5137 = vpop.f32.mrf.mxu0
      %v5138 = vadd.f32 %v5065, %v5137
      %v5139 = vpop.f32.mrf.mxu0
      %v5140 = vadd.f32 %v5067, %v5139
      %5141 = vmatmul.bf16.gmra.mxu0 %v884
      %v5142 = vpop.f32.mrf.mxu0
      %v5143 = vadd.f32 %v5070, %v5142
      %v5144 = vpop.f32.mrf.mxu0
      %v5145 = vadd.f32 %v5072, %v5144
      %5146 = vmatmul.bf16.gmra.mxu0 %v896
      %v5147 = vpop.f32.mrf.mxu0
      %v5148 = vadd.f32 %v5075, %v5147
      %v5149 = vpop.f32.mrf.mxu0
      %v5150 = vadd.f32 %v5077, %v5149
      %5151 = vmatmul.bf16.gmra.mxu0 %v908
      %v5152 = vpop.f32.mrf.mxu0
      %v5153 = vadd.f32 %v5080, %v5152
      %v5154 = vpop.f32.mrf.mxu0
      %v5155 = vadd.f32 %v5082, %v5154
      %5156 = vmatmul.bf16.gmra.mxu0 %v920
      %v5157 = vpop.f32.mrf.mxu0
      %v5158 = vadd.f32 %v5085, %v5157
      %v5159 = vpop.f32.mrf.mxu0
      %v5160 = vadd.f32 %v5087, %v5159
      %5161 = vmatmul.bf16.gmra.mxu0 %v932
      %v5162 = vpop.f32.mrf.mxu0
      %v5163 = vadd.f32 %v5090, %v5162
      %v5164 = vpop.f32.mrf.mxu0
      %v5165 = vadd.f32 %v5092, %v5164
      %5166 = vmatmul.bf16.gmra.mxu0 %v944
      %v5167 = vpop.f32.mrf.mxu0
      %v5168 = vadd.f32 %v5095, %v5167
      %v5169 = vpop.f32.mrf.mxu0
      %v5170 = vadd.f32 %v5097, %v5169
      %5171 = vmatmul.bf16.gmra.mxu0 %v956
      %v5172 = vpop.f32.mrf.mxu0
      %v5173 = vadd.f32 %v5100, %v5172
      %v5174 = vpop.f32.mrf.mxu0
      %v5175 = vadd.f32 %v5102, %v5174
      %5176 = vmatmul.bf16.gmra.mxu0 %v968
      %v5177 = vpop.f32.mrf.mxu0
      %v5178 = vadd.f32 %v5105, %v5177
      %v5179 = vpop.f32.mrf.mxu0
      %5180 = vdwg.mxu0
      %5181 = vmatpush.bf16.msra.mxu0 %v2609
      %5182 = vmatpush.bf16.msra.mxu0 %v2605
      %5183 = vmatpush.bf16.msra.mxu0 %v2601
      %5184 = vmatpush.bf16.msra.mxu0 %v2597
      %5185 = vmatpush.bf16.msra.mxu0 %v2593
      %5186 = vmatpush.bf16.msra.mxu0 %v2589
      %5187 = vmatpush.bf16.msra.mxu0 %v2585
      %5188 = vmatpush.bf16.msra.mxu0 %v2581
      %5189 = vmatmul.bf16.gmra.mxu0 %v825
      %v5190 = vpop.f32.mrf.mxu0
      %v5191 = vadd.f32 %v5118, %v5190
      %v5192 = vpop.f32.mrf.mxu0
      %v5193 = vadd.f32 %v5120, %v5192
      %5194 = vmatmul.bf16.gmra.mxu0 %v837
      %v5195 = vpop.f32.mrf.mxu0
      %v5196 = vadd.f32 %v5123, %v5195
      %v5197 = vpop.f32.mrf.mxu0
      %v5198 = vadd.f32 %v5125, %v5197
      %5199 = vmatmul.bf16.gmra.mxu0 %v849
      %v5200 = vpop.f32.mrf.mxu0
      %v5201 = vadd.f32 %v5128, %v5200
      %v5202 = vpop.f32.mrf.mxu0
      %v5203 = vadd.f32 %v5130, %v5202
      %5204 = vmatmul.bf16.gmra.mxu0 %v861
      %v5205 = vpop.f32.mrf.mxu0
      %v5206 = vadd.f32 %v5133, %v5205
      %v5207 = vpop.f32.mrf.mxu0
      %v5208 = vadd.f32 %v5135, %v5207
      %5209 = vmatmul.bf16.gmra.mxu0 %v873
      %v5210 = vpop.f32.mrf.mxu0
      %v5211 = vadd.f32 %v5138, %v5210
      %v5212 = vpop.f32.mrf.mxu0
      %v5213 = vadd.f32 %v5140, %v5212
      %5214 = vmatmul.bf16.gmra.mxu0 %v885
      %v5215 = vpop.f32.mrf.mxu0
      %v5216 = vadd.f32 %v5143, %v5215
      %v5217 = vpop.f32.mrf.mxu0
      %v5218 = vadd.f32 %v5145, %v5217
      %5219 = vmatmul.bf16.gmra.mxu0 %v897
      %v5220 = vpop.f32.mrf.mxu0
      %v5221 = vadd.f32 %v5148, %v5220
      %v5222 = vpop.f32.mrf.mxu0
      %v5223 = vadd.f32 %v5150, %v5222
      %5224 = vmatmul.bf16.gmra.mxu0 %v909
      %v5225 = vpop.f32.mrf.mxu0
      %v5226 = vadd.f32 %v5153, %v5225
      %v5227 = vpop.f32.mrf.mxu0
      %v5228 = vadd.f32 %v5155, %v5227
      %5229 = vmatmul.bf16.gmra.mxu0 %v921
      %v5230 = vpop.f32.mrf.mxu0
      %v5231 = vadd.f32 %v5158, %v5230
      %v5232 = vpop.f32.mrf.mxu0
      %v5233 = vadd.f32 %v5160, %v5232
      %5234 = vmatmul.bf16.gmra.mxu0 %v933
      %v5235 = vpop.f32.mrf.mxu0
      %v5236 = vadd.f32 %v5163, %v5235
      %v5237 = vpop.f32.mrf.mxu0
      %v5238 = vadd.f32 %v5165, %v5237
      %5239 = vmatmul.bf16.gmra.mxu0 %v945
      %v5240 = vpop.f32.mrf.mxu0
      %v5241 = vadd.f32 %v5168, %v5240
      %v5242 = vpop.f32.mrf.mxu0
      %v5243 = vadd.f32 %v5170, %v5242
      %5244 = vmatmul.bf16.gmra.mxu0 %v957
      %v5245 = vpop.f32.mrf.mxu0
      %v5246 = vadd.f32 %v5173, %v5245
      %v5247 = vpop.f32.mrf.mxu0
      %v5248 = vadd.f32 %v5175, %v5247
      %5249 = vmatmul.bf16.gmra.mxu0 %v969
      %v5250 = vpop.f32.mrf.mxu0
      %v5251 = vadd.f32 %v5178, %v5250
      %v5252 = vpop.f32.mrf.mxu0
      %5253 = vdwg.mxu0
      %5254 = vmatpush.bf16.msra.mxu0 %v2641
      %5255 = vmatpush.bf16.msra.mxu0 %v2637
      %5256 = vmatpush.bf16.msra.mxu0 %v2633
      %5257 = vmatpush.bf16.msra.mxu0 %v2629
      %5258 = vmatpush.bf16.msra.mxu0 %v2625
      %5259 = vmatpush.bf16.msra.mxu0 %v2621
      %5260 = vmatpush.bf16.msra.mxu0 %v2617
      %5261 = vmatpush.bf16.msra.mxu0 %v2613
      %5262 = vmatmul.bf16.gmra.mxu0 %v826
      %v5263 = vpop.f32.mrf.mxu0
      %v5264 = vadd.f32 %v5191, %v5263
      %v5265 = vpop.f32.mrf.mxu0
      %v5266 = vadd.f32 %v5193, %v5265
      %5267 = vmatmul.bf16.gmra.mxu0 %v838
      %v5268 = vpop.f32.mrf.mxu0
      %v5269 = vadd.f32 %v5196, %v5268
      %v5270 = vpop.f32.mrf.mxu0
      %v5271 = vadd.f32 %v5198, %v5270
      %5272 = vmatmul.bf16.gmra.mxu0 %v850
      %v5273 = vpop.f32.mrf.mxu0
      %v5274 = vadd.f32 %v5201, %v5273
      %v5275 = vpop.f32.mrf.mxu0
      %v5276 = vadd.f32 %v5203, %v5275
      %5277 = vmatmul.bf16.gmra.mxu0 %v862
      %v5278 = vpop.f32.mrf.mxu0
      %v5279 = vadd.f32 %v5206, %v5278
      %v5280 = vpop.f32.mrf.mxu0
      %v5281 = vadd.f32 %v5208, %v5280
      %5282 = vmatmul.bf16.gmra.mxu0 %v874
      %v5283 = vpop.f32.mrf.mxu0
      %v5284 = vadd.f32 %v5211, %v5283
      %v5285 = vpop.f32.mrf.mxu0
      %v5286 = vadd.f32 %v5213, %v5285
      %5287 = vmatmul.bf16.gmra.mxu0 %v886
      %v5288 = vpop.f32.mrf.mxu0
      %v5289 = vadd.f32 %v5216, %v5288
      %v5290 = vpop.f32.mrf.mxu0
      %v5291 = vadd.f32 %v5218, %v5290
      %5292 = vmatmul.bf16.gmra.mxu0 %v898
      %v5293 = vpop.f32.mrf.mxu0
      %v5294 = vadd.f32 %v5221, %v5293
      %v5295 = vpop.f32.mrf.mxu0
      %v5296 = vadd.f32 %v5223, %v5295
      %5297 = vmatmul.bf16.gmra.mxu0 %v910
      %v5298 = vpop.f32.mrf.mxu0
      %v5299 = vadd.f32 %v5226, %v5298
      %v5300 = vpop.f32.mrf.mxu0
      %v5301 = vadd.f32 %v5228, %v5300
      %5302 = vmatmul.bf16.gmra.mxu0 %v922
      %v5303 = vpop.f32.mrf.mxu0
      %v5304 = vadd.f32 %v5231, %v5303
      %v5305 = vpop.f32.mrf.mxu0
      %v5306 = vadd.f32 %v5233, %v5305
      %5307 = vmatmul.bf16.gmra.mxu0 %v934
      %v5308 = vpop.f32.mrf.mxu0
      %v5309 = vadd.f32 %v5236, %v5308
      %v5310 = vpop.f32.mrf.mxu0
      %v5311 = vadd.f32 %v5238, %v5310
      %5312 = vmatmul.bf16.gmra.mxu0 %v946
      %v5313 = vpop.f32.mrf.mxu0
      %v5314 = vadd.f32 %v5241, %v5313
      %v5315 = vpop.f32.mrf.mxu0
      %v5316 = vadd.f32 %v5243, %v5315
      %5317 = vmatmul.bf16.gmra.mxu0 %v958
      %v5318 = vpop.f32.mrf.mxu0
      %v5319 = vadd.f32 %v5246, %v5318
      %v5320 = vpop.f32.mrf.mxu0
      %v5321 = vadd.f32 %v5248, %v5320
      %5322 = vmatmul.bf16.gmra.mxu0 %v970
      %v5323 = vpop.f32.mrf.mxu0
      %v5324 = vadd.f32 %v5251, %v5323
      %v5325 = vpop.f32.mrf.mxu0
      %5326 = vdwg.mxu0
      %5327 = vmatpush.bf16.msra.mxu0 %v2673
      %5328 = vmatpush.bf16.msra.mxu0 %v2669
      %5329 = vmatpush.bf16.msra.mxu0 %v2665
      %5330 = vmatpush.bf16.msra.mxu0 %v2661
      %5331 = vmatpush.bf16.msra.mxu0 %v2657
      %5332 = vmatpush.bf16.msra.mxu0 %v2653
      %5333 = vmatpush.bf16.msra.mxu0 %v2649
      %5334 = vmatpush.bf16.msra.mxu0 %v2645
      %5335 = vmatmul.bf16.gmra.mxu0 %v827
      %v5336 = vpop.f32.mrf.mxu0
      %v5337 = vadd.f32 %v5264, %v5336
      %v5338 = vpop.f32.mrf.mxu0
      %v5339 = vadd.f32 %v5266, %v5338
      %5340 = vmatmul.bf16.gmra.mxu0 %v839
      %v5341 = vpop.f32.mrf.mxu0
      %v5342 = vadd.f32 %v5269, %v5341
      %v5343 = vpop.f32.mrf.mxu0
      %v5344 = vadd.f32 %v5271, %v5343
      %5345 = vmatmul.bf16.gmra.mxu0 %v851
      %v5346 = vpop.f32.mrf.mxu0
      %v5347 = vadd.f32 %v5274, %v5346
      %v5348 = vpop.f32.mrf.mxu0
      %v5349 = vadd.f32 %v5276, %v5348
      %5350 = vmatmul.bf16.gmra.mxu0 %v863
      %v5351 = vpop.f32.mrf.mxu0
      %v5352 = vadd.f32 %v5279, %v5351
      %v5353 = vpop.f32.mrf.mxu0
      %v5354 = vadd.f32 %v5281, %v5353
      %5355 = vmatmul.bf16.gmra.mxu0 %v875
      %v5356 = vpop.f32.mrf.mxu0
      %v5357 = vadd.f32 %v5284, %v5356
      %v5358 = vpop.f32.mrf.mxu0
      %v5359 = vadd.f32 %v5286, %v5358
      %5360 = vmatmul.bf16.gmra.mxu0 %v887
      %v5361 = vpop.f32.mrf.mxu0
      %v5362 = vadd.f32 %v5289, %v5361
      %v5363 = vpop.f32.mrf.mxu0
      %v5364 = vadd.f32 %v5291, %v5363
      %5365 = vmatmul.bf16.gmra.mxu0 %v899
      %v5366 = vpop.f32.mrf.mxu0
      %v5367 = vadd.f32 %v5294, %v5366
      %v5368 = vpop.f32.mrf.mxu0
      %v5369 = vadd.f32 %v5296, %v5368
      %5370 = vmatmul.bf16.gmra.mxu0 %v911
      %v5371 = vpop.f32.mrf.mxu0
      %v5372 = vadd.f32 %v5299, %v5371
      %v5373 = vpop.f32.mrf.mxu0
      %v5374 = vadd.f32 %v5301, %v5373
      %5375 = vmatmul.bf16.gmra.mxu0 %v923
      %v5376 = vpop.f32.mrf.mxu0
      %v5377 = vadd.f32 %v5304, %v5376
      %v5378 = vpop.f32.mrf.mxu0
      %v5379 = vadd.f32 %v5306, %v5378
      %5380 = vmatmul.bf16.gmra.mxu0 %v935
      %v5381 = vpop.f32.mrf.mxu0
      %v5382 = vadd.f32 %v5309, %v5381
      %v5383 = vpop.f32.mrf.mxu0
      %v5384 = vadd.f32 %v5311, %v5383
      %5385 = vmatmul.bf16.gmra.mxu0 %v947
      %v5386 = vpop.f32.mrf.mxu0
      %v5387 = vadd.f32 %v5314, %v5386
      %v5388 = vpop.f32.mrf.mxu0
      %v5389 = vadd.f32 %v5316, %v5388
      %5390 = vmatmul.bf16.gmra.mxu0 %v959
      %v5391 = vpop.f32.mrf.mxu0
      %v5392 = vadd.f32 %v5319, %v5391
      %v5393 = vpop.f32.mrf.mxu0
      %v5394 = vadd.f32 %v5321, %v5393
      %5395 = vmatmul.bf16.gmra.mxu0 %v971
      %v5396 = vpop.f32.mrf.mxu0
      %v5397 = vadd.f32 %v5324, %v5396
      %v5398 = vpop.f32.mrf.mxu0
      %5399 = vdwg.mxu0
      %5400 = vmatpush.bf16.msra.mxu0 %v2705
      %5401 = vmatpush.bf16.msra.mxu0 %v2701
      %5402 = vmatpush.bf16.msra.mxu0 %v2697
      %5403 = vmatpush.bf16.msra.mxu0 %v2693
      %5404 = vmatpush.bf16.msra.mxu0 %v2689
      %5405 = vmatpush.bf16.msra.mxu0 %v2685
      %5406 = vmatpush.bf16.msra.mxu0 %v2681
      %5407 = vmatpush.bf16.msra.mxu0 %v2677
      %5408 = vmatmul.bf16.gmra.mxu0 %v828
      %v5409 = vpop.f32.mrf.mxu0
      %v5410 = vadd.f32 %v5337, %v5409
      %v5411 = vpop.f32.mrf.mxu0
      %v5412 = vadd.f32 %v5339, %v5411
      %5413 = vmatmul.bf16.gmra.mxu0 %v840
      %v5414 = vpop.f32.mrf.mxu0
      %v5415 = vadd.f32 %v5342, %v5414
      %v5416 = vpop.f32.mrf.mxu0
      %v5417 = vadd.f32 %v5344, %v5416
      %5418 = vmatmul.bf16.gmra.mxu0 %v852
      %v5419 = vpop.f32.mrf.mxu0
      %v5420 = vadd.f32 %v5347, %v5419
      %v5421 = vpop.f32.mrf.mxu0
      %v5422 = vadd.f32 %v5349, %v5421
      %5423 = vmatmul.bf16.gmra.mxu0 %v864
      %v5424 = vpop.f32.mrf.mxu0
      %v5425 = vadd.f32 %v5352, %v5424
      %v5426 = vpop.f32.mrf.mxu0
      %v5427 = vadd.f32 %v5354, %v5426
      %5428 = vmatmul.bf16.gmra.mxu0 %v876
      %v5429 = vpop.f32.mrf.mxu0
      %v5430 = vadd.f32 %v5357, %v5429
      %v5431 = vpop.f32.mrf.mxu0
      %v5432 = vadd.f32 %v5359, %v5431
      %5433 = vmatmul.bf16.gmra.mxu0 %v888
      %v5434 = vpop.f32.mrf.mxu0
      %v5435 = vadd.f32 %v5362, %v5434
      %v5436 = vpop.f32.mrf.mxu0
      %v5437 = vadd.f32 %v5364, %v5436
      %5438 = vmatmul.bf16.gmra.mxu0 %v900
      %v5439 = vpop.f32.mrf.mxu0
      %v5440 = vadd.f32 %v5367, %v5439
      %v5441 = vpop.f32.mrf.mxu0
      %v5442 = vadd.f32 %v5369, %v5441
      %5443 = vmatmul.bf16.gmra.mxu0 %v912
      %v5444 = vpop.f32.mrf.mxu0
      %v5445 = vadd.f32 %v5372, %v5444
      %v5446 = vpop.f32.mrf.mxu0
      %v5447 = vadd.f32 %v5374, %v5446
      %5448 = vmatmul.bf16.gmra.mxu0 %v924
      %v5449 = vpop.f32.mrf.mxu0
      %v5450 = vadd.f32 %v5377, %v5449
      %v5451 = vpop.f32.mrf.mxu0
      %v5452 = vadd.f32 %v5379, %v5451
      %5453 = vmatmul.bf16.gmra.mxu0 %v936
      %v5454 = vpop.f32.mrf.mxu0
      %v5455 = vadd.f32 %v5382, %v5454
      %v5456 = vpop.f32.mrf.mxu0
      %v5457 = vadd.f32 %v5384, %v5456
      %5458 = vmatmul.bf16.gmra.mxu0 %v948
      %v5459 = vpop.f32.mrf.mxu0
      %v5460 = vadd.f32 %v5387, %v5459
      %v5461 = vpop.f32.mrf.mxu0
      %v5462 = vadd.f32 %v5389, %v5461
      %5463 = vmatmul.bf16.gmra.mxu0 %v960
      %v5464 = vpop.f32.mrf.mxu0
      %v5465 = vadd.f32 %v5392, %v5464
      %v5466 = vpop.f32.mrf.mxu0
      %v5467 = vadd.f32 %v5394, %v5466
      %5468 = vmatmul.bf16.gmra.mxu0 %v972
      %v5469 = vpop.f32.mrf.mxu0
      %v5470 = vadd.f32 %v5397, %v5469
      %v5471 = vpop.f32.mrf.mxu0
      %5472 = vdwg.mxu0
      %5473 = vmatpush.bf16.msra.mxu0 %v2737
      %5474 = vmatpush.bf16.msra.mxu0 %v2733
      %5475 = vmatpush.bf16.msra.mxu0 %v2729
      %5476 = vmatpush.bf16.msra.mxu0 %v2725
      %5477 = vmatpush.bf16.msra.mxu0 %v2721
      %5478 = vmatpush.bf16.msra.mxu0 %v2717
      %5479 = vmatpush.bf16.msra.mxu0 %v2713
      %5480 = vmatpush.bf16.msra.mxu0 %v2709
      %5481 = vmatmul.bf16.gmra.mxu0 %v829
      %v5482 = vpop.f32.mrf.mxu0
      %v5483 = vadd.f32 %v5410, %v5482
      %v5484 = vpop.f32.mrf.mxu0
      %v5485 = vadd.f32 %v5412, %v5484
      %5486 = vmatmul.bf16.gmra.mxu0 %v841
      %v5487 = vpop.f32.mrf.mxu0
      %v5488 = vadd.f32 %v5415, %v5487
      %v5489 = vpop.f32.mrf.mxu0
      %v5490 = vadd.f32 %v5417, %v5489
      %5491 = vmatmul.bf16.gmra.mxu0 %v853
      %v5492 = vpop.f32.mrf.mxu0
      %v5493 = vadd.f32 %v5420, %v5492
      %v5494 = vpop.f32.mrf.mxu0
      %v5495 = vadd.f32 %v5422, %v5494
      %5496 = vmatmul.bf16.gmra.mxu0 %v865
      %v5497 = vpop.f32.mrf.mxu0
      %v5498 = vadd.f32 %v5425, %v5497
      %v5499 = vpop.f32.mrf.mxu0
      %v5500 = vadd.f32 %v5427, %v5499
      %5501 = vmatmul.bf16.gmra.mxu0 %v877
      %v5502 = vpop.f32.mrf.mxu0
      %v5503 = vadd.f32 %v5430, %v5502
      %v5504 = vpop.f32.mrf.mxu0
      %v5505 = vadd.f32 %v5432, %v5504
      %5506 = vmatmul.bf16.gmra.mxu0 %v889
      %v5507 = vpop.f32.mrf.mxu0
      %v5508 = vadd.f32 %v5435, %v5507
      %v5509 = vpop.f32.mrf.mxu0
      %v5510 = vadd.f32 %v5437, %v5509
      %5511 = vmatmul.bf16.gmra.mxu0 %v901
      %v5512 = vpop.f32.mrf.mxu0
      %v5513 = vadd.f32 %v5440, %v5512
      %v5514 = vpop.f32.mrf.mxu0
      %v5515 = vadd.f32 %v5442, %v5514
      %5516 = vmatmul.bf16.gmra.mxu0 %v913
      %v5517 = vpop.f32.mrf.mxu0
      %v5518 = vadd.f32 %v5445, %v5517
      %v5519 = vpop.f32.mrf.mxu0
      %v5520 = vadd.f32 %v5447, %v5519
      %5521 = vmatmul.bf16.gmra.mxu0 %v925
      %v5522 = vpop.f32.mrf.mxu0
      %v5523 = vadd.f32 %v5450, %v5522
      %v5524 = vpop.f32.mrf.mxu0
      %v5525 = vadd.f32 %v5452, %v5524
      %5526 = vmatmul.bf16.gmra.mxu0 %v937
      %v5527 = vpop.f32.mrf.mxu0
      %v5528 = vadd.f32 %v5455, %v5527
      %v5529 = vpop.f32.mrf.mxu0
      %v5530 = vadd.f32 %v5457, %v5529
      %5531 = vmatmul.bf16.gmra.mxu0 %v949
      %v5532 = vpop.f32.mrf.mxu0
      %v5533 = vadd.f32 %v5460, %v5532
      %v5534 = vpop.f32.mrf.mxu0
      %v5535 = vadd.f32 %v5462, %v5534
      %5536 = vmatmul.bf16.gmra.mxu0 %v961
      %v5537 = vpop.f32.mrf.mxu0
      %v5538 = vadd.f32 %v5465, %v5537
      %v5539 = vpop.f32.mrf.mxu0
      %v5540 = vadd.f32 %v5467, %v5539
      %5541 = vmatmul.bf16.gmra.mxu0 %v973
      %v5542 = vpop.f32.mrf.mxu0
      %v5543 = vadd.f32 %v5470, %v5542
      %v5544 = vpop.f32.mrf.mxu0
      %5545 = vdwg.mxu0
      %5546 = vmatpush.bf16.msra.mxu0 %v2769
      %5547 = vmatpush.bf16.msra.mxu0 %v2765
      %5548 = vmatpush.bf16.msra.mxu0 %v2761
      %5549 = vmatpush.bf16.msra.mxu0 %v2757
      %5550 = vmatpush.bf16.msra.mxu0 %v2753
      %5551 = vmatpush.bf16.msra.mxu0 %v2749
      %5552 = vmatpush.bf16.msra.mxu0 %v2745
      %5553 = vmatpush.bf16.msra.mxu0 %v2741
      %5554 = vmatmul.bf16.gmra.mxu0 %v830
      %v5555 = vpop.f32.mrf.mxu0
      %v5556 = vadd.f32 %v5483, %v5555
      %v5557 = vpop.f32.mrf.mxu0
      %v5558 = vadd.f32 %v5485, %v5557
      %5559 = vmatmul.bf16.gmra.mxu0 %v842
      %v5560 = vpop.f32.mrf.mxu0
      %v5561 = vadd.f32 %v5488, %v5560
      %v5562 = vpop.f32.mrf.mxu0
      %v5563 = vadd.f32 %v5490, %v5562
      %5564 = vmatmul.bf16.gmra.mxu0 %v854
      %v5565 = vpop.f32.mrf.mxu0
      %v5566 = vadd.f32 %v5493, %v5565
      %v5567 = vpop.f32.mrf.mxu0
      %v5568 = vadd.f32 %v5495, %v5567
      %5569 = vmatmul.bf16.gmra.mxu0 %v866
      %v5570 = vpop.f32.mrf.mxu0
      %v5571 = vadd.f32 %v5498, %v5570
      %v5572 = vpop.f32.mrf.mxu0
      %v5573 = vadd.f32 %v5500, %v5572
      %5574 = vmatmul.bf16.gmra.mxu0 %v878
      %v5575 = vpop.f32.mrf.mxu0
      %v5576 = vadd.f32 %v5503, %v5575
      %v5577 = vpop.f32.mrf.mxu0
      %v5578 = vadd.f32 %v5505, %v5577
      %5579 = vmatmul.bf16.gmra.mxu0 %v890
      %v5580 = vpop.f32.mrf.mxu0
      %v5581 = vadd.f32 %v5508, %v5580
      %v5582 = vpop.f32.mrf.mxu0
      %v5583 = vadd.f32 %v5510, %v5582
      %5584 = vmatmul.bf16.gmra.mxu0 %v902
      %v5585 = vpop.f32.mrf.mxu0
      %v5586 = vadd.f32 %v5513, %v5585
      %v5587 = vpop.f32.mrf.mxu0
      %v5588 = vadd.f32 %v5515, %v5587
      %5589 = vmatmul.bf16.gmra.mxu0 %v914
      %v5590 = vpop.f32.mrf.mxu0
      %v5591 = vadd.f32 %v5518, %v5590
      %v5592 = vpop.f32.mrf.mxu0
      %v5593 = vadd.f32 %v5520, %v5592
      %5594 = vmatmul.bf16.gmra.mxu0 %v926
      %v5595 = vpop.f32.mrf.mxu0
      %v5596 = vadd.f32 %v5523, %v5595
      %v5597 = vpop.f32.mrf.mxu0
      %v5598 = vadd.f32 %v5525, %v5597
      %5599 = vmatmul.bf16.gmra.mxu0 %v938
      %v5600 = vpop.f32.mrf.mxu0
      %v5601 = vadd.f32 %v5528, %v5600
      %v5602 = vpop.f32.mrf.mxu0
      %v5603 = vadd.f32 %v5530, %v5602
      %5604 = vmatmul.bf16.gmra.mxu0 %v950
      %v5605 = vpop.f32.mrf.mxu0
      %v5606 = vadd.f32 %v5533, %v5605
      %v5607 = vpop.f32.mrf.mxu0
      %v5608 = vadd.f32 %v5535, %v5607
      %5609 = vmatmul.bf16.gmra.mxu0 %v962
      %v5610 = vpop.f32.mrf.mxu0
      %v5611 = vadd.f32 %v5538, %v5610
      %v5612 = vpop.f32.mrf.mxu0
      %v5613 = vadd.f32 %v5540, %v5612
      %5614 = vmatmul.bf16.gmra.mxu0 %v974
      %v5615 = vpop.f32.mrf.mxu0
      %v5616 = vadd.f32 %v5543, %v5615
      %v5617 = vpop.f32.mrf.mxu0
      %5618 = vdwg.mxu0
      %5619 = vmatpush.bf16.msra.mxu0 %v2801
      %5620 = vmatpush.bf16.msra.mxu0 %v2797
      %5621 = vmatpush.bf16.msra.mxu0 %v2793
      %5622 = vmatpush.bf16.msra.mxu0 %v2789
      %5623 = vmatpush.bf16.msra.mxu0 %v2785
      %5624 = vmatpush.bf16.msra.mxu0 %v2781
      %5625 = vmatpush.bf16.msra.mxu0 %v2777
      %5626 = vmatpush.bf16.msra.mxu0 %v2773
      %5627 = vmatmul.bf16.gmra.mxu0 %v831
      %v5628 = vpop.f32.mrf.mxu0
      %v5629 = vadd.f32 %v5556, %v5628
      %v5630 = vpop.f32.mrf.mxu0
      %v5631 = vadd.f32 %v5558, %v5630
      %5632 = vmatmul.bf16.gmra.mxu0 %v843
      %v5633 = vpop.f32.mrf.mxu0
      %v5634 = vadd.f32 %v5561, %v5633
      %v5635 = vpop.f32.mrf.mxu0
      %v5636 = vadd.f32 %v5563, %v5635
      %5637 = vmatmul.bf16.gmra.mxu0 %v855
      %v5638 = vpop.f32.mrf.mxu0
      %v5639 = vadd.f32 %v5566, %v5638
      %v5640 = vpop.f32.mrf.mxu0
      %v5641 = vadd.f32 %v5568, %v5640
      %5642 = vmatmul.bf16.gmra.mxu0 %v867
      %v5643 = vpop.f32.mrf.mxu0
      %v5644 = vadd.f32 %v5571, %v5643
      %v5645 = vpop.f32.mrf.mxu0
      %v5646 = vadd.f32 %v5573, %v5645
      %5647 = vmatmul.bf16.gmra.mxu0 %v879
      %v5648 = vpop.f32.mrf.mxu0
      %v5649 = vadd.f32 %v5576, %v5648
      %v5650 = vpop.f32.mrf.mxu0
      %v5651 = vadd.f32 %v5578, %v5650
      %5652 = vmatmul.bf16.gmra.mxu0 %v891
      %v5653 = vpop.f32.mrf.mxu0
      %v5654 = vadd.f32 %v5581, %v5653
      %v5655 = vpop.f32.mrf.mxu0
      %v5656 = vadd.f32 %v5583, %v5655
      %5657 = vmatmul.bf16.gmra.mxu0 %v903
      %v5658 = vpop.f32.mrf.mxu0
      %v5659 = vadd.f32 %v5586, %v5658
      %v5660 = vpop.f32.mrf.mxu0
      %v5661 = vadd.f32 %v5588, %v5660
      %5662 = vmatmul.bf16.gmra.mxu0 %v915
      %v5663 = vpop.f32.mrf.mxu0
      %v5664 = vadd.f32 %v5591, %v5663
      %v5665 = vpop.f32.mrf.mxu0
      %v5666 = vadd.f32 %v5593, %v5665
      %5667 = vmatmul.bf16.gmra.mxu0 %v927
      %v5668 = vpop.f32.mrf.mxu0
      %v5669 = vadd.f32 %v5596, %v5668
      %v5670 = vpop.f32.mrf.mxu0
      %v5671 = vadd.f32 %v5598, %v5670
      %5672 = vmatmul.bf16.gmra.mxu0 %v939
      %v5673 = vpop.f32.mrf.mxu0
      %v5674 = vadd.f32 %v5601, %v5673
      %v5675 = vpop.f32.mrf.mxu0
      %v5676 = vadd.f32 %v5603, %v5675
      %5677 = vmatmul.bf16.gmra.mxu0 %v951
      %v5678 = vpop.f32.mrf.mxu0
      %v5679 = vadd.f32 %v5606, %v5678
      %v5680 = vpop.f32.mrf.mxu0
      %v5681 = vadd.f32 %v5608, %v5680
      %5682 = vmatmul.bf16.gmra.mxu0 %v963
      %v5683 = vpop.f32.mrf.mxu0
      %v5684 = vadd.f32 %v5611, %v5683
      %v5685 = vpop.f32.mrf.mxu0
      %v5686 = vadd.f32 %v5613, %v5685
      %5687 = vmatmul.bf16.gmra.mxu0 %v975
      %v5688 = vpop.f32.mrf.mxu0
      %v5689 = vadd.f32 %v5616, %v5688
      %v5690 = vpop.f32.mrf.mxu0
      %5691 = vdwg.mxu0
      %5692 = vmatpush.bf16.msra.mxu0 %v2833
      %5693 = vmatpush.bf16.msra.mxu0 %v2829
      %5694 = vmatpush.bf16.msra.mxu0 %v2825
      %5695 = vmatpush.bf16.msra.mxu0 %v2821
      %5696 = vmatpush.bf16.msra.mxu0 %v2817
      %5697 = vmatpush.bf16.msra.mxu0 %v2813
      %5698 = vmatpush.bf16.msra.mxu0 %v2809
      %5699 = vmatpush.bf16.msra.mxu0 %v2805
      %5700 = vmatmul.bf16.gmra.mxu0 %v832
      %v5701 = vpop.f32.mrf.mxu0
      %v5702 = vadd.f32 %v5629, %v5701
      %v5703 = vpop.f32.mrf.mxu0
      %v5704 = vadd.f32 %v5631, %v5703
      %5705 = vmatmul.bf16.gmra.mxu0 %v844
      %v5706 = vpop.f32.mrf.mxu0
      %v5707 = vadd.f32 %v5634, %v5706
      %v5708 = vpop.f32.mrf.mxu0
      %v5709 = vadd.f32 %v5636, %v5708
      %5710 = vmatmul.bf16.gmra.mxu0 %v856
      %v5711 = vpop.f32.mrf.mxu0
      %v5712 = vadd.f32 %v5639, %v5711
      %v5713 = vpop.f32.mrf.mxu0
      %v5714 = vadd.f32 %v5641, %v5713
      %5715 = vmatmul.bf16.gmra.mxu0 %v868
      %v5716 = vpop.f32.mrf.mxu0
      %v5717 = vadd.f32 %v5644, %v5716
      %v5718 = vpop.f32.mrf.mxu0
      %v5719 = vadd.f32 %v5646, %v5718
      %5720 = vmatmul.bf16.gmra.mxu0 %v880
      %v5721 = vpop.f32.mrf.mxu0
      %v5722 = vadd.f32 %v5649, %v5721
      %v5723 = vpop.f32.mrf.mxu0
      %v5724 = vadd.f32 %v5651, %v5723
      %5725 = vmatmul.bf16.gmra.mxu0 %v892
      %v5726 = vpop.f32.mrf.mxu0
      %v5727 = vadd.f32 %v5654, %v5726
      %v5728 = vpop.f32.mrf.mxu0
      %v5729 = vadd.f32 %v5656, %v5728
      %5730 = vmatmul.bf16.gmra.mxu0 %v904
      %v5731 = vpop.f32.mrf.mxu0
      %v5732 = vadd.f32 %v5659, %v5731
      %v5733 = vpop.f32.mrf.mxu0
      %v5734 = vadd.f32 %v5661, %v5733
      %5735 = vmatmul.bf16.gmra.mxu0 %v916
      %v5736 = vpop.f32.mrf.mxu0
      %v5737 = vadd.f32 %v5664, %v5736
      %v5738 = vpop.f32.mrf.mxu0
      %v5739 = vadd.f32 %v5666, %v5738
      %5740 = vmatmul.bf16.gmra.mxu0 %v928
      %v5741 = vpop.f32.mrf.mxu0
      %v5742 = vadd.f32 %v5669, %v5741
      %v5743 = vpop.f32.mrf.mxu0
      %v5744 = vadd.f32 %v5671, %v5743
      %5745 = vmatmul.bf16.gmra.mxu0 %v940
      %v5746 = vpop.f32.mrf.mxu0
      %v5747 = vadd.f32 %v5674, %v5746
      %v5748 = vpop.f32.mrf.mxu0
      %v5749 = vadd.f32 %v5676, %v5748
      %5750 = vmatmul.bf16.gmra.mxu0 %v952
      %v5751 = vpop.f32.mrf.mxu0
      %v5752 = vadd.f32 %v5679, %v5751
      %v5753 = vpop.f32.mrf.mxu0
      %v5754 = vadd.f32 %v5681, %v5753
      %5755 = vmatmul.bf16.gmra.mxu0 %v964
      %v5756 = vpop.f32.mrf.mxu0
      %v5757 = vadd.f32 %v5684, %v5756
      %v5758 = vpop.f32.mrf.mxu0
      %v5759 = vadd.f32 %v5686, %v5758
      %5760 = vmatmul.bf16.gmra.mxu0 %v976
      %v5761 = vpop.f32.mrf.mxu0
      %v5762 = vadd.f32 %v5689, %v5761
      %v5763 = vpop.f32.mrf.mxu0
      %5764 = vdwg.mxu0
      %5765 = vmatpush.bf16.msra.mxu0 %v2865
      %5766 = vmatpush.bf16.msra.mxu0 %v2861
      %5767 = vmatpush.bf16.msra.mxu0 %v2857
      %5768 = vmatpush.bf16.msra.mxu0 %v2853
      %5769 = vmatpush.bf16.msra.mxu0 %v2849
      %5770 = vmatpush.bf16.msra.mxu0 %v2845
      %5771 = vmatpush.bf16.msra.mxu0 %v2841
      %5772 = vmatpush.bf16.msra.mxu0 %v2837
      %5773 = vmatmul.bf16.gmra.mxu0 %v833
      %v5774 = vpop.f32.mrf.mxu0
      %v5775 = vadd.f32 %v5702, %v5774
      %v5776 = vpop.f32.mrf.mxu0
      %v5777 = vadd.f32 %v5704, %v5776
      %5778 = vmatmul.bf16.gmra.mxu0 %v845
      %v5779 = vpop.f32.mrf.mxu0
      %v5780 = vadd.f32 %v5707, %v5779
      %v5781 = vpop.f32.mrf.mxu0
      %v5782 = vadd.f32 %v5709, %v5781
      %5783 = vmatmul.bf16.gmra.mxu0 %v857
      %v5784 = vpop.f32.mrf.mxu0
      %v5785 = vadd.f32 %v5712, %v5784
      %v5786 = vpop.f32.mrf.mxu0
      %v5787 = vadd.f32 %v5714, %v5786
      %5788 = vmatmul.bf16.gmra.mxu0 %v869
      %v5789 = vpop.f32.mrf.mxu0
      %v5790 = vadd.f32 %v5717, %v5789
      %v5791 = vpop.f32.mrf.mxu0
      %v5792 = vadd.f32 %v5719, %v5791
      %5793 = vmatmul.bf16.gmra.mxu0 %v881
      %v5794 = vpop.f32.mrf.mxu0
      %v5795 = vadd.f32 %v5722, %v5794
      %v5796 = vpop.f32.mrf.mxu0
      %v5797 = vadd.f32 %v5724, %v5796
      %5798 = vmatmul.bf16.gmra.mxu0 %v893
      %v5799 = vpop.f32.mrf.mxu0
      %v5800 = vadd.f32 %v5727, %v5799
      %v5801 = vpop.f32.mrf.mxu0
      %v5802 = vadd.f32 %v5729, %v5801
      %5803 = vmatmul.bf16.gmra.mxu0 %v905
      %v5804 = vpop.f32.mrf.mxu0
      %v5805 = vadd.f32 %v5732, %v5804
      %v5806 = vpop.f32.mrf.mxu0
      %v5807 = vadd.f32 %v5734, %v5806
      %5808 = vmatmul.bf16.gmra.mxu0 %v917
      %v5809 = vpop.f32.mrf.mxu0
      %v5810 = vadd.f32 %v5737, %v5809
      %v5811 = vpop.f32.mrf.mxu0
      %v5812 = vadd.f32 %v5739, %v5811
      %5813 = vmatmul.bf16.gmra.mxu0 %v929
      %v5814 = vpop.f32.mrf.mxu0
      %v5815 = vadd.f32 %v5742, %v5814
      %v5816 = vpop.f32.mrf.mxu0
      %v5817 = vadd.f32 %v5744, %v5816
      %5818 = vmatmul.bf16.gmra.mxu0 %v941
      %v5819 = vpop.f32.mrf.mxu0
      %v5820 = vadd.f32 %v5747, %v5819
      %v5821 = vpop.f32.mrf.mxu0
      %v5822 = vadd.f32 %v5749, %v5821
      %5823 = vmatmul.bf16.gmra.mxu0 %v953
      %v5824 = vpop.f32.mrf.mxu0
      %v5825 = vadd.f32 %v5752, %v5824
      %v5826 = vpop.f32.mrf.mxu0
      %v5827 = vadd.f32 %v5754, %v5826
      %5828 = vmatmul.bf16.gmra.mxu0 %v965
      %v5829 = vpop.f32.mrf.mxu0
      %v5830 = vadd.f32 %v5757, %v5829
      %v5831 = vpop.f32.mrf.mxu0
      %v5832 = vadd.f32 %v5759, %v5831
      %5833 = vmatmul.bf16.gmra.mxu0 %v977
      %v5834 = vpop.f32.mrf.mxu0
      %v5835 = vadd.f32 %v5762, %v5834
      %v5836 = vpop.f32.mrf.mxu0
      %5837 = vdwg.mxu0
      %5838 = vmatpush.bf16.msra.mxu0 %v2897
      %5839 = vmatpush.bf16.msra.mxu0 %v2893
      %5840 = vmatpush.bf16.msra.mxu0 %v2889
      %5841 = vmatpush.bf16.msra.mxu0 %v2885
      %5842 = vmatpush.bf16.msra.mxu0 %v2881
      %5843 = vmatpush.bf16.msra.mxu0 %v2877
      %5844 = vmatpush.bf16.msra.mxu0 %v2873
      %5845 = vmatpush.bf16.msra.mxu0 %v2869
      %5846 = vmatmul.bf16.gmra.mxu0 %v834
      %v5847 = vpop.f32.mrf.mxu0
      %v5848 = vadd.f32 %v5775, %v5847
      %v5849 = vpop.f32.mrf.mxu0
      %v5850 = vadd.f32 %v5777, %v5849
      %5851 = vmatmul.bf16.gmra.mxu0 %v846
      %v5852 = vpop.f32.mrf.mxu0
      %v5853 = vadd.f32 %v5780, %v5852
      %v5854 = vpop.f32.mrf.mxu0
      %v5855 = vadd.f32 %v5782, %v5854
      %5856 = vmatmul.bf16.gmra.mxu0 %v858
      %v5857 = vpop.f32.mrf.mxu0
      %v5858 = vadd.f32 %v5785, %v5857
      %v5859 = vpop.f32.mrf.mxu0
      %v5860 = vadd.f32 %v5787, %v5859
      %5861 = vmatmul.bf16.gmra.mxu0 %v870
      %v5862 = vpop.f32.mrf.mxu0
      %v5863 = vadd.f32 %v5790, %v5862
      %v5864 = vpop.f32.mrf.mxu0
      %v5865 = vadd.f32 %v5792, %v5864
      %5866 = vmatmul.bf16.gmra.mxu0 %v882
      %v5867 = vpop.f32.mrf.mxu0
      %v5868 = vadd.f32 %v5795, %v5867
      %v5869 = vpop.f32.mrf.mxu0
      %v5870 = vadd.f32 %v5797, %v5869
      %5871 = vmatmul.bf16.gmra.mxu0 %v894
      %v5872 = vpop.f32.mrf.mxu0
      %v5873 = vadd.f32 %v5800, %v5872
      %v5874 = vpop.f32.mrf.mxu0
      %v5875 = vadd.f32 %v5802, %v5874
      %5876 = vmatmul.bf16.gmra.mxu0 %v906
      %v5877 = vpop.f32.mrf.mxu0
      %v5878 = vadd.f32 %v5805, %v5877
      %v5879 = vpop.f32.mrf.mxu0
      %v5880 = vadd.f32 %v5807, %v5879
      %5881 = vmatmul.bf16.gmra.mxu0 %v918
      %v5882 = vpop.f32.mrf.mxu0
      %v5883 = vadd.f32 %v5810, %v5882
      %v5884 = vpop.f32.mrf.mxu0
      %v5885 = vadd.f32 %v5812, %v5884
      %5886 = vmatmul.bf16.gmra.mxu0 %v930
      %v5887 = vpop.f32.mrf.mxu0
      %v5888 = vadd.f32 %v5815, %v5887
      %v5889 = vpop.f32.mrf.mxu0
      %v5890 = vadd.f32 %v5817, %v5889
      %5891 = vmatmul.bf16.gmra.mxu0 %v942
      %v5892 = vpop.f32.mrf.mxu0
      %v5893 = vadd.f32 %v5820, %v5892
      %v5894 = vpop.f32.mrf.mxu0
      %v5895 = vadd.f32 %v5822, %v5894
      %5896 = vmatmul.bf16.gmra.mxu0 %v954
      %v5897 = vpop.f32.mrf.mxu0
      %v5898 = vadd.f32 %v5825, %v5897
      %v5899 = vpop.f32.mrf.mxu0
      %v5900 = vadd.f32 %v5827, %v5899
      %5901 = vmatmul.bf16.gmra.mxu0 %v966
      %v5902 = vpop.f32.mrf.mxu0
      %v5903 = vadd.f32 %v5830, %v5902
      %v5904 = vpop.f32.mrf.mxu0
      %v5905 = vadd.f32 %v5832, %v5904
      %5906 = vmatmul.bf16.gmra.mxu0 %v978
      %v5907 = vpop.f32.mrf.mxu0
      %v5908 = vadd.f32 %v5835, %v5907
      %v5909 = vpop.f32.mrf.mxu0
      %5910 = vdwg.mxu0
      %5911 = vmatpush.bf16.msra.mxu0 %v2546
      %5912 = vmatpush.bf16.msra.mxu0 %v2542
      %5913 = vmatpush.bf16.msra.mxu0 %v2538
      %5914 = vmatpush.bf16.msra.mxu0 %v2534
      %5915 = vmatpush.bf16.msra.mxu0 %v2530
      %5916 = vmatpush.bf16.msra.mxu0 %v2526
      %5917 = vmatpush.bf16.msra.mxu0 %v2522
      %5918 = vmatpush.bf16.msra.mxu0 %v2518
      %5919 = vmatmul.bf16.gmra.mxu0 %v823
      %v5920 = vpop.f32.mrf.mxu0
      %v5921 = vadd.f32 0.0, %v5920
      %v5922 = vpop.f32.mrf.mxu0
      %v5923 = vadd.f32 0.0, %v5922
      %5924 = vmatmul.bf16.gmra.mxu0 %v835
      %v5925 = vpop.f32.mrf.mxu0
      %v5926 = vadd.f32 0.0, %v5925
      %v5927 = vpop.f32.mrf.mxu0
      %v5928 = vadd.f32 0.0, %v5927
      %5929 = vmatmul.bf16.gmra.mxu0 %v847
      %v5930 = vpop.f32.mrf.mxu0
      %v5931 = vadd.f32 0.0, %v5930
      %v5932 = vpop.f32.mrf.mxu0
      %v5933 = vadd.f32 0.0, %v5932
      %5934 = vmatmul.bf16.gmra.mxu0 %v859
      %v5935 = vpop.f32.mrf.mxu0
      %v5936 = vadd.f32 0.0, %v5935
      %v5937 = vpop.f32.mrf.mxu0
      %v5938 = vadd.f32 0.0, %v5937
      %5939 = vmatmul.bf16.gmra.mxu0 %v871
      %v5940 = vpop.f32.mrf.mxu0
      %v5941 = vadd.f32 0.0, %v5940
      %v5942 = vpop.f32.mrf.mxu0
      %v5943 = vadd.f32 0.0, %v5942
      %5944 = vmatmul.bf16.gmra.mxu0 %v883
      %v5945 = vpop.f32.mrf.mxu0
      %v5946 = vadd.f32 0.0, %v5945
      %v5947 = vpop.f32.mrf.mxu0
      %v5948 = vadd.f32 0.0, %v5947
      %5949 = vmatmul.bf16.gmra.mxu0 %v895
      %v5950 = vpop.f32.mrf.mxu0
      %v5951 = vadd.f32 0.0, %v5950
      %v5952 = vpop.f32.mrf.mxu0
      %v5953 = vadd.f32 0.0, %v5952
      %5954 = vmatmul.bf16.gmra.mxu0 %v907
      %v5955 = vpop.f32.mrf.mxu0
      %v5956 = vadd.f32 0.0, %v5955
      %v5957 = vpop.f32.mrf.mxu0
      %v5958 = vadd.f32 0.0, %v5957
      %5959 = vmatmul.bf16.gmra.mxu0 %v919
      %v5960 = vpop.f32.mrf.mxu0
      %v5961 = vadd.f32 0.0, %v5960
      %v5962 = vpop.f32.mrf.mxu0
      %v5963 = vadd.f32 0.0, %v5962
      %5964 = vmatmul.bf16.gmra.mxu0 %v931
      %v5965 = vpop.f32.mrf.mxu0
      %v5966 = vadd.f32 0.0, %v5965
      %v5967 = vpop.f32.mrf.mxu0
      %v5968 = vadd.f32 0.0, %v5967
      %5969 = vmatmul.bf16.gmra.mxu0 %v943
      %v5970 = vpop.f32.mrf.mxu0
      %v5971 = vadd.f32 0.0, %v5970
      %v5972 = vpop.f32.mrf.mxu0
      %v5973 = vadd.f32 0.0, %v5972
      %5974 = vmatmul.bf16.gmra.mxu0 %v955
      %v5975 = vpop.f32.mrf.mxu0
      %v5976 = vadd.f32 0.0, %v5975
      %v5977 = vpop.f32.mrf.mxu0
      %v5978 = vadd.f32 0.0, %v5977
      %5979 = vmatmul.bf16.gmra.mxu0 %v967
      %v5980 = vpop.f32.mrf.mxu0
      %v5981 = vadd.f32 0.0, %v5980
      %v5982 = vpop.f32.mrf.mxu0
      %5983 = vdwg.mxu0
      %5984 = vmatpush.bf16.msra.mxu0 %v2578
      %5985 = vmatpush.bf16.msra.mxu0 %v2574
      %5986 = vmatpush.bf16.msra.mxu0 %v2570
      %5987 = vmatpush.bf16.msra.mxu0 %v2566
      %5988 = vmatpush.bf16.msra.mxu0 %v2562
      %5989 = vmatpush.bf16.msra.mxu0 %v2558
      %5990 = vmatpush.bf16.msra.mxu0 %v2554
      %5991 = vmatpush.bf16.msra.mxu0 %v2550
      %5992 = vmatmul.bf16.gmra.mxu0 %v824
      %v5993 = vpop.f32.mrf.mxu0
      %v5994 = vadd.f32 %v5921, %v5993
      %v5995 = vpop.f32.mrf.mxu0
      %v5996 = vadd.f32 %v5923, %v5995
      %5997 = vmatmul.bf16.gmra.mxu0 %v836
      %v5998 = vpop.f32.mrf.mxu0
      %v5999 = vadd.f32 %v5926, %v5998
      %v6000 = vpop.f32.mrf.mxu0
      %v6001 = vadd.f32 %v5928, %v6000
      %6002 = vmatmul.bf16.gmra.mxu0 %v848
      %v6003 = vpop.f32.mrf.mxu0
      %v6004 = vadd.f32 %v5931, %v6003
      %v6005 = vpop.f32.mrf.mxu0
      %v6006 = vadd.f32 %v5933, %v6005
      %6007 = vmatmul.bf16.gmra.mxu0 %v860
      %v6008 = vpop.f32.mrf.mxu0
      %v6009 = vadd.f32 %v5936, %v6008
      %v6010 = vpop.f32.mrf.mxu0
      %v6011 = vadd.f32 %v5938, %v6010
      %6012 = vmatmul.bf16.gmra.mxu0 %v872
      %v6013 = vpop.f32.mrf.mxu0
      %v6014 = vadd.f32 %v5941, %v6013
      %v6015 = vpop.f32.mrf.mxu0
      %v6016 = vadd.f32 %v5943, %v6015
      %6017 = vmatmul.bf16.gmra.mxu0 %v884
      %v6018 = vpop.f32.mrf.mxu0
      %v6019 = vadd.f32 %v5946, %v6018
      %v6020 = vpop.f32.mrf.mxu0
      %v6021 = vadd.f32 %v5948, %v6020
      %6022 = vmatmul.bf16.gmra.mxu0 %v896
      %v6023 = vpop.f32.mrf.mxu0
      %v6024 = vadd.f32 %v5951, %v6023
      %v6025 = vpop.f32.mrf.mxu0
      %v6026 = vadd.f32 %v5953, %v6025
      %6027 = vmatmul.bf16.gmra.mxu0 %v908
      %v6028 = vpop.f32.mrf.mxu0
      %v6029 = vadd.f32 %v5956, %v6028
      %v6030 = vpop.f32.mrf.mxu0
      %v6031 = vadd.f32 %v5958, %v6030
      %6032 = vmatmul.bf16.gmra.mxu0 %v920
      %v6033 = vpop.f32.mrf.mxu0
      %v6034 = vadd.f32 %v5961, %v6033
      %v6035 = vpop.f32.mrf.mxu0
      %v6036 = vadd.f32 %v5963, %v6035
      %6037 = vmatmul.bf16.gmra.mxu0 %v932
      %v6038 = vpop.f32.mrf.mxu0
      %v6039 = vadd.f32 %v5966, %v6038
      %v6040 = vpop.f32.mrf.mxu0
      %v6041 = vadd.f32 %v5968, %v6040
      %6042 = vmatmul.bf16.gmra.mxu0 %v944
      %v6043 = vpop.f32.mrf.mxu0
      %v6044 = vadd.f32 %v5971, %v6043
      %v6045 = vpop.f32.mrf.mxu0
      %v6046 = vadd.f32 %v5973, %v6045
      %6047 = vmatmul.bf16.gmra.mxu0 %v956
      %v6048 = vpop.f32.mrf.mxu0
      %v6049 = vadd.f32 %v5976, %v6048
      %v6050 = vpop.f32.mrf.mxu0
      %v6051 = vadd.f32 %v5978, %v6050
      %6052 = vmatmul.bf16.gmra.mxu0 %v968
      %v6053 = vpop.f32.mrf.mxu0
      %v6054 = vadd.f32 %v5981, %v6053
      %v6055 = vpop.f32.mrf.mxu0
      %6056 = vdwg.mxu0
      %6057 = vmatpush.bf16.msra.mxu0 %v2610
      %6058 = vmatpush.bf16.msra.mxu0 %v2606
      %6059 = vmatpush.bf16.msra.mxu0 %v2602
      %6060 = vmatpush.bf16.msra.mxu0 %v2598
      %6061 = vmatpush.bf16.msra.mxu0 %v2594
      %6062 = vmatpush.bf16.msra.mxu0 %v2590
      %6063 = vmatpush.bf16.msra.mxu0 %v2586
      %6064 = vmatpush.bf16.msra.mxu0 %v2582
      %6065 = vmatmul.bf16.gmra.mxu0 %v825
      %v6066 = vpop.f32.mrf.mxu0
      %v6067 = vadd.f32 %v5994, %v6066
      %v6068 = vpop.f32.mrf.mxu0
      %v6069 = vadd.f32 %v5996, %v6068
      %6070 = vmatmul.bf16.gmra.mxu0 %v837
      %v6071 = vpop.f32.mrf.mxu0
      %v6072 = vadd.f32 %v5999, %v6071
      %v6073 = vpop.f32.mrf.mxu0
      %v6074 = vadd.f32 %v6001, %v6073
      %6075 = vmatmul.bf16.gmra.mxu0 %v849
      %v6076 = vpop.f32.mrf.mxu0
      %v6077 = vadd.f32 %v6004, %v6076
      %v6078 = vpop.f32.mrf.mxu0
      %v6079 = vadd.f32 %v6006, %v6078
      %6080 = vmatmul.bf16.gmra.mxu0 %v861
      %v6081 = vpop.f32.mrf.mxu0
      %v6082 = vadd.f32 %v6009, %v6081
      %v6083 = vpop.f32.mrf.mxu0
      %v6084 = vadd.f32 %v6011, %v6083
      %6085 = vmatmul.bf16.gmra.mxu0 %v873
      %v6086 = vpop.f32.mrf.mxu0
      %v6087 = vadd.f32 %v6014, %v6086
      %v6088 = vpop.f32.mrf.mxu0
      %v6089 = vadd.f32 %v6016, %v6088
      %6090 = vmatmul.bf16.gmra.mxu0 %v885
      %v6091 = vpop.f32.mrf.mxu0
      %v6092 = vadd.f32 %v6019, %v6091
      %v6093 = vpop.f32.mrf.mxu0
      %v6094 = vadd.f32 %v6021, %v6093
      %6095 = vmatmul.bf16.gmra.mxu0 %v897
      %v6096 = vpop.f32.mrf.mxu0
      %v6097 = vadd.f32 %v6024, %v6096
      %v6098 = vpop.f32.mrf.mxu0
      %v6099 = vadd.f32 %v6026, %v6098
      %6100 = vmatmul.bf16.gmra.mxu0 %v909
      %v6101 = vpop.f32.mrf.mxu0
      %v6102 = vadd.f32 %v6029, %v6101
      %v6103 = vpop.f32.mrf.mxu0
      %v6104 = vadd.f32 %v6031, %v6103
      %6105 = vmatmul.bf16.gmra.mxu0 %v921
      %v6106 = vpop.f32.mrf.mxu0
      %v6107 = vadd.f32 %v6034, %v6106
      %v6108 = vpop.f32.mrf.mxu0
      %v6109 = vadd.f32 %v6036, %v6108
      %6110 = vmatmul.bf16.gmra.mxu0 %v933
      %v6111 = vpop.f32.mrf.mxu0
      %v6112 = vadd.f32 %v6039, %v6111
      %v6113 = vpop.f32.mrf.mxu0
      %v6114 = vadd.f32 %v6041, %v6113
      %6115 = vmatmul.bf16.gmra.mxu0 %v945
      %v6116 = vpop.f32.mrf.mxu0
      %v6117 = vadd.f32 %v6044, %v6116
      %v6118 = vpop.f32.mrf.mxu0
      %v6119 = vadd.f32 %v6046, %v6118
      %6120 = vmatmul.bf16.gmra.mxu0 %v957
      %v6121 = vpop.f32.mrf.mxu0
      %v6122 = vadd.f32 %v6049, %v6121
      %v6123 = vpop.f32.mrf.mxu0
      %v6124 = vadd.f32 %v6051, %v6123
      %6125 = vmatmul.bf16.gmra.mxu0 %v969
      %v6126 = vpop.f32.mrf.mxu0
      %v6127 = vadd.f32 %v6054, %v6126
      %v6128 = vpop.f32.mrf.mxu0
      %6129 = vdwg.mxu0
      %6130 = vmatpush.bf16.msra.mxu0 %v2642
      %6131 = vmatpush.bf16.msra.mxu0 %v2638
      %6132 = vmatpush.bf16.msra.mxu0 %v2634
      %6133 = vmatpush.bf16.msra.mxu0 %v2630
      %6134 = vmatpush.bf16.msra.mxu0 %v2626
      %6135 = vmatpush.bf16.msra.mxu0 %v2622
      %6136 = vmatpush.bf16.msra.mxu0 %v2618
      %6137 = vmatpush.bf16.msra.mxu0 %v2614
      %6138 = vmatmul.bf16.gmra.mxu0 %v826
      %v6139 = vpop.f32.mrf.mxu0
      %v6140 = vadd.f32 %v6067, %v6139
      %v6141 = vpop.f32.mrf.mxu0
      %v6142 = vadd.f32 %v6069, %v6141
      %6143 = vmatmul.bf16.gmra.mxu0 %v838
      %v6144 = vpop.f32.mrf.mxu0
      %v6145 = vadd.f32 %v6072, %v6144
      %v6146 = vpop.f32.mrf.mxu0
      %v6147 = vadd.f32 %v6074, %v6146
      %6148 = vmatmul.bf16.gmra.mxu0 %v850
      %v6149 = vpop.f32.mrf.mxu0
      %v6150 = vadd.f32 %v6077, %v6149
      %v6151 = vpop.f32.mrf.mxu0
      %v6152 = vadd.f32 %v6079, %v6151
      %6153 = vmatmul.bf16.gmra.mxu0 %v862
      %v6154 = vpop.f32.mrf.mxu0
      %v6155 = vadd.f32 %v6082, %v6154
      %v6156 = vpop.f32.mrf.mxu0
      %v6157 = vadd.f32 %v6084, %v6156
      %6158 = vmatmul.bf16.gmra.mxu0 %v874
      %v6159 = vpop.f32.mrf.mxu0
      %v6160 = vadd.f32 %v6087, %v6159
      %v6161 = vpop.f32.mrf.mxu0
      %v6162 = vadd.f32 %v6089, %v6161
      %6163 = vmatmul.bf16.gmra.mxu0 %v886
      %v6164 = vpop.f32.mrf.mxu0
      %v6165 = vadd.f32 %v6092, %v6164
      %v6166 = vpop.f32.mrf.mxu0
      %v6167 = vadd.f32 %v6094, %v6166
      %6168 = vmatmul.bf16.gmra.mxu0 %v898
      %v6169 = vpop.f32.mrf.mxu0
      %v6170 = vadd.f32 %v6097, %v6169
      %v6171 = vpop.f32.mrf.mxu0
      %v6172 = vadd.f32 %v6099, %v6171
      %6173 = vmatmul.bf16.gmra.mxu0 %v910
      %v6174 = vpop.f32.mrf.mxu0
      %v6175 = vadd.f32 %v6102, %v6174
      %v6176 = vpop.f32.mrf.mxu0
      %v6177 = vadd.f32 %v6104, %v6176
      %6178 = vmatmul.bf16.gmra.mxu0 %v922
      %v6179 = vpop.f32.mrf.mxu0
      %v6180 = vadd.f32 %v6107, %v6179
      %v6181 = vpop.f32.mrf.mxu0
      %v6182 = vadd.f32 %v6109, %v6181
      %6183 = vmatmul.bf16.gmra.mxu0 %v934
      %v6184 = vpop.f32.mrf.mxu0
      %v6185 = vadd.f32 %v6112, %v6184
      %v6186 = vpop.f32.mrf.mxu0
      %v6187 = vadd.f32 %v6114, %v6186
      %6188 = vmatmul.bf16.gmra.mxu0 %v946
      %v6189 = vpop.f32.mrf.mxu0
      %v6190 = vadd.f32 %v6117, %v6189
      %v6191 = vpop.f32.mrf.mxu0
      %v6192 = vadd.f32 %v6119, %v6191
      %6193 = vmatmul.bf16.gmra.mxu0 %v958
      %v6194 = vpop.f32.mrf.mxu0
      %v6195 = vadd.f32 %v6122, %v6194
      %v6196 = vpop.f32.mrf.mxu0
      %v6197 = vadd.f32 %v6124, %v6196
      %6198 = vmatmul.bf16.gmra.mxu0 %v970
      %v6199 = vpop.f32.mrf.mxu0
      %v6200 = vadd.f32 %v6127, %v6199
      %v6201 = vpop.f32.mrf.mxu0
      %6202 = vdwg.mxu0
      %6203 = vmatpush.bf16.msra.mxu0 %v2674
      %6204 = vmatpush.bf16.msra.mxu0 %v2670
      %6205 = vmatpush.bf16.msra.mxu0 %v2666
      %6206 = vmatpush.bf16.msra.mxu0 %v2662
      %6207 = vmatpush.bf16.msra.mxu0 %v2658
      %6208 = vmatpush.bf16.msra.mxu0 %v2654
      %6209 = vmatpush.bf16.msra.mxu0 %v2650
      %6210 = vmatpush.bf16.msra.mxu0 %v2646
      %6211 = vmatmul.bf16.gmra.mxu0 %v827
      %v6212 = vpop.f32.mrf.mxu0
      %v6213 = vadd.f32 %v6140, %v6212
      %v6214 = vpop.f32.mrf.mxu0
      %v6215 = vadd.f32 %v6142, %v6214
      %6216 = vmatmul.bf16.gmra.mxu0 %v839
      %v6217 = vpop.f32.mrf.mxu0
      %v6218 = vadd.f32 %v6145, %v6217
      %v6219 = vpop.f32.mrf.mxu0
      %v6220 = vadd.f32 %v6147, %v6219
      %6221 = vmatmul.bf16.gmra.mxu0 %v851
      %v6222 = vpop.f32.mrf.mxu0
      %v6223 = vadd.f32 %v6150, %v6222
      %v6224 = vpop.f32.mrf.mxu0
      %v6225 = vadd.f32 %v6152, %v6224
      %6226 = vmatmul.bf16.gmra.mxu0 %v863
      %v6227 = vpop.f32.mrf.mxu0
      %v6228 = vadd.f32 %v6155, %v6227
      %v6229 = vpop.f32.mrf.mxu0
      %v6230 = vadd.f32 %v6157, %v6229
      %6231 = vmatmul.bf16.gmra.mxu0 %v875
      %v6232 = vpop.f32.mrf.mxu0
      %v6233 = vadd.f32 %v6160, %v6232
      %v6234 = vpop.f32.mrf.mxu0
      %v6235 = vadd.f32 %v6162, %v6234
      %6236 = vmatmul.bf16.gmra.mxu0 %v887
      %v6237 = vpop.f32.mrf.mxu0
      %v6238 = vadd.f32 %v6165, %v6237
      %v6239 = vpop.f32.mrf.mxu0
      %v6240 = vadd.f32 %v6167, %v6239
      %6241 = vmatmul.bf16.gmra.mxu0 %v899
      %v6242 = vpop.f32.mrf.mxu0
      %v6243 = vadd.f32 %v6170, %v6242
      %v6244 = vpop.f32.mrf.mxu0
      %v6245 = vadd.f32 %v6172, %v6244
      %6246 = vmatmul.bf16.gmra.mxu0 %v911
      %v6247 = vpop.f32.mrf.mxu0
      %v6248 = vadd.f32 %v6175, %v6247
      %v6249 = vpop.f32.mrf.mxu0
      %v6250 = vadd.f32 %v6177, %v6249
      %6251 = vmatmul.bf16.gmra.mxu0 %v923
      %v6252 = vpop.f32.mrf.mxu0
      %v6253 = vadd.f32 %v6180, %v6252
      %v6254 = vpop.f32.mrf.mxu0
      %v6255 = vadd.f32 %v6182, %v6254
      %6256 = vmatmul.bf16.gmra.mxu0 %v935
      %v6257 = vpop.f32.mrf.mxu0
      %v6258 = vadd.f32 %v6185, %v6257
      %v6259 = vpop.f32.mrf.mxu0
      %v6260 = vadd.f32 %v6187, %v6259
      %6261 = vmatmul.bf16.gmra.mxu0 %v947
      %v6262 = vpop.f32.mrf.mxu0
      %v6263 = vadd.f32 %v6190, %v6262
      %v6264 = vpop.f32.mrf.mxu0
      %v6265 = vadd.f32 %v6192, %v6264
      %6266 = vmatmul.bf16.gmra.mxu0 %v959
      %v6267 = vpop.f32.mrf.mxu0
      %v6268 = vadd.f32 %v6195, %v6267
      %v6269 = vpop.f32.mrf.mxu0
      %v6270 = vadd.f32 %v6197, %v6269
      %6271 = vmatmul.bf16.gmra.mxu0 %v971
      %v6272 = vpop.f32.mrf.mxu0
      %v6273 = vadd.f32 %v6200, %v6272
      %v6274 = vpop.f32.mrf.mxu0
      %6275 = vdwg.mxu0
      %6276 = vmatpush.bf16.msra.mxu0 %v2706
      %6277 = vmatpush.bf16.msra.mxu0 %v2702
      %6278 = vmatpush.bf16.msra.mxu0 %v2698
      %6279 = vmatpush.bf16.msra.mxu0 %v2694
      %6280 = vmatpush.bf16.msra.mxu0 %v2690
      %6281 = vmatpush.bf16.msra.mxu0 %v2686
      %6282 = vmatpush.bf16.msra.mxu0 %v2682
      %6283 = vmatpush.bf16.msra.mxu0 %v2678
      %6284 = vmatmul.bf16.gmra.mxu0 %v828
      %v6285 = vpop.f32.mrf.mxu0
      %v6286 = vadd.f32 %v6213, %v6285
      %v6287 = vpop.f32.mrf.mxu0
      %v6288 = vadd.f32 %v6215, %v6287
      %6289 = vmatmul.bf16.gmra.mxu0 %v840
      %v6290 = vpop.f32.mrf.mxu0
      %v6291 = vadd.f32 %v6218, %v6290
      %v6292 = vpop.f32.mrf.mxu0
      %v6293 = vadd.f32 %v6220, %v6292
      %6294 = vmatmul.bf16.gmra.mxu0 %v852
      %v6295 = vpop.f32.mrf.mxu0
      %v6296 = vadd.f32 %v6223, %v6295
      %v6297 = vpop.f32.mrf.mxu0
      %v6298 = vadd.f32 %v6225, %v6297
      %6299 = vmatmul.bf16.gmra.mxu0 %v864
      %v6300 = vpop.f32.mrf.mxu0
      %v6301 = vadd.f32 %v6228, %v6300
      %v6302 = vpop.f32.mrf.mxu0
      %v6303 = vadd.f32 %v6230, %v6302
      %6304 = vmatmul.bf16.gmra.mxu0 %v876
      %v6305 = vpop.f32.mrf.mxu0
      %v6306 = vadd.f32 %v6233, %v6305
      %v6307 = vpop.f32.mrf.mxu0
      %v6308 = vadd.f32 %v6235, %v6307
      %6309 = vmatmul.bf16.gmra.mxu0 %v888
      %v6310 = vpop.f32.mrf.mxu0
      %v6311 = vadd.f32 %v6238, %v6310
      %v6312 = vpop.f32.mrf.mxu0
      %v6313 = vadd.f32 %v6240, %v6312
      %6314 = vmatmul.bf16.gmra.mxu0 %v900
      %v6315 = vpop.f32.mrf.mxu0
      %v6316 = vadd.f32 %v6243, %v6315
      %v6317 = vpop.f32.mrf.mxu0
      %v6318 = vadd.f32 %v6245, %v6317
      %6319 = vmatmul.bf16.gmra.mxu0 %v912
      %v6320 = vpop.f32.mrf.mxu0
      %v6321 = vadd.f32 %v6248, %v6320
      %v6322 = vpop.f32.mrf.mxu0
      %v6323 = vadd.f32 %v6250, %v6322
      %6324 = vmatmul.bf16.gmra.mxu0 %v924
      %v6325 = vpop.f32.mrf.mxu0
      %v6326 = vadd.f32 %v6253, %v6325
      %v6327 = vpop.f32.mrf.mxu0
      %v6328 = vadd.f32 %v6255, %v6327
      %6329 = vmatmul.bf16.gmra.mxu0 %v936
      %v6330 = vpop.f32.mrf.mxu0
      %v6331 = vadd.f32 %v6258, %v6330
      %v6332 = vpop.f32.mrf.mxu0
      %v6333 = vadd.f32 %v6260, %v6332
      %6334 = vmatmul.bf16.gmra.mxu0 %v948
      %v6335 = vpop.f32.mrf.mxu0
      %v6336 = vadd.f32 %v6263, %v6335
      %v6337 = vpop.f32.mrf.mxu0
      %v6338 = vadd.f32 %v6265, %v6337
      %6339 = vmatmul.bf16.gmra.mxu0 %v960
      %v6340 = vpop.f32.mrf.mxu0
      %v6341 = vadd.f32 %v6268, %v6340
      %v6342 = vpop.f32.mrf.mxu0
      %v6343 = vadd.f32 %v6270, %v6342
      %6344 = vmatmul.bf16.gmra.mxu0 %v972
      %v6345 = vpop.f32.mrf.mxu0
      %v6346 = vadd.f32 %v6273, %v6345
      %v6347 = vpop.f32.mrf.mxu0
      %6348 = vdwg.mxu0
      %6349 = vmatpush.bf16.msra.mxu0 %v2738
      %6350 = vmatpush.bf16.msra.mxu0 %v2734
      %6351 = vmatpush.bf16.msra.mxu0 %v2730
      %6352 = vmatpush.bf16.msra.mxu0 %v2726
      %6353 = vmatpush.bf16.msra.mxu0 %v2722
      %6354 = vmatpush.bf16.msra.mxu0 %v2718
      %6355 = vmatpush.bf16.msra.mxu0 %v2714
      %6356 = vmatpush.bf16.msra.mxu0 %v2710
      %6357 = vmatmul.bf16.gmra.mxu0 %v829
      %v6358 = vpop.f32.mrf.mxu0
      %v6359 = vadd.f32 %v6286, %v6358
      %v6360 = vpop.f32.mrf.mxu0
      %v6361 = vadd.f32 %v6288, %v6360
      %6362 = vmatmul.bf16.gmra.mxu0 %v841
      %v6363 = vpop.f32.mrf.mxu0
      %v6364 = vadd.f32 %v6291, %v6363
      %v6365 = vpop.f32.mrf.mxu0
      %v6366 = vadd.f32 %v6293, %v6365
      %6367 = vmatmul.bf16.gmra.mxu0 %v853
      %v6368 = vpop.f32.mrf.mxu0
      %v6369 = vadd.f32 %v6296, %v6368
      %v6370 = vpop.f32.mrf.mxu0
      %v6371 = vadd.f32 %v6298, %v6370
      %6372 = vmatmul.bf16.gmra.mxu0 %v865
      %v6373 = vpop.f32.mrf.mxu0
      %v6374 = vadd.f32 %v6301, %v6373
      %v6375 = vpop.f32.mrf.mxu0
      %v6376 = vadd.f32 %v6303, %v6375
      %6377 = vmatmul.bf16.gmra.mxu0 %v877
      %v6378 = vpop.f32.mrf.mxu0
      %v6379 = vadd.f32 %v6306, %v6378
      %v6380 = vpop.f32.mrf.mxu0
      %v6381 = vadd.f32 %v6308, %v6380
      %6382 = vmatmul.bf16.gmra.mxu0 %v889
      %v6383 = vpop.f32.mrf.mxu0
      %v6384 = vadd.f32 %v6311, %v6383
      %v6385 = vpop.f32.mrf.mxu0
      %v6386 = vadd.f32 %v6313, %v6385
      %6387 = vmatmul.bf16.gmra.mxu0 %v901
      %v6388 = vpop.f32.mrf.mxu0
      %v6389 = vadd.f32 %v6316, %v6388
      %v6390 = vpop.f32.mrf.mxu0
      %v6391 = vadd.f32 %v6318, %v6390
      %6392 = vmatmul.bf16.gmra.mxu0 %v913
      %v6393 = vpop.f32.mrf.mxu0
      %v6394 = vadd.f32 %v6321, %v6393
      %v6395 = vpop.f32.mrf.mxu0
      %v6396 = vadd.f32 %v6323, %v6395
      %6397 = vmatmul.bf16.gmra.mxu0 %v925
      %v6398 = vpop.f32.mrf.mxu0
      %v6399 = vadd.f32 %v6326, %v6398
      %v6400 = vpop.f32.mrf.mxu0
      %v6401 = vadd.f32 %v6328, %v6400
      %6402 = vmatmul.bf16.gmra.mxu0 %v937
      %v6403 = vpop.f32.mrf.mxu0
      %v6404 = vadd.f32 %v6331, %v6403
      %v6405 = vpop.f32.mrf.mxu0
      %v6406 = vadd.f32 %v6333, %v6405
      %6407 = vmatmul.bf16.gmra.mxu0 %v949
      %v6408 = vpop.f32.mrf.mxu0
      %v6409 = vadd.f32 %v6336, %v6408
      %v6410 = vpop.f32.mrf.mxu0
      %v6411 = vadd.f32 %v6338, %v6410
      %6412 = vmatmul.bf16.gmra.mxu0 %v961
      %v6413 = vpop.f32.mrf.mxu0
      %v6414 = vadd.f32 %v6341, %v6413
      %v6415 = vpop.f32.mrf.mxu0
      %v6416 = vadd.f32 %v6343, %v6415
      %6417 = vmatmul.bf16.gmra.mxu0 %v973
      %v6418 = vpop.f32.mrf.mxu0
      %v6419 = vadd.f32 %v6346, %v6418
      %v6420 = vpop.f32.mrf.mxu0
      %6421 = vdwg.mxu0
      %6422 = vmatpush.bf16.msra.mxu0 %v2770
      %6423 = vmatpush.bf16.msra.mxu0 %v2766
      %6424 = vmatpush.bf16.msra.mxu0 %v2762
      %6425 = vmatpush.bf16.msra.mxu0 %v2758
      %6426 = vmatpush.bf16.msra.mxu0 %v2754
      %6427 = vmatpush.bf16.msra.mxu0 %v2750
      %6428 = vmatpush.bf16.msra.mxu0 %v2746
      %6429 = vmatpush.bf16.msra.mxu0 %v2742
      %6430 = vmatmul.bf16.gmra.mxu0 %v830
      %v6431 = vpop.f32.mrf.mxu0
      %v6432 = vadd.f32 %v6359, %v6431
      %v6433 = vpop.f32.mrf.mxu0
      %v6434 = vadd.f32 %v6361, %v6433
      %6435 = vmatmul.bf16.gmra.mxu0 %v842
      %v6436 = vpop.f32.mrf.mxu0
      %v6437 = vadd.f32 %v6364, %v6436
      %v6438 = vpop.f32.mrf.mxu0
      %v6439 = vadd.f32 %v6366, %v6438
      %6440 = vmatmul.bf16.gmra.mxu0 %v854
      %v6441 = vpop.f32.mrf.mxu0
      %v6442 = vadd.f32 %v6369, %v6441
      %v6443 = vpop.f32.mrf.mxu0
      %v6444 = vadd.f32 %v6371, %v6443
      %6445 = vmatmul.bf16.gmra.mxu0 %v866
      %v6446 = vpop.f32.mrf.mxu0
      %v6447 = vadd.f32 %v6374, %v6446
      %v6448 = vpop.f32.mrf.mxu0
      %v6449 = vadd.f32 %v6376, %v6448
      %6450 = vmatmul.bf16.gmra.mxu0 %v878
      %v6451 = vpop.f32.mrf.mxu0
      %v6452 = vadd.f32 %v6379, %v6451
      %v6453 = vpop.f32.mrf.mxu0
      %v6454 = vadd.f32 %v6381, %v6453
      %6455 = vmatmul.bf16.gmra.mxu0 %v890
      %v6456 = vpop.f32.mrf.mxu0
      %v6457 = vadd.f32 %v6384, %v6456
      %v6458 = vpop.f32.mrf.mxu0
      %v6459 = vadd.f32 %v6386, %v6458
      %6460 = vmatmul.bf16.gmra.mxu0 %v902
      %v6461 = vpop.f32.mrf.mxu0
      %v6462 = vadd.f32 %v6389, %v6461
      %v6463 = vpop.f32.mrf.mxu0
      %v6464 = vadd.f32 %v6391, %v6463
      %6465 = vmatmul.bf16.gmra.mxu0 %v914
      %v6466 = vpop.f32.mrf.mxu0
      %v6467 = vadd.f32 %v6394, %v6466
      %v6468 = vpop.f32.mrf.mxu0
      %v6469 = vadd.f32 %v6396, %v6468
      %6470 = vmatmul.bf16.gmra.mxu0 %v926
      %v6471 = vpop.f32.mrf.mxu0
      %v6472 = vadd.f32 %v6399, %v6471
      %v6473 = vpop.f32.mrf.mxu0
      %v6474 = vadd.f32 %v6401, %v6473
      %6475 = vmatmul.bf16.gmra.mxu0 %v938
      %v6476 = vpop.f32.mrf.mxu0
      %v6477 = vadd.f32 %v6404, %v6476
      %v6478 = vpop.f32.mrf.mxu0
      %v6479 = vadd.f32 %v6406, %v6478
      %6480 = vmatmul.bf16.gmra.mxu0 %v950
      %v6481 = vpop.f32.mrf.mxu0
      %v6482 = vadd.f32 %v6409, %v6481
      %v6483 = vpop.f32.mrf.mxu0
      %v6484 = vadd.f32 %v6411, %v6483
      %6485 = vmatmul.bf16.gmra.mxu0 %v962
      %v6486 = vpop.f32.mrf.mxu0
      %v6487 = vadd.f32 %v6414, %v6486
      %v6488 = vpop.f32.mrf.mxu0
      %v6489 = vadd.f32 %v6416, %v6488
      %6490 = vmatmul.bf16.gmra.mxu0 %v974
      %v6491 = vpop.f32.mrf.mxu0
      %v6492 = vadd.f32 %v6419, %v6491
      %v6493 = vpop.f32.mrf.mxu0
      %6494 = vdwg.mxu0
      %6495 = vmatpush.bf16.msra.mxu0 %v2802
      %6496 = vmatpush.bf16.msra.mxu0 %v2798
      %6497 = vmatpush.bf16.msra.mxu0 %v2794
      %6498 = vmatpush.bf16.msra.mxu0 %v2790
      %6499 = vmatpush.bf16.msra.mxu0 %v2786
      %6500 = vmatpush.bf16.msra.mxu0 %v2782
      %6501 = vmatpush.bf16.msra.mxu0 %v2778
      %6502 = vmatpush.bf16.msra.mxu0 %v2774
      %6503 = vmatmul.bf16.gmra.mxu0 %v831
      %v6504 = vpop.f32.mrf.mxu0
      %v6505 = vadd.f32 %v6432, %v6504
      %v6506 = vpop.f32.mrf.mxu0
      %v6507 = vadd.f32 %v6434, %v6506
      %6508 = vmatmul.bf16.gmra.mxu0 %v843
      %v6509 = vpop.f32.mrf.mxu0
      %v6510 = vadd.f32 %v6437, %v6509
      %v6511 = vpop.f32.mrf.mxu0
      %v6512 = vadd.f32 %v6439, %v6511
      %6513 = vmatmul.bf16.gmra.mxu0 %v855
      %v6514 = vpop.f32.mrf.mxu0
      %v6515 = vadd.f32 %v6442, %v6514
      %v6516 = vpop.f32.mrf.mxu0
      %v6517 = vadd.f32 %v6444, %v6516
      %6518 = vmatmul.bf16.gmra.mxu0 %v867
      %v6519 = vpop.f32.mrf.mxu0
      %v6520 = vadd.f32 %v6447, %v6519
      %v6521 = vpop.f32.mrf.mxu0
      %v6522 = vadd.f32 %v6449, %v6521
      %6523 = vmatmul.bf16.gmra.mxu0 %v879
      %v6524 = vpop.f32.mrf.mxu0
      %v6525 = vadd.f32 %v6452, %v6524
      %v6526 = vpop.f32.mrf.mxu0
      %v6527 = vadd.f32 %v6454, %v6526
      %6528 = vmatmul.bf16.gmra.mxu0 %v891
      %v6529 = vpop.f32.mrf.mxu0
      %v6530 = vadd.f32 %v6457, %v6529
      %v6531 = vpop.f32.mrf.mxu0
      %v6532 = vadd.f32 %v6459, %v6531
      %6533 = vmatmul.bf16.gmra.mxu0 %v903
      %v6534 = vpop.f32.mrf.mxu0
      %v6535 = vadd.f32 %v6462, %v6534
      %v6536 = vpop.f32.mrf.mxu0
      %v6537 = vadd.f32 %v6464, %v6536
      %6538 = vmatmul.bf16.gmra.mxu0 %v915
      %v6539 = vpop.f32.mrf.mxu0
      %v6540 = vadd.f32 %v6467, %v6539
      %v6541 = vpop.f32.mrf.mxu0
      %v6542 = vadd.f32 %v6469, %v6541
      %6543 = vmatmul.bf16.gmra.mxu0 %v927
      %v6544 = vpop.f32.mrf.mxu0
      %v6545 = vadd.f32 %v6472, %v6544
      %v6546 = vpop.f32.mrf.mxu0
      %v6547 = vadd.f32 %v6474, %v6546
      %6548 = vmatmul.bf16.gmra.mxu0 %v939
      %v6549 = vpop.f32.mrf.mxu0
      %v6550 = vadd.f32 %v6477, %v6549
      %v6551 = vpop.f32.mrf.mxu0
      %v6552 = vadd.f32 %v6479, %v6551
      %6553 = vmatmul.bf16.gmra.mxu0 %v951
      %v6554 = vpop.f32.mrf.mxu0
      %v6555 = vadd.f32 %v6482, %v6554
      %v6556 = vpop.f32.mrf.mxu0
      %v6557 = vadd.f32 %v6484, %v6556
      %6558 = vmatmul.bf16.gmra.mxu0 %v963
      %v6559 = vpop.f32.mrf.mxu0
      %v6560 = vadd.f32 %v6487, %v6559
      %v6561 = vpop.f32.mrf.mxu0
      %v6562 = vadd.f32 %v6489, %v6561
      %6563 = vmatmul.bf16.gmra.mxu0 %v975
      %v6564 = vpop.f32.mrf.mxu0
      %v6565 = vadd.f32 %v6492, %v6564
      %v6566 = vpop.f32.mrf.mxu0
      %6567 = vdwg.mxu0
      %6568 = vmatpush.bf16.msra.mxu0 %v2834
      %6569 = vmatpush.bf16.msra.mxu0 %v2830
      %6570 = vmatpush.bf16.msra.mxu0 %v2826
      %6571 = vmatpush.bf16.msra.mxu0 %v2822
      %6572 = vmatpush.bf16.msra.mxu0 %v2818
      %6573 = vmatpush.bf16.msra.mxu0 %v2814
      %6574 = vmatpush.bf16.msra.mxu0 %v2810
      %6575 = vmatpush.bf16.msra.mxu0 %v2806
      %6576 = vmatmul.bf16.gmra.mxu0 %v832
      %v6577 = vpop.f32.mrf.mxu0
      %v6578 = vadd.f32 %v6505, %v6577
      %v6579 = vpop.f32.mrf.mxu0
      %v6580 = vadd.f32 %v6507, %v6579
      %6581 = vmatmul.bf16.gmra.mxu0 %v844
      %v6582 = vpop.f32.mrf.mxu0
      %v6583 = vadd.f32 %v6510, %v6582
      %v6584 = vpop.f32.mrf.mxu0
      %v6585 = vadd.f32 %v6512, %v6584
      %6586 = vmatmul.bf16.gmra.mxu0 %v856
      %v6587 = vpop.f32.mrf.mxu0
      %v6588 = vadd.f32 %v6515, %v6587
      %v6589 = vpop.f32.mrf.mxu0
      %v6590 = vadd.f32 %v6517, %v6589
      %6591 = vmatmul.bf16.gmra.mxu0 %v868
      %v6592 = vpop.f32.mrf.mxu0
      %v6593 = vadd.f32 %v6520, %v6592
      %v6594 = vpop.f32.mrf.mxu0
      %v6595 = vadd.f32 %v6522, %v6594
      %6596 = vmatmul.bf16.gmra.mxu0 %v880
      %v6597 = vpop.f32.mrf.mxu0
      %v6598 = vadd.f32 %v6525, %v6597
      %v6599 = vpop.f32.mrf.mxu0
      %v6600 = vadd.f32 %v6527, %v6599
      %6601 = vmatmul.bf16.gmra.mxu0 %v892
      %v6602 = vpop.f32.mrf.mxu0
      %v6603 = vadd.f32 %v6530, %v6602
      %v6604 = vpop.f32.mrf.mxu0
      %v6605 = vadd.f32 %v6532, %v6604
      %6606 = vmatmul.bf16.gmra.mxu0 %v904
      %v6607 = vpop.f32.mrf.mxu0
      %v6608 = vadd.f32 %v6535, %v6607
      %v6609 = vpop.f32.mrf.mxu0
      %v6610 = vadd.f32 %v6537, %v6609
      %6611 = vmatmul.bf16.gmra.mxu0 %v916
      %v6612 = vpop.f32.mrf.mxu0
      %v6613 = vadd.f32 %v6540, %v6612
      %v6614 = vpop.f32.mrf.mxu0
      %v6615 = vadd.f32 %v6542, %v6614
      %6616 = vmatmul.bf16.gmra.mxu0 %v928
      %v6617 = vpop.f32.mrf.mxu0
      %v6618 = vadd.f32 %v6545, %v6617
      %v6619 = vpop.f32.mrf.mxu0
      %v6620 = vadd.f32 %v6547, %v6619
      %6621 = vmatmul.bf16.gmra.mxu0 %v940
      %v6622 = vpop.f32.mrf.mxu0
      %v6623 = vadd.f32 %v6550, %v6622
      %v6624 = vpop.f32.mrf.mxu0
      %v6625 = vadd.f32 %v6552, %v6624
      %6626 = vmatmul.bf16.gmra.mxu0 %v952
      %v6627 = vpop.f32.mrf.mxu0
      %v6628 = vadd.f32 %v6555, %v6627
      %v6629 = vpop.f32.mrf.mxu0
      %v6630 = vadd.f32 %v6557, %v6629
      %6631 = vmatmul.bf16.gmra.mxu0 %v964
      %v6632 = vpop.f32.mrf.mxu0
      %v6633 = vadd.f32 %v6560, %v6632
      %v6634 = vpop.f32.mrf.mxu0
      %v6635 = vadd.f32 %v6562, %v6634
      %6636 = vmatmul.bf16.gmra.mxu0 %v976
      %v6637 = vpop.f32.mrf.mxu0
      %v6638 = vadd.f32 %v6565, %v6637
      %v6639 = vpop.f32.mrf.mxu0
      %6640 = vdwg.mxu0
      %6641 = vmatpush.bf16.msra.mxu0 %v2866
      %6642 = vmatpush.bf16.msra.mxu0 %v2862
      %6643 = vmatpush.bf16.msra.mxu0 %v2858
      %6644 = vmatpush.bf16.msra.mxu0 %v2854
      %6645 = vmatpush.bf16.msra.mxu0 %v2850
      %6646 = vmatpush.bf16.msra.mxu0 %v2846
      %6647 = vmatpush.bf16.msra.mxu0 %v2842
      %6648 = vmatpush.bf16.msra.mxu0 %v2838
      %6649 = vmatmul.bf16.gmra.mxu0 %v833
      %v6650 = vpop.f32.mrf.mxu0
      %v6651 = vadd.f32 %v6578, %v6650
      %v6652 = vpop.f32.mrf.mxu0
      %v6653 = vadd.f32 %v6580, %v6652
      %6654 = vmatmul.bf16.gmra.mxu0 %v845
      %v6655 = vpop.f32.mrf.mxu0
      %v6656 = vadd.f32 %v6583, %v6655
      %v6657 = vpop.f32.mrf.mxu0
      %v6658 = vadd.f32 %v6585, %v6657
      %6659 = vmatmul.bf16.gmra.mxu0 %v857
      %v6660 = vpop.f32.mrf.mxu0
      %v6661 = vadd.f32 %v6588, %v6660
      %v6662 = vpop.f32.mrf.mxu0
      %v6663 = vadd.f32 %v6590, %v6662
      %6664 = vmatmul.bf16.gmra.mxu0 %v869
      %v6665 = vpop.f32.mrf.mxu0
      %v6666 = vadd.f32 %v6593, %v6665
      %v6667 = vpop.f32.mrf.mxu0
      %v6668 = vadd.f32 %v6595, %v6667
      %6669 = vmatmul.bf16.gmra.mxu0 %v881
      %v6670 = vpop.f32.mrf.mxu0
      %v6671 = vadd.f32 %v6598, %v6670
      %v6672 = vpop.f32.mrf.mxu0
      %v6673 = vadd.f32 %v6600, %v6672
      %6674 = vmatmul.bf16.gmra.mxu0 %v893
      %v6675 = vpop.f32.mrf.mxu0
      %v6676 = vadd.f32 %v6603, %v6675
      %v6677 = vpop.f32.mrf.mxu0
      %v6678 = vadd.f32 %v6605, %v6677
      %6679 = vmatmul.bf16.gmra.mxu0 %v905
      %v6680 = vpop.f32.mrf.mxu0
      %v6681 = vadd.f32 %v6608, %v6680
      %v6682 = vpop.f32.mrf.mxu0
      %v6683 = vadd.f32 %v6610, %v6682
      %6684 = vmatmul.bf16.gmra.mxu0 %v917
      %v6685 = vpop.f32.mrf.mxu0
      %v6686 = vadd.f32 %v6613, %v6685
      %v6687 = vpop.f32.mrf.mxu0
      %v6688 = vadd.f32 %v6615, %v6687
      %6689 = vmatmul.bf16.gmra.mxu0 %v929
      %v6690 = vpop.f32.mrf.mxu0
      %v6691 = vadd.f32 %v6618, %v6690
      %v6692 = vpop.f32.mrf.mxu0
      %v6693 = vadd.f32 %v6620, %v6692
      %6694 = vmatmul.bf16.gmra.mxu0 %v941
      %v6695 = vpop.f32.mrf.mxu0
      %v6696 = vadd.f32 %v6623, %v6695
      %v6697 = vpop.f32.mrf.mxu0
      %v6698 = vadd.f32 %v6625, %v6697
      %6699 = vmatmul.bf16.gmra.mxu0 %v953
      %v6700 = vpop.f32.mrf.mxu0
      %v6701 = vadd.f32 %v6628, %v6700
      %v6702 = vpop.f32.mrf.mxu0
      %v6703 = vadd.f32 %v6630, %v6702
      %6704 = vmatmul.bf16.gmra.mxu0 %v965
      %v6705 = vpop.f32.mrf.mxu0
      %v6706 = vadd.f32 %v6633, %v6705
      %v6707 = vpop.f32.mrf.mxu0
      %v6708 = vadd.f32 %v6635, %v6707
      %6709 = vmatmul.bf16.gmra.mxu0 %v977
      %v6710 = vpop.f32.mrf.mxu0
      %v6711 = vadd.f32 %v6638, %v6710
      %v6712 = vpop.f32.mrf.mxu0
      %6713 = vdwg.mxu0
      %6714 = vmatpush.bf16.msra.mxu0 %v2898
      %6715 = vmatpush.bf16.msra.mxu0 %v2894
      %6716 = vmatpush.bf16.msra.mxu0 %v2890
      %6717 = vmatpush.bf16.msra.mxu0 %v2886
      %6718 = vmatpush.bf16.msra.mxu0 %v2882
      %6719 = vmatpush.bf16.msra.mxu0 %v2878
      %6720 = vmatpush.bf16.msra.mxu0 %v2874
      %6721 = vmatpush.bf16.msra.mxu0 %v2870
      %6722 = vmatmul.bf16.gmra.mxu0 %v834
      %v6723 = vpop.f32.mrf.mxu0
      %v6724 = vadd.f32 %v6651, %v6723
      %v6725 = vpop.f32.mrf.mxu0
      %v6726 = vadd.f32 %v6653, %v6725
      %6727 = vmatmul.bf16.gmra.mxu0 %v846
      %v6728 = vpop.f32.mrf.mxu0
      %v6729 = vadd.f32 %v6656, %v6728
      %v6730 = vpop.f32.mrf.mxu0
      %v6731 = vadd.f32 %v6658, %v6730
      %6732 = vmatmul.bf16.gmra.mxu0 %v858
      %v6733 = vpop.f32.mrf.mxu0
      %v6734 = vadd.f32 %v6661, %v6733
      %v6735 = vpop.f32.mrf.mxu0
      %v6736 = vadd.f32 %v6663, %v6735
      %6737 = vmatmul.bf16.gmra.mxu0 %v870
      %v6738 = vpop.f32.mrf.mxu0
      %v6739 = vadd.f32 %v6666, %v6738
      %v6740 = vpop.f32.mrf.mxu0
      %v6741 = vadd.f32 %v6668, %v6740
      %6742 = vmatmul.bf16.gmra.mxu0 %v882
      %v6743 = vpop.f32.mrf.mxu0
      %v6744 = vadd.f32 %v6671, %v6743
      %v6745 = vpop.f32.mrf.mxu0
      %v6746 = vadd.f32 %v6673, %v6745
      %6747 = vmatmul.bf16.gmra.mxu0 %v894
      %v6748 = vpop.f32.mrf.mxu0
      %v6749 = vadd.f32 %v6676, %v6748
      %v6750 = vpop.f32.mrf.mxu0
      %v6751 = vadd.f32 %v6678, %v6750
      %6752 = vmatmul.bf16.gmra.mxu0 %v906
      %v6753 = vpop.f32.mrf.mxu0
      %v6754 = vadd.f32 %v6681, %v6753
      %v6755 = vpop.f32.mrf.mxu0
      %v6756 = vadd.f32 %v6683, %v6755
      %6757 = vmatmul.bf16.gmra.mxu0 %v918
      %v6758 = vpop.f32.mrf.mxu0
      %v6759 = vadd.f32 %v6686, %v6758
      %v6760 = vpop.f32.mrf.mxu0
      %v6761 = vadd.f32 %v6688, %v6760
      %6762 = vmatmul.bf16.gmra.mxu0 %v930
      %v6763 = vpop.f32.mrf.mxu0
      %v6764 = vadd.f32 %v6691, %v6763
      %v6765 = vpop.f32.mrf.mxu0
      %v6766 = vadd.f32 %v6693, %v6765
      %6767 = vmatmul.bf16.gmra.mxu0 %v942
      %v6768 = vpop.f32.mrf.mxu0
      %v6769 = vadd.f32 %v6696, %v6768
      %v6770 = vpop.f32.mrf.mxu0
      %v6771 = vadd.f32 %v6698, %v6770
      %6772 = vmatmul.bf16.gmra.mxu0 %v954
      %v6773 = vpop.f32.mrf.mxu0
      %v6774 = vadd.f32 %v6701, %v6773
      %v6775 = vpop.f32.mrf.mxu0
      %v6776 = vadd.f32 %v6703, %v6775
      %6777 = vmatmul.bf16.gmra.mxu0 %v966
      %v6778 = vpop.f32.mrf.mxu0
      %v6779 = vadd.f32 %v6706, %v6778
      %v6780 = vpop.f32.mrf.mxu0
      %v6781 = vadd.f32 %v6708, %v6780
      %6782 = vmatmul.bf16.gmra.mxu0 %v978
      %v6783 = vpop.f32.mrf.mxu0
      %v6784 = vadd.f32 %v6711, %v6783
      %v6785 = vpop.f32.mrf.mxu0
      %6786 = vdwg.mxu0
      %vm6812 = vcmask 1046528
      %v6813 = vrot.slane %v4972, 1
      %v6814 = vrot.slane %v4974, 1
      %v6815 = vsel %vm6812, %v6813, %v6814
      %v6816 = vrot.slane %v4977, 1
      %v6817 = vsel %vm6812, %v6814, %v6816
      %v6818 = vrot.slane %v4979, 1
      %v6819 = vsel %vm6812, %v6816, %v6818
      %v6820 = vrot.slane %v4982, 1
      %v6821 = vsel %vm6812, %v6818, %v6820
      %v6822 = vrot.slane %v4984, 1
      %v6823 = vsel %vm6812, %v6820, %v6822
      %v6824 = vrot.slane %v4987, 1
      %v6825 = vsel %vm6812, %v6822, %v6824
      %v6826 = vrot.slane %v4989, 1
      %v6827 = vsel %vm6812, %v6824, %v6826
      %v6828 = vrot.slane %v4992, 1
      %v6829 = vsel %vm6812, %v6826, %v6828
      %v6830 = vrot.slane %v4994, 1
      %v6831 = vsel %vm6812, %v6828, %v6830
      %v6832 = vrot.slane %v4997, 1
      %v6833 = vsel %vm6812, %v6830, %v6832
      %v6834 = vrot.slane %v4999, 1
      %v6835 = vsel %vm6812, %v6832, %v6834
      %v6836 = vrot.slane %v5002, 1
      %v6837 = vsel %vm6812, %v6834, %v6836
      %v6838 = vrot.slane %v5004, 1
      %v6839 = vsel %vm6812, %v6836, %v6838
      %v6840 = vrot.slane %v5007, 1
      %v6841 = vsel %vm6812, %v6838, %v6840
      %v6842 = vrot.slane %v5009, 1
      %v6843 = vsel %vm6812, %v6840, %v6842
      %v6844 = vrot.slane %v5012, 1
      %v6845 = vsel %vm6812, %v6842, %v6844
      %v6846 = vrot.slane %v5014, 1
      %v6847 = vsel %vm6812, %v6844, %v6846
      %v6848 = vrot.slane %v5017, 1
      %v6849 = vsel %vm6812, %v6846, %v6848
      %v6850 = vrot.slane %v5019, 1
      %v6851 = vsel %vm6812, %v6848, %v6850
      %v6852 = vrot.slane %v5022, 1
      %v6853 = vsel %vm6812, %v6850, %v6852
      %v6854 = vrot.slane %v5024, 1
      %v6855 = vsel %vm6812, %v6852, %v6854
      %v6856 = vrot.slane %v5027, 1
      %v6857 = vsel %vm6812, %v6854, %v6856
      %v6858 = vrot.slane %v5029, 1
      %v6859 = vsel %vm6812, %v6856, %v6858
      %v6860 = vrot.slane %v5032, 1
      %v6861 = vsel %vm6812, %v6858, %v6860
      %v6888 = vsel %vm6812, %v6860, %v6813
      %v6889 = vadd.f32 %v4096, %v6815
      %v6890 = vadd.f32 %v4098, %v6817
      %v6891 = vadd.f32 %v4101, %v6819
      %v6892 = vadd.f32 %v4103, %v6821
      %v6893 = vadd.f32 %v4106, %v6823
      %v6894 = vadd.f32 %v4108, %v6825
      %v6895 = vadd.f32 %v4111, %v6827
      %v6896 = vadd.f32 %v4113, %v6829
      %v6897 = vadd.f32 %v4116, %v6831
      %v6898 = vadd.f32 %v4118, %v6833
      %v6899 = vadd.f32 %v4121, %v6835
      %v6900 = vadd.f32 %v4123, %v6837
      %v6901 = vadd.f32 %v4126, %v6839
      %v6902 = vadd.f32 %v4128, %v6841
      %v6903 = vadd.f32 %v4131, %v6843
      %v6904 = vadd.f32 %v4133, %v6845
      %v6905 = vadd.f32 %v4136, %v6847
      %v6906 = vadd.f32 %v4138, %v6849
      %v6907 = vadd.f32 %v4141, %v6851
      %v6908 = vadd.f32 %v4143, %v6853
      %v6909 = vadd.f32 %v4146, %v6855
      %v6910 = vadd.f32 %v4148, %v6857
      %v6911 = vadd.f32 %v4151, %v6859
      %v6912 = vadd.f32 %v4153, %v6861
      %v6913 = vadd.f32 %v4156, %v6888
      %vm6939 = vcmask 1045504
      %v6940 = vrot.slane %v5848, 2
      %v6941 = vrot.slane %v5850, 2
      %v6942 = vsel %vm6939, %v6940, %v6941
      %v6943 = vrot.slane %v5853, 2
      %v6944 = vsel %vm6939, %v6941, %v6943
      %v6945 = vrot.slane %v5855, 2
      %v6946 = vsel %vm6939, %v6943, %v6945
      %v6947 = vrot.slane %v5858, 2
      %v6948 = vsel %vm6939, %v6945, %v6947
      %v6949 = vrot.slane %v5860, 2
      %v6950 = vsel %vm6939, %v6947, %v6949
      %v6951 = vrot.slane %v5863, 2
      %v6952 = vsel %vm6939, %v6949, %v6951
      %v6953 = vrot.slane %v5865, 2
      %v6954 = vsel %vm6939, %v6951, %v6953
      %v6955 = vrot.slane %v5868, 2
      %v6956 = vsel %vm6939, %v6953, %v6955
      %v6957 = vrot.slane %v5870, 2
      %v6958 = vsel %vm6939, %v6955, %v6957
      %v6959 = vrot.slane %v5873, 2
      %v6960 = vsel %vm6939, %v6957, %v6959
      %v6961 = vrot.slane %v5875, 2
      %v6962 = vsel %vm6939, %v6959, %v6961
      %v6963 = vrot.slane %v5878, 2
      %v6964 = vsel %vm6939, %v6961, %v6963
      %v6965 = vrot.slane %v5880, 2
      %v6966 = vsel %vm6939, %v6963, %v6965
      %v6967 = vrot.slane %v5883, 2
      %v6968 = vsel %vm6939, %v6965, %v6967
      %v6969 = vrot.slane %v5885, 2
      %v6970 = vsel %vm6939, %v6967, %v6969
      %v6971 = vrot.slane %v5888, 2
      %v6972 = vsel %vm6939, %v6969, %v6971
      %v6973 = vrot.slane %v5890, 2
      %v6974 = vsel %vm6939, %v6971, %v6973
      %v6975 = vrot.slane %v5893, 2
      %v6976 = vsel %vm6939, %v6973, %v6975
      %v6977 = vrot.slane %v5895, 2
      %v6978 = vsel %vm6939, %v6975, %v6977
      %v6979 = vrot.slane %v5898, 2
      %v6980 = vsel %vm6939, %v6977, %v6979
      %v6981 = vrot.slane %v5900, 2
      %v6982 = vsel %vm6939, %v6979, %v6981
      %v6983 = vrot.slane %v5903, 2
      %v6984 = vsel %vm6939, %v6981, %v6983
      %v6985 = vrot.slane %v5905, 2
      %v6986 = vsel %vm6939, %v6983, %v6985
      %v6987 = vrot.slane %v5908, 2
      %v6988 = vsel %vm6939, %v6985, %v6987
      %v7015 = vsel %vm6939, %v6987, %v6940
      %v7016 = vadd.f32 %v6889, %v6942
      %v7017 = vadd.f32 %v6890, %v6944
      %v7018 = vadd.f32 %v6891, %v6946
      %v7019 = vadd.f32 %v6892, %v6948
      %v7020 = vadd.f32 %v6893, %v6950
      %v7021 = vadd.f32 %v6894, %v6952
      %v7022 = vadd.f32 %v6895, %v6954
      %v7023 = vadd.f32 %v6896, %v6956
      %v7024 = vadd.f32 %v6897, %v6958
      %v7025 = vadd.f32 %v6898, %v6960
      %v7026 = vadd.f32 %v6899, %v6962
      %v7027 = vadd.f32 %v6900, %v6964
      %v7028 = vadd.f32 %v6901, %v6966
      %v7029 = vadd.f32 %v6902, %v6968
      %v7030 = vadd.f32 %v6903, %v6970
      %v7031 = vadd.f32 %v6904, %v6972
      %v7032 = vadd.f32 %v6905, %v6974
      %v7033 = vadd.f32 %v6906, %v6976
      %v7034 = vadd.f32 %v6907, %v6978
      %v7035 = vadd.f32 %v6908, %v6980
      %v7036 = vadd.f32 %v6909, %v6982
      %v7037 = vadd.f32 %v6910, %v6984
      %v7038 = vadd.f32 %v6911, %v6986
      %v7039 = vadd.f32 %v6912, %v6988
      %v7040 = vadd.f32 %v6913, %v7015
      %vm7066 = vcmask 1044480
      %v7067 = vrot.slane %v6724, 3
      %v7068 = vrot.slane %v6726, 3
      %v7069 = vsel %vm7066, %v7067, %v7068
      %v7070 = vrot.slane %v6729, 3
      %v7071 = vsel %vm7066, %v7068, %v7070
      %v7072 = vrot.slane %v6731, 3
      %v7073 = vsel %vm7066, %v7070, %v7072
      %v7074 = vrot.slane %v6734, 3
      %v7075 = vsel %vm7066, %v7072, %v7074
      %v7076 = vrot.slane %v6736, 3
      %v7077 = vsel %vm7066, %v7074, %v7076
      %v7078 = vrot.slane %v6739, 3
      %v7079 = vsel %vm7066, %v7076, %v7078
      %v7080 = vrot.slane %v6741, 3
      %v7081 = vsel %vm7066, %v7078, %v7080
      %v7082 = vrot.slane %v6744, 3
      %v7083 = vsel %vm7066, %v7080, %v7082
      %v7084 = vrot.slane %v6746, 3
      %v7085 = vsel %vm7066, %v7082, %v7084
      %v7086 = vrot.slane %v6749, 3
      %v7087 = vsel %vm7066, %v7084, %v7086
      %v7088 = vrot.slane %v6751, 3
      %v7089 = vsel %vm7066, %v7086, %v7088
      %v7090 = vrot.slane %v6754, 3
      %v7091 = vsel %vm7066, %v7088, %v7090
      %v7092 = vrot.slane %v6756, 3
      %v7093 = vsel %vm7066, %v7090, %v7092
      %v7094 = vrot.slane %v6759, 3
      %v7095 = vsel %vm7066, %v7092, %v7094
      %v7096 = vrot.slane %v6761, 3
      %v7097 = vsel %vm7066, %v7094, %v7096
      %v7098 = vrot.slane %v6764, 3
      %v7099 = vsel %vm7066, %v7096, %v7098
      %v7100 = vrot.slane %v6766, 3
      %v7101 = vsel %vm7066, %v7098, %v7100
      %v7102 = vrot.slane %v6769, 3
      %v7103 = vsel %vm7066, %v7100, %v7102
      %v7104 = vrot.slane %v6771, 3
      %v7105 = vsel %vm7066, %v7102, %v7104
      %v7106 = vrot.slane %v6774, 3
      %v7107 = vsel %vm7066, %v7104, %v7106
      %v7108 = vrot.slane %v6776, 3
      %v7109 = vsel %vm7066, %v7106, %v7108
      %v7110 = vrot.slane %v6779, 3
      %v7111 = vsel %vm7066, %v7108, %v7110
      %v7112 = vrot.slane %v6781, 3
      %v7113 = vsel %vm7066, %v7110, %v7112
      %v7114 = vrot.slane %v6784, 3
      %v7115 = vsel %vm7066, %v7112, %v7114
      %v7142 = vsel %vm7066, %v7114, %v7067
      %v7143 = vadd.f32 %v7016, %v7069
      %v7144 = vadd.f32 %v7017, %v7071
      %v7145 = vadd.f32 %v7018, %v7073
      %v7146 = vadd.f32 %v7019, %v7075
      %v7147 = vadd.f32 %v7020, %v7077
      %v7148 = vadd.f32 %v7021, %v7079
      %v7149 = vadd.f32 %v7022, %v7081
      %v7150 = vadd.f32 %v7023, %v7083
      %v7151 = vadd.f32 %v7024, %v7085
      %v7152 = vadd.f32 %v7025, %v7087
      %v7153 = vadd.f32 %v7026, %v7089
      %v7154 = vadd.f32 %v7027, %v7091
      %v7155 = vadd.f32 %v7028, %v7093
      %v7156 = vadd.f32 %v7029, %v7095
      %v7157 = vadd.f32 %v7030, %v7097
      %v7158 = vadd.f32 %v7031, %v7099
      %v7159 = vadd.f32 %v7032, %v7101
      %v7160 = vadd.f32 %v7033, %v7103
      %v7161 = vadd.f32 %v7034, %v7105
      %v7162 = vadd.f32 %v7035, %v7107
      %v7163 = vadd.f32 %v7036, %v7109
      %v7164 = vadd.f32 %v7037, %v7111
      %v7165 = vadd.f32 %v7038, %v7113
      %v7166 = vadd.f32 %v7039, %v7115
      %v7167 = vadd.f32 %v7040, %v7142
      %v7168 = vld [vmem:[%s2] sm:$0x1]
      %v7169 = vperm.slane %v7168, 0
      %v7170 = vadd.f32 %v7143, %v7169
      %v7171 = vadd.f32 %v7144, %v7169
      %v7172 = vadd.f32 %v7145, %v7169
      %v7173 = vadd.f32 %v7146, %v7169
      %v7174 = vadd.f32 %v7147, %v7169
      %v7175 = vadd.f32 %v7148, %v7169
      %v7176 = vadd.f32 %v7149, %v7169
      %v7177 = vadd.f32 %v7150, %v7169
      %v7178 = vadd.f32 %v7151, %v7169
      %v7179 = vadd.f32 %v7152, %v7169
      %v7180 = vadd.f32 %v7153, %v7169
      %v7181 = vadd.f32 %v7154, %v7169
      %v7182 = vadd.f32 %v7155, %v7169
      %v7183 = vadd.f32 %v7156, %v7169
      %v7184 = vadd.f32 %v7157, %v7169
      %v7185 = vadd.f32 %v7158, %v7169
      %v7186 = vadd.f32 %v7159, %v7169
      %v7187 = vadd.f32 %v7160, %v7169
      %v7188 = vadd.f32 %v7161, %v7169
      %v7189 = vadd.f32 %v7162, %v7169
      %v7190 = vadd.f32 %v7163, %v7169
      %v7191 = vadd.f32 %v7164, %v7169
      %v7192 = vadd.f32 %v7165, %v7169
      %v7193 = vadd.f32 %v7166, %v7169
      %v7194 = vadd.f32 %v7167, %v7169
      %v7195 = vmax.f32 %v7170, 0.0
      %v7196 = vmax.f32 %v7171, 0.0
      %v7197 = vmax.f32 %v7172, 0.0
      %v7198 = vmax.f32 %v7173, 0.0
      %v7199 = vmax.f32 %v7174, 0.0
      %v7200 = vmax.f32 %v7175, 0.0
      %v7201 = vmax.f32 %v7176, 0.0
      %v7202 = vmax.f32 %v7177, 0.0
      %v7203 = vmax.f32 %v7178, 0.0
      %v7204 = vmax.f32 %v7179, 0.0
      %v7205 = vmax.f32 %v7180, 0.0
      %v7206 = vmax.f32 %v7181, 0.0
      %v7207 = vmax.f32 %v7182, 0.0
      %v7208 = vmax.f32 %v7183, 0.0
      %v7209 = vmax.f32 %v7184, 0.0
      %v7210 = vmax.f32 %v7185, 0.0
      %v7211 = vmax.f32 %v7186, 0.0
      %v7212 = vmax.f32 %v7187, 0.0
      %v7213 = vmax.f32 %v7188, 0.0
      %v7214 = vmax.f32 %v7189, 0.0
      %v7215 = vmax.f32 %v7190, 0.0
      %v7216 = vmax.f32 %v7191, 0.0
      %v7217 = vmax.f32 %v7192, 0.0
      %v7218 = vmax.f32 %v7193, 0.0
      %v7219 = vmax.f32 %v7194, 0.0
      %v7245 = vrot.slane %v7195, 1
      %v7246 = vrot.slane %v7196, 1
      %v7247 = vsel %vm6812, %v7245, %v7246
      %v7248 = vrot.slane %v7197, 1
      %v7249 = vsel %vm6812, %v7246, %v7248
      %v7250 = vrot.slane %v7198, 1
      %v7251 = vsel %vm6812, %v7248, %v7250
      %v7252 = vrot.slane %v7199, 1
      %v7253 = vsel %vm6812, %v7250, %v7252
      %v7254 = vrot.slane %v7200, 1
      %v7255 = vsel %vm6812, %v7252, %v7254
      %v7256 = vrot.slane %v7201, 1
      %v7257 = vsel %vm6812, %v7254, %v7256
      %v7258 = vrot.slane %v7202, 1
      %v7259 = vsel %vm6812, %v7256, %v7258
      %v7260 = vrot.slane %v7203, 1
      %v7261 = vsel %vm6812, %v7258, %v7260
      %v7262 = vrot.slane %v7204, 1
      %v7263 = vsel %vm6812, %v7260, %v7262
      %v7264 = vrot.slane %v7205, 1
      %v7265 = vsel %vm6812, %v7262, %v7264
      %v7266 = vrot.slane %v7206, 1
      %v7267 = vsel %vm6812, %v7264, %v7266
      %v7268 = vrot.slane %v7207, 1
      %v7269 = vsel %vm6812, %v7266, %v7268
      %v7270 = vrot.slane %v7208, 1
      %v7271 = vsel %vm6812, %v7268, %v7270
      %v7272 = vrot.slane %v7209, 1
      %v7273 = vsel %vm6812, %v7270, %v7272
      %v7274 = vrot.slane %v7210, 1
      %v7275 = vsel %vm6812, %v7272, %v7274
      %v7276 = vrot.slane %v7211, 1
      %v7277 = vsel %vm6812, %v7274, %v7276
      %v7278 = vrot.slane %v7212, 1
      %v7279 = vsel %vm6812, %v7276, %v7278
      %v7280 = vrot.slane %v7213, 1
      %v7281 = vsel %vm6812, %v7278, %v7280
      %v7282 = vrot.slane %v7214, 1
      %v7283 = vsel %vm6812, %v7280, %v7282
      %v7284 = vrot.slane %v7215, 1
      %v7285 = vsel %vm6812, %v7282, %v7284
      %v7286 = vrot.slane %v7216, 1
      %v7287 = vsel %vm6812, %v7284, %v7286
      %v7288 = vrot.slane %v7217, 1
      %v7289 = vsel %vm6812, %v7286, %v7288
      %v7290 = vrot.slane %v7218, 1
      %v7291 = vsel %vm6812, %v7288, %v7290
      %v7292 = vrot.slane %v7219, 1
      %v7293 = vsel %vm6812, %v7290, %v7292
      %v7320 = vsel %vm6812, %v7292, %v7245
      %v7321 = vmax.f32 %v7195, %v7247
      %v7322 = vmax.f32 %v7196, %v7249
      %v7323 = vmax.f32 %v7197, %v7251
      %v7324 = vmax.f32 %v7198, %v7253
      %v7325 = vmax.f32 %v7199, %v7255
      %v7326 = vmax.f32 %v7200, %v7257
      %v7327 = vmax.f32 %v7201, %v7259
      %v7328 = vmax.f32 %v7202, %v7261
      %v7329 = vmax.f32 %v7203, %v7263
      %v7330 = vmax.f32 %v7204, %v7265
      %v7331 = vmax.f32 %v7205, %v7267
      %v7332 = vmax.f32 %v7206, %v7269
      %v7333 = vmax.f32 %v7207, %v7271
      %v7334 = vmax.f32 %v7208, %v7273
      %v7335 = vmax.f32 %v7209, %v7275
      %v7336 = vmax.f32 %v7210, %v7277
      %v7337 = vmax.f32 %v7211, %v7279
      %v7338 = vmax.f32 %v7212, %v7281
      %v7339 = vmax.f32 %v7213, %v7283
      %v7340 = vmax.f32 %v7214, %v7285
      %v7341 = vmax.f32 %v7215, %v7287
      %v7342 = vmax.f32 %v7216, %v7289
      %v7343 = vmax.f32 %v7217, %v7291
      %v7344 = vmax.f32 %v7218, %v7293
      %v7345 = vmax.f32 %v7219, %v7320
      %v7346 = vrot.slane %v7195, 2
      %v7347 = vrot.slane %v7196, 2
      %v7348 = vsel %vm6939, %v7346, %v7347
      %v7349 = vrot.slane %v7197, 2
      %v7350 = vsel %vm6939, %v7347, %v7349
      %v7351 = vrot.slane %v7198, 2
      %v7352 = vsel %vm6939, %v7349, %v7351
      %v7353 = vrot.slane %v7199, 2
      %v7354 = vsel %vm6939, %v7351, %v7353
      %v7355 = vrot.slane %v7200, 2
      %v7356 = vsel %vm6939, %v7353, %v7355
      %v7357 = vrot.slane %v7201, 2
      %v7358 = vsel %vm6939, %v7355, %v7357
      %v7359 = vrot.slane %v7202, 2
      %v7360 = vsel %vm6939, %v7357, %v7359
      %v7361 = vrot.slane %v7203, 2
      %v7362 = vsel %vm6939, %v7359, %v7361
      %v7363 = vrot.slane %v7204, 2
      %v7364 = vsel %vm6939, %v7361, %v7363
      %v7365 = vrot.slane %v7205, 2
      %v7366 = vsel %vm6939, %v7363, %v7365
      %v7367 = vrot.slane %v7206, 2
      %v7368 = vsel %vm6939, %v7365, %v7367
      %v7369 = vrot.slane %v7207, 2
      %v7370 = vsel %vm6939, %v7367, %v7369
      %v7371 = vrot.slane %v7208, 2
      %v7372 = vsel %vm6939, %v7369, %v7371
      %v7373 = vrot.slane %v7209, 2
      %v7374 = vsel %vm6939, %v7371, %v7373
      %v7375 = vrot.slane %v7210, 2
      %v7376 = vsel %vm6939, %v7373, %v7375
      %v7377 = vrot.slane %v7211, 2
      %v7378 = vsel %vm6939, %v7375, %v7377
      %v7379 = vrot.slane %v7212, 2
      %v7380 = vsel %vm6939, %v7377, %v7379
      %v7381 = vrot.slane %v7213, 2
      %v7382 = vsel %vm6939, %v7379, %v7381
      %v7383 = vrot.slane %v7214, 2
      %v7384 = vsel %vm6939, %v7381, %v7383
      %v7385 = vrot.slane %v7215, 2
      %v7386 = vsel %vm6939, %v7383, %v7385
      %v7387 = vrot.slane %v7216, 2
      %v7388 = vsel %vm6939, %v7385, %v7387
      %v7389 = vrot.slane %v7217, 2
      %v7390 = vsel %vm6939, %v7387, %v7389
      %v7391 = vrot.slane %v7218, 2
      %v7392 = vsel %vm6939, %v7389, %v7391
      %v7393 = vrot.slane %v7219, 2
      %v7394 = vsel %vm6939, %v7391, %v7393
      %v7421 = vsel %vm6939, %v7393, %v7346
      %v7422 = vmax.f32 %v7321, %v7348
      %v7423 = vmax.f32 %v7322, %v7350
      %v7424 = vmax.f32 %v7323, %v7352
      %v7425 = vmax.f32 %v7324, %v7354
      %v7426 = vmax.f32 %v7325, %v7356
      %v7427 = vmax.f32 %v7326, %v7358
      %v7428 = vmax.f32 %v7327, %v7360
      %v7429 = vmax.f32 %v7328, %v7362
      %v7430 = vmax.f32 %v7329, %v7364
      %v7431 = vmax.f32 %v7330, %v7366
      %v7432 = vmax.f32 %v7331, %v7368
      %v7433 = vmax.f32 %v7332, %v7370
      %v7434 = vmax.f32 %v7333, %v7372
      %v7435 = vmax.f32 %v7334, %v7374
      %v7436 = vmax.f32 %v7335, %v7376
      %v7437 = vmax.f32 %v7336, %v7378
      %v7438 = vmax.f32 %v7337, %v7380
      %v7439 = vmax.f32 %v7338, %v7382
      %v7440 = vmax.f32 %v7339, %v7384
      %v7441 = vmax.f32 %v7340, %v7386
      %v7442 = vmax.f32 %v7341, %v7388
      %v7443 = vmax.f32 %v7342, %v7390
      %v7444 = vmax.f32 %v7343, %v7392
      %v7445 = vmax.f32 %v7344, %v7394
      %v7446 = vmax.f32 %v7345, %v7421
      %v7447 = vld [vmem:[%s2 + $0x1] sm:$0x1]
      %v7448 = vperm.slane %v7447, 0
      %v7449 = vmul.f32 %v7422, %v7448
      %v7450 = vmul.f32 %v7423, %v7448
      %v7451 = vmul.f32 %v7424, %v7448
      %v7452 = vmul.f32 %v7425, %v7448
      %v7453 = vmul.f32 %v7426, %v7448
      %v7454 = vmul.f32 %v7427, %v7448
      %v7455 = vmul.f32 %v7428, %v7448
      %v7456 = vmul.f32 %v7429, %v7448
      %v7457 = vmul.f32 %v7430, %v7448
      %v7458 = vmul.f32 %v7431, %v7448
      %v7459 = vmul.f32 %v7432, %v7448
      %v7460 = vmul.f32 %v7433, %v7448
      %v7461 = vmul.f32 %v7434, %v7448
      %v7462 = vmul.f32 %v7435, %v7448
      %v7463 = vmul.f32 %v7436, %v7448
      %v7464 = vmul.f32 %v7437, %v7448
      %v7465 = vmul.f32 %v7438, %v7448
      %v7466 = vmul.f32 %v7439, %v7448
      %v7467 = vmul.f32 %v7440, %v7448
      %v7468 = vmul.f32 %v7441, %v7448
      %v7469 = vmul.f32 %v7442, %v7448
      %v7470 = vmul.f32 %v7443, %v7448
      %v7471 = vmul.f32 %v7444, %v7448
      %v7472 = vmul.f32 %v7445, %v7448
      %v7473 = vmul.f32 %v7446, %v7448
      %v7474 = vld [vmem:[%s2 + $0x2] sm:$0x1]
      %v7475 = vperm.slane %v7474, 0
      %v7476 = vadd.f32 %v7449, %v7475
      %v7477 = vadd.f32 %v7450, %v7475
      %v7478 = vadd.f32 %v7451, %v7475
      %v7479 = vadd.f32 %v7452, %v7475
      %v7480 = vadd.f32 %v7453, %v7475
      %v7481 = vadd.f32 %v7454, %v7475
      %v7482 = vadd.f32 %v7455, %v7475
      %v7483 = vadd.f32 %v7456, %v7475
      %v7484 = vadd.f32 %v7457, %v7475
      %v7485 = vadd.f32 %v7458, %v7475
      %v7486 = vadd.f32 %v7459, %v7475
      %v7487 = vadd.f32 %v7460, %v7475
      %v7488 = vadd.f32 %v7461, %v7475
      %v7489 = vadd.f32 %v7462, %v7475
      %v7490 = vadd.f32 %v7463, %v7475
      %v7491 = vadd.f32 %v7464, %v7475
      %v7492 = vadd.f32 %v7465, %v7475
      %v7493 = vadd.f32 %v7466, %v7475
      %v7494 = vadd.f32 %v7467, %v7475
      %v7495 = vadd.f32 %v7468, %v7475
      %v7496 = vadd.f32 %v7469, %v7475
      %v7497 = vadd.f32 %v7470, %v7475
      %v7498 = vadd.f32 %v7471, %v7475
      %v7499 = vadd.f32 %v7472, %v7475
      %v7500 = vadd.f32 %v7473, %v7475
      %7501 = vst [vmem:[#allocation2] sm:$0xff] %v7476
      %7502 = vst [vmem:[#allocation2 + $0x8] sm:$0xff] %v7477
      %7503 = vst [vmem:[#allocation2 + $0x10] sm:$0xff] %v7478
      %7504 = vst [vmem:[#allocation2 + $0x18] sm:$0xff] %v7479
      %7505 = vst [vmem:[#allocation2 + $0x20] sm:$0xff] %v7480
      %7506 = vst [vmem:[#allocation2 + $0x28] sm:$0xff] %v7481
      %7507 = vst [vmem:[#allocation2 + $0x30] sm:$0xff] %v7482
      %7508 = vst [vmem:[#allocation2 + $0x38] sm:$0xff] %v7483
      %7509 = vst [vmem:[#allocation2 + $0x40] sm:$0xff] %v7484
      %7510 = vst [vmem:[#allocation2 + $0x48] sm:$0xff] %v7485
      %7511 = vst [vmem:[#allocation2 + $0x50] sm:$0xff] %v7486
      %7512 = vst [vmem:[#allocation2 + $0x58] sm:$0xff] %v7487
      %7513 = vst [vmem:[#allocation2 + $0x60] sm:$0xff] %v7488
      %7514 = vst [vmem:[#allocation2 + $0x68] sm:$0xff] %v7489
      %7515 = vst [vmem:[#allocation2 + $0x70] sm:$0xff] %v7490
      %7516 = vst [vmem:[#allocation2 + $0x78] sm:$0xff] %v7491
      %7517 = vst [vmem:[#allocation2 + $0x80] sm:$0xff] %v7492
      %7518 = vst [vmem:[#allocation2 + $0x88] sm:$0xff] %v7493
      %7519 = vst [vmem:[#allocation2 + $0x90] sm:$0xff] %v7494
      %7520 = vst [vmem:[#allocation2 + $0x98] sm:$0xff] %v7495
      %7521 = vst [vmem:[#allocation2 + $0xa0] sm:$0xff] %v7496
      %7522 = vst [vmem:[#allocation2 + $0xa8] sm:$0xff] %v7497
      %7523 = vst [vmem:[#allocation2 + $0xb0] sm:$0xff] %v7498
      %7524 = vst [vmem:[#allocation2 + $0xb8] sm:$0xff] %v7499
      %7525 = vst [vmem:[#allocation2 + $0xc0] sm:$0xff] %v7500
      %v7526 = vld [vmem:[#allocation2] ss:$2 sm:$0xff]
      %s7527 = scalar_lea.vmem [#allocation2], 16
      %v7528 = vld [vmem:[%s7527] ss:$2 sm:$0xff]
      %s7529 = scalar_lea.vmem [#allocation2], 32
      %v7530 = vld [vmem:[%s7529] ss:$2 sm:$0xff]
      %s7531 = scalar_lea.vmem [#allocation2], 48
      %v7532 = vld [vmem:[%s7531] ss:$2 sm:$0xff]
      %s7533 = scalar_lea.vmem [#allocation2], 64
      %v7534 = vld [vmem:[%s7533] ss:$2 sm:$0xff]
      %s7535 = scalar_lea.vmem [#allocation2], 80
      %v7536 = vld [vmem:[%s7535] ss:$2 sm:$0xff]
      %s7537 = scalar_lea.vmem [#allocation2], 96
      %v7538 = vld [vmem:[%s7537] ss:$2 sm:$0xff]
      %s7539 = scalar_lea.vmem [#allocation2], 112
      %v7540 = vld [vmem:[%s7539] ss:$2 sm:$0xff]
      %s7541 = scalar_lea.vmem [#allocation2], 128
      %v7542 = vld [vmem:[%s7541] ss:$2 sm:$0xff]
      %s7543 = scalar_lea.vmem [#allocation2], 144
      %v7544 = vld [vmem:[%s7543] ss:$2 sm:$0xff]
      %s7545 = scalar_lea.vmem [#allocation2], 160
      %v7546 = vld [vmem:[%s7545] ss:$2 sm:$0xff]
      %s7547 = scalar_lea.vmem [#allocation2], 176
      %v7548 = vld [vmem:[%s7547] ss:$2 sm:$0xff]
      %s7549 = scalar_lea.vmem [#allocation2], 192
      %v7550 = vld [vmem:[%s7549] ss:$2 sm:$0xf]
      %v7551 = vpack.c.bf16 %v7528, %v7526
      %v7552 = vpack.c.bf16 %v7532, %v7530
      %v7553 = vpack.c.bf16 %v7536, %v7534
      %v7554 = vpack.c.bf16 %v7540, %v7538
      %v7555 = vpack.c.bf16 %v7544, %v7542
      %v7556 = vpack.c.bf16 %v7548, %v7546
      %v7557 = vpack.c.bf16 %v7550, %v7550
      %s7558 = scalar_lea.vmem [#allocation2], 1
      %v7559 = vld [vmem:[%s7558] ss:$2 sm:$0xff]
      %s7560 = scalar_lea.vmem [#allocation2], 17
      %v7561 = vld [vmem:[%s7560] ss:$2 sm:$0xff]
      %s7562 = scalar_lea.vmem [#allocation2], 33
      %v7563 = vld [vmem:[%s7562] ss:$2 sm:$0xff]
      %s7564 = scalar_lea.vmem [#allocation2], 49
      %v7565 = vld [vmem:[%s7564] ss:$2 sm:$0xff]
      %s7566 = scalar_lea.vmem [#allocation2], 65
      %v7567 = vld [vmem:[%s7566] ss:$2 sm:$0xff]
      %s7568 = scalar_lea.vmem [#allocation2], 81
      %v7569 = vld [vmem:[%s7568] ss:$2 sm:$0xff]
      %s7570 = scalar_lea.vmem [#allocation2], 97
      %v7571 = vld [vmem:[%s7570] ss:$2 sm:$0xff]
      %s7572 = scalar_lea.vmem [#allocation2], 113
      %v7573 = vld [vmem:[%s7572] ss:$2 sm:$0xff]
      %s7574 = scalar_lea.vmem [#allocation2], 129
      %v7575 = vld [vmem:[%s7574] ss:$2 sm:$0xff]
      %s7576 = scalar_lea.vmem [#allocation2], 145
      %v7577 = vld [vmem:[%s7576] ss:$2 sm:$0xff]
      %s7578 = scalar_lea.vmem [#allocation2], 161
      %v7579 = vld [vmem:[%s7578] ss:$2 sm:$0xff]
      %s7580 = scalar_lea.vmem [#allocation2], 177
      %v7581 = vld [vmem:[%s7580] ss:$2 sm:$0xff]
      %s7582 = scalar_lea.vmem [#allocation2], 193
      %v7583 = vld [vmem:[%s7582] ss:$2 sm:$0xf]
      %v7584 = vpack.c.bf16 %v7561, %v7559
      %v7585 = vpack.c.bf16 %v7565, %v7563
      %v7586 = vpack.c.bf16 %v7569, %v7567
      %v7587 = vpack.c.bf16 %v7573, %v7571
      %v7588 = vpack.c.bf16 %v7577, %v7575
      %v7589 = vpack.c.bf16 %v7581, %v7579
      %v7590 = vpack.c.bf16 %v7583, %v7583
      %v7591 = vld [vmem:[%s3] sm:$0xff]
      %v7592 = vld [vmem:[%s3 + $0x8] sm:$0xff]
      %v7593 = vld [vmem:[%s3 + $0x10] sm:$0xff]
      %v7594 = vld [vmem:[%s3 + $0x18] sm:$0xff]
      %v7595 = vld [vmem:[%s3 + $0x20] sm:$0xff]
      %v7596 = vld [vmem:[%s3 + $0x28] sm:$0xff]
      %v7597 = vld [vmem:[%s3 + $0x30] sm:$0xff]
      %v7598 = vld [vmem:[%s3 + $0x38] sm:$0xff]
      %v7599 = vld [vmem:[%s3 + $0x40] sm:$0xff]
      %v7600 = vld [vmem:[%s3 + $0x48] sm:$0xff]
      %v7601 = vld [vmem:[%s3 + $0x50] sm:$0xff]
      %v7602 = vld [vmem:[%s3 + $0x58] sm:$0xff]
      %v7603 = vld [vmem:[%s3 + $0x60] sm:$0xff]
      %v7604 = vld [vmem:[%s3 + $0x68] sm:$0xff]
      %v7605 = vld [vmem:[%s3 + $0x70] sm:$0xff]
      %v7606 = vld [vmem:[%s3 + $0x78] sm:$0xff]
      %v7623 = vunpack.c.l.b16 %v7591
      %v7624 = vunpack.c.h.b16 %v7591
      %v7625 = vunpack.c.l.b16 %v7592
      %v7626 = vunpack.c.h.b16 %v7592
      %v7627 = vunpack.c.l.b16 %v7593
      %v7628 = vunpack.c.h.b16 %v7593
      %v7629 = vunpack.c.l.b16 %v7594
      %v7630 = vunpack.c.h.b16 %v7594
      %v7631 = vunpack.c.l.b16 %v7595
      %v7632 = vunpack.c.h.b16 %v7595
      %v7633 = vunpack.c.l.b16 %v7596
      %v7634 = vunpack.c.h.b16 %v7596
      %v7635 = vunpack.c.l.b16 %v7597
      %v7636 = vunpack.c.h.b16 %v7597
      %v7637 = vunpack.c.l.b16 %v7598
      %v7638 = vunpack.c.h.b16 %v7598
      %v7639 = vunpack.c.l.b16 %v7599
      %v7640 = vunpack.c.h.b16 %v7599
      %v7641 = vunpack.c.l.b16 %v7600
      %v7642 = vunpack.c.h.b16 %v7600
      %v7643 = vunpack.c.l.b16 %v7601
      %v7644 = vunpack.c.h.b16 %v7601
      %v7645 = vunpack.c.l.b16 %v7602
      %v7646 = vunpack.c.h.b16 %v7602
      %v7647 = vunpack.c.l.b16 %v7603
      %v7648 = vunpack.c.h.b16 %v7603
      %v7649 = vunpack.c.l.b16 %v7604
      %v7650 = vunpack.c.h.b16 %v7604
      %v7651 = vunpack.c.l.b16 %v7605
      %v7652 = vunpack.c.h.b16 %v7605
      %v7653 = vunpack.c.l.b16 %v7606
      %v7654 = vunpack.c.h.b16 %v7606
      %v7655 = vpack.c.b16 %v7625, %v7623
      %v7656 = vpack.c.b16 %v7626, %v7624
      %v7657 = vpack.c.b16 %v7629, %v7627
      %v7658 = vpack.c.b16 %v7630, %v7628
      %v7659 = vpack.c.b16 %v7633, %v7631
      %v7660 = vpack.c.b16 %v7634, %v7632
      %v7661 = vpack.c.b16 %v7637, %v7635
      %v7662 = vpack.c.b16 %v7638, %v7636
      %v7663 = vpack.c.b16 %v7641, %v7639
      %v7664 = vpack.c.b16 %v7642, %v7640
      %v7665 = vpack.c.b16 %v7645, %v7643
      %v7666 = vpack.c.b16 %v7646, %v7644
      %v7667 = vpack.c.b16 %v7649, %v7647
      %v7668 = vpack.c.b16 %v7650, %v7648
      %v7669 = vpack.c.b16 %v7653, %v7651
      %v7670 = vpack.c.b16 %v7654, %v7652
      %7687 = vmatpush.bf16.msra.mxu0 %v7669
      %7688 = vmatpush.bf16.msra.mxu0 %v7667
      %7689 = vmatpush.bf16.msra.mxu0 %v7665
      %7690 = vmatpush.bf16.msra.mxu0 %v7663
      %7691 = vmatpush.bf16.msra.mxu0 %v7661
      %7692 = vmatpush.bf16.msra.mxu0 %v7659
      %7693 = vmatpush.bf16.msra.mxu0 %v7657
      %7694 = vmatpush.bf16.msra.mxu0 %v7655
      %7695 = vmatmul.bf16.gmra.mxu0 %v7551
      %v7696 = vpop.f32.mrf.mxu0
      %v7697 = vadd.f32 0.0, %v7696
      %v7698 = vpop.f32.mrf.mxu0
      %v7699 = vadd.f32 0.0, %v7698
      %7700 = vmatmul.bf16.gmra.mxu0 %v7552
      %v7701 = vpop.f32.mrf.mxu0
      %v7702 = vadd.f32 0.0, %v7701
      %v7703 = vpop.f32.mrf.mxu0
      %v7704 = vadd.f32 0.0, %v7703
      %7705 = vmatmul.bf16.gmra.mxu0 %v7553
      %v7706 = vpop.f32.mrf.mxu0
      %v7707 = vadd.f32 0.0, %v7706
      %v7708 = vpop.f32.mrf.mxu0
      %v7709 = vadd.f32 0.0, %v7708
      %7710 = vmatmul.bf16.gmra.mxu0 %v7554
      %v7711 = vpop.f32.mrf.mxu0
      %v7712 = vadd.f32 0.0, %v7711
      %v7713 = vpop.f32.mrf.mxu0
      %v7714 = vadd.f32 0.0, %v7713
      %7715 = vmatmul.bf16.gmra.mxu0 %v7555
      %v7716 = vpop.f32.mrf.mxu0
      %v7717 = vadd.f32 0.0, %v7716
      %v7718 = vpop.f32.mrf.mxu0
      %v7719 = vadd.f32 0.0, %v7718
      %7720 = vmatmul.bf16.gmra.mxu0 %v7556
      %v7721 = vpop.f32.mrf.mxu0
      %v7722 = vadd.f32 0.0, %v7721
      %v7723 = vpop.f32.mrf.mxu0
      %v7724 = vadd.f32 0.0, %v7723
      %7725 = vmatmul.bf16.gmra.mxu0 %v7557
      %v7726 = vpop.f32.mrf.mxu0
      %v7727 = vadd.f32 0.0, %v7726
      %v7728 = vpop.f32.mrf.mxu0
      %7729 = vdwg.mxu0
      %7730 = vmatpush.bf16.msra.mxu0 %v7670
      %7731 = vmatpush.bf16.msra.mxu0 %v7668
      %7732 = vmatpush.bf16.msra.mxu0 %v7666
      %7733 = vmatpush.bf16.msra.mxu0 %v7664
      %7734 = vmatpush.bf16.msra.mxu0 %v7662
      %7735 = vmatpush.bf16.msra.mxu0 %v7660
      %7736 = vmatpush.bf16.msra.mxu0 %v7658
      %7737 = vmatpush.bf16.msra.mxu0 %v7656
      %7738 = vmatmul.bf16.gmra.mxu0 %v7551
      %v7739 = vpop.f32.mrf.mxu0
      %v7740 = vadd.f32 0.0, %v7739
      %v7741 = vpop.f32.mrf.mxu0
      %v7742 = vadd.f32 0.0, %v7741
      %7743 = vmatmul.bf16.gmra.mxu0 %v7552
      %v7744 = vpop.f32.mrf.mxu0
      %v7745 = vadd.f32 0.0, %v7744
      %v7746 = vpop.f32.mrf.mxu0
      %v7747 = vadd.f32 0.0, %v7746
      %7748 = vmatmul.bf16.gmra.mxu0 %v7553
      %v7749 = vpop.f32.mrf.mxu0
      %v7750 = vadd.f32 0.0, %v7749
      %v7751 = vpop.f32.mrf.mxu0
      %v7752 = vadd.f32 0.0, %v7751
      %7753 = vmatmul.bf16.gmra.mxu0 %v7554
      %v7754 = vpop.f32.mrf.mxu0
      %v7755 = vadd.f32 0.0, %v7754
      %v7756 = vpop.f32.mrf.mxu0
      %v7757 = vadd.f32 0.0, %v7756
      %7758 = vmatmul.bf16.gmra.mxu0 %v7555
      %v7759 = vpop.f32.mrf.mxu0
      %v7760 = vadd.f32 0.0, %v7759
      %v7761 = vpop.f32.mrf.mxu0
      %v7762 = vadd.f32 0.0, %v7761
      %7763 = vmatmul.bf16.gmra.mxu0 %v7556
      %v7764 = vpop.f32.mrf.mxu0
      %v7765 = vadd.f32 0.0, %v7764
      %v7766 = vpop.f32.mrf.mxu0
      %v7767 = vadd.f32 0.0, %v7766
      %7768 = vmatmul.bf16.gmra.mxu0 %v7557
      %v7769 = vpop.f32.mrf.mxu0
      %v7770 = vadd.f32 0.0, %v7769
      %v7771 = vpop.f32.mrf.mxu0
      %7772 = vdwg.mxu0
      %v7773 = vld [vmem:[%s4] sm:$0xff]
      %v7774 = vld [vmem:[%s4 + $0x8] sm:$0xff]
      %v7775 = vld [vmem:[%s4 + $0x10] sm:$0xff]
      %v7776 = vld [vmem:[%s4 + $0x18] sm:$0xff]
      %v7777 = vld [vmem:[%s4 + $0x20] sm:$0xff]
      %v7778 = vld [vmem:[%s4 + $0x28] sm:$0xff]
      %v7779 = vld [vmem:[%s4 + $0x30] sm:$0xff]
      %v7780 = vld [vmem:[%s4 + $0x38] sm:$0xff]
      %v7781 = vld [vmem:[%s4 + $0x40] sm:$0xff]
      %v7782 = vld [vmem:[%s4 + $0x48] sm:$0xff]
      %v7783 = vld [vmem:[%s4 + $0x50] sm:$0xff]
      %v7784 = vld [vmem:[%s4 + $0x58] sm:$0xff]
      %v7785 = vld [vmem:[%s4 + $0x60] sm:$0xff]
      %v7786 = vld [vmem:[%s4 + $0x68] sm:$0xff]
      %v7787 = vld [vmem:[%s4 + $0x70] sm:$0xff]
      %v7788 = vld [vmem:[%s4 + $0x78] sm:$0xff]
      %v7805 = vunpack.c.l.b16 %v7773
      %v7806 = vunpack.c.h.b16 %v7773
      %v7807 = vunpack.c.l.b16 %v7774
      %v7808 = vunpack.c.h.b16 %v7774
      %v7809 = vunpack.c.l.b16 %v7775
      %v7810 = vunpack.c.h.b16 %v7775
      %v7811 = vunpack.c.l.b16 %v7776
      %v7812 = vunpack.c.h.b16 %v7776
      %v7813 = vunpack.c.l.b16 %v7777
      %v7814 = vunpack.c.h.b16 %v7777
      %v7815 = vunpack.c.l.b16 %v7778
      %v7816 = vunpack.c.h.b16 %v7778
      %v7817 = vunpack.c.l.b16 %v7779
      %v7818 = vunpack.c.h.b16 %v7779
      %v7819 = vunpack.c.l.b16 %v7780
      %v7820 = vunpack.c.h.b16 %v7780
      %v7821 = vunpack.c.l.b16 %v7781
      %v7822 = vunpack.c.h.b16 %v7781
      %v7823 = vunpack.c.l.b16 %v7782
      %v7824 = vunpack.c.h.b16 %v7782
      %v7825 = vunpack.c.l.b16 %v7783
      %v7826 = vunpack.c.h.b16 %v7783
      %v7827 = vunpack.c.l.b16 %v7784
      %v7828 = vunpack.c.h.b16 %v7784
      %v7829 = vunpack.c.l.b16 %v7785
      %v7830 = vunpack.c.h.b16 %v7785
      %v7831 = vunpack.c.l.b16 %v7786
      %v7832 = vunpack.c.h.b16 %v7786
      %v7833 = vunpack.c.l.b16 %v7787
      %v7834 = vunpack.c.h.b16 %v7787
      %v7835 = vunpack.c.l.b16 %v7788
      %v7836 = vunpack.c.h.b16 %v7788
      %v7837 = vpack.c.b16 %v7807, %v7805
      %v7838 = vpack.c.b16 %v7808, %v7806
      %v7839 = vpack.c.b16 %v7811, %v7809
      %v7840 = vpack.c.b16 %v7812, %v7810
      %v7841 = vpack.c.b16 %v7815, %v7813
      %v7842 = vpack.c.b16 %v7816, %v7814
      %v7843 = vpack.c.b16 %v7819, %v7817
      %v7844 = vpack.c.b16 %v7820, %v7818
      %v7845 = vpack.c.b16 %v7823, %v7821
      %v7846 = vpack.c.b16 %v7824, %v7822
      %v7847 = vpack.c.b16 %v7827, %v7825
      %v7848 = vpack.c.b16 %v7828, %v7826
      %v7849 = vpack.c.b16 %v7831, %v7829
      %v7850 = vpack.c.b16 %v7832, %v7830
      %v7851 = vpack.c.b16 %v7835, %v7833
      %v7852 = vpack.c.b16 %v7836, %v7834
      %7869 = vmatpush.bf16.msra.mxu0 %v7851
      %7870 = vmatpush.bf16.msra.mxu0 %v7849
      %7871 = vmatpush.bf16.msra.mxu0 %v7847
      %7872 = vmatpush.bf16.msra.mxu0 %v7845
      %7873 = vmatpush.bf16.msra.mxu0 %v7843
      %7874 = vmatpush.bf16.msra.mxu0 %v7841
      %7875 = vmatpush.bf16.msra.mxu0 %v7839
      %7876 = vmatpush.bf16.msra.mxu0 %v7837
      %7877 = vmatmul.bf16.gmra.mxu0 %v7584
      %v7878 = vpop.f32.mrf.mxu0
      %v7879 = vadd.f32 0.0, %v7878
      %v7880 = vpop.f32.mrf.mxu0
      %v7881 = vadd.f32 0.0, %v7880
      %7882 = vmatmul.bf16.gmra.mxu0 %v7585
      %v7883 = vpop.f32.mrf.mxu0
      %v7884 = vadd.f32 0.0, %v7883
      %v7885 = vpop.f32.mrf.mxu0
      %v7886 = vadd.f32 0.0, %v7885
      %7887 = vmatmul.bf16.gmra.mxu0 %v7586
      %v7888 = vpop.f32.mrf.mxu0
      %v7889 = vadd.f32 0.0, %v7888
      %v7890 = vpop.f32.mrf.mxu0
      %v7891 = vadd.f32 0.0, %v7890
      %7892 = vmatmul.bf16.gmra.mxu0 %v7587
      %v7893 = vpop.f32.mrf.mxu0
      %v7894 = vadd.f32 0.0, %v7893
      %v7895 = vpop.f32.mrf.mxu0
      %v7896 = vadd.f32 0.0, %v7895
      %7897 = vmatmul.bf16.gmra.mxu0 %v7588
      %v7898 = vpop.f32.mrf.mxu0
      %v7899 = vadd.f32 0.0, %v7898
      %v7900 = vpop.f32.mrf.mxu0
      %v7901 = vadd.f32 0.0, %v7900
      %7902 = vmatmul.bf16.gmra.mxu0 %v7589
      %v7903 = vpop.f32.mrf.mxu0
      %v7904 = vadd.f32 0.0, %v7903
      %v7905 = vpop.f32.mrf.mxu0
      %v7906 = vadd.f32 0.0, %v7905
      %7907 = vmatmul.bf16.gmra.mxu0 %v7590
      %v7908 = vpop.f32.mrf.mxu0
      %v7909 = vadd.f32 0.0, %v7908
      %v7910 = vpop.f32.mrf.mxu0
      %7911 = vdwg.mxu0
      %7912 = vmatpush.bf16.msra.mxu0 %v7852
      %7913 = vmatpush.bf16.msra.mxu0 %v7850
      %7914 = vmatpush.bf16.msra.mxu0 %v7848
      %7915 = vmatpush.bf16.msra.mxu0 %v7846
      %7916 = vmatpush.bf16.msra.mxu0 %v7844
      %7917 = vmatpush.bf16.msra.mxu0 %v7842
      %7918 = vmatpush.bf16.msra.mxu0 %v7840
      %7919 = vmatpush.bf16.msra.mxu0 %v7838
      %7920 = vmatmul.bf16.gmra.mxu0 %v7584
      %v7921 = vpop.f32.mrf.mxu0
      %v7922 = vadd.f32 0.0, %v7921
      %v7923 = vpop.f32.mrf.mxu0
      %v7924 = vadd.f32 0.0, %v7923
      %7925 = vmatmul.bf16.gmra.mxu0 %v7585
      %v7926 = vpop.f32.mrf.mxu0
      %v7927 = vadd.f32 0.0, %v7926
      %v7928 = vpop.f32.mrf.mxu0
      %v7929 = vadd.f32 0.0, %v7928
      %7930 = vmatmul.bf16.gmra.mxu0 %v7586
      %v7931 = vpop.f32.mrf.mxu0
      %v7932 = vadd.f32 0.0, %v7931
      %v7933 = vpop.f32.mrf.mxu0
      %v7934 = vadd.f32 0.0, %v7933
      %7935 = vmatmul.bf16.gmra.mxu0 %v7587
      %v7936 = vpop.f32.mrf.mxu0
      %v7937 = vadd.f32 0.0, %v7936
      %v7938 = vpop.f32.mrf.mxu0
      %v7939 = vadd.f32 0.0, %v7938
      %7940 = vmatmul.bf16.gmra.mxu0 %v7588
      %v7941 = vpop.f32.mrf.mxu0
      %v7942 = vadd.f32 0.0, %v7941
      %v7943 = vpop.f32.mrf.mxu0
      %v7944 = vadd.f32 0.0, %v7943
      %7945 = vmatmul.bf16.gmra.mxu0 %v7589
      %v7946 = vpop.f32.mrf.mxu0
      %v7947 = vadd.f32 0.0, %v7946
      %v7948 = vpop.f32.mrf.mxu0
      %v7949 = vadd.f32 0.0, %v7948
      %7950 = vmatmul.bf16.gmra.mxu0 %v7590
      %v7951 = vpop.f32.mrf.mxu0
      %v7952 = vadd.f32 0.0, %v7951
      %v7953 = vpop.f32.mrf.mxu0
      %7954 = vdwg.mxu0
      %v7955 = vadd.f32 %v7697, %v7879
      %v7956 = vadd.f32 %v7699, %v7881
      %v7957 = vadd.f32 %v7702, %v7884
      %v7958 = vadd.f32 %v7704, %v7886
      %v7959 = vadd.f32 %v7707, %v7889
      %v7960 = vadd.f32 %v7709, %v7891
      %v7961 = vadd.f32 %v7712, %v7894
      %v7962 = vadd.f32 %v7714, %v7896
      %v7963 = vadd.f32 %v7717, %v7899
      %v7964 = vadd.f32 %v7719, %v7901
      %v7965 = vadd.f32 %v7722, %v7904
      %v7966 = vadd.f32 %v7724, %v7906
      %v7967 = vadd.f32 %v7727, %v7909
      %v7981 = vrot.slane %v7697, 1
      %v7982 = vrot.slane %v7699, 1
      %v7983 = vsel %vm6812, %v7981, %v7982
      %v7984 = vrot.slane %v7702, 1
      %v7985 = vsel %vm6812, %v7982, %v7984
      %v7986 = vrot.slane %v7704, 1
      %v7987 = vsel %vm6812, %v7984, %v7986
      %v7988 = vrot.slane %v7707, 1
      %v7989 = vsel %vm6812, %v7986, %v7988
      %v7990 = vrot.slane %v7709, 1
      %v7991 = vsel %vm6812, %v7988, %v7990
      %v7992 = vrot.slane %v7712, 1
      %v7993 = vsel %vm6812, %v7990, %v7992
      %v7994 = vrot.slane %v7714, 1
      %v7995 = vsel %vm6812, %v7992, %v7994
      %v7996 = vrot.slane %v7717, 1
      %v7997 = vsel %vm6812, %v7994, %v7996
      %v7998 = vrot.slane %v7719, 1
      %v7999 = vsel %vm6812, %v7996, %v7998
      %v8000 = vrot.slane %v7722, 1
      %v8001 = vsel %vm6812, %v7998, %v8000
      %v8002 = vrot.slane %v7724, 1
      %v8003 = vsel %vm6812, %v8000, %v8002
      %v8004 = vrot.slane %v7727, 1
      %v8005 = vsel %vm6812, %v8002, %v8004
      %v8007 = vrot.slane %v7697, 5
      %vm8009 = vcmask 1042432
      %v8010 = vsel %vm8009, %v8004, %v8007
      %8012 = vrot.lane.b32.xlu0 %v7983, 64
      %v8013 = vpop.permute.xlu0 %8012
      %8014 = vrot.lane.b32.xlu0 %v7985, 64
      %v8015 = vpop.permute.xlu0 %8014
      %8016 = vrot.lane.b32.xlu0 %v7987, 64
      %v8017 = vpop.permute.xlu0 %8016
      %8018 = vrot.lane.b32.xlu0 %v7989, 64
      %v8019 = vpop.permute.xlu0 %8018
      %8020 = vrot.lane.b32.xlu0 %v7991, 64
      %v8021 = vpop.permute.xlu0 %8020
      %8022 = vrot.lane.b32.xlu0 %v7993, 64
      %v8023 = vpop.permute.xlu0 %8022
      %8024 = vrot.lane.b32.xlu0 %v7995, 64
      %v8025 = vpop.permute.xlu0 %8024
      %8026 = vrot.lane.b32.xlu0 %v7997, 64
      %v8027 = vpop.permute.xlu0 %8026
      %8028 = vrot.lane.b32.xlu0 %v7999, 64
      %v8029 = vpop.permute.xlu0 %8028
      %8030 = vrot.lane.b32.xlu0 %v8001, 64
      %v8031 = vpop.permute.xlu0 %8030
      %8032 = vrot.lane.b32.xlu0 %v8003, 64
      %v8033 = vpop.permute.xlu0 %8032
      %8034 = vrot.lane.b32.xlu0 %v8005, 64
      %v8035 = vpop.permute.xlu0 %8034
      %8036 = vrot.lane.b32.xlu0 %v8010, 64
      %v8037 = vpop.permute.xlu0 %8036
      %v8051 = vadd.f32 %v7955, %v8013
      %v8052 = vadd.f32 %v7956, %v8015
      %v8053 = vadd.f32 %v7957, %v8017
      %v8054 = vadd.f32 %v7958, %v8019
      %v8055 = vadd.f32 %v7959, %v8021
      %v8056 = vadd.f32 %v7960, %v8023
      %v8057 = vadd.f32 %v7961, %v8025
      %v8058 = vadd.f32 %v7962, %v8027
      %v8059 = vadd.f32 %v7963, %v8029
      %v8060 = vadd.f32 %v7964, %v8031
      %v8061 = vadd.f32 %v7965, %v8033
      %v8062 = vadd.f32 %v7966, %v8035
      %v8063 = vadd.f32 %v7967, %v8037
      %v8077 = vrot.slane %v7879, 1
      %v8078 = vrot.slane %v7881, 1
      %v8079 = vsel %vm6812, %v8077, %v8078
      %v8080 = vrot.slane %v7884, 1
      %v8081 = vsel %vm6812, %v8078, %v8080
      %v8082 = vrot.slane %v7886, 1
      %v8083 = vsel %vm6812, %v8080, %v8082
      %v8084 = vrot.slane %v7889, 1
      %v8085 = vsel %vm6812, %v8082, %v8084
      %v8086 = vrot.slane %v7891, 1
      %v8087 = vsel %vm6812, %v8084, %v8086
      %v8088 = vrot.slane %v7894, 1
      %v8089 = vsel %vm6812, %v8086, %v8088
      %v8090 = vrot.slane %v7896, 1
      %v8091 = vsel %vm6812, %v8088, %v8090
      %v8092 = vrot.slane %v7899, 1
      %v8093 = vsel %vm6812, %v8090, %v8092
      %v8094 = vrot.slane %v7901, 1
      %v8095 = vsel %vm6812, %v8092, %v8094
      %v8096 = vrot.slane %v7904, 1
      %v8097 = vsel %vm6812, %v8094, %v8096
      %v8098 = vrot.slane %v7906, 1
      %v8099 = vsel %vm6812, %v8096, %v8098
      %v8100 = vrot.slane %v7909, 1
      %v8101 = vsel %vm6812, %v8098, %v8100
      %v8103 = vrot.slane %v7879, 5
      %v8105 = vsel %vm8009, %v8100, %v8103
      %8107 = vrot.lane.b32.xlu0 %v8079, 64
      %v8108 = vpop.permute.xlu0 %8107
      %8109 = vrot.lane.b32.xlu0 %v8081, 64
      %v8110 = vpop.permute.xlu0 %8109
      %8111 = vrot.lane.b32.xlu0 %v8083, 64
      %v8112 = vpop.permute.xlu0 %8111
      %8113 = vrot.lane.b32.xlu0 %v8085, 64
      %v8114 = vpop.permute.xlu0 %8113
      %8115 = vrot.lane.b32.xlu0 %v8087, 64
      %v8116 = vpop.permute.xlu0 %8115
      %8117 = vrot.lane.b32.xlu0 %v8089, 64
      %v8118 = vpop.permute.xlu0 %8117
      %8119 = vrot.lane.b32.xlu0 %v8091, 64
      %v8120 = vpop.permute.xlu0 %8119
      %8121 = vrot.lane.b32.xlu0 %v8093, 64
      %v8122 = vpop.permute.xlu0 %8121
      %8123 = vrot.lane.b32.xlu0 %v8095, 64
      %v8124 = vpop.permute.xlu0 %8123
      %8125 = vrot.lane.b32.xlu0 %v8097, 64
      %v8126 = vpop.permute.xlu0 %8125
      %8127 = vrot.lane.b32.xlu0 %v8099, 64
      %v8128 = vpop.permute.xlu0 %8127
      %8129 = vrot.lane.b32.xlu0 %v8101, 64
      %v8130 = vpop.permute.xlu0 %8129
      %8131 = vrot.lane.b32.xlu0 %v8105, 64
      %v8132 = vpop.permute.xlu0 %8131
      %v8146 = vadd.f32 %v8051, %v8108
      %v8147 = vadd.f32 %v8052, %v8110
      %v8148 = vadd.f32 %v8053, %v8112
      %v8149 = vadd.f32 %v8054, %v8114
      %v8150 = vadd.f32 %v8055, %v8116
      %v8151 = vadd.f32 %v8056, %v8118
      %v8152 = vadd.f32 %v8057, %v8120
      %v8153 = vadd.f32 %v8058, %v8122
      %v8154 = vadd.f32 %v8059, %v8124
      %v8155 = vadd.f32 %v8060, %v8126
      %v8156 = vadd.f32 %v8061, %v8128
      %v8157 = vadd.f32 %v8062, %v8130
      %v8158 = vadd.f32 %v8063, %v8132
      %v8172 = vrot.slane %v7740, 2
      %v8173 = vrot.slane %v7742, 2
      %v8174 = vsel %vm6939, %v8172, %v8173
      %v8175 = vrot.slane %v7745, 2
      %v8176 = vsel %vm6939, %v8173, %v8175
      %v8177 = vrot.slane %v7747, 2
      %v8178 = vsel %vm6939, %v8175, %v8177
      %v8179 = vrot.slane %v7750, 2
      %v8180 = vsel %vm6939, %v8177, %v8179
      %v8181 = vrot.slane %v7752, 2
      %v8182 = vsel %vm6939, %v8179, %v8181
      %v8183 = vrot.slane %v7755, 2
      %v8184 = vsel %vm6939, %v8181, %v8183
      %v8185 = vrot.slane %v7757, 2
      %v8186 = vsel %vm6939, %v8183, %v8185
      %v8187 = vrot.slane %v7760, 2
      %v8188 = vsel %vm6939, %v8185, %v8187
      %v8189 = vrot.slane %v7762, 2
      %v8190 = vsel %vm6939, %v8187, %v8189
      %v8191 = vrot.slane %v7765, 2
      %v8192 = vsel %vm6939, %v8189, %v8191
      %v8193 = vrot.slane %v7767, 2
      %v8194 = vsel %vm6939, %v8191, %v8193
      %v8195 = vrot.slane %v7770, 2
      %v8196 = vsel %vm6939, %v8193, %v8195
      %v8210 = vrot.slane %v7740, 6
      %vm8212 = vcmask 1041408
      %v8213 = vsel %vm8212, %v8195, %v8210
      %v8214 = vadd.f32 %v8146, %v8174
      %v8215 = vadd.f32 %v8147, %v8176
      %v8216 = vadd.f32 %v8148, %v8178
      %v8217 = vadd.f32 %v8149, %v8180
      %v8218 = vadd.f32 %v8150, %v8182
      %v8219 = vadd.f32 %v8151, %v8184
      %v8220 = vadd.f32 %v8152, %v8186
      %v8221 = vadd.f32 %v8153, %v8188
      %v8222 = vadd.f32 %v8154, %v8190
      %v8223 = vadd.f32 %v8155, %v8192
      %v8224 = vadd.f32 %v8156, %v8194
      %v8225 = vadd.f32 %v8157, %v8196
      %v8226 = vadd.f32 %v8158, %v8213
      %v8240 = vrot.slane %v7922, 2
      %v8241 = vrot.slane %v7924, 2
      %v8242 = vsel %vm6939, %v8240, %v8241
      %v8243 = vrot.slane %v7927, 2
      %v8244 = vsel %vm6939, %v8241, %v8243
      %v8245 = vrot.slane %v7929, 2
      %v8246 = vsel %vm6939, %v8243, %v8245
      %v8247 = vrot.slane %v7932, 2
      %v8248 = vsel %vm6939, %v8245, %v8247
      %v8249 = vrot.slane %v7934, 2
      %v8250 = vsel %vm6939, %v8247, %v8249
      %v8251 = vrot.slane %v7937, 2
      %v8252 = vsel %vm6939, %v8249, %v8251
      %v8253 = vrot.slane %v7939, 2
      %v8254 = vsel %vm6939, %v8251, %v8253
      %v8255 = vrot.slane %v7942, 2
      %v8256 = vsel %vm6939, %v8253, %v8255
      %v8257 = vrot.slane %v7944, 2
      %v8258 = vsel %vm6939, %v8255, %v8257
      %v8259 = vrot.slane %v7947, 2
      %v8260 = vsel %vm6939, %v8257, %v8259
      %v8261 = vrot.slane %v7949, 2
      %v8262 = vsel %vm6939, %v8259, %v8261
      %v8263 = vrot.slane %v7952, 2
      %v8264 = vsel %vm6939, %v8261, %v8263
      %v8278 = vrot.slane %v7922, 6
      %v8280 = vsel %vm8212, %v8263, %v8278
      %v8281 = vadd.f32 %v8214, %v8242
      %v8282 = vadd.f32 %v8215, %v8244
      %v8283 = vadd.f32 %v8216, %v8246
      %v8284 = vadd.f32 %v8217, %v8248
      %v8285 = vadd.f32 %v8218, %v8250
      %v8286 = vadd.f32 %v8219, %v8252
      %v8287 = vadd.f32 %v8220, %v8254
      %v8288 = vadd.f32 %v8221, %v8256
      %v8289 = vadd.f32 %v8222, %v8258
      %v8290 = vadd.f32 %v8223, %v8260
      %v8291 = vadd.f32 %v8224, %v8262
      %v8292 = vadd.f32 %v8225, %v8264
      %v8293 = vadd.f32 %v8226, %v8280
      %v8294 = vrot.slane %v7740, 3
      %v8295 = vrot.slane %v7742, 3
      %v8296 = vsel %vm7066, %v8294, %v8295
      %v8297 = vrot.slane %v7745, 3
      %v8298 = vsel %vm7066, %v8295, %v8297
      %v8299 = vrot.slane %v7747, 3
      %v8300 = vsel %vm7066, %v8297, %v8299
      %v8301 = vrot.slane %v7750, 3
      %v8302 = vsel %vm7066, %v8299, %v8301
      %v8303 = vrot.slane %v7752, 3
      %v8304 = vsel %vm7066, %v8301, %v8303
      %v8305 = vrot.slane %v7755, 3
      %v8306 = vsel %vm7066, %v8303, %v8305
      %v8307 = vrot.slane %v7757, 3
      %v8308 = vsel %vm7066, %v8305, %v8307
      %v8309 = vrot.slane %v7760, 3
      %v8310 = vsel %vm7066, %v8307, %v8309
      %v8311 = vrot.slane %v7762, 3
      %v8312 = vsel %vm7066, %v8309, %v8311
      %v8313 = vrot.slane %v7765, 3
      %v8314 = vsel %vm7066, %v8311, %v8313
      %v8315 = vrot.slane %v7767, 3
      %v8316 = vsel %vm7066, %v8313, %v8315
      %v8317 = vrot.slane %v7770, 3
      %v8318 = vsel %vm7066, %v8315, %v8317
      %v8320 = vrot.slane %v7740, 7
      %vm8322 = vcmask 1040384
      %v8323 = vsel %vm8322, %v8317, %v8320
      %8325 = vrot.lane.b32.xlu0 %v8296, 64
      %v8326 = vpop.permute.xlu0 %8325
      %8327 = vrot.lane.b32.xlu0 %v8298, 64
      %v8328 = vpop.permute.xlu0 %8327
      %8329 = vrot.lane.b32.xlu0 %v8300, 64
      %v8330 = vpop.permute.xlu0 %8329
      %8331 = vrot.lane.b32.xlu0 %v8302, 64
      %v8332 = vpop.permute.xlu0 %8331
      %8333 = vrot.lane.b32.xlu0 %v8304, 64
      %v8334 = vpop.permute.xlu0 %8333
      %8335 = vrot.lane.b32.xlu0 %v8306, 64
      %v8336 = vpop.permute.xlu0 %8335
      %8337 = vrot.lane.b32.xlu0 %v8308, 64
      %v8338 = vpop.permute.xlu0 %8337
      %8339 = vrot.lane.b32.xlu0 %v8310, 64
      %v8340 = vpop.permute.xlu0 %8339
      %8341 = vrot.lane.b32.xlu0 %v8312, 64
      %v8342 = vpop.permute.xlu0 %8341
      %8343 = vrot.lane.b32.xlu0 %v8314, 64
      %v8344 = vpop.permute.xlu0 %8343
      %8345 = vrot.lane.b32.xlu0 %v8316, 64
      %v8346 = vpop.permute.xlu0 %8345
      %8347 = vrot.lane.b32.xlu0 %v8318, 64
      %v8348 = vpop.permute.xlu0 %8347
      %8349 = vrot.lane.b32.xlu0 %v8323, 64
      %v8350 = vpop.permute.xlu0 %8349
      %v8364 = vadd.f32 %v8281, %v8326
      %v8365 = vadd.f32 %v8282, %v8328
      %v8366 = vadd.f32 %v8283, %v8330
      %v8367 = vadd.f32 %v8284, %v8332
      %v8368 = vadd.f32 %v8285, %v8334
      %v8369 = vadd.f32 %v8286, %v8336
      %v8370 = vadd.f32 %v8287, %v8338
      %v8371 = vadd.f32 %v8288, %v8340
      %v8372 = vadd.f32 %v8289, %v8342
      %v8373 = vadd.f32 %v8290, %v8344
      %v8374 = vadd.f32 %v8291, %v8346
      %v8375 = vadd.f32 %v8292, %v8348
      %v8376 = vadd.f32 %v8293, %v8350
      %v8377 = vrot.slane %v7922, 3
      %v8378 = vrot.slane %v7924, 3
      %v8379 = vsel %vm7066, %v8377, %v8378
      %v8380 = vrot.slane %v7927, 3
      %v8381 = vsel %vm7066, %v8378, %v8380
      %v8382 = vrot.slane %v7929, 3
      %v8383 = vsel %vm7066, %v8380, %v8382
      %v8384 = vrot.slane %v7932, 3
      %v8385 = vsel %vm7066, %v8382, %v8384
      %v8386 = vrot.slane %v7934, 3
      %v8387 = vsel %vm7066, %v8384, %v8386
      %v8388 = vrot.slane %v7937, 3
      %v8389 = vsel %vm7066, %v8386, %v8388
      %v8390 = vrot.slane %v7939, 3
      %v8391 = vsel %vm7066, %v8388, %v8390
      %v8392 = vrot.slane %v7942, 3
      %v8393 = vsel %vm7066, %v8390, %v8392
      %v8394 = vrot.slane %v7944, 3
      %v8395 = vsel %vm7066, %v8392, %v8394
      %v8396 = vrot.slane %v7947, 3
      %v8397 = vsel %vm7066, %v8394, %v8396
      %v8398 = vrot.slane %v7949, 3
      %v8399 = vsel %vm7066, %v8396, %v8398
      %v8400 = vrot.slane %v7952, 3
      %v8401 = vsel %vm7066, %v8398, %v8400
      %v8403 = vrot.slane %v7922, 7
      %v8405 = vsel %vm8322, %v8400, %v8403
      %8407 = vrot.lane.b32.xlu0 %v8379, 64
      %v8408 = vpop.permute.xlu0 %8407
      %8409 = vrot.lane.b32.xlu0 %v8381, 64
      %v8410 = vpop.permute.xlu0 %8409
      %8411 = vrot.lane.b32.xlu0 %v8383, 64
      %v8412 = vpop.permute.xlu0 %8411
      %8413 = vrot.lane.b32.xlu0 %v8385, 64
      %v8414 = vpop.permute.xlu0 %8413
      %8415 = vrot.lane.b32.xlu0 %v8387, 64
      %v8416 = vpop.permute.xlu0 %8415
      %8417 = vrot.lane.b32.xlu0 %v8389, 64
      %v8418 = vpop.permute.xlu0 %8417
      %8419 = vrot.lane.b32.xlu0 %v8391, 64
      %v8420 = vpop.permute.xlu0 %8419
      %8421 = vrot.lane.b32.xlu0 %v8393, 64
      %v8422 = vpop.permute.xlu0 %8421
      %8423 = vrot.lane.b32.xlu0 %v8395, 64
      %v8424 = vpop.permute.xlu0 %8423
      %8425 = vrot.lane.b32.xlu0 %v8397, 64
      %v8426 = vpop.permute.xlu0 %8425
      %8427 = vrot.lane.b32.xlu0 %v8399, 64
      %v8428 = vpop.permute.xlu0 %8427
      %8429 = vrot.lane.b32.xlu0 %v8401, 64
      %v8430 = vpop.permute.xlu0 %8429
      %8431 = vrot.lane.b32.xlu0 %v8405, 64
      %v8432 = vpop.permute.xlu0 %8431
      %v8446 = vadd.f32 %v8364, %v8408
      %v8447 = vadd.f32 %v8365, %v8410
      %v8448 = vadd.f32 %v8366, %v8412
      %v8449 = vadd.f32 %v8367, %v8414
      %v8450 = vadd.f32 %v8368, %v8416
      %v8451 = vadd.f32 %v8369, %v8418
      %v8452 = vadd.f32 %v8370, %v8420
      %v8453 = vadd.f32 %v8371, %v8422
      %v8454 = vadd.f32 %v8372, %v8424
      %v8455 = vadd.f32 %v8373, %v8426
      %v8456 = vadd.f32 %v8374, %v8428
      %v8457 = vadd.f32 %v8375, %v8430
      %v8458 = vadd.f32 %v8376, %v8432
      %v8459 = vld [vmem:[%s5] sm:$0x1]
      %v8460 = vperm.slane %v8459, 0
      %v8461 = vadd.f32 %v8446, %v8460
      %v8462 = vadd.f32 %v8447, %v8460
      %v8463 = vadd.f32 %v8448, %v8460
      %v8464 = vadd.f32 %v8449, %v8460
      %v8465 = vadd.f32 %v8450, %v8460
      %v8466 = vadd.f32 %v8451, %v8460
      %v8467 = vadd.f32 %v8452, %v8460
      %v8468 = vadd.f32 %v8453, %v8460
      %v8469 = vadd.f32 %v8454, %v8460
      %v8470 = vadd.f32 %v8455, %v8460
      %v8471 = vadd.f32 %v8456, %v8460
      %v8472 = vadd.f32 %v8457, %v8460
      %v8473 = vadd.f32 %v8458, %v8460
      %v8474 = vmax.f32 %v8461, 0.0
      %v8475 = vmax.f32 %v8462, 0.0
      %v8476 = vmax.f32 %v8463, 0.0
      %v8477 = vmax.f32 %v8464, 0.0
      %v8478 = vmax.f32 %v8465, 0.0
      %v8479 = vmax.f32 %v8466, 0.0
      %v8480 = vmax.f32 %v8467, 0.0
      %v8481 = vmax.f32 %v8468, 0.0
      %v8482 = vmax.f32 %v8469, 0.0
      %v8483 = vmax.f32 %v8470, 0.0
      %v8484 = vmax.f32 %v8471, 0.0
      %v8485 = vmax.f32 %v8472, 0.0
      %v8486 = vmax.f32 %v8473, 0.0
      %v8500 = vrot.slane %v8474, 1
      %v8501 = vrot.slane %v8475, 1
      %v8502 = vsel %vm6812, %v8500, %v8501
      %v8503 = vrot.slane %v8476, 1
      %v8504 = vsel %vm6812, %v8501, %v8503
      %v8505 = vrot.slane %v8477, 1
      %v8506 = vsel %vm6812, %v8503, %v8505
      %v8507 = vrot.slane %v8478, 1
      %v8508 = vsel %vm6812, %v8505, %v8507
      %v8509 = vrot.slane %v8479, 1
      %v8510 = vsel %vm6812, %v8507, %v8509
      %v8511 = vrot.slane %v8480, 1
      %v8512 = vsel %vm6812, %v8509, %v8511
      %v8513 = vrot.slane %v8481, 1
      %v8514 = vsel %vm6812, %v8511, %v8513
      %v8515 = vrot.slane %v8482, 1
      %v8516 = vsel %vm6812, %v8513, %v8515
      %v8517 = vrot.slane %v8483, 1
      %v8518 = vsel %vm6812, %v8515, %v8517
      %v8519 = vrot.slane %v8484, 1
      %v8520 = vsel %vm6812, %v8517, %v8519
      %v8521 = vrot.slane %v8485, 1
      %v8522 = vsel %vm6812, %v8519, %v8521
      %v8523 = vrot.slane %v8486, 1
      %v8524 = vsel %vm6812, %v8521, %v8523
      %v8538 = vrot.slane %v8474, 5
      %v8540 = vsel %vm8009, %v8523, %v8538
      %v8541 = vmax.f32 %v8474, %v8502
      %v8542 = vmax.f32 %v8475, %v8504
      %v8543 = vmax.f32 %v8476, %v8506
      %v8544 = vmax.f32 %v8477, %v8508
      %v8545 = vmax.f32 %v8478, %v8510
      %v8546 = vmax.f32 %v8479, %v8512
      %v8547 = vmax.f32 %v8480, %v8514
      %v8548 = vmax.f32 %v8481, %v8516
      %v8549 = vmax.f32 %v8482, %v8518
      %v8550 = vmax.f32 %v8483, %v8520
      %v8551 = vmax.f32 %v8484, %v8522
      %v8552 = vmax.f32 %v8485, %v8524
      %v8553 = vmax.f32 %v8486, %v8540
      %v8554 = vrot.slane %v8474, 2
      %v8555 = vrot.slane %v8475, 2
      %v8556 = vsel %vm6939, %v8554, %v8555
      %v8557 = vrot.slane %v8476, 2
      %v8558 = vsel %vm6939, %v8555, %v8557
      %v8559 = vrot.slane %v8477, 2
      %v8560 = vsel %vm6939, %v8557, %v8559
      %v8561 = vrot.slane %v8478, 2
      %v8562 = vsel %vm6939, %v8559, %v8561
      %v8563 = vrot.slane %v8479, 2
      %v8564 = vsel %vm6939, %v8561, %v8563
      %v8565 = vrot.slane %v8480, 2
      %v8566 = vsel %vm6939, %v8563, %v8565
      %v8567 = vrot.slane %v8481, 2
      %v8568 = vsel %vm6939, %v8565, %v8567
      %v8569 = vrot.slane %v8482, 2
      %v8570 = vsel %vm6939, %v8567, %v8569
      %v8571 = vrot.slane %v8483, 2
      %v8572 = vsel %vm6939, %v8569, %v8571
      %v8573 = vrot.slane %v8484, 2
      %v8574 = vsel %vm6939, %v8571, %v8573
      %v8575 = vrot.slane %v8485, 2
      %v8576 = vsel %vm6939, %v8573, %v8575
      %v8577 = vrot.slane %v8486, 2
      %v8578 = vsel %vm6939, %v8575, %v8577
      %v8592 = vrot.slane %v8474, 6
      %v8594 = vsel %vm8212, %v8577, %v8592
      %v8595 = vmax.f32 %v8541, %v8556
      %v8596 = vmax.f32 %v8542, %v8558
      %v8597 = vmax.f32 %v8543, %v8560
      %v8598 = vmax.f32 %v8544, %v8562
      %v8599 = vmax.f32 %v8545, %v8564
      %v8600 = vmax.f32 %v8546, %v8566
      %v8601 = vmax.f32 %v8547, %v8568
      %v8602 = vmax.f32 %v8548, %v8570
      %v8603 = vmax.f32 %v8549, %v8572
      %v8604 = vmax.f32 %v8550, %v8574
      %v8605 = vmax.f32 %v8551, %v8576
      %v8606 = vmax.f32 %v8552, %v8578
      %v8607 = vmax.f32 %v8553, %v8594
      %v8608 = vld [vmem:[%s5 + $0x1] sm:$0x1]
      %v8609 = vperm.slane %v8608, 0
      %v8610 = vmul.f32 %v8595, %v8609
      %v8611 = vmul.f32 %v8596, %v8609
      %v8612 = vmul.f32 %v8597, %v8609
      %v8613 = vmul.f32 %v8598, %v8609
      %v8614 = vmul.f32 %v8599, %v8609
      %v8615 = vmul.f32 %v8600, %v8609
      %v8616 = vmul.f32 %v8601, %v8609
      %v8617 = vmul.f32 %v8602, %v8609
      %v8618 = vmul.f32 %v8603, %v8609
      %v8619 = vmul.f32 %v8604, %v8609
      %v8620 = vmul.f32 %v8605, %v8609
      %v8621 = vmul.f32 %v8606, %v8609
      %v8622 = vmul.f32 %v8607, %v8609
      %v8623 = vld [vmem:[%s5 + $0x2] sm:$0x1]
      %v8624 = vperm.slane %v8623, 0
      %v8625 = vadd.f32 %v8610, %v8624
      %v8626 = vadd.f32 %v8611, %v8624
      %v8627 = vadd.f32 %v8612, %v8624
      %v8628 = vadd.f32 %v8613, %v8624
      %v8629 = vadd.f32 %v8614, %v8624
      %v8630 = vadd.f32 %v8615, %v8624
      %v8631 = vadd.f32 %v8616, %v8624
      %v8632 = vadd.f32 %v8617, %v8624
      %v8633 = vadd.f32 %v8618, %v8624
      %v8634 = vadd.f32 %v8619, %v8624
      %v8635 = vadd.f32 %v8620, %v8624
      %v8636 = vadd.f32 %v8621, %v8624
      %v8637 = vadd.f32 %v8622, %v8624
      %vm8638 = vcmask 523264
      %8639 = vst.msk [vmem:[#allocation3] sm:$0xff] %vm8638, 0.0
      %8640 = vst.msk [vmem:[#allocation3 + $0x8] sm:$0xff] %vm8638, 0.0
      %8641 = vst.msk [vmem:[#allocation3 + $0x10] sm:$0xff] %vm8638, 0.0
      %8642 = vst.msk [vmem:[#allocation3 + $0x18] sm:$0xff] %vm8638, 0.0
      %8643 = vst.msk [vmem:[#allocation3 + $0x20] sm:$0xff] %vm8638, 0.0
      %8644 = vst.msk [vmem:[#allocation3 + $0x28] sm:$0xff] %vm8638, 0.0
      %8645 = vst.msk [vmem:[#allocation3 + $0x30] sm:$0xff] %vm8638, 0.0
      %8646 = vst.msk [vmem:[#allocation3 + $0x38] sm:$0xff] %vm8638, 0.0
      %8647 = vst.msk [vmem:[#allocation3 + $0x40] sm:$0xff] %vm8638, 0.0
      %8648 = vst.msk [vmem:[#allocation3 + $0x48] sm:$0xff] %vm8638, 0.0
      %8649 = vst.msk [vmem:[#allocation3 + $0x50] sm:$0xff] %vm8638, 0.0
      %8650 = vst.msk [vmem:[#allocation3 + $0x58] sm:$0xff] %vm8638, 0.0
      %8651 = vst.msk [vmem:[#allocation3 + $0x60] sm:$0xff] %vm8638, 0.0
      %8652 = vst.msk [vmem:[#allocation3 + $0x68] sm:$0xff] %vm8638, 0.0
      %8653 = vst.msk [vmem:[#allocation3 + $0x70] sm:$0xff] %vm8638, 0.0
      %8654 = vst.msk [vmem:[#allocation3 + $0x78] sm:$0xff] %vm8638, 0.0
      %8655 = vst.msk [vmem:[#allocation3] sm:$0xff] %vm8638, %v8625
      %8656 = vst.msk [vmem:[#allocation3 + $0x8] sm:$0xff] %vm8638, %v8626
      %8657 = vst.msk [vmem:[#allocation3 + $0x10] sm:$0xff] %vm8638, %v8627
      %vm8658 = vcmask 516096
      %8659 = vst.msk [vmem:[#allocation3 + $0x18] sm:$0x1] %vm8658, %v8628
      %vm8660 = vcmask 523265
      %8661 = vst.msk [vmem:[#allocation3 + $0x1f] sm:$0xfe] %vm8660, %v8628
      %8662 = vst.msk [vmem:[#allocation3 + $0x27] sm:$0xff] %vm8638, %v8629
      %8663 = vst.msk [vmem:[#allocation3 + $0x2f] sm:$0xff] %vm8638, %v8630
      %vm8664 = vcmask 517120
      %8665 = vst.msk [vmem:[#allocation3 + $0x37] sm:$0x3] %vm8664, %v8631
      %vm8666 = vcmask 523266
      %8667 = vst.msk [vmem:[#allocation3 + $0x3e] sm:$0xfc] %vm8666, %v8631
      %8668 = vst.msk [vmem:[#allocation3 + $0x46] sm:$0xff] %vm8638, %v8632
      %8669 = vst.msk [vmem:[#allocation3 + $0x4e] sm:$0xff] %vm8638, %v8633
      %vm8670 = vcmask 518144
      %8671 = vst.msk [vmem:[#allocation3 + $0x56] sm:$0x7] %vm8670, %v8634
      %vm8672 = vcmask 523267
      %8673 = vst.msk [vmem:[#allocation3 + $0x5d] sm:$0xf8] %vm8672, %v8634
      %8674 = vst.msk [vmem:[#allocation3 + $0x65] sm:$0xff] %vm8638, %v8635
      %8675 = vst.msk [vmem:[#allocation3 + $0x6d] sm:$0xff] %vm8638, %v8636
      %vm8676 = vcmask 519168
      %8677 = vst.msk [vmem:[#allocation3 + $0x75] sm:$0xf] %vm8676, %v8637
      %v8678 = vld [vmem:[#allocation3] ss:$2 sm:$0xff]
      %s8679 = scalar_lea.vmem [#allocation3], 16
      %v8680 = vld [vmem:[%s8679] ss:$2 sm:$0xff]
      %s8681 = scalar_lea.vmem [#allocation3], 32
      %v8682 = vld [vmem:[%s8681] ss:$2 sm:$0xff]
      %s8683 = scalar_lea.vmem [#allocation3], 48
      %v8684 = vld [vmem:[%s8683] ss:$2 sm:$0xff]
      %s8685 = scalar_lea.vmem [#allocation3], 64
      %v8686 = vld [vmem:[%s8685] ss:$2 sm:$0xff]
      %s8687 = scalar_lea.vmem [#allocation3], 80
      %v8688 = vld [vmem:[%s8687] ss:$2 sm:$0xff]
      %s8689 = scalar_lea.vmem [#allocation3], 96
      %v8690 = vld [vmem:[%s8689] ss:$2 sm:$0xff]
      %s8691 = scalar_lea.vmem [#allocation3], 112
      %v8692 = vld [vmem:[%s8691] ss:$2 sm:$0xff]
      %v8693 = vpack.c.bf16 %v8680, %v8678
      %v8694 = vpack.c.bf16 %v8684, %v8682
      %v8695 = vpack.c.bf16 %v8688, %v8686
      %v8696 = vpack.c.bf16 %v8692, %v8690
      %s8697 = scalar_lea.vmem [#allocation3], 1
      %v8698 = vld [vmem:[%s8697] ss:$2 sm:$0xff]
      %s8699 = scalar_lea.vmem [#allocation3], 17
      %v8700 = vld [vmem:[%s8699] ss:$2 sm:$0xff]
      %s8701 = scalar_lea.vmem [#allocation3], 33
      %v8702 = vld [vmem:[%s8701] ss:$2 sm:$0xff]
      %s8703 = scalar_lea.vmem [#allocation3], 49
      %v8704 = vld [vmem:[%s8703] ss:$2 sm:$0xff]
      %s8705 = scalar_lea.vmem [#allocation3], 65
      %v8706 = vld [vmem:[%s8705] ss:$2 sm:$0xff]
      %s8707 = scalar_lea.vmem [#allocation3], 81
      %v8708 = vld [vmem:[%s8707] ss:$2 sm:$0xff]
      %s8709 = scalar_lea.vmem [#allocation3], 97
      %v8710 = vld [vmem:[%s8709] ss:$2 sm:$0xff]
      %s8711 = scalar_lea.vmem [#allocation3], 113
      %v8712 = vld [vmem:[%s8711] ss:$2 sm:$0xff]
      %v8713 = vpack.c.bf16 %v8700, %v8698
      %v8714 = vpack.c.bf16 %v8704, %v8702
      %v8715 = vpack.c.bf16 %v8708, %v8706
      %v8716 = vpack.c.bf16 %v8712, %v8710
      %v8717 = vld [vmem:[%s6] sm:$0xf]
      %v8718 = vld [vmem:[%s6 + $0x4] sm:$0xf]
      %v8719 = vld [vmem:[%s6 + $0x8] sm:$0xf]
      %v8720 = vld [vmem:[%s6 + $0xc] sm:$0xf]
      %v8721 = vld [vmem:[%s6 + $0x10] sm:$0xf]
      %v8722 = vld [vmem:[%s6 + $0x14] sm:$0xf]
      %v8723 = vld [vmem:[%s6 + $0x18] sm:$0xf]
      %v8724 = vld [vmem:[%s6 + $0x1c] sm:$0xf]
      %v8733 = vunpack.c.l.b16 %v8717
      %v8734 = vunpack.c.l.b16 %v8718
      %v8735 = vunpack.c.l.b16 %v8719
      %v8736 = vunpack.c.l.b16 %v8720
      %v8737 = vunpack.c.l.b16 %v8721
      %v8738 = vunpack.c.l.b16 %v8722
      %v8739 = vunpack.c.l.b16 %v8723
      %v8740 = vunpack.c.l.b16 %v8724
      %v8741 = vpack.c.b16 %v8734, %v8733
      %v8742 = vpack.c.b16 %v8736, %v8735
      %v8743 = vpack.c.b16 %v8738, %v8737
      %v8744 = vpack.c.b16 %v8740, %v8739
      %v8750 = vsel %vm8638, %v8693, 0
      %v8753 = vsel %vm8638, %v8694, 0
      %v8756 = vsel %vm8638, %v8695, 0
      %v8759 = vsel %vm8638, %v8696, 0
      %8761 = vmatpush.bf16.msra.mxu0 0
      %8762 = vmatpush.bf16.msra.mxu0 0
      %8763 = vmatpush.bf16.msra.mxu0 0
      %8764 = vmatpush.bf16.msra.mxu0 0
      %8765 = vmatpush.bf16.msra.mxu0 %v8744
      %8766 = vmatpush.bf16.msra.mxu0 %v8743
      %8767 = vmatpush.bf16.msra.mxu0 %v8742
      %8768 = vmatpush.bf16.msra.mxu0 %v8741
      %8769 = vmatmul.bf16.gmra.mxu0 %v8750
      %v8770 = vpop.f32.mrf.mxu0
      %v8771 = vadd.f32 0.0, %v8770
      %v8772 = vpop.f32.mrf.mxu0
      %v8773 = vadd.f32 0.0, %v8772
      %8774 = vmatmul.bf16.gmra.mxu0 %v8753
      %v8775 = vpop.f32.mrf.mxu0
      %v8776 = vadd.f32 0.0, %v8775
      %v8777 = vpop.f32.mrf.mxu0
      %v8778 = vadd.f32 0.0, %v8777
      %8779 = vmatmul.bf16.gmra.mxu0 %v8756
      %v8780 = vpop.f32.mrf.mxu0
      %v8781 = vadd.f32 0.0, %v8780
      %v8782 = vpop.f32.mrf.mxu0
      %v8783 = vadd.f32 0.0, %v8782
      %8784 = vmatmul.bf16.gmra.mxu0 %v8759
      %v8785 = vpop.f32.mrf.mxu0
      %v8786 = vadd.f32 0.0, %v8785
      %v8787 = vpop.f32.mrf.mxu0
      %v8788 = vadd.f32 0.0, %v8787
      %8789 = vdwg.mxu0
      %v8790 = vld [vmem:[%s7] sm:$0xf]
      %v8791 = vld [vmem:[%s7 + $0x4] sm:$0xf]
      %v8792 = vld [vmem:[%s7 + $0x8] sm:$0xf]
      %v8793 = vld [vmem:[%s7 + $0xc] sm:$0xf]
      %v8794 = vld [vmem:[%s7 + $0x10] sm:$0xf]
      %v8795 = vld [vmem:[%s7 + $0x14] sm:$0xf]
      %v8796 = vld [vmem:[%s7 + $0x18] sm:$0xf]
      %v8797 = vld [vmem:[%s7 + $0x1c] sm:$0xf]
      %v8806 = vunpack.c.l.b16 %v8790
      %v8807 = vunpack.c.l.b16 %v8791
      %v8808 = vunpack.c.l.b16 %v8792
      %v8809 = vunpack.c.l.b16 %v8793
      %v8810 = vunpack.c.l.b16 %v8794
      %v8811 = vunpack.c.l.b16 %v8795
      %v8812 = vunpack.c.l.b16 %v8796
      %v8813 = vunpack.c.l.b16 %v8797
      %v8814 = vpack.c.b16 %v8807, %v8806
      %v8815 = vpack.c.b16 %v8809, %v8808
      %v8816 = vpack.c.b16 %v8811, %v8810
      %v8817 = vpack.c.b16 %v8813, %v8812
      %v8823 = vsel %vm8638, %v8713, 0
      %v8826 = vsel %vm8638, %v8714, 0
      %v8829 = vsel %vm8638, %v8715, 0
      %v8832 = vsel %vm8638, %v8716, 0
      %8834 = vmatpush.bf16.msra.mxu0 0
      %8835 = vmatpush.bf16.msra.mxu0 0
      %8836 = vmatpush.bf16.msra.mxu0 0
      %8837 = vmatpush.bf16.msra.mxu0 0
      %8838 = vmatpush.bf16.msra.mxu0 %v8817
      %8839 = vmatpush.bf16.msra.mxu0 %v8816
      %8840 = vmatpush.bf16.msra.mxu0 %v8815
      %8841 = vmatpush.bf16.msra.mxu0 %v8814
      %8842 = vmatmul.bf16.gmra.mxu0 %v8823
      %v8843 = vpop.f32.mrf.mxu0
      %v8844 = vadd.f32 0.0, %v8843
      %v8845 = vpop.f32.mrf.mxu0
      %v8846 = vadd.f32 0.0, %v8845
      %8847 = vmatmul.bf16.gmra.mxu0 %v8826
      %v8848 = vpop.f32.mrf.mxu0
      %v8849 = vadd.f32 0.0, %v8848
      %v8850 = vpop.f32.mrf.mxu0
      %v8851 = vadd.f32 0.0, %v8850
      %8852 = vmatmul.bf16.gmra.mxu0 %v8829
      %v8853 = vpop.f32.mrf.mxu0
      %v8854 = vadd.f32 0.0, %v8853
      %v8855 = vpop.f32.mrf.mxu0
      %v8856 = vadd.f32 0.0, %v8855
      %8857 = vmatmul.bf16.gmra.mxu0 %v8832
      %v8858 = vpop.f32.mrf.mxu0
      %v8859 = vadd.f32 0.0, %v8858
      %v8860 = vpop.f32.mrf.mxu0
      %v8861 = vadd.f32 0.0, %v8860
      %8862 = vdwg.mxu0
      %v8863 = vadd.f32 %v8771, %v8844
      %v8864 = vadd.f32 %v8773, %v8846
      %v8865 = vadd.f32 %v8776, %v8849
      %v8866 = vadd.f32 %v8778, %v8851
      %v8867 = vadd.f32 %v8781, %v8854
      %v8868 = vadd.f32 %v8783, %v8856
      %v8869 = vadd.f32 %v8786, %v8859
      %v8870 = vadd.f32 %v8788, %v8861
      %v8879 = vrot.slane %v8771, 1
      %v8880 = vrot.slane %v8773, 1
      %v8881 = vsel %vm6812, %v8879, %v8880
      %v8882 = vrot.slane %v8776, 1
      %v8883 = vsel %vm6812, %v8880, %v8882
      %v8884 = vrot.slane %v8778, 1
      %v8885 = vsel %vm6812, %v8882, %v8884
      %v8886 = vrot.slane %v8781, 1
      %v8887 = vsel %vm6812, %v8884, %v8886
      %v8888 = vrot.slane %v8783, 1
      %v8889 = vsel %vm6812, %v8886, %v8888
      %v8890 = vrot.slane %v8786, 1
      %v8891 = vsel %vm6812, %v8888, %v8890
      %v8892 = vrot.slane %v8788, 1
      %v8893 = vsel %vm6812, %v8890, %v8892
      %v8896 = vsel %vm6812, %v8892, %v8879
      %8898 = vrot.lane.b32.xlu0 %v8881, 96
      %v8899 = vpop.permute.xlu0 %8898
      %8900 = vrot.lane.b32.xlu0 %v8883, 96
      %v8901 = vpop.permute.xlu0 %8900
      %8902 = vrot.lane.b32.xlu0 %v8885, 96
      %v8903 = vpop.permute.xlu0 %8902
      %8904 = vrot.lane.b32.xlu0 %v8887, 96
      %v8905 = vpop.permute.xlu0 %8904
      %8906 = vrot.lane.b32.xlu0 %v8889, 96
      %v8907 = vpop.permute.xlu0 %8906
      %8908 = vrot.lane.b32.xlu0 %v8891, 96
      %v8909 = vpop.permute.xlu0 %8908
      %8910 = vrot.lane.b32.xlu0 %v8893, 96
      %v8911 = vpop.permute.xlu0 %8910
      %8912 = vrot.lane.b32.xlu0 %v8896, 96
      %v8913 = vpop.permute.xlu0 %8912
      %v8922 = vadd.f32 %v8863, %v8899
      %v8923 = vadd.f32 %v8864, %v8901
      %v8924 = vadd.f32 %v8865, %v8903
      %v8925 = vadd.f32 %v8866, %v8905
      %v8926 = vadd.f32 %v8867, %v8907
      %v8927 = vadd.f32 %v8868, %v8909
      %v8928 = vadd.f32 %v8869, %v8911
      %v8929 = vadd.f32 %v8870, %v8913
      %v8930 = vld [vmem:[%s8] sm:$0x1]
      %v8931 = vperm.slane %v8930, 0
      %v8932 = vadd.f32 %v8922, %v8931
      %v8933 = vadd.f32 %v8923, %v8931
      %v8934 = vadd.f32 %v8924, %v8931
      %v8935 = vadd.f32 %v8925, %v8931
      %v8936 = vadd.f32 %v8926, %v8931
      %v8937 = vadd.f32 %v8927, %v8931
      %v8938 = vadd.f32 %v8928, %v8931
      %v8939 = vadd.f32 %v8929, %v8931
      %v8940 = vmax.f32 %v8932, 0.0
      %v8941 = vmax.f32 %v8933, 0.0
      %v8942 = vmax.f32 %v8934, 0.0
      %v8943 = vmax.f32 %v8935, 0.0
      %v8944 = vmax.f32 %v8936, 0.0
      %v8945 = vmax.f32 %v8937, 0.0
      %v8946 = vmax.f32 %v8938, 0.0
      %v8947 = vmax.f32 %v8939, 0.0
      %v8956 = vrot.slane %v8940, 1
      %v8957 = vrot.slane %v8941, 1
      %v8958 = vsel %vm6812, %v8956, %v8957
      %v8959 = vrot.slane %v8942, 1
      %v8960 = vsel %vm6812, %v8957, %v8959
      %v8961 = vrot.slane %v8943, 1
      %v8962 = vsel %vm6812, %v8959, %v8961
      %v8963 = vrot.slane %v8944, 1
      %v8964 = vsel %vm6812, %v8961, %v8963
      %v8965 = vrot.slane %v8945, 1
      %v8966 = vsel %vm6812, %v8963, %v8965
      %v8967 = vrot.slane %v8946, 1
      %v8968 = vsel %vm6812, %v8965, %v8967
      %v8969 = vrot.slane %v8947, 1
      %v8970 = vsel %vm6812, %v8967, %v8969
      %v8980 = vsel %vm6812, %v8969, %v8956
      %v8981 = vmax.f32 %v8940, %v8958
      %v8982 = vmax.f32 %v8941, %v8960
      %v8983 = vmax.f32 %v8942, %v8962
      %v8984 = vmax.f32 %v8943, %v8964
      %v8985 = vmax.f32 %v8944, %v8966
      %v8986 = vmax.f32 %v8945, %v8968
      %v8987 = vmax.f32 %v8946, %v8970
      %v8988 = vmax.f32 %v8947, %v8980
      %v8989 = vrot.slane %v8940, 2
      %v8990 = vrot.slane %v8941, 2
      %v8991 = vsel %vm6939, %v8989, %v8990
      %v8992 = vrot.slane %v8942, 2
      %v8993 = vsel %vm6939, %v8990, %v8992
      %v8994 = vrot.slane %v8943, 2
      %v8995 = vsel %vm6939, %v8992, %v8994
      %v8996 = vrot.slane %v8944, 2
      %v8997 = vsel %vm6939, %v8994, %v8996
      %v8998 = vrot.slane %v8945, 2
      %v8999 = vsel %vm6939, %v8996, %v8998
      %v9000 = vrot.slane %v8946, 2
      %v9001 = vsel %vm6939, %v8998, %v9000
      %v9002 = vrot.slane %v8947, 2
      %v9003 = vsel %vm6939, %v9000, %v9002
      %v9013 = vsel %vm6939, %v9002, %v8989
      %v9014 = vmax.f32 %v8981, %v8991
      %v9015 = vmax.f32 %v8982, %v8993
      %v9016 = vmax.f32 %v8983, %v8995
      %v9017 = vmax.f32 %v8984, %v8997
      %v9018 = vmax.f32 %v8985, %v8999
      %v9019 = vmax.f32 %v8986, %v9001
      %v9020 = vmax.f32 %v8987, %v9003
      %v9021 = vmax.f32 %v8988, %v9013
      %v9022 = vld [vmem:[%s8 + $0x1] sm:$0x1]
      %v9023 = vperm.slane %v9022, 0
      %v9024 = vmul.f32 %v9014, %v9023
      %v9025 = vmul.f32 %v9015, %v9023
      %v9026 = vmul.f32 %v9016, %v9023
      %v9027 = vmul.f32 %v9017, %v9023
      %v9028 = vmul.f32 %v9018, %v9023
      %v9029 = vmul.f32 %v9019, %v9023
      %v9030 = vmul.f32 %v9020, %v9023
      %v9031 = vmul.f32 %v9021, %v9023
      %v9032 = vld [vmem:[%s8 + $0x2] sm:$0x1]
      %v9033 = vperm.slane %v9032, 0
      %v9034 = vadd.f32 %v9024, %v9033
      %v9035 = vadd.f32 %v9025, %v9033
      %v9036 = vadd.f32 %v9026, %v9033
      %v9037 = vadd.f32 %v9027, %v9033
      %v9038 = vadd.f32 %v9028, %v9033
      %v9039 = vadd.f32 %v9029, %v9033
      %v9040 = vadd.f32 %v9030, %v9033
      %v9041 = vadd.f32 %v9031, %v9033
      %v9042 = vld [vmem:[%s9] sm:$0xff]
      %v9043 = vld [vmem:[%s9 + $0x8] sm:$0xff]
      %v9044 = vld [vmem:[%s9 + $0x10] sm:$0xff]
      %v9045 = vld [vmem:[%s9 + $0x18] sm:$0xff]
      %v9046 = vld [vmem:[%s11] sm:$0x1]
      %v9048 = vperm.slane %v9046, 0
      %vm9050 = vcmask 261120
      %v9052 = vsel %vm9050, %v9034, 0
      %v9055 = vsel %vm9050, %v9035, 0
      %v9058 = vsel %vm9050, %v9036, 0
      %v9061 = vsel %vm9050, %v9037, 0
      %v9064 = vsel %vm9050, %v9038, 0
      %v9067 = vsel %vm9050, %v9039, 0
      %v9070 = vsel %vm9050, %v9040, 0
      %v9073 = vsel %vm9050, %v9041, 0
      %9075 = vmatpush.msra.mxu0 0.0
      %9076 = vmatpush.msra.mxu0 0.0
      %9077 = vmatpush.msra.mxu0 0.0
      %9078 = vmatpush.msra.mxu0 0.0
      %9079 = vmatpush.msra.mxu0 0.0
      %9080 = vmatpush.msra.mxu0 0.0
      %9081 = vmatpush.msra.mxu0 0.0
      %9082 = vmatpush.msra.mxu0 0.0
      %9083 = vmatpush.msra.mxu0 0.0
      %9084 = vmatpush.msra.mxu0 0.0
      %9085 = vmatpush.msra.mxu0 0.0
      %9086 = vmatpush.msra.mxu0 0.0
      %9087 = vmatpush.msra.mxu0 %v9045
      %9088 = vmatpush.msra.mxu0 %v9044
      %9089 = vmatpush.msra.mxu0 %v9043
      %9090 = vmatpush.msra.mxu0 %v9042
      %9091 = vmatmul.f32.gmra.mxu0 %v9052
      %v9092 = vpop.f32.mrf.mxu0
      %v9093 = vadd.f32 %v9048, %v9092
      %9094 = vmatmul.f32.gmra.mxu0 %v9055
      %v9095 = vpop.f32.mrf.mxu0
      %v9096 = vadd.f32 %v9048, %v9095
      %9097 = vmatmul.f32.gmra.mxu0 %v9058
      %v9098 = vpop.f32.mrf.mxu0
      %v9099 = vadd.f32 %v9048, %v9098
      %9100 = vmatmul.f32.gmra.mxu0 %v9061
      %v9101 = vpop.f32.mrf.mxu0
      %v9102 = vadd.f32 %v9048, %v9101
      %9103 = vmatmul.f32.gmra.mxu0 %v9064
      %v9104 = vpop.f32.mrf.mxu0
      %v9105 = vadd.f32 %v9048, %v9104
      %9106 = vmatmul.f32.gmra.mxu0 %v9067
      %v9107 = vpop.f32.mrf.mxu0
      %v9108 = vadd.f32 %v9048, %v9107
      %9109 = vmatmul.f32.gmra.mxu0 %v9070
      %v9110 = vpop.f32.mrf.mxu0
      %v9111 = vadd.f32 %v9048, %v9110
      %9112 = vmatmul.f32.gmra.mxu0 %v9073
      %v9113 = vpop.f32.mrf.mxu0
      %v9114 = vadd.f32 %v9048, %v9113
      %9115 = vdwg.mxu0
      %9116 = vst.msk [vmem:[#allocation4] sm:$0xff] %vm8638, %v9093
      %9117 = vst.msk [vmem:[#allocation4 + $0x8] sm:$0xff] %vm8638, %v9096
      %9118 = vst.msk [vmem:[#allocation4 + $0x10] sm:$0xff] %vm8638, %v9099
      %9119 = vst.msk [vmem:[#allocation4 + $0x18] sm:$0xff] %vm8638, %v9102
      %9120 = vst.msk [vmem:[#allocation4 + $0x20] sm:$0xff] %vm8638, %v9105
      %9121 = vst.msk [vmem:[#allocation4 + $0x28] sm:$0xff] %vm8638, %v9108
      %9122 = vst.msk [vmem:[#allocation4 + $0x30] sm:$0xff] %vm8638, %v9111
      %9123 = vst.msk [vmem:[#allocation4 + $0x38] sm:$0xff] %vm8638, %v9114
      %v9124 = vld [vmem:[%s10] sm:$0xff]
      %v9125 = vld [vmem:[%s10 + $0x8] sm:$0xff]
      %v9126 = vld [vmem:[#allocation4] ss:$16 sm:$0x3]
      %v9127 = vld [vmem:[#allocation4] ss:$16 sm:$0xc]
      %v9128 = vor.u32 %v9126, %v9127
      %vm9129 = vcmask 130048
      %v9131 = vsel %vm9129, 0.0, 0
      %9133 = vmatpush.msra.mxu0 0.0
      %9134 = vmatpush.msra.mxu0 0.0
      %9135 = vmatpush.msra.mxu0 0.0
      %9136 = vmatpush.msra.mxu0 0.0
      %9137 = vmatpush.msra.mxu0 0.0
      %9138 = vmatpush.msra.mxu0 0.0
      %9139 = vmatpush.msra.mxu0 0.0
      %9140 = vmatpush.msra.mxu0 0.0
      %9141 = vmatpush.msra.mxu0 0.0
      %9142 = vmatpush.msra.mxu0 0.0
      %9143 = vmatpush.msra.mxu0 0.0
      %9144 = vmatpush.msra.mxu0 0.0
      %9145 = vmatpush.msra.mxu0 0.0
      %9146 = vmatpush.msra.mxu0 0.0
      %9147 = vmatpush.msra.mxu0 %v9125
      %9148 = vmatpush.msra.mxu0 %v9124
      %9149 = vmatmul.f32.gmra.mxu0 %v9131
      %v9150 = vpop.f32.mrf.mxu0
      %v9151 = vadd.f32 0.0, %v9150
      %9152 = vdwg.mxu0
      %v9153 = vadd.f32 %v9128, %v9151
      %v9154 = vxor.u32 %v9153, 2147483648
      %v9155 = vmul.f32 %v9154, 1.442695
      %v9156 = vpow.pop %v9155
      %v9157 = vadd.f32 %v9156, 1.0
      %v9158 = vrcp.pop %v9157
      %v9159 = vmul.f32 %v9157, %v9158
      %v9160 = vsub.f32 1.0, %v9159
      %v9161 = vmul.f32 %v9158, %v9160
      %v9162 = vadd.f32 %v9158, %v9161
      %vm9163 = vweird.f32 %v9157
      %vm9164 = vweird.f32 %v9158
      %vm9165 = vmor %vm9163, %vm9164
      %v9166 = vsel %vm9165, %v9158, %v9162
      %v9167 = vand.u32 2147483647, %v9157
      %vm9168 = vcmp.eq.f32.partialorder %v9167, 8.507059e+37
      %v9169 = vand.u32 %v9157, 2147483648
      %v9170 = vor.u32 1.1754944e-38, %v9169
      %v9171 = vsel %vm9168, %v9170, %v9166
      %v9172 = vmul.f32 1.0, %v9171
      %v9173 = vtanh.pop %v9153
      %v9174 = vmul.f32 %v9172, 0.0
      %9176 = vrot.lane.b32.xlu0 %v9173, 96
      %v9177 = vpop.permute.xlu0 %9176
      %v9179 = vmul.f32 %v9172, %v9177
      %9181 = vrot.lane.b32.xlu0 %v9179, 16
      %v9182 = vpop.permute.xlu0 %9181
      %v9184 = vadd.f32 %v9174, %v9182
      %v9185 = vtanh.pop %v9184
      %9187 = vrot.lane.b32.xlu0 %v9185, 32
      %v9188 = vpop.permute.xlu0 %9187
      %v9190 = vmul.f32 %v9172, %v9188
      %s9191 = scalar_lea.vmem [#allocation4], 1
      %v9192 = vld [vmem:[%s9191] ss:$16 sm:$0x3]
      %v9193 = vld [vmem:[%s9191] ss:$16 sm:$0xc]
      %v9194 = vor.u32 %v9192, %v9193
      %9196 = vrot.lane.b32.xlu0 %v9190, 80
      %v9197 = vpop.permute.xlu0 %9196
      %v9198 = vsel %vm9129, %v9197, 0
      %9200 = vmatpush.msra.mxu0 0.0
      %9201 = vmatpush.msra.mxu0 0.0
      %9202 = vmatpush.msra.mxu0 0.0
      %9203 = vmatpush.msra.mxu0 0.0
      %9204 = vmatpush.msra.mxu0 0.0
      %9205 = vmatpush.msra.mxu0 0.0
      %9206 = vmatpush.msra.mxu0 0.0
      %9207 = vmatpush.msra.mxu0 0.0
      %9208 = vmatpush.msra.mxu0 0.0
      %9209 = vmatpush.msra.mxu0 0.0
      %9210 = vmatpush.msra.mxu0 0.0
      %9211 = vmatpush.msra.mxu0 0.0
      %9212 = vmatpush.msra.mxu0 0.0
      %9213 = vmatpush.msra.mxu0 0.0
      %9214 = vmatpush.msra.mxu0 %v9125
      %9215 = vmatpush.msra.mxu0 %v9124
      %9216 = vmatmul.f32.gmra.mxu0 %v9198
      %v9217 = vpop.f32.mrf.mxu0
      %v9218 = vadd.f32 0.0, %v9217
      %9219 = vdwg.mxu0
      %v9220 = vadd.f32 %v9194, %v9218
      %v9221 = vxor.u32 %v9220, 2147483648
      %v9222 = vmul.f32 %v9221, 1.442695
      %v9223 = vpow.pop %v9222
      %v9224 = vadd.f32 %v9223, 1.0
      %v9225 = vrcp.pop %v9224
      %v9226 = vmul.f32 %v9224, %v9225
      %v9227 = vsub.f32 1.0, %v9226
      %v9228 = vmul.f32 %v9225, %v9227
      %v9229 = vadd.f32 %v9225, %v9228
      %vm9230 = vweird.f32 %v9224
      %vm9231 = vweird.f32 %v9225
      %vm9232 = vmor %vm9230, %vm9231
      %v9233 = vsel %vm9232, %v9225, %v9229
      %v9234 = vand.u32 2147483647, %v9224
      %vm9235 = vcmp.eq.f32.partialorder %v9234, 8.507059e+37
      %v9236 = vand.u32 %v9224, 2147483648
      %v9237 = vor.u32 1.1754944e-38, %v9236
      %v9238 = vsel %vm9235, %v9237, %v9233
      %v9239 = vmul.f32 1.0, %v9238
      %v9240 = vtanh.pop %v9220
      %v9241 = vmul.f32 %v9239, %v9184
      %9243 = vrot.lane.b32.xlu0 %v9240, 96
      %v9244 = vpop.permute.xlu0 %9243
      %v9246 = vmul.f32 %v9239, %v9244
      %9248 = vrot.lane.b32.xlu0 %v9246, 16
      %v9249 = vpop.permute.xlu0 %9248
      %v9251 = vadd.f32 %v9241, %v9249
      %v9252 = vtanh.pop %v9251
      %9254 = vrot.lane.b32.xlu0 %v9252, 32
      %v9255 = vpop.permute.xlu0 %9254
      %v9257 = vmul.f32 %v9239, %v9255
      %s9258 = scalar_lea.vmem [#allocation4], 2
      %v9259 = vld [vmem:[%s9258] ss:$16 sm:$0x3]
      %v9260 = vld [vmem:[%s9258] ss:$16 sm:$0xc]
      %v9261 = vor.u32 %v9259, %v9260
      %9263 = vrot.lane.b32.xlu0 %v9257, 80
      %v9264 = vpop.permute.xlu0 %9263
      %v9265 = vsel %vm9129, %v9264, 0
      %9267 = vmatpush.msra.mxu0 0.0
      %9268 = vmatpush.msra.mxu0 0.0
      %9269 = vmatpush.msra.mxu0 0.0
      %9270 = vmatpush.msra.mxu0 0.0
      %9271 = vmatpush.msra.mxu0 0.0
      %9272 = vmatpush.msra.mxu0 0.0
      %9273 = vmatpush.msra.mxu0 0.0
      %9274 = vmatpush.msra.mxu0 0.0
      %9275 = vmatpush.msra.mxu0 0.0
      %9276 = vmatpush.msra.mxu0 0.0
      %9277 = vmatpush.msra.mxu0 0.0
      %9278 = vmatpush.msra.mxu0 0.0
      %9279 = vmatpush.msra.mxu0 0.0
      %9280 = vmatpush.msra.mxu0 0.0
      %9281 = vmatpush.msra.mxu0 %v9125
      %9282 = vmatpush.msra.mxu0 %v9124
      %9283 = vmatmul.f32.gmra.mxu0 %v9265
      %v9284 = vpop.f32.mrf.mxu0
      %v9285 = vadd.f32 0.0, %v9284
      %9286 = vdwg.mxu0
      %v9287 = vadd.f32 %v9261, %v9285
      %v9288 = vxor.u32 %v9287, 2147483648
      %v9289 = vmul.f32 %v9288, 1.442695
      %v9290 = vpow.pop %v9289
      %v9291 = vadd.f32 %v9290, 1.0
      %v9292 = vrcp.pop %v9291
      %v9293 = vmul.f32 %v9291, %v9292
      %v9294 = vsub.f32 1.0, %v9293
      %v9295 = vmul.f32 %v9292, %v9294
      %v9296 = vadd.f32 %v9292, %v9295
      %vm9297 = vweird.f32 %v9291
      %vm9298 = vweird.f32 %v9292
      %vm9299 = vmor %vm9297, %vm9298
      %v9300 = vsel %vm9299, %v9292, %v9296
      %v9301 = vand.u32 2147483647, %v9291
      %vm9302 = vcmp.eq.f32.partialorder %v9301, 8.507059e+37
      %v9303 = vand.u32 %v9291, 2147483648
      %v9304 = vor.u32 1.1754944e-38, %v9303
      %v9305 = vsel %vm9302, %v9304, %v9300
      %v9306 = vmul.f32 1.0, %v9305
      %v9307 = vtanh.pop %v9287
      %v9308 = vmul.f32 %v9306, %v9251
      %9310 = vrot.lane.b32.xlu0 %v9307, 96
      %v9311 = vpop.permute.xlu0 %9310
      %v9313 = vmul.f32 %v9306, %v9311
      %9315 = vrot.lane.b32.xlu0 %v9313, 16
      %v9316 = vpop.permute.xlu0 %9315
      %v9318 = vadd.f32 %v9308, %v9316
      %v9319 = vtanh.pop %v9318
      %9321 = vrot.lane.b32.xlu0 %v9319, 32
      %v9322 = vpop.permute.xlu0 %9321
      %v9324 = vmul.f32 %v9306, %v9322
      %s9325 = scalar_lea.vmem [#allocation4], 3
      %v9326 = vld [vmem:[%s9325] ss:$16 sm:$0x3]
      %v9327 = vld [vmem:[%s9325] ss:$16 sm:$0xc]
      %v9328 = vor.u32 %v9326, %v9327
      %9330 = vrot.lane.b32.xlu0 %v9324, 80
      %v9331 = vpop.permute.xlu0 %9330
      %v9332 = vsel %vm9129, %v9331, 0
      %9334 = vmatpush.msra.mxu0 0.0
      %9335 = vmatpush.msra.mxu0 0.0
      %9336 = vmatpush.msra.mxu0 0.0
      %9337 = vmatpush.msra.mxu0 0.0
      %9338 = vmatpush.msra.mxu0 0.0
      %9339 = vmatpush.msra.mxu0 0.0
      %9340 = vmatpush.msra.mxu0 0.0
      %9341 = vmatpush.msra.mxu0 0.0
      %9342 = vmatpush.msra.mxu0 0.0
      %9343 = vmatpush.msra.mxu0 0.0
      %9344 = vmatpush.msra.mxu0 0.0
      %9345 = vmatpush.msra.mxu0 0.0
      %9346 = vmatpush.msra.mxu0 0.0
      %9347 = vmatpush.msra.mxu0 0.0
      %9348 = vmatpush.msra.mxu0 %v9125
      %9349 = vmatpush.msra.mxu0 %v9124
      %9350 = vmatmul.f32.gmra.mxu0 %v9332
      %v9351 = vpop.f32.mrf.mxu0
      %v9352 = vadd.f32 0.0, %v9351
      %9353 = vdwg.mxu0
      %v9354 = vadd.f32 %v9328, %v9352
      %v9355 = vxor.u32 %v9354, 2147483648
      %v9356 = vmul.f32 %v9355, 1.442695
      %v9357 = vpow.pop %v9356
      %v9358 = vadd.f32 %v9357, 1.0
      %v9359 = vrcp.pop %v9358
      %v9360 = vmul.f32 %v9358, %v9359
      %v9361 = vsub.f32 1.0, %v9360
      %v9362 = vmul.f32 %v9359, %v9361
      %v9363 = vadd.f32 %v9359, %v9362
      %vm9364 = vweird.f32 %v9358
      %vm9365 = vweird.f32 %v9359
      %vm9366 = vmor %vm9364, %vm9365
      %v9367 = vsel %vm9366, %v9359, %v9363
      %v9368 = vand.u32 2147483647, %v9358
      %vm9369 = vcmp.eq.f32.partialorder %v9368, 8.507059e+37
      %v9370 = vand.u32 %v9358, 2147483648
      %v9371 = vor.u32 1.1754944e-38, %v9370
      %v9372 = vsel %vm9369, %v9371, %v9367
      %v9373 = vmul.f32 1.0, %v9372
      %v9374 = vtanh.pop %v9354
      %v9375 = vmul.f32 %v9373, %v9318
      %9377 = vrot.lane.b32.xlu0 %v9374, 96
      %v9378 = vpop.permute.xlu0 %9377
      %v9380 = vmul.f32 %v9373, %v9378
      %9382 = vrot.lane.b32.xlu0 %v9380, 16
      %v9383 = vpop.permute.xlu0 %9382
      %v9385 = vadd.f32 %v9375, %v9383
      %v9386 = vtanh.pop %v9385
      %9388 = vrot.lane.b32.xlu0 %v9386, 32
      %v9389 = vpop.permute.xlu0 %9388
      %v9391 = vmul.f32 %v9373, %v9389
      %s9392 = scalar_lea.vmem [#allocation4], 4
      %v9393 = vld [vmem:[%s9392] ss:$16 sm:$0x3]
      %v9394 = vld [vmem:[%s9392] ss:$16 sm:$0xc]
      %v9395 = vor.u32 %v9393, %v9394
      %9397 = vrot.lane.b32.xlu0 %v9391, 80
      %v9398 = vpop.permute.xlu0 %9397
      %v9399 = vsel %vm9129, %v9398, 0
      %9401 = vmatpush.msra.mxu0 0.0
      %9402 = vmatpush.msra.mxu0 0.0
      %9403 = vmatpush.msra.mxu0 0.0
      %9404 = vmatpush.msra.mxu0 0.0
      %9405 = vmatpush.msra.mxu0 0.0
      %9406 = vmatpush.msra.mxu0 0.0
      %9407 = vmatpush.msra.mxu0 0.0
      %9408 = vmatpush.msra.mxu0 0.0
      %9409 = vmatpush.msra.mxu0 0.0
      %9410 = vmatpush.msra.mxu0 0.0
      %9411 = vmatpush.msra.mxu0 0.0
      %9412 = vmatpush.msra.mxu0 0.0
      %9413 = vmatpush.msra.mxu0 0.0
      %9414 = vmatpush.msra.mxu0 0.0
      %9415 = vmatpush.msra.mxu0 %v9125
      %9416 = vmatpush.msra.mxu0 %v9124
      %9417 = vmatmul.f32.gmra.mxu0 %v9399
      %v9418 = vpop.f32.mrf.mxu0
      %v9419 = vadd.f32 0.0, %v9418
      %9420 = vdwg.mxu0
      %v9421 = vadd.f32 %v9395, %v9419
      %v9422 = vxor.u32 %v9421, 2147483648
      %v9423 = vmul.f32 %v9422, 1.442695
      %v9424 = vpow.pop %v9423
      %v9425 = vadd.f32 %v9424, 1.0
      %v9426 = vrcp.pop %v9425
      %v9427 = vmul.f32 %v9425, %v9426
      %v9428 = vsub.f32 1.0, %v9427
      %v9429 = vmul.f32 %v9426, %v9428
      %v9430 = vadd.f32 %v9426, %v9429
      %vm9431 = vweird.f32 %v9425
      %vm9432 = vweird.f32 %v9426
      %vm9433 = vmor %vm9431, %vm9432
      %v9434 = vsel %vm9433, %v9426, %v9430
      %v9435 = vand.u32 2147483647, %v9425
      %vm9436 = vcmp.eq.f32.partialorder %v9435, 8.507059e+37
      %v9437 = vand.u32 %v9425, 2147483648
      %v9438 = vor.u32 1.1754944e-38, %v9437
      %v9439 = vsel %vm9436, %v9438, %v9434
      %v9440 = vmul.f32 1.0, %v9439
      %v9441 = vtanh.pop %v9421
      %v9442 = vmul.f32 %v9440, %v9385
      %9444 = vrot.lane.b32.xlu0 %v9441, 96
      %v9445 = vpop.permute.xlu0 %9444
      %v9447 = vmul.f32 %v9440, %v9445
      %9449 = vrot.lane.b32.xlu0 %v9447, 16
      %v9450 = vpop.permute.xlu0 %9449
      %v9452 = vadd.f32 %v9442, %v9450
      %v9453 = vtanh.pop %v9452
      %9455 = vrot.lane.b32.xlu0 %v9453, 32
      %v9456 = vpop.permute.xlu0 %9455
      %v9458 = vmul.f32 %v9440, %v9456
      %s9459 = scalar_lea.vmem [#allocation4], 5
      %v9460 = vld [vmem:[%s9459] ss:$16 sm:$0x3]
      %v9461 = vld [vmem:[%s9459] ss:$16 sm:$0xc]
      %v9462 = vor.u32 %v9460, %v9461
      %9464 = vrot.lane.b32.xlu0 %v9458, 80
      %v9465 = vpop.permute.xlu0 %9464
      %v9466 = vsel %vm9129, %v9465, 0
      %9468 = vmatpush.msra.mxu0 0.0
      %9469 = vmatpush.msra.mxu0 0.0
      %9470 = vmatpush.msra.mxu0 0.0
      %9471 = vmatpush.msra.mxu0 0.0
      %9472 = vmatpush.msra.mxu0 0.0
      %9473 = vmatpush.msra.mxu0 0.0
      %9474 = vmatpush.msra.mxu0 0.0
      %9475 = vmatpush.msra.mxu0 0.0
      %9476 = vmatpush.msra.mxu0 0.0
      %9477 = vmatpush.msra.mxu0 0.0
      %9478 = vmatpush.msra.mxu0 0.0
      %9479 = vmatpush.msra.mxu0 0.0
      %9480 = vmatpush.msra.mxu0 0.0
      %9481 = vmatpush.msra.mxu0 0.0
      %9482 = vmatpush.msra.mxu0 %v9125
      %9483 = vmatpush.msra.mxu0 %v9124
      %9484 = vmatmul.f32.gmra.mxu0 %v9466
      %v9485 = vpop.f32.mrf.mxu0
      %v9486 = vadd.f32 0.0, %v9485
      %9487 = vdwg.mxu0
      %v9488 = vadd.f32 %v9462, %v9486
      %v9489 = vxor.u32 %v9488, 2147483648
      %v9490 = vmul.f32 %v9489, 1.442695
      %v9491 = vpow.pop %v9490
      %v9492 = vadd.f32 %v9491, 1.0
      %v9493 = vrcp.pop %v9492
      %v9494 = vmul.f32 %v9492, %v9493
      %v9495 = vsub.f32 1.0, %v9494
      %v9496 = vmul.f32 %v9493, %v9495
      %v9497 = vadd.f32 %v9493, %v9496
      %vm9498 = vweird.f32 %v9492
      %vm9499 = vweird.f32 %v9493
      %vm9500 = vmor %vm9498, %vm9499
      %v9501 = vsel %vm9500, %v9493, %v9497
      %v9502 = vand.u32 2147483647, %v9492
      %vm9503 = vcmp.eq.f32.partialorder %v9502, 8.507059e+37
      %v9504 = vand.u32 %v9492, 2147483648
      %v9505 = vor.u32 1.1754944e-38, %v9504
      %v9506 = vsel %vm9503, %v9505, %v9501
      %v9507 = vmul.f32 1.0, %v9506
      %v9508 = vtanh.pop %v9488
      %v9509 = vmul.f32 %v9507, %v9452
      %9511 = vrot.lane.b32.xlu0 %v9508, 96
      %v9512 = vpop.permute.xlu0 %9511
      %v9514 = vmul.f32 %v9507, %v9512
      %9516 = vrot.lane.b32.xlu0 %v9514, 16
      %v9517 = vpop.permute.xlu0 %9516
      %v9519 = vadd.f32 %v9509, %v9517
      %v9520 = vtanh.pop %v9519
      %9522 = vrot.lane.b32.xlu0 %v9520, 32
      %v9523 = vpop.permute.xlu0 %9522
      %v9525 = vmul.f32 %v9507, %v9523
      %9527 = vrot.lane.b32.xlu0 %v9257, 96
      %v9528 = vpop.permute.xlu0 %9527
      %9530 = vrot.lane.b32.xlu0 %v9324, 112
      %v9531 = vpop.permute.xlu0 %9530
      %9533 = vrot.lane.b32.xlu0 %v9458, 16
      %v9534 = vpop.permute.xlu0 %9533
      %9537 = vrot.lane.b32.xlu0 %v9525, 32
      %v9538 = vpop.permute.xlu0 %9537
      %v9540 = vsel %vm9129, %v9197, %v9528
      %v9541 = vsel %vm9050, %v9540, %v9531
      %vm9542 = vcmask 392192
      %v9543 = vsel %vm9542, %v9541, %v9391
      %v9544 = vsel %vm8638, %v9543, %v9534
      %vm9545 = vcmask 654336
      %v9546 = vsel %vm9545, %v9544, %v9538
      %v9547 = vld [vmem:[%s12] sm:$0xff]
      %v9548 = vld [vmem:[%s12 + $0x8] sm:$0xff]
      %v9549 = vld [vmem:[%s12 + $0x10] sm:$0xff]
      %v9550 = vld [vmem:[%s12 + $0x18] sm:$0xff]
      %v9551 = vld [vmem:[%s12 + $0x20] sm:$0xff]
      %v9552 = vld [vmem:[%s12 + $0x28] sm:$0xff]
      %v9553 = vld [vmem:[%s12 + $0x30] sm:$0xff]
      %v9554 = vld [vmem:[%s12 + $0x38] sm:$0xff]
      %v9555 = vld [vmem:[%s12 + $0x40] sm:$0xff]
      %v9556 = vld [vmem:[%s12 + $0x48] sm:$0xff]
      %v9557 = vld [vmem:[%s12 + $0x50] sm:$0xff]
      %v9558 = vld [vmem:[%s12 + $0x58] sm:$0xff]
      %v9559 = vld [vmem:[%s13] sm:$0x1]
      %v9561 = vperm.slane %v9559, 0
      %vm9563 = vcmask 785408
      %v9565 = vsel %vm9563, %v9546, 0
      %9567 = vmatpush.msra.mxu0 0.0
      %9568 = vmatpush.msra.mxu0 0.0
      %9569 = vmatpush.msra.mxu0 0.0
      %9570 = vmatpush.msra.mxu0 0.0
      %9571 = vmatpush.msra.mxu0 %v9558
      %9572 = vmatpush.msra.mxu0 %v9557
      %9573 = vmatpush.msra.mxu0 %v9556
      %9574 = vmatpush.msra.mxu0 %v9555
      %9575 = vmatpush.msra.mxu0 %v9554
      %9576 = vmatpush.msra.mxu0 %v9553
      %9577 = vmatpush.msra.mxu0 %v9552
      %9578 = vmatpush.msra.mxu0 %v9551
      %9579 = vmatpush.msra.mxu0 %v9550
      %9580 = vmatpush.msra.mxu0 %v9549
      %9581 = vmatpush.msra.mxu0 %v9548
      %9582 = vmatpush.msra.mxu0 %v9547
      %9583 = vmatmul.f32.gmra.mxu0 %v9565
      %v9584 = vpop.f32.mrf.mxu0
      %v9585 = vadd.f32 %v9561, %v9584
      %9586 = vdwg.mxu0
      %v9587 = vmax.f32 %v9585, 0.0
      %v9588 = vld [vmem:[%s14] sm:$0xff]
      %v9589 = vld [vmem:[%s14 + $0x8] sm:$0xff]
      %v9590 = vld [vmem:[%s14 + $0x10] sm:$0xff]
      %v9591 = vld [vmem:[%s14 + $0x18] sm:$0xff]
      %v9592 = vld [vmem:[%s14 + $0x20] sm:$0xff]
      %v9593 = vld [vmem:[%s14 + $0x28] sm:$0xff]
      %v9594 = vld [vmem:[%s14 + $0x30] sm:$0xff]
      %v9595 = vld [vmem:[%s14 + $0x38] sm:$0xff]
      %v9596 = vld [vmem:[#allocation5] sm:$0x1]
      %v9598 = vperm.slane %v9596, 0
      %v9601 = vsel %vm8638, %v9587, 0
      %9603 = vmatpush.msra.mxu0 0.0
      %9604 = vmatpush.msra.mxu0 0.0
      %9605 = vmatpush.msra.mxu0 0.0
      %9606 = vmatpush.msra.mxu0 0.0
      %9607 = vmatpush.msra.mxu0 0.0
      %9608 = vmatpush.msra.mxu0 0.0
      %9609 = vmatpush.msra.mxu0 0.0
      %9610 = vmatpush.msra.mxu0 0.0
      %9611 = vmatpush.msra.mxu0 %v9595
      %9612 = vmatpush.msra.mxu0 %v9594
      %9613 = vmatpush.msra.mxu0 %v9593
      %9614 = vmatpush.msra.mxu0 %v9592
      %9615 = vmatpush.msra.mxu0 %v9591
      %9616 = vmatpush.msra.mxu0 %v9590
      %9617 = vmatpush.msra.mxu0 %v9589
      %9618 = vmatpush.msra.mxu0 %v9588
      %9619 = vmatmul.f32.gmra.mxu0 %v9601
      %v9620 = vpop.f32.mrf.mxu0
      %v9621 = vadd.f32 %v9598, %v9620
      %9622 = vdwg.mxu0
      %v9623 = vxor.u32 %v9621, 2147483648
      %v9624 = vmul.f32 %v9623, 1.442695
      %v9625 = vpow.pop %v9624
      %v9626 = vadd.f32 %v9625, 1.0
      %v9627 = vrcp.pop %v9626
      %v9628 = vmul.f32 %v9626, %v9627
      %v9629 = vsub.f32 1.0, %v9628
      %v9630 = vmul.f32 %v9627, %v9629
      %v9631 = vadd.f32 %v9627, %v9630
      %vm9632 = vweird.f32 %v9626
      %vm9633 = vweird.f32 %v9627
      %vm9634 = vmor %vm9632, %vm9633
      %v9635 = vsel %vm9634, %v9627, %v9631
      %v9636 = vand.u32 2147483647, %v9626
      %vm9637 = vcmp.eq.f32.partialorder %v9636, 8.507059e+37
      %v9638 = vand.u32 %v9626, 2147483648
      %v9639 = vor.u32 1.1754944e-38, %v9638
      %v9640 = vsel %vm9637, %v9639, %v9635
      %v9641 = vmul.f32 1.0, %v9640
      %vm9642 = vcmask 3072
      %9643 = vst.msk [vmem:[%s521] sm:$0xf] %vm9642, %v9641
      %p9644 = scmp.lt.s32.totalorder %s29, 1
      %s9645 = scalar_select %p9644, %s29, 1
      %s9646 = smul.addr %s9645, 4
      %s9647 = scalar_lea.vmem %s16, %s9646
      // Predicated region
      $region85: #{bert_base_lstm_net1_forward.1} parent=83 // pred_check
        %p9648 = pneg %p388
      $region86: #{bert_base_lstm_net1_forward.1} parent=83 // pred_check_branch
        %9650 = sbr.rel (%p9648) target = $region88
      $region87: #{bert_base_lstm_net1_forward.1} parent=83 // pred_region
        _
      $region88: #{bert_base_lstm_net1_forward.1} parent=83 // pred_fallthru
        _
    $region84: #{bert_base_lstm_net1_forward.1} parent=5 // pred_fallthru
      _
    %p9651 = scmp.le.s32.totalorder 2, %s24
    // Predicated region
    $region89: #{bert_base_lstm_net1_forward.1} parent=5 // pred_check
      %p9652 = pneg %p9651
    $region90: #{bert_base_lstm_net1_forward.1} parent=5 // pred_check_branch
      %9654 = sbr.rel (%p9652) target = $region92
    $region91: #{bert_base_lstm_net1_forward.1} parent=5 // pred_region
      %s9655 = ssub.s32 %s24, 2
      // Predicated region
      $region93: #{bert_base_lstm_net1_forward.1} parent=91 // pred_check
        %p9656 = pneg %p394
      $region94: #{bert_base_lstm_net1_forward.1} parent=91 // pred_check_branch
        %9658 = sbr.rel (%p9656) target = $region96
      $region95: #{bert_base_lstm_net1_forward.1} parent=91 // pred_region
        %p9659 = scmp.lt.s32.totalorder %s30, 1
        %s9660 = scalar_select %p9659, %s30, 1
        %s9661 = smul.addr %s9660, 4
        %s9662 = scalar_lea.vmem %s16, %s9661
      $region96: #{bert_base_lstm_net1_forward.1} parent=91 // pred_fallthru
        _
    $region92: #{bert_base_lstm_net1_forward.1} parent=5 // pred_fallthru
      _
  $region6: #{bert_base_lstm_net1_forward.1} parent=0 // loop_footer
    %s28 = sadd.s32 1, %s24
  $region7: #{bert_base_lstm_net1_forward.1} parent=0 // loop_footer_branch
    %23 = sbr.rel target = $region3
  $region8: #{bert_base_lstm_net1_forward.1} parent=0 // loop_exit
    _

</llo_original>
